<compile_context>
chip_gen: v6e
topology: v6e:2x2x1
jax: 0.10.0
libtpu: 0.0.40
codegen_flags: <defaults>
</compile_context>

<pallas_src>
import functools

import jax
import jax.numpy as jnp
from jax.experimental import pallas as pl
from jax.experimental.pallas import tpu as pltpu

LANE = 128


def _round_up(x, m):
    return ((x + m - 1) // m) * m


# ---------------------------------------------------------------------------
# Pallas kernel: tiled  out = relu?(x @ w + b)   (N already lane-dense)
# ---------------------------------------------------------------------------
def _matmul_bias_kernel(x_ref, w_ref, b_ref, o_ref, *, relu):
    acc = jnp.dot(x_ref[...], w_ref[...], preferred_element_type=jnp.float32)
    acc = acc + b_ref[...]                      # (1, N) broadcasts over rows
    if relu:
        acc = jnp.maximum(acc, 0.0)
    o_ref[...] = acc.astype(o_ref.dtype)


def matmul_bias(x, w, b2, *, relu, num_m_blocks=1):
    """x: (M, K) f32; w: (K, N) f32 with N % 128 == 0; b2: (1, N) f32.

    Returns the padded (m_pad, N) result; caller slices rows/lanes it needs.
    """
    M, K = x.shape
    Kw, N = w.shape
    assert Kw == K and N % LANE == 0
    tm = _round_up(pl.cdiv(M, num_m_blocks), 8)
    m_pad = tm * num_m_blocks
    if m_pad != M:
        x = jnp.pad(x, ((0, m_pad - M), (0, 0)))

    cost = pl.CostEstimate(
        flops=2 * m_pad * K * N,
        transcendentals=0,
        bytes_accessed=4 * (m_pad * K + K * N + N + m_pad * N),
    )
    out = pl.pallas_call(
        functools.partial(_matmul_bias_kernel, relu=relu),
        out_shape=jax.ShapeDtypeStruct((m_pad, N), jnp.float32),
        grid=(num_m_blocks,),
        in_specs=[
            pl.BlockSpec((tm, K), lambda i: (i, 0)),   # activations, tiled over M
            pl.BlockSpec((K, N), lambda i: (0, 0)),    # full weight, resident
            pl.BlockSpec((1, N), lambda i: (0, 0)),    # bias row
        ],
        out_specs=pl.BlockSpec((tm, N), lambda i: (i, 0)),
        compiler_params=pltpu.CompilerParams(dimension_semantics=("parallel",)),
        cost_estimate=cost,
    )(x, w, b2)
    return out


# ---------------------------------------------------------------------------
# Pallas kernel: fused  feats -> relu(feats@fc_w + fc_b) -> @[actor|critic]+b
# ---------------------------------------------------------------------------
def _head_kernel(x_ref, fcw_ref, fcb_ref, hw_ref, hb_ref, o_ref):
    h = jnp.dot(x_ref[...], fcw_ref[...], preferred_element_type=jnp.float32)
    h = jnp.maximum(h + fcb_ref[...], 0.0)
    out = jnp.dot(h, hw_ref[...], preferred_element_type=jnp.float32) + hb_ref[...]
    o_ref[...] = out.astype(o_ref.dtype)


def fused_heads(feats, fc_w, fc_b2, head_w, head_b2):
    B, K = feats.shape            # (B, 1920)
    _, H = fc_w.shape             # 512
    _, N = head_w.shape           # 128 (lane-dense, = out_dim + 1 + zero pad)
    b_pad = _round_up(B, 8)
    if b_pad != B:
        feats = jnp.pad(feats, ((0, b_pad - B), (0, 0)))

    cost = pl.CostEstimate(
        flops=2 * b_pad * K * H + 2 * b_pad * H * N,
        transcendentals=0,
        bytes_accessed=4 * (b_pad * K + K * H + H + H * N + N + b_pad * N),
    )
    out = pl.pallas_call(
        _head_kernel,
        out_shape=jax.ShapeDtypeStruct((b_pad, N), jnp.float32),
        grid=(1,),
        in_specs=[
            pl.BlockSpec((b_pad, K), lambda i: (0, 0)),
            pl.BlockSpec((K, H), lambda i: (0, 0)),
            pl.BlockSpec((1, H), lambda i: (0, 0)),
            pl.BlockSpec((H, N), lambda i: (0, 0)),
            pl.BlockSpec((1, N), lambda i: (0, 0)),
        ],
        out_specs=pl.BlockSpec((b_pad, N), lambda i: (0, 0)),
        compiler_params=pltpu.CompilerParams(dimension_semantics=("arbitrary",)),
        cost_estimate=cost,
    )(feats, fc_w, fc_b2, head_w, head_b2)
    return out[:B]


# ---------------------------------------------------------------------------
# Conv2d (valid padding, square kernel, stride s) via im2col + Pallas matmul
# ---------------------------------------------------------------------------
# TODO(synk): the strided im2col patch gather stays in XLA; in-kernel strided
# sublane slicing is not cleanly expressible in Pallas TPU for these shapes.
def _im2col(x, k, s):
    # x: (B, H, W, C) -> (B*Ho*Wo, C*k*k), patch features ordered (c, kh, kw)
    # to match the PyTorch Conv2d weight layout (C_out, C_in, KH, KW).
    B, H, W, C = x.shape
    Ho = (H - k) // s + 1
    Wo = (W - k) // s + 1
    slices = [x[:, i:i + s * Ho:s, j:j + s * Wo:s, :]
              for i in range(k) for j in range(k)]           # each (B, Ho, Wo, C)
    patches = jnp.stack(slices, axis=-1)                     # (B, Ho, Wo, C, k*k)
    patches = patches.reshape(B * Ho * Wo, C * k * k)
    return patches, Ho, Wo


def conv2d(x, w_mat, b2, k, s, c_out, *, relu, num_m_blocks=1):
    # x: (B, H, W, C_in) NHWC; w_mat: (C_in*k*k, 128) lane-padded; b2: (1, 128)
    cols, Ho, Wo = _im2col(x, k, s)
    M = cols.shape[0]
    out = matmul_bias(cols, w_mat, b2, relu=relu, num_m_blocks=num_m_blocks)
    out = out[:M, :c_out]                                    # drop pad rows/lanes
    return out.reshape(x.shape[0], Ho, Wo, c_out)


# ---------------------------------------------------------------------------
# A2CNetwork forward
# ---------------------------------------------------------------------------
def a2c_forward(q, x_nchw, output_dim):
    x = jnp.transpose(x_nchw, (0, 2, 3, 1))                  # NCHW -> NHWC (once)
    x = conv2d(x, q["c1_w"], q["c1_b"], 4, 3, 32, relu=True, num_m_blocks=4)
    x = conv2d(x, q["c2_w"], q["c2_b"], 4, 3, 64, relu=True, num_m_blocks=2)
    x = conv2d(x, q["c3_w"], q["c3_b"], 3, 2, 64, relu=True, num_m_blocks=1)
    x = conv2d(x, q["c4_w"], q["c4_b"], 3, 2, 64, relu=False, num_m_blocks=1)
    B = x.shape[0]
    feats = x.reshape(B, -1)           # NHWC flatten; fc_w rows pre-permuted
    out = fused_heads(feats, q["fc_w"], q["fc_b"], q["head_w"], q["head_b"])
    policy = out[:, :output_dim]
    value = out[:, output_dim:output_dim + 1]
    return policy, value


# ---------------------------------------------------------------------------
# Parameter init (PyTorch layouts) + one-time re-layout for the kernels
# ---------------------------------------------------------------------------
def init_params(key, output_dim):
    def uni(k, shape, fan_in):
        bound = 1.0 / (fan_in ** 0.5)
        return jax.random.uniform(k, shape, jnp.float32, -bound, bound)

    ks = jax.random.split(key, 14)
    p = {}
    # conv weights in PyTorch (C_out, C_in, KH, KW) layout
    p["c1_w"] = uni(ks[0], (32, 3, 4, 4), 3 * 16);   p["c1_b"] = uni(ks[1], (32,), 3 * 16)
    p["c2_w"] = uni(ks[2], (64, 32, 4, 4), 32 * 16); p["c2_b"] = uni(ks[3], (64,), 32 * 16)
    p["c3_w"] = uni(ks[4], (64, 64, 3, 3), 64 * 9);  p["c3_b"] = uni(ks[5], (64,), 64 * 9)
    p["c4_w"] = uni(ks[6], (64, 64, 3, 3), 64 * 9);  p["c4_b"] = uni(ks[7], (64,), 64 * 9)
    # linear weights in PyTorch (out, in) layout
    p["fc_w"] = uni(ks[8], (512, 1920), 1920);       p["fc_b"] = uni(ks[9], (512,), 1920)
    p["actor_w"] = uni(ks[10], (output_dim, 512), 512)
    p["actor_b"] = uni(ks[11], (output_dim,), 512)
    p["critic_w"] = uni(ks[12], (1, 512), 512)
    p["critic_b"] = uni(ks[13], (1,), 512)
    return p


def prepare_params(p, output_dim):
    """One-time (outside jit) conversion of PyTorch-layout params into
    lane-dense, pre-transposed kernel layouts."""
    assert output_dim + 1 <= LANE

    def conv_pack(w, b):
        c_out, c_in, k, _ = w.shape
        w_mat = jnp.transpose(w, (1, 2, 3, 0)).reshape(c_in * k * k, c_out)
        w_mat = jnp.pad(w_mat, ((0, 0), (0, LANE - c_out)))
        b2 = jnp.pad(b, (0, LANE - c_out)).reshape(1, LANE)
        return w_mat, b2

    q = {}
    q["c1_w"], q["c1_b"] = conv_pack(p["c1_w"], p["c1_b"])
    q["c2_w"], q["c2_b"] = conv_pack(p["c2_w"], p["c2_b"])
    q["c3_w"], q["c3_b"] = conv_pack(p["c3_w"], p["c3_b"])
    q["c4_w"], q["c4_b"] = conv_pack(p["c4_w"], p["c4_b"])

    # fc: PyTorch (512, 1920) with columns in NCHW flatten order (c=64, h=5, w=6).
    # Permute rows once so the kernel consumes the NHWC flatten (h, w, c) directly.
    assert p["fc_w"].shape == (512, 1920)
    fc_w = p["fc_w"].reshape(512, 64, 5, 6)
    fc_w = jnp.transpose(fc_w, (2, 3, 1, 0)).reshape(5 * 6 * 64, 512)   # (1920, 512)
    q["fc_w"] = fc_w
    q["fc_b"] = p["fc_b"].reshape(1, 512)

    # actor/critic fused into one lane-dense (512, 128) head: [policy | value | 0s]
    head_w = jnp.concatenate([p["actor_w"].T, p["critic_w"].T], axis=1)
    head_b = jnp.concatenate([p["actor_b"], p["critic_b"]])
    pad = LANE - head_w.shape[1]
    q["head_w"] = jnp.pad(head_w, ((0, 0), (0, pad)))
    q["head_b"] = jnp.pad(head_b, (0, pad)).reshape(1, LANE)
    return q


if __name__ == "__main__":
    OUTPUT_DIM = 6
    B, C, H, W = 2, 3, 211, 247   # smallest spatial size giving 1920 conv features

    key = jax.random.PRNGKey(0)
    k_params, k_x = jax.random.split(key)
    params = init_params(k_params, OUTPUT_DIM)
    prepped = prepare_params(params, OUTPUT_DIM)        # one-time re-layout
    x = jax.random.normal(k_x, (B, C, H, W), jnp.float32)

    fwd = jax.jit(functools.partial(a2c_forward, output_dim=OUTPUT_DIM))
    policy, value = fwd(prepped, x)
    policy = jax.block_until_ready(policy)
    value = jax.block_until_ready(value)

    assert policy.shape == (B, OUTPUT_DIM), policy.shape
    assert value.shape == (B, 1), value.shape
    assert jnp.all(jnp.isfinite(policy)) and jnp.all(jnp.isfinite(value))
    print("KERNEL_OK")
</pallas_src>

<mosaic_0001>
module attributes {stable_mosaic.version = 11 : i64} {
  func.func @_matmul_bias_kernel(%arg0: i32, %arg1: memref<2872x48xf32, #tpu.memory_space<vmem>>, %arg2: memref<48x128xf32, #tpu.memory_space<vmem>>, %arg3: memref<1x128xf32, #tpu.memory_space<vmem>>, %arg4: memref<2872x128xf32, #tpu.memory_space<vmem>>) attributes {dimension_semantics = [#tpu.dimension_semantics<parallel>], iteration_bounds = array<i64: 4>, scalar_prefetch = 0 : i64, scratch_operands = 0 : i64, tpu.core_type = #tpu.core_type<tc>, window_params = [{transform_indices = @transform_0, window_bounds = array<i64: 2872, 48>}, {pipeline_mode = #tpu.pipeline_mode<synchronous>, transform_indices = @transform_1, window_bounds = array<i64: 48, 128>}, {pipeline_mode = #tpu.pipeline_mode<synchronous>, transform_indices = @transform_2, window_bounds = array<i64: 1, 128>}, {transform_indices = @transform_3, window_bounds = array<i64: 2872, 128>}]} {
    %c0 = arith.constant 0 : index
    %c0_0 = arith.constant 0 : index
    %0 = vector.load %arg1[%c0, %c0_0] : memref<2872x48xf32, #tpu.memory_space<vmem>>, vector<2872x48xf32>
    %c0_1 = arith.constant 0 : index
    %c0_2 = arith.constant 0 : index
    %1 = vector.load %arg2[%c0_1, %c0_2] : memref<48x128xf32, #tpu.memory_space<vmem>>, vector<48x128xf32>
    %cst = arith.constant dense<0.000000e+00> : vector<2872x128xf32>
    %2 = tpu.matmul %0, %1, %cst {dimension_numbers = #tpu.dot_dimension_numbers<[1], [0], [0], [1], [0, 0, 1, 1], [], []>} : vector<2872x48xf32>, vector<48x128xf32>, vector<2872x128xf32> -> vector<2872x128xf32>
    %c0_3 = arith.constant 0 : index
    %c0_4 = arith.constant 0 : index
    %3 = vector.load %arg3[%c0_3, %c0_4] : memref<1x128xf32, #tpu.memory_space<vmem>>, vector<1x128xf32>
    %4 = vector.broadcast %3 : vector<1x128xf32> to vector<2872x128xf32>
    %5 = arith.addf %2, %4 : vector<2872x128xf32>
    %cst_5 = arith.constant 0.000000e+00 : f32
    %6 = vector.broadcast %cst_5 : f32 to vector<2872x128xf32>
    %7 = arith.maximumf %5, %6 : vector<2872x128xf32>
    %c0_6 = arith.constant 0 : index
    %c0_7 = arith.constant 0 : index
    %8 = vector.load %arg4[%c0_6, %c0_7] : memref<2872x128xf32, #tpu.memory_space<vmem>>, vector<2872x128xf32>
    tpu.vector_store %arg4[%c0_6, %c0_7], %7 {strides = array<i32>} : memref<2872x128xf32, #tpu.memory_space<vmem>>, vector<2872x128xf32>,
    return
  }
  func.func @transform_0(%arg0: i32) -> (i32, i32) {
    %c0_i32 = arith.constant 0 : i32
    %c0_i32_0 = arith.constant 0 : i32
    return %arg0, %c0_i32 : i32, i32
  }
  func.func @transform_1(%arg0: i32) -> (i32, i32) {
    %c0_i32 = arith.constant 0 : i32
    %c0_i32_0 = arith.constant 0 : i32
    %c0_i32_1 = arith.constant 0 : i32
    return %c0_i32, %c0_i32_0 : i32, i32
  }
  func.func @transform_2(%arg0: i32) -> (i32, i32) {
    %c0_i32 = arith.constant 0 : i32
    %c0_i32_0 = arith.constant 0 : i32
    %c0_i32_1 = arith.constant 0 : i32
    return %c0_i32, %c0_i32_0 : i32, i32
  }
  func.func @transform_3(%arg0: i32) -> (i32, i32) {
    %c0_i32 = arith.constant 0 : i32
    %c0_i32_0 = arith.constant 0 : i32
    return %arg0, %c0_i32 : i32, i32
  }
}

module attributes {stable_mosaic.version = 11 : i64} {
  func.func @_matmul_bias_kernel(%arg0: i32, %arg1: memref<624x512xf32, #tpu.memory_space<vmem>>, %arg2: memref<512x128xf32, #tpu.memory_space<vmem>>, %arg3: memref<1x128xf32, #tpu.memory_space<vmem>>, %arg4: memref<624x128xf32, #tpu.memory_space<vmem>>) attributes {dimension_semantics = [#tpu.dimension_semantics<parallel>], iteration_bounds = array<i64: 2>, scalar_prefetch = 0 : i64, scratch_operands = 0 : i64, tpu.core_type = #tpu.core_type<tc>, window_params = [{transform_indices = @transform_0, window_bounds = array<i64: 624, 512>}, {pipeline_mode = #tpu.pipeline_mode<synchronous>, transform_indices = @transform_1, window_bounds = array<i64: 512, 128>}, {pipeline_mode = #tpu.pipeline_mode<synchronous>, transform_indices = @transform_2, window_bounds = array<i64: 1, 128>}, {transform_indices = @transform_3, window_bounds = array<i64: 624, 128>}]} {
    %c0 = arith.constant 0 : index
    %c0_0 = arith.constant 0 : index
    %0 = vector.load %arg1[%c0, %c0_0] : memref<624x512xf32, #tpu.memory_space<vmem>>, vector<624x512xf32>
    %c0_1 = arith.constant 0 : index
    %c0_2 = arith.constant 0 : index
    %1 = vector.load %arg2[%c0_1, %c0_2] : memref<512x128xf32, #tpu.memory_space<vmem>>, vector<512x128xf32>
    %cst = arith.constant dense<0.000000e+00> : vector<624x128xf32>
    %2 = tpu.matmul %0, %1, %cst {dimension_numbers = #tpu.dot_dimension_numbers<[1], [0], [0], [1], [0, 0, 1, 1], [], []>} : vector<624x512xf32>, vector<512x128xf32>, vector<624x128xf32> -> vector<624x128xf32>
    %c0_3 = arith.constant 0 : index
    %c0_4 = arith.constant 0 : index
    %3 = vector.load %arg3[%c0_3, %c0_4] : memref<1x128xf32, #tpu.memory_space<vmem>>, vector<1x128xf32>
    %4 = vector.broadcast %3 : vector<1x128xf32> to vector<624x128xf32>
    %5 = arith.addf %2, %4 : vector<624x128xf32>
    %cst_5 = arith.constant 0.000000e+00 : f32
    %6 = vector.broadcast %cst_5 : f32 to vector<624x128xf32>
    %7 = arith.maximumf %5, %6 : vector<624x128xf32>
    %c0_6 = arith.constant 0 : index
    %c0_7 = arith.constant 0 : index
    %8 = vector.load %arg4[%c0_6, %c0_7] : memref<624x128xf32, #tpu.memory_space<vmem>>, vector<624x128xf32>
    tpu.vector_store %arg4[%c0_6, %c0_7], %7 {strides = array<i32>} : memref<624x128xf32, #tpu.memory_space<vmem>>, vector<624x128xf32>,
    return
  }
  func.func @transform_0(%arg0: i32) -> (i32, i32) {
    %c0_i32 = arith.constant 0 : i32
    %c0_i32_0 = arith.constant 0 : i32
    return %arg0, %c0_i32 : i32, i32
  }
  func.func @transform_1(%arg0: i32) -> (i32, i32) {
    %c0_i32 = arith.constant 0 : i32
    %c0_i32_0 = arith.constant 0 : i32
    %c0_i32_1 = arith.constant 0 : i32
    return %c0_i32, %c0_i32_0 : i32, i32
  }
  func.func @transform_2(%arg0: i32) -> (i32, i32) {
    %c0_i32 = arith.constant 0 : i32
    %c0_i32_0 = arith.constant 0 : i32
    %c0_i32_1 = arith.constant 0 : i32
    return %c0_i32, %c0_i32_0 : i32, i32
  }
  func.func @transform_3(%arg0: i32) -> (i32, i32) {
    %c0_i32 = arith.constant 0 : i32
    %c0_i32_0 = arith.constant 0 : i32
    return %arg0, %c0_i32 : i32, i32
  }
}

module attributes {stable_mosaic.version = 11 : i64} {
  func.func @_matmul_bias_kernel(%arg0: i32, %arg1: memref<288x576xf32, #tpu.memory_space<vmem>>, %arg2: memref<576x128xf32, #tpu.memory_space<vmem>>, %arg3: memref<1x128xf32, #tpu.memory_space<vmem>>, %arg4: memref<288x128xf32, #tpu.memory_space<vmem>>) attributes {dimension_semantics = [#tpu.dimension_semantics<parallel>], iteration_bounds = array<i64: 1>, scalar_prefetch = 0 : i64, scratch_operands = 0 : i64, tpu.core_type = #tpu.core_type<tc>, window_params = [{transform_indices = @transform_0, window_bounds = array<i64: 288, 576>}, {pipeline_mode = #tpu.pipeline_mode<synchronous>, transform_indices = @transform_1, window_bounds = array<i64: 576, 128>}, {pipeline_mode = #tpu.pipeline_mode<synchronous>, transform_indices = @transform_2, window_bounds = array<i64: 1, 128>}, {transform_indices = @transform_3, window_bounds = array<i64: 288, 128>}]} {
    %c0 = arith.constant 0 : index
    %c0_0 = arith.constant 0 : index
    %0 = vector.load %arg1[%c0, %c0_0] : memref<288x576xf32, #tpu.memory_space<vmem>>, vector<288x576xf32>
    %c0_1 = arith.constant 0 : index
    %c0_2 = arith.constant 0 : index
    %1 = vector.load %arg2[%c0_1, %c0_2] : memref<576x128xf32, #tpu.memory_space<vmem>>, vector<576x128xf32>
    %cst = arith.constant dense<0.000000e+00> : vector<288x128xf32>
    %2 = tpu.matmul %0, %1, %cst {dimension_numbers = #tpu.dot_dimension_numbers<[1], [0], [0], [1], [0, 0, 1, 1], [], []>} : vector<288x576xf32>, vector<576x128xf32>, vector<288x128xf32> -> vector<288x128xf32>
    %c0_3 = arith.constant 0 : index
    %c0_4 = arith.constant 0 : index
    %3 = vector.load %arg3[%c0_3, %c0_4] : memref<1x128xf32, #tpu.memory_space<vmem>>, vector<1x128xf32>
    %4 = vector.broadcast %3 : vector<1x128xf32> to vector<288x128xf32>
    %5 = arith.addf %2, %4 : vector<288x128xf32>
    %cst_5 = arith.constant 0.000000e+00 : f32
    %6 = vector.broadcast %cst_5 : f32 to vector<288x128xf32>
    %7 = arith.maximumf %5, %6 : vector<288x128xf32>
    %c0_6 = arith.constant 0 : index
    %c0_7 = arith.constant 0 : index
    %8 = vector.load %arg4[%c0_6, %c0_7] : memref<288x128xf32, #tpu.memory_space<vmem>>, vector<288x128xf32>
    tpu.vector_store %arg4[%c0_6, %c0_7], %7 {strides = array<i32>} : memref<288x128xf32, #tpu.memory_space<vmem>>, vector<288x128xf32>,
    return
  }
  func.func @transform_0(%arg0: i32) -> (i32, i32) {
    %c0_i32 = arith.constant 0 : i32
    %c0_i32_0 = arith.constant 0 : i32
    return %arg0, %c0_i32 : i32, i32
  }
  func.func @transform_1(%arg0: i32) -> (i32, i32) {
    %c0_i32 = arith.constant 0 : i32
    %c0_i32_0 = arith.constant 0 : i32
    %c0_i32_1 = arith.constant 0 : i32
    return %c0_i32, %c0_i32_0 : i32, i32
  }
  func.func @transform_2(%arg0: i32) -> (i32, i32) {
    %c0_i32 = arith.constant 0 : i32
    %c0_i32_0 = arith.constant 0 : i32
    %c0_i32_1 = arith.constant 0 : i32
    return %c0_i32, %c0_i32_0 : i32, i32
  }
  func.func @transform_3(%arg0: i32) -> (i32, i32) {
    %c0_i32 = arith.constant 0 : i32
    %c0_i32_0 = arith.constant 0 : i32
    return %arg0, %c0_i32 : i32, i32
  }
}

module attributes {stable_mosaic.version = 11 : i64} {
  func.func @_matmul_bias_kernel(%arg0: i32, %arg1: memref<64x576xf32, #tpu.memory_space<vmem>>, %arg2: memref<576x128xf32, #tpu.memory_space<vmem>>, %arg3: memref<1x128xf32, #tpu.memory_space<vmem>>, %arg4: memref<64x128xf32, #tpu.memory_space<vmem>>) attributes {dimension_semantics = [#tpu.dimension_semantics<parallel>], iteration_bounds = array<i64: 1>, scalar_prefetch = 0 : i64, scratch_operands = 0 : i64, tpu.core_type = #tpu.core_type<tc>, window_params = [{transform_indices = @transform_0, window_bounds = array<i64: 64, 576>}, {pipeline_mode = #tpu.pipeline_mode<synchronous>, transform_indices = @transform_1, window_bounds = array<i64: 576, 128>}, {pipeline_mode = #tpu.pipeline_mode<synchronous>, transform_indices = @transform_2, window_bounds = array<i64: 1, 128>}, {transform_indices = @transform_3, window_bounds = array<i64: 64, 128>}]} {
    %c0 = arith.constant 0 : index
    %c0_0 = arith.constant 0 : index
    %0 = vector.load %arg1[%c0, %c0_0] : memref<64x576xf32, #tpu.memory_space<vmem>>, vector<64x576xf32>
    %c0_1 = arith.constant 0 : index
    %c0_2 = arith.constant 0 : index
    %1 = vector.load %arg2[%c0_1, %c0_2] : memref<576x128xf32, #tpu.memory_space<vmem>>, vector<576x128xf32>
    %cst = arith.constant dense<0.000000e+00> : vector<64x128xf32>
    %2 = tpu.matmul %0, %1, %cst {dimension_numbers = #tpu.dot_dimension_numbers<[1], [0], [0], [1], [0, 0, 1, 1], [], []>} : vector<64x576xf32>, vector<576x128xf32>, vector<64x128xf32> -> vector<64x128xf32>
    %c0_3 = arith.constant 0 : index
    %c0_4 = arith.constant 0 : index
    %3 = vector.load %arg3[%c0_3, %c0_4] : memref<1x128xf32, #tpu.memory_space<vmem>>, vector<1x128xf32>
    %4 = vector.broadcast %3 : vector<1x128xf32> to vector<64x128xf32>
    %5 = arith.addf %2, %4 : vector<64x128xf32>
    %c0_5 = arith.constant 0 : index
    %c0_6 = arith.constant 0 : index
    %6 = vector.load %arg4[%c0_5, %c0_6] : memref<64x128xf32, #tpu.memory_space<vmem>>, vector<64x128xf32>
    tpu.vector_store %arg4[%c0_5, %c0_6], %5 {strides = array<i32>} : memref<64x128xf32, #tpu.memory_space<vmem>>, vector<64x128xf32>,
    return
  }
  func.func @transform_0(%arg0: i32) -> (i32, i32) {
    %c0_i32 = arith.constant 0 : i32
    %c0_i32_0 = arith.constant 0 : i32
    return %arg0, %c0_i32 : i32, i32
  }
  func.func @transform_1(%arg0: i32) -> (i32, i32) {
    %c0_i32 = arith.constant 0 : i32
    %c0_i32_0 = arith.constant 0 : i32
    %c0_i32_1 = arith.constant 0 : i32
    return %c0_i32, %c0_i32_0 : i32, i32
  }
  func.func @transform_2(%arg0: i32) -> (i32, i32) {
    %c0_i32 = arith.constant 0 : i32
    %c0_i32_0 = arith.constant 0 : i32
    %c0_i32_1 = arith.constant 0 : i32
    return %c0_i32, %c0_i32_0 : i32, i32
  }
  func.func @transform_3(%arg0: i32) -> (i32, i32) {
    %c0_i32 = arith.constant 0 : i32
    %c0_i32_0 = arith.constant 0 : i32
    return %arg0, %c0_i32 : i32, i32
  }
}

module attributes {stable_mosaic.version = 11 : i64} {
  func.func @_head_kernel(%arg0: i32, %arg1: memref<8x1920xf32, #tpu.memory_space<vmem>>, %arg2: memref<1920x512xf32, #tpu.memory_space<vmem>>, %arg3: memref<1x512xf32, #tpu.memory_space<vmem>>, %arg4: memref<512x128xf32, #tpu.memory_space<vmem>>, %arg5: memref<1x128xf32, #tpu.memory_space<vmem>>, %arg6: memref<8x128xf32, #tpu.memory_space<vmem>>) attributes {dimension_semantics = [#tpu.dimension_semantics<arbitrary>], iteration_bounds = array<i64: 1>, scalar_prefetch = 0 : i64, scratch_operands = 0 : i64, tpu.core_type = #tpu.core_type<tc>, window_params = [{pipeline_mode = #tpu.pipeline_mode<synchronous>, transform_indices = @transform_0, window_bounds = array<i64: 8, 1920>}, {pipeline_mode = #tpu.pipeline_mode<synchronous>, transform_indices = @transform_1, window_bounds = array<i64: 1920, 512>}, {pipeline_mode = #tpu.pipeline_mode<synchronous>, transform_indices = @transform_2, window_bounds = array<i64: 1, 512>}, {pipeline_mode = #tpu.pipeline_mode<synchronous>, transform_indices = @transform_3, window_bounds = array<i64: 512, 128>}, {pipeline_mode = #tpu.pipeline_mode<synchronous>, transform_indices = @transform_4, window_bounds = array<i64: 1, 128>}, {pipeline_mode = #tpu.pipeline_mode<synchronous>, transform_indices = @transform_5, window_bounds = array<i64: 8, 128>}]} {
    %c0 = arith.constant 0 : index
    %c0_0 = arith.constant 0 : index
    %0 = vector.load %arg1[%c0, %c0_0] : memref<8x1920xf32, #tpu.memory_space<vmem>>, vector<8x1920xf32>
    %c0_1 = arith.constant 0 : index
    %c0_2 = arith.constant 0 : index
    %1 = vector.load %arg2[%c0_1, %c0_2] : memref<1920x512xf32, #tpu.memory_space<vmem>>, vector<1920x512xf32>
    %cst = arith.constant dense<0.000000e+00> : vector<8x512xf32>
    %2 = tpu.matmul %0, %1, %cst {dimension_numbers = #tpu.dot_dimension_numbers<[1], [0], [0], [1], [0, 0, 1, 1], [], []>} : vector<8x1920xf32>, vector<1920x512xf32>, vector<8x512xf32> -> vector<8x512xf32>
    %c0_3 = arith.constant 0 : index
    %c0_4 = arith.constant 0 : index
    %3 = vector.load %arg3[%c0_3, %c0_4] : memref<1x512xf32, #tpu.memory_space<vmem>>, vector<1x512xf32>
    %4 = vector.broadcast %3 : vector<1x512xf32> to vector<8x512xf32>
    %5 = arith.addf %2, %4 : vector<8x512xf32>
    %cst_5 = arith.constant 0.000000e+00 : f32
    %6 = vector.broadcast %cst_5 : f32 to vector<8x512xf32>
    %7 = arith.maximumf %5, %6 : vector<8x512xf32>
    %c0_6 = arith.constant 0 : index
    %c0_7 = arith.constant 0 : index
    %8 = vector.load %arg4[%c0_6, %c0_7] : memref<512x128xf32, #tpu.memory_space<vmem>>, vector<512x128xf32>
    %cst_8 = arith.constant dense<0.000000e+00> : vector<8x128xf32>
    %9 = tpu.matmul %7, %8, %cst_8 {dimension_numbers = #tpu.dot_dimension_numbers<[1], [0], [0], [1], [0, 0, 1, 1], [], []>} : vector<8x512xf32>, vector<512x128xf32>, vector<8x128xf32> -> vector<8x128xf32>
    %c0_9 = arith.constant 0 : index
    %c0_10 = arith.constant 0 : index
    %10 = vector.load %arg5[%c0_9, %c0_10] : memref<1x128xf32, #tpu.memory_space<vmem>>, vector<1x128xf32>
    %11 = vector.broadcast %10 : vector<1x128xf32> to vector<8x128xf32>
    %12 = arith.addf %9, %11 : vector<8x128xf32>
    %c0_11 = arith.constant 0 : index
    %c0_12 = arith.constant 0 : index
    %13 = vector.load %arg6[%c0_11, %c0_12] : memref<8x128xf32, #tpu.memory_space<vmem>>, vector<8x128xf32>
    tpu.vector_store %arg6[%c0_11, %c0_12], %12 {strides = array<i32>} : memref<8x128xf32, #tpu.memory_space<vmem>>, vector<8x128xf32>,
    return
  }
  func.func @transform_0(%arg0: i32) -> (i32, i32) {
    %c0_i32 = arith.constant 0 : i32
    %c0_i32_0 = arith.constant 0 : i32
    %c0_i32_1 = arith.constant 0 : i32
    return %c0_i32, %c0_i32_0 : i32, i32
  }
  func.func @transform_1(%arg0: i32) -> (i32, i32) {
    %c0_i32 = arith.constant 0 : i32
    %c0_i32_0 = arith.constant 0 : i32
    %c0_i32_1 = arith.constant 0 : i32
    return %c0_i32, %c0_i32_0 : i32, i32
  }
  func.func @transform_2(%arg0: i32) -> (i32, i32) {
    %c0_i32 = arith.constant 0 : i32
    %c0_i32_0 = arith.constant 0 : i32
    %c0_i32_1 = arith.constant 0 : i32
    return %c0_i32, %c0_i32_0 : i32, i32
  }
  func.func @transform_3(%arg0: i32) -> (i32, i32) {
    %c0_i32 = arith.constant 0 : i32
    %c0_i32_0 = arith.constant 0 : i32
    %c0_i32_1 = arith.constant 0 : i32
    return %c0_i32, %c0_i32_0 : i32, i32
  }
  func.func @transform_4(%arg0: i32) -> (i32, i32) {
    %c0_i32 = arith.constant 0 : i32
    %c0_i32_0 = arith.constant 0 : i32
    %c0_i32_1 = arith.constant 0 : i32
    return %c0_i32, %c0_i32_0 : i32, i32
  }
  func.func @transform_5(%arg0: i32) -> (i32, i32) {
    %c0_i32 = arith.constant 0 : i32
    %c0_i32_0 = arith.constant 0 : i32
    %c0_i32_1 = arith.constant 0 : i32
    return %c0_i32, %c0_i32_0 : i32, i32
  }
}

</mosaic_0001>

<llo_original>
// kernel: a2c_forward.5
$region0: #{a2c_forward.5}
  #allocation0 [shape = 'u32[]', space=smem, size = 0x4, offset = 0x4, fixed_abs, tag = 'smem constant byte address 0x4 - core index']
  #allocation1 [shape = 'u32[144,128]{1,0:T(1,128)}', space=vmem, size = 0x12000, scoped, tag = 'internal scratch']
  %s0 = inlined_call_operand.vmem [shape: f32[11488,48], index: 0, kind: input, shape index: {}]
  %s1 = inlined_call_operand.vmem [shape: f32[48,128], index: 1, kind: input, shape index: {}]
  %s2 = inlined_call_operand.vmem [shape: f32[1,128], index: 2, kind: input, shape index: {}]
  %s3 = inlined_call_operand.vmem [shape: f32[11488,128], index: 3, kind: output, shape index: {}]
  %s4 = sld [smem:[#allocation0]]
  $region45: #{a2c_forward.5} parent=0
    _
  %s6 = ssub.s32 1, %s4
  %s7 = scalar_select 0, %s6, %s4
  loop: start=0, step=1, limit=6
  $region2: #{a2c_forward.5} parent=0 // loop_pre_header
    _
  $region3: #{a2c_forward.5} parent=0 // loop_header
    %s9 = sphi 0, %s13
    %p10 = scmp.ge.s32.totalorder %s9, 6
    %s19 = sphi 0, %s21
    %s22 = sphi 0, %s19
    %s23 = sphi 0, %s22
    %s39 = sphi 0, %s23
    %s43 = sphi 0, %s43
    %s45 = sphi 0, %s43
    %s46 = sphi 0, %s45
    %s60 = sphi 0, %s46
    %s64 = sphi 0, %s64
    %s66 = sphi 0, %s64
    %s67 = sphi 0, %s66
    %s81 = sphi 0, %s67
    %s87 = sphi 0, %s89
    %s90 = sphi 0, %s87
    %s91 = sphi 0, %s90
    %s107 = sphi 0, %s91
  $region4: #{a2c_forward.5} parent=0 // loop_header_branch
    %12 = sbr.rel (%p10) target = $region8
  $region5: #{a2c_forward.5} parent=0 // loop_body
    %s14 = ssub.s32 %s9, 1
    %s15 = ssub.s32 %s9, 2
    %s16 = sadd.s32 %s9, 1
    %s17 = ssub.s32 %s9, %s16
    %p18 = scmp.eq.s32.totalorder %s17, 0
    %s20 = sadd.s32 %s19, 1
    %s21 = scalar_select %p18, %s19, %s20
    %p24 = pneg %p18
    %p25 = scmp.eq.s32.totalorder %s9, 3
    %p26 = por %p24, %p25
    %p27 = scmp.ne.s32.totalorder %s19, %s22
    %p28 = scmp.eq.s32.totalorder %s9, 0
    %p29 = por %p27, %p28
    %p30 = scmp.ne.s32.totalorder %s19, %s22
    %p31 = scmp.eq.s32.totalorder %s14, 3
    %p32 = por %p30, %p31
    %p33 = scmp.ne.s32.totalorder %s22, %s23
    %p34 = scmp.eq.s32.totalorder %s14, 0
    %p35 = por %p33, %p34
    %p36 = scmp.ne.s32.totalorder %s22, %s23
    %p37 = scmp.eq.s32.totalorder %s15, 3
    %p38 = por %p36, %p37
    %p40 = scmp.ne.s32.totalorder %s23, %s39
    %p41 = scmp.eq.s32.totalorder %s15, 0
    %p42 = por %p40, %p41
    %s44 = sadd.s32 %s43, 1
    %p47 = scmp.eq.s32.totalorder %s9, 3
    %p48 = scmp.ne.s32.totalorder %s43, %s45
    %p49 = scmp.eq.s32.totalorder %s9, 0
    %p50 = por %p48, %p49
    %p51 = scmp.ne.s32.totalorder %s43, %s45
    %p52 = scmp.eq.s32.totalorder %s14, 3
    %p53 = por %p51, %p52
    %p54 = scmp.ne.s32.totalorder %s45, %s46
    %p55 = scmp.eq.s32.totalorder %s14, 0
    %p56 = por %p54, %p55
    %p57 = scmp.ne.s32.totalorder %s45, %s46
    %p58 = scmp.eq.s32.totalorder %s15, 3
    %p59 = por %p57, %p58
    %p61 = scmp.ne.s32.totalorder %s46, %s60
    %p62 = scmp.eq.s32.totalorder %s15, 0
    %p63 = por %p61, %p62
    %s65 = sadd.s32 %s64, 1
    %p68 = scmp.eq.s32.totalorder %s9, 3
    %p69 = scmp.ne.s32.totalorder %s64, %s66
    %p70 = scmp.eq.s32.totalorder %s9, 0
    %p71 = por %p69, %p70
    %p72 = scmp.ne.s32.totalorder %s64, %s66
    %p73 = scmp.eq.s32.totalorder %s14, 3
    %p74 = por %p72, %p73
    %p75 = scmp.ne.s32.totalorder %s66, %s67
    %p76 = scmp.eq.s32.totalorder %s14, 0
    %p77 = por %p75, %p76
    %p78 = scmp.ne.s32.totalorder %s66, %s67
    %p79 = scmp.eq.s32.totalorder %s15, 3
    %p80 = por %p78, %p79
    %p82 = scmp.ne.s32.totalorder %s67, %s81
    %p83 = scmp.eq.s32.totalorder %s15, 0
    %p84 = por %p82, %p83
    %s85 = ssub.s32 %s9, %s16
    %p86 = scmp.eq.s32.totalorder %s85, 0
    %s88 = sadd.s32 %s87, 1
    %s89 = scalar_select %p86, %s87, %s88
    %p92 = pneg %p86
    %p93 = scmp.eq.s32.totalorder %s9, 3
    %p94 = por %p92, %p93
    %p95 = scmp.ne.s32.totalorder %s87, %s90
    %p96 = scmp.eq.s32.totalorder %s9, 0
    %p97 = por %p95, %p96
    %p98 = scmp.ne.s32.totalorder %s87, %s90
    %p99 = scmp.eq.s32.totalorder %s14, 3
    %p100 = por %p98, %p99
    %p101 = scmp.ne.s32.totalorder %s90, %s91
    %p102 = scmp.eq.s32.totalorder %s14, 0
    %p103 = por %p101, %p102
    %p104 = scmp.ne.s32.totalorder %s90, %s91
    %p105 = scmp.eq.s32.totalorder %s15, 3
    %p106 = por %p104, %p105
    %p108 = scmp.ne.s32.totalorder %s91, %s107
    %p109 = scmp.eq.s32.totalorder %s15, 0
    %p110 = por %p108, %p109
    %p111 = scmp.le.s32.totalorder 1, %s9
    %p112 = scmp.lt.s32.totalorder %s9, 5
    %p113 = pnand %p111, %p112
    %p114 = pneg %p113
    // Predicated region
    $region9: #{a2c_forward.5} parent=5 // pred_check
      _
    $region10: #{a2c_forward.5} parent=5 // pred_check_branch
      %116 = sbr.rel (%p113) target = $region12
    $region11: #{a2c_forward.5} parent=5 // pred_region
      %s117 = ssub.s32 %s9, 1
      // Predicated region
      $region13: #{a2c_forward.5} parent=11 // pred_check
        %p118 = pneg %p56
      $region14: #{a2c_forward.5} parent=11 // pred_check_branch
        %120 = sbr.rel (%p118) target = $region16
      $region15: #{a2c_forward.5} parent=11 // pred_region
        _
      $region16: #{a2c_forward.5} parent=11 // pred_fallthru
        _
      // Predicated region
      $region17: #{a2c_forward.5} parent=11 // pred_check
        %p121 = pneg %p77
      $region18: #{a2c_forward.5} parent=11 // pred_check_branch
        %123 = sbr.rel (%p121) target = $region20
      $region19: #{a2c_forward.5} parent=11 // pred_region
        _
      $region20: #{a2c_forward.5} parent=11 // pred_fallthru
        _
    $region12: #{a2c_forward.5} parent=5 // pred_fallthru
      _
    %p124 = scmp.lt.s32.totalorder %s9, 4
    // Predicated region
    $region21: #{a2c_forward.5} parent=5 // pred_check
      %p125 = pneg %p124
    $region22: #{a2c_forward.5} parent=5 // pred_check_branch
      %127 = sbr.rel (%p125) target = $region24
    $region23: #{a2c_forward.5} parent=5 // pred_region
      // Predicated region
      $region25: #{a2c_forward.5} parent=23 // pred_check
        %p128 = pneg %p29
      $region26: #{a2c_forward.5} parent=23 // pred_check_branch
        %130 = sbr.rel (%p128) target = $region28
      $region27: #{a2c_forward.5} parent=23 // pred_region
        %s131 = smul.u32 359, %s9
        %p132 = scmp.lt.s32.totalorder %s131, 1435
        %s133 = scalar_select %p132, %s131, 1435
        %s134 = smul.addr %s133, 8
        %s135 = scalar_lea.vmem %s0, %s134
        %s136 = smul.u32 359, %s9
      $region28: #{a2c_forward.5} parent=23 // pred_fallthru
        _
    $region24: #{a2c_forward.5} parent=5 // pred_fallthru
      _
    %p137 = scmp.le.s32.totalorder 1, %s9
    %p138 = scmp.lt.s32.totalorder %s9, 5
    %p139 = pnand %p137, %p138
    %p140 = pneg %p139
    // Predicated region
    $region29: #{a2c_forward.5} parent=5 // pred_check
      _
    $region30: #{a2c_forward.5} parent=5 // pred_check_branch
      %142 = sbr.rel (%p139) target = $region32
    $region31: #{a2c_forward.5} parent=5 // pred_region
      %s143 = ssub.s32 %s9, 1
      %s144 = smul.u32 359, %s14
      %p145 = scmp.lt.s32.totalorder %s144, 1435
      %s146 = scalar_select %p145, %s144, 1435
      %s147 = smul.addr %s146, 8
      %s148 = scalar_lea.vmem %s0, %s147
      %p149 = pneg %p35
      %p150 = pneg %p32
      %p151 = pneg %p56
      %p152 = pneg %p53
      %p153 = pneg %p77
      %p154 = pneg %p74
      %p155 = pneg %p103
      %p156 = pneg %p100
      %s157 = smul.u32 359, %s14
      %p158 = scmp.lt.s32.totalorder %s157, 1435
      %s159 = scalar_select %p158, %s157, 1435
      %s160 = smul.addr %s159, 8
      %s161 = scalar_lea.vmem %s3, %s160
      %s162 = smul.u32 359, %s14
      %p163 = scmp.lt.s32.totalorder %s162, 1435
      %s164 = scalar_select %p163, %s162, 1435
      %s165 = smul.addr %s164, 8
      %s166 = scalar_lea.vmem %s0, %s165
      %s167 = smul.u32 359, %s14
      %s168 = smul.u32 359, %s14
      %p169 = scmp.lt.s32.totalorder %s168, 1435
      %s170 = scalar_select %p169, %s168, 1435
      %s171 = smul.addr %s170, 8
      %s172 = scalar_lea.vmem %s3, %s171
      %s173 = smul.u32 359, %s14
      %v174 = vld [vmem:[%s166] sm:$0xff]
      %v175 = vld [vmem:[%s166 + $0x8] sm:$0xff]
      %v176 = vld [vmem:[%s166 + $0x10] sm:$0xff]
      %v177 = vld [vmem:[%s166 + $0x18] sm:$0xff]
      %v178 = vld [vmem:[%s166 + $0x20] sm:$0xff]
      %v179 = vld [vmem:[%s166 + $0x28] sm:$0xff]
      %v180 = vld [vmem:[%s166 + $0x30] sm:$0xff]
      %v181 = vld [vmem:[%s166 + $0x38] sm:$0xff]
      %v182 = vld [vmem:[%s166 + $0x40] sm:$0xff]
      %v183 = vld [vmem:[%s166 + $0x48] sm:$0xff]
      %v184 = vld [vmem:[%s166 + $0x50] sm:$0xff]
      %v185 = vld [vmem:[%s166 + $0x58] sm:$0xff]
      %v186 = vld [vmem:[%s166 + $0x60] sm:$0xff]
      %v187 = vld [vmem:[%s166 + $0x68] sm:$0xff]
      %v188 = vld [vmem:[%s166 + $0x70] sm:$0xff]
      %v189 = vld [vmem:[%s166 + $0x78] sm:$0xff]
      %v190 = vld [vmem:[%s166 + $0x80] sm:$0xff]
      %v191 = vld [vmem:[%s166 + $0x88] sm:$0xff]
      %v192 = vld [vmem:[%s166 + $0x90] sm:$0xff]
      %v193 = vld [vmem:[%s166 + $0x98] sm:$0xff]
      %v194 = vld [vmem:[%s166 + $0xa0] sm:$0xff]
      %v195 = vld [vmem:[%s166 + $0xa8] sm:$0xff]
      %v196 = vld [vmem:[%s166 + $0xb0] sm:$0xff]
      %v197 = vld [vmem:[%s166 + $0xb8] sm:$0xff]
      %v198 = vld [vmem:[%s166 + $0xc0] sm:$0xff]
      %v199 = vld [vmem:[%s166 + $0xc8] sm:$0xff]
      %v200 = vld [vmem:[%s166 + $0xd0] sm:$0xff]
      %v201 = vld [vmem:[%s166 + $0xd8] sm:$0xff]
      %v202 = vld [vmem:[%s166 + $0xe0] sm:$0xff]
      %v203 = vld [vmem:[%s166 + $0xe8] sm:$0xff]
      %v204 = vld [vmem:[%s166 + $0xf0] sm:$0xff]
      %v205 = vld [vmem:[%s166 + $0xf8] sm:$0xff]
      %v206 = vld [vmem:[%s166 + $0x100] sm:$0xff]
      %v207 = vld [vmem:[%s166 + $0x108] sm:$0xff]
      %v208 = vld [vmem:[%s166 + $0x110] sm:$0xff]
      %v209 = vld [vmem:[%s166 + $0x118] sm:$0xff]
      %v210 = vld [vmem:[%s166 + $0x120] sm:$0xff]
      %v211 = vld [vmem:[%s166 + $0x128] sm:$0xff]
      %v212 = vld [vmem:[%s166 + $0x130] sm:$0xff]
      %v213 = vld [vmem:[%s166 + $0x138] sm:$0xff]
      %v214 = vld [vmem:[%s166 + $0x140] sm:$0xff]
      %v215 = vld [vmem:[%s166 + $0x148] sm:$0xff]
      %v216 = vld [vmem:[%s166 + $0x150] sm:$0xff]
      %v217 = vld [vmem:[%s166 + $0x158] sm:$0xff]
      %v218 = vld [vmem:[%s166 + $0x160] sm:$0xff]
      %v219 = vld [vmem:[%s166 + $0x168] sm:$0xff]
      %v220 = vld [vmem:[%s166 + $0x170] sm:$0xff]
      %v221 = vld [vmem:[%s166 + $0x178] sm:$0xff]
      %v222 = vld [vmem:[%s166 + $0x180] sm:$0xff]
      %v223 = vld [vmem:[%s166 + $0x188] sm:$0xff]
      %v224 = vld [vmem:[%s166 + $0x190] sm:$0xff]
      %v225 = vld [vmem:[%s166 + $0x198] sm:$0xff]
      %v226 = vld [vmem:[%s166 + $0x1a0] sm:$0xff]
      %v227 = vld [vmem:[%s166 + $0x1a8] sm:$0xff]
      %v228 = vld [vmem:[%s166 + $0x1b0] sm:$0xff]
      %v229 = vld [vmem:[%s166 + $0x1b8] sm:$0xff]
      %v230 = vld [vmem:[%s166 + $0x1c0] sm:$0xff]
      %v231 = vld [vmem:[%s166 + $0x1c8] sm:$0xff]
      %v232 = vld [vmem:[%s166 + $0x1d0] sm:$0xff]
      %v233 = vld [vmem:[%s166 + $0x1d8] sm:$0xff]
      %v234 = vld [vmem:[%s166 + $0x1e0] sm:$0xff]
      %v235 = vld [vmem:[%s166 + $0x1e8] sm:$0xff]
      %v236 = vld [vmem:[%s166 + $0x1f0] sm:$0xff]
      %v237 = vld [vmem:[%s166 + $0x1f8] sm:$0xff]
      %v238 = vld [vmem:[%s166 + $0x200] sm:$0xff]
      %v239 = vld [vmem:[%s166 + $0x208] sm:$0xff]
      %v240 = vld [vmem:[%s166 + $0x210] sm:$0xff]
      %v241 = vld [vmem:[%s166 + $0x218] sm:$0xff]
      %v242 = vld [vmem:[%s166 + $0x220] sm:$0xff]
      %v243 = vld [vmem:[%s166 + $0x228] sm:$0xff]
      %v244 = vld [vmem:[%s166 + $0x230] sm:$0xff]
      %v245 = vld [vmem:[%s166 + $0x238] sm:$0xff]
      %v246 = vld [vmem:[%s166 + $0x240] sm:$0xff]
      %v247 = vld [vmem:[%s166 + $0x248] sm:$0xff]
      %v248 = vld [vmem:[%s166 + $0x250] sm:$0xff]
      %v249 = vld [vmem:[%s166 + $0x258] sm:$0xff]
      %v250 = vld [vmem:[%s166 + $0x260] sm:$0xff]
      %v251 = vld [vmem:[%s166 + $0x268] sm:$0xff]
      %v252 = vld [vmem:[%s166 + $0x270] sm:$0xff]
      %v253 = vld [vmem:[%s166 + $0x278] sm:$0xff]
      %v254 = vld [vmem:[%s166 + $0x280] sm:$0xff]
      %v255 = vld [vmem:[%s166 + $0x288] sm:$0xff]
      %v256 = vld [vmem:[%s166 + $0x290] sm:$0xff]
      %v257 = vld [vmem:[%s166 + $0x298] sm:$0xff]
      %v258 = vld [vmem:[%s166 + $0x2a0] sm:$0xff]
      %v259 = vld [vmem:[%s166 + $0x2a8] sm:$0xff]
      %v260 = vld [vmem:[%s166 + $0x2b0] sm:$0xff]
      %v261 = vld [vmem:[%s166 + $0x2b8] sm:$0xff]
      %v262 = vld [vmem:[%s166 + $0x2c0] sm:$0xff]
      %v263 = vld [vmem:[%s166 + $0x2c8] sm:$0xff]
      %v264 = vld [vmem:[%s166 + $0x2d0] sm:$0xff]
      %v265 = vld [vmem:[%s166 + $0x2d8] sm:$0xff]
      %v266 = vld [vmem:[%s166 + $0x2e0] sm:$0xff]
      %v267 = vld [vmem:[%s166 + $0x2e8] sm:$0xff]
      %v268 = vld [vmem:[%s166 + $0x2f0] sm:$0xff]
      %v269 = vld [vmem:[%s166 + $0x2f8] sm:$0xff]
      %v270 = vld [vmem:[%s166 + $0x300] sm:$0xff]
      %v271 = vld [vmem:[%s166 + $0x308] sm:$0xff]
      %v272 = vld [vmem:[%s166 + $0x310] sm:$0xff]
      %v273 = vld [vmem:[%s166 + $0x318] sm:$0xff]
      %v274 = vld [vmem:[%s166 + $0x320] sm:$0xff]
      %v275 = vld [vmem:[%s166 + $0x328] sm:$0xff]
      %v276 = vld [vmem:[%s166 + $0x330] sm:$0xff]
      %v277 = vld [vmem:[%s166 + $0x338] sm:$0xff]
      %v278 = vld [vmem:[%s166 + $0x340] sm:$0xff]
      %v279 = vld [vmem:[%s166 + $0x348] sm:$0xff]
      %v280 = vld [vmem:[%s166 + $0x350] sm:$0xff]
      %v281 = vld [vmem:[%s166 + $0x358] sm:$0xff]
      %v282 = vld [vmem:[%s166 + $0x360] sm:$0xff]
      %v283 = vld [vmem:[%s166 + $0x368] sm:$0xff]
      %v284 = vld [vmem:[%s166 + $0x370] sm:$0xff]
      %v285 = vld [vmem:[%s166 + $0x378] sm:$0xff]
      %v286 = vld [vmem:[%s166 + $0x380] sm:$0xff]
      %v287 = vld [vmem:[%s166 + $0x388] sm:$0xff]
      %v288 = vld [vmem:[%s166 + $0x390] sm:$0xff]
      %v289 = vld [vmem:[%s166 + $0x398] sm:$0xff]
      %v290 = vld [vmem:[%s166 + $0x3a0] sm:$0xff]
      %v291 = vld [vmem:[%s166 + $0x3a8] sm:$0xff]
      %v292 = vld [vmem:[%s166 + $0x3b0] sm:$0xff]
      %v293 = vld [vmem:[%s166 + $0x3b8] sm:$0xff]
      %v294 = vld [vmem:[%s166 + $0x3c0] sm:$0xff]
      %v295 = vld [vmem:[%s166 + $0x3c8] sm:$0xff]
      %v296 = vld [vmem:[%s166 + $0x3d0] sm:$0xff]
      %v297 = vld [vmem:[%s166 + $0x3d8] sm:$0xff]
      %v298 = vld [vmem:[%s166 + $0x3e0] sm:$0xff]
      %v299 = vld [vmem:[%s166 + $0x3e8] sm:$0xff]
      %v300 = vld [vmem:[%s166 + $0x3f0] sm:$0xff]
      %v301 = vld [vmem:[%s166 + $0x3f8] sm:$0xff]
      %v302 = vld [vmem:[%s166 + $0x400] sm:$0xff]
      %v303 = vld [vmem:[%s166 + $0x408] sm:$0xff]
      %v304 = vld [vmem:[%s166 + $0x410] sm:$0xff]
      %v305 = vld [vmem:[%s166 + $0x418] sm:$0xff]
      %v306 = vld [vmem:[%s166 + $0x420] sm:$0xff]
      %v307 = vld [vmem:[%s166 + $0x428] sm:$0xff]
      %v308 = vld [vmem:[%s166 + $0x430] sm:$0xff]
      %v309 = vld [vmem:[%s166 + $0x438] sm:$0xff]
      %v310 = vld [vmem:[%s166 + $0x440] sm:$0xff]
      %v311 = vld [vmem:[%s166 + $0x448] sm:$0xff]
      %v312 = vld [vmem:[%s166 + $0x450] sm:$0xff]
      %v313 = vld [vmem:[%s166 + $0x458] sm:$0xff]
      %v314 = vld [vmem:[%s166 + $0x460] sm:$0xff]
      %v315 = vld [vmem:[%s166 + $0x468] sm:$0xff]
      %v316 = vld [vmem:[%s166 + $0x470] sm:$0xff]
      %v317 = vld [vmem:[%s166 + $0x478] sm:$0xff]
      %v318 = vld [vmem:[%s166 + $0x480] sm:$0xff]
      %v319 = vld [vmem:[%s166 + $0x488] sm:$0xff]
      %v320 = vld [vmem:[%s166 + $0x490] sm:$0xff]
      %v321 = vld [vmem:[%s166 + $0x498] sm:$0xff]
      %v322 = vld [vmem:[%s166 + $0x4a0] sm:$0xff]
      %v323 = vld [vmem:[%s166 + $0x4a8] sm:$0xff]
      %v324 = vld [vmem:[%s166 + $0x4b0] sm:$0xff]
      %v325 = vld [vmem:[%s166 + $0x4b8] sm:$0xff]
      %v326 = vld [vmem:[%s166 + $0x4c0] sm:$0xff]
      %v327 = vld [vmem:[%s166 + $0x4c8] sm:$0xff]
      %v328 = vld [vmem:[%s166 + $0x4d0] sm:$0xff]
      %v329 = vld [vmem:[%s166 + $0x4d8] sm:$0xff]
      %v330 = vld [vmem:[%s166 + $0x4e0] sm:$0xff]
      %v331 = vld [vmem:[%s166 + $0x4e8] sm:$0xff]
      %v332 = vld [vmem:[%s166 + $0x4f0] sm:$0xff]
      %v333 = vld [vmem:[%s166 + $0x4f8] sm:$0xff]
      %v334 = vld [vmem:[%s166 + $0x500] sm:$0xff]
      %v335 = vld [vmem:[%s166 + $0x508] sm:$0xff]
      %v336 = vld [vmem:[%s166 + $0x510] sm:$0xff]
      %v337 = vld [vmem:[%s166 + $0x518] sm:$0xff]
      %v338 = vld [vmem:[%s166 + $0x520] sm:$0xff]
      %v339 = vld [vmem:[%s166 + $0x528] sm:$0xff]
      %v340 = vld [vmem:[%s166 + $0x530] sm:$0xff]
      %v341 = vld [vmem:[%s166 + $0x538] sm:$0xff]
      %v342 = vld [vmem:[%s166 + $0x540] sm:$0xff]
      %v343 = vld [vmem:[%s166 + $0x548] sm:$0xff]
      %v344 = vld [vmem:[%s166 + $0x550] sm:$0xff]
      %v345 = vld [vmem:[%s166 + $0x558] sm:$0xff]
      %v346 = vld [vmem:[%s166 + $0x560] sm:$0xff]
      %v347 = vld [vmem:[%s166 + $0x568] sm:$0xff]
      %v348 = vld [vmem:[%s166 + $0x570] sm:$0xff]
      %v349 = vld [vmem:[%s166 + $0x578] sm:$0xff]
      %v350 = vld [vmem:[%s166 + $0x580] sm:$0xff]
      %v351 = vld [vmem:[%s166 + $0x588] sm:$0xff]
      %v352 = vld [vmem:[%s166 + $0x590] sm:$0xff]
      %v353 = vld [vmem:[%s166 + $0x598] sm:$0xff]
      %v354 = vld [vmem:[%s166 + $0x5a0] sm:$0xff]
      %v355 = vld [vmem:[%s166 + $0x5a8] sm:$0xff]
      %v356 = vld [vmem:[%s166 + $0x5b0] sm:$0xff]
      %v357 = vld [vmem:[%s166 + $0x5b8] sm:$0xff]
      %v358 = vld [vmem:[%s166 + $0x5c0] sm:$0xff]
      %v359 = vld [vmem:[%s166 + $0x5c8] sm:$0xff]
      %v360 = vld [vmem:[%s166 + $0x5d0] sm:$0xff]
      %v361 = vld [vmem:[%s166 + $0x5d8] sm:$0xff]
      %v362 = vld [vmem:[%s166 + $0x5e0] sm:$0xff]
      %v363 = vld [vmem:[%s166 + $0x5e8] sm:$0xff]
      %v364 = vld [vmem:[%s166 + $0x5f0] sm:$0xff]
      %v365 = vld [vmem:[%s166 + $0x5f8] sm:$0xff]
      %v366 = vld [vmem:[%s166 + $0x600] sm:$0xff]
      %v367 = vld [vmem:[%s166 + $0x608] sm:$0xff]
      %v368 = vld [vmem:[%s166 + $0x610] sm:$0xff]
      %v369 = vld [vmem:[%s166 + $0x618] sm:$0xff]
      %v370 = vld [vmem:[%s166 + $0x620] sm:$0xff]
      %v371 = vld [vmem:[%s166 + $0x628] sm:$0xff]
      %v372 = vld [vmem:[%s166 + $0x630] sm:$0xff]
      %v373 = vld [vmem:[%s166 + $0x638] sm:$0xff]
      %v374 = vld [vmem:[%s166 + $0x640] sm:$0xff]
      %v375 = vld [vmem:[%s166 + $0x648] sm:$0xff]
      %v376 = vld [vmem:[%s166 + $0x650] sm:$0xff]
      %v377 = vld [vmem:[%s166 + $0x658] sm:$0xff]
      %v378 = vld [vmem:[%s166 + $0x660] sm:$0xff]
      %v379 = vld [vmem:[%s166 + $0x668] sm:$0xff]
      %v380 = vld [vmem:[%s166 + $0x670] sm:$0xff]
      %v381 = vld [vmem:[%s166 + $0x678] sm:$0xff]
      %v382 = vld [vmem:[%s166 + $0x680] sm:$0xff]
      %v383 = vld [vmem:[%s166 + $0x688] sm:$0xff]
      %v384 = vld [vmem:[%s166 + $0x690] sm:$0xff]
      %v385 = vld [vmem:[%s166 + $0x698] sm:$0xff]
      %v386 = vld [vmem:[%s166 + $0x6a0] sm:$0xff]
      %v387 = vld [vmem:[%s166 + $0x6a8] sm:$0xff]
      %v388 = vld [vmem:[%s166 + $0x6b0] sm:$0xff]
      %v389 = vld [vmem:[%s166 + $0x6b8] sm:$0xff]
      %v390 = vld [vmem:[%s166 + $0x6c0] sm:$0xff]
      %v391 = vld [vmem:[%s166 + $0x6c8] sm:$0xff]
      %v392 = vld [vmem:[%s166 + $0x6d0] sm:$0xff]
      %v393 = vld [vmem:[%s166 + $0x6d8] sm:$0xff]
      %v394 = vld [vmem:[%s166 + $0x6e0] sm:$0xff]
      %v395 = vld [vmem:[%s166 + $0x6e8] sm:$0xff]
      %v396 = vld [vmem:[%s166 + $0x6f0] sm:$0xff]
      %v397 = vld [vmem:[%s166 + $0x6f8] sm:$0xff]
      %v398 = vld [vmem:[%s166 + $0x700] sm:$0xff]
      %v399 = vld [vmem:[%s166 + $0x708] sm:$0xff]
      %v400 = vld [vmem:[%s166 + $0x710] sm:$0xff]
      %v401 = vld [vmem:[%s166 + $0x718] sm:$0xff]
      %v402 = vld [vmem:[%s166 + $0x720] sm:$0xff]
      %v403 = vld [vmem:[%s166 + $0x728] sm:$0xff]
      %v404 = vld [vmem:[%s166 + $0x730] sm:$0xff]
      %v405 = vld [vmem:[%s166 + $0x738] sm:$0xff]
      %v406 = vld [vmem:[%s166 + $0x740] sm:$0xff]
      %v407 = vld [vmem:[%s166 + $0x748] sm:$0xff]
      %v408 = vld [vmem:[%s166 + $0x750] sm:$0xff]
      %v409 = vld [vmem:[%s166 + $0x758] sm:$0xff]
      %v410 = vld [vmem:[%s166 + $0x760] sm:$0xff]
      %v411 = vld [vmem:[%s166 + $0x768] sm:$0xff]
      %v412 = vld [vmem:[%s166 + $0x770] sm:$0xff]
      %v413 = vld [vmem:[%s166 + $0x778] sm:$0xff]
      %v414 = vld [vmem:[%s166 + $0x780] sm:$0xff]
      %v415 = vld [vmem:[%s166 + $0x788] sm:$0xff]
      %v416 = vld [vmem:[%s166 + $0x790] sm:$0xff]
      %v417 = vld [vmem:[%s166 + $0x798] sm:$0xff]
      %v418 = vld [vmem:[%s166 + $0x7a0] sm:$0xff]
      %v419 = vld [vmem:[%s166 + $0x7a8] sm:$0xff]
      %v420 = vld [vmem:[%s166 + $0x7b0] sm:$0xff]
      %v421 = vld [vmem:[%s166 + $0x7b8] sm:$0xff]
      %v422 = vld [vmem:[%s166 + $0x7c0] sm:$0xff]
      %v423 = vld [vmem:[%s166 + $0x7c8] sm:$0xff]
      %v424 = vld [vmem:[%s166 + $0x7d0] sm:$0xff]
      %v425 = vld [vmem:[%s166 + $0x7d8] sm:$0xff]
      %v426 = vld [vmem:[%s166 + $0x7e0] sm:$0xff]
      %v427 = vld [vmem:[%s166 + $0x7e8] sm:$0xff]
      %v428 = vld [vmem:[%s166 + $0x7f0] sm:$0xff]
      %v429 = vld [vmem:[%s166 + $0x7f8] sm:$0xff]
      %v430 = vld [vmem:[%s166 + $0x800] sm:$0xff]
      %v431 = vld [vmem:[%s166 + $0x808] sm:$0xff]
      %v432 = vld [vmem:[%s166 + $0x810] sm:$0xff]
      %v433 = vld [vmem:[%s166 + $0x818] sm:$0xff]
      %v434 = vld [vmem:[%s166 + $0x820] sm:$0xff]
      %v435 = vld [vmem:[%s166 + $0x828] sm:$0xff]
      %v436 = vld [vmem:[%s166 + $0x830] sm:$0xff]
      %v437 = vld [vmem:[%s166 + $0x838] sm:$0xff]
      %v438 = vld [vmem:[%s166 + $0x840] sm:$0xff]
      %v439 = vld [vmem:[%s166 + $0x848] sm:$0xff]
      %v440 = vld [vmem:[%s166 + $0x850] sm:$0xff]
      %v441 = vld [vmem:[%s166 + $0x858] sm:$0xff]
      %v442 = vld [vmem:[%s166 + $0x860] sm:$0xff]
      %v443 = vld [vmem:[%s166 + $0x868] sm:$0xff]
      %v444 = vld [vmem:[%s166 + $0x870] sm:$0xff]
      %v445 = vld [vmem:[%s166 + $0x878] sm:$0xff]
      %v446 = vld [vmem:[%s166 + $0x880] sm:$0xff]
      %v447 = vld [vmem:[%s166 + $0x888] sm:$0xff]
      %v448 = vld [vmem:[%s166 + $0x890] sm:$0xff]
      %v449 = vld [vmem:[%s166 + $0x898] sm:$0xff]
      %v450 = vld [vmem:[%s166 + $0x8a0] sm:$0xff]
      %v451 = vld [vmem:[%s166 + $0x8a8] sm:$0xff]
      %v452 = vld [vmem:[%s166 + $0x8b0] sm:$0xff]
      %v453 = vld [vmem:[%s166 + $0x8b8] sm:$0xff]
      %v454 = vld [vmem:[%s166 + $0x8c0] sm:$0xff]
      %v455 = vld [vmem:[%s166 + $0x8c8] sm:$0xff]
      %v456 = vld [vmem:[%s166 + $0x8d0] sm:$0xff]
      %v457 = vld [vmem:[%s166 + $0x8d8] sm:$0xff]
      %v458 = vld [vmem:[%s166 + $0x8e0] sm:$0xff]
      %v459 = vld [vmem:[%s166 + $0x8e8] sm:$0xff]
      %v460 = vld [vmem:[%s166 + $0x8f0] sm:$0xff]
      %v461 = vld [vmem:[%s166 + $0x8f8] sm:$0xff]
      %v462 = vld [vmem:[%s166 + $0x900] sm:$0xff]
      %v463 = vld [vmem:[%s166 + $0x908] sm:$0xff]
      %v464 = vld [vmem:[%s166 + $0x910] sm:$0xff]
      %v465 = vld [vmem:[%s166 + $0x918] sm:$0xff]
      %v466 = vld [vmem:[%s166 + $0x920] sm:$0xff]
      %v467 = vld [vmem:[%s166 + $0x928] sm:$0xff]
      %v468 = vld [vmem:[%s166 + $0x930] sm:$0xff]
      %v469 = vld [vmem:[%s166 + $0x938] sm:$0xff]
      %v470 = vld [vmem:[%s166 + $0x940] sm:$0xff]
      %v471 = vld [vmem:[%s166 + $0x948] sm:$0xff]
      %v472 = vld [vmem:[%s166 + $0x950] sm:$0xff]
      %v473 = vld [vmem:[%s166 + $0x958] sm:$0xff]
      %v474 = vld [vmem:[%s166 + $0x960] sm:$0xff]
      %v475 = vld [vmem:[%s166 + $0x968] sm:$0xff]
      %v476 = vld [vmem:[%s166 + $0x970] sm:$0xff]
      %v477 = vld [vmem:[%s166 + $0x978] sm:$0xff]
      %v478 = vld [vmem:[%s166 + $0x980] sm:$0xff]
      %v479 = vld [vmem:[%s166 + $0x988] sm:$0xff]
      %v480 = vld [vmem:[%s166 + $0x990] sm:$0xff]
      %v481 = vld [vmem:[%s166 + $0x998] sm:$0xff]
      %v482 = vld [vmem:[%s166 + $0x9a0] sm:$0xff]
      %v483 = vld [vmem:[%s166 + $0x9a8] sm:$0xff]
      %v484 = vld [vmem:[%s166 + $0x9b0] sm:$0xff]
      %v485 = vld [vmem:[%s166 + $0x9b8] sm:$0xff]
      %v486 = vld [vmem:[%s166 + $0x9c0] sm:$0xff]
      %v487 = vld [vmem:[%s166 + $0x9c8] sm:$0xff]
      %v488 = vld [vmem:[%s166 + $0x9d0] sm:$0xff]
      %v489 = vld [vmem:[%s166 + $0x9d8] sm:$0xff]
      %v490 = vld [vmem:[%s166 + $0x9e0] sm:$0xff]
      %v491 = vld [vmem:[%s166 + $0x9e8] sm:$0xff]
      %v492 = vld [vmem:[%s166 + $0x9f0] sm:$0xff]
      %v493 = vld [vmem:[%s166 + $0x9f8] sm:$0xff]
      %v494 = vld [vmem:[%s166 + $0xa00] sm:$0xff]
      %v495 = vld [vmem:[%s166 + $0xa08] sm:$0xff]
      %v496 = vld [vmem:[%s166 + $0xa10] sm:$0xff]
      %v497 = vld [vmem:[%s166 + $0xa18] sm:$0xff]
      %v498 = vld [vmem:[%s166 + $0xa20] sm:$0xff]
      %v499 = vld [vmem:[%s166 + $0xa28] sm:$0xff]
      %v500 = vld [vmem:[%s166 + $0xa30] sm:$0xff]
      %v501 = vld [vmem:[%s166 + $0xa38] sm:$0xff]
      %v502 = vld [vmem:[%s166 + $0xa40] sm:$0xff]
      %v503 = vld [vmem:[%s166 + $0xa48] sm:$0xff]
      %v504 = vld [vmem:[%s166 + $0xa50] sm:$0xff]
      %v505 = vld [vmem:[%s166 + $0xa58] sm:$0xff]
      %v506 = vld [vmem:[%s166 + $0xa60] sm:$0xff]
      %v507 = vld [vmem:[%s166 + $0xa68] sm:$0xff]
      %v508 = vld [vmem:[%s166 + $0xa70] sm:$0xff]
      %v509 = vld [vmem:[%s166 + $0xa78] sm:$0xff]
      %v510 = vld [vmem:[%s166 + $0xa80] sm:$0xff]
      %v511 = vld [vmem:[%s166 + $0xa88] sm:$0xff]
      %v512 = vld [vmem:[%s166 + $0xa90] sm:$0xff]
      %v513 = vld [vmem:[%s166 + $0xa98] sm:$0xff]
      %v514 = vld [vmem:[%s166 + $0xaa0] sm:$0xff]
      %v515 = vld [vmem:[%s166 + $0xaa8] sm:$0xff]
      %v516 = vld [vmem:[%s166 + $0xab0] sm:$0xff]
      %v517 = vld [vmem:[%s166 + $0xab8] sm:$0xff]
      %v518 = vld [vmem:[%s166 + $0xac0] sm:$0xff]
      %v519 = vld [vmem:[%s166 + $0xac8] sm:$0xff]
      %v520 = vld [vmem:[%s166 + $0xad0] sm:$0xff]
      %v521 = vld [vmem:[%s166 + $0xad8] sm:$0xff]
      %v522 = vld [vmem:[%s166 + $0xae0] sm:$0xff]
      %v523 = vld [vmem:[%s166 + $0xae8] sm:$0xff]
      %v524 = vld [vmem:[%s166 + $0xaf0] sm:$0xff]
      %v525 = vld [vmem:[%s166 + $0xaf8] sm:$0xff]
      %v526 = vld [vmem:[%s166 + $0xb00] sm:$0xff]
      %v527 = vld [vmem:[%s166 + $0xb08] sm:$0xff]
      %v528 = vld [vmem:[%s166 + $0xb10] sm:$0xff]
      %v529 = vld [vmem:[%s166 + $0xb18] sm:$0xff]
      %v530 = vld [vmem:[%s166 + $0xb20] sm:$0xff]
      %v531 = vld [vmem:[%s166 + $0xb28] sm:$0xff]
      %v532 = vld [vmem:[%s166 + $0xb30] sm:$0xff]
      %v533 = vld [vmem:[%s1] sm:$0xff]
      %v534 = vld [vmem:[%s1 + $0x8] sm:$0xff]
      %v535 = vld [vmem:[%s1 + $0x10] sm:$0xff]
      %v536 = vld [vmem:[%s1 + $0x18] sm:$0xff]
      %v537 = vld [vmem:[%s1 + $0x20] sm:$0xff]
      %v538 = vld [vmem:[%s1 + $0x28] sm:$0xff]
      %v539 = vld [vmem:[%s2] sm:$0x1]
      %v541 = vlaneseq
      %v542 = vshrl.u32 %v541, 7
      %v543 = vsub.s32 0, %v542
      %v544 = vrot.slane %v539, %v543
      %vm546 = vcmask 392192
      %v548 = vsel %vm546, %v174, 0
      %v551 = vsel %vm546, %v175, 0
      %v554 = vsel %vm546, %v176, 0
      %v557 = vsel %vm546, %v177, 0
      %v560 = vsel %vm546, %v178, 0
      %v563 = vsel %vm546, %v179, 0
      %v566 = vsel %vm546, %v180, 0
      %v569 = vsel %vm546, %v181, 0
      %v572 = vsel %vm546, %v182, 0
      %v575 = vsel %vm546, %v183, 0
      %v578 = vsel %vm546, %v184, 0
      %v581 = vsel %vm546, %v185, 0
      %v584 = vsel %vm546, %v186, 0
      %v587 = vsel %vm546, %v187, 0
      %v590 = vsel %vm546, %v188, 0
      %v593 = vsel %vm546, %v189, 0
      %v596 = vsel %vm546, %v190, 0
      %v599 = vsel %vm546, %v191, 0
      %v602 = vsel %vm546, %v192, 0
      %v605 = vsel %vm546, %v193, 0
      %v608 = vsel %vm546, %v194, 0
      %v611 = vsel %vm546, %v195, 0
      %v614 = vsel %vm546, %v196, 0
      %v617 = vsel %vm546, %v197, 0
      %v620 = vsel %vm546, %v198, 0
      %v623 = vsel %vm546, %v199, 0
      %v626 = vsel %vm546, %v200, 0
      %v629 = vsel %vm546, %v201, 0
      %v632 = vsel %vm546, %v202, 0
      %v635 = vsel %vm546, %v203, 0
      %v638 = vsel %vm546, %v204, 0
      %v641 = vsel %vm546, %v205, 0
      %v644 = vsel %vm546, %v206, 0
      %v647 = vsel %vm546, %v207, 0
      %v650 = vsel %vm546, %v208, 0
      %v653 = vsel %vm546, %v209, 0
      %v656 = vsel %vm546, %v210, 0
      %v659 = vsel %vm546, %v211, 0
      %v662 = vsel %vm546, %v212, 0
      %v665 = vsel %vm546, %v213, 0
      %v668 = vsel %vm546, %v214, 0
      %v671 = vsel %vm546, %v215, 0
      %v674 = vsel %vm546, %v216, 0
      %v677 = vsel %vm546, %v217, 0
      %v680 = vsel %vm546, %v218, 0
      %v683 = vsel %vm546, %v219, 0
      %v686 = vsel %vm546, %v220, 0
      %v689 = vsel %vm546, %v221, 0
      %v692 = vsel %vm546, %v222, 0
      %v695 = vsel %vm546, %v223, 0
      %v698 = vsel %vm546, %v224, 0
      %v701 = vsel %vm546, %v225, 0
      %v704 = vsel %vm546, %v226, 0
      %v707 = vsel %vm546, %v227, 0
      %v710 = vsel %vm546, %v228, 0
      %v713 = vsel %vm546, %v229, 0
      %v716 = vsel %vm546, %v230, 0
      %v719 = vsel %vm546, %v231, 0
      %v722 = vsel %vm546, %v232, 0
      %v725 = vsel %vm546, %v233, 0
      %v728 = vsel %vm546, %v234, 0
      %v731 = vsel %vm546, %v235, 0
      %v734 = vsel %vm546, %v236, 0
      %v737 = vsel %vm546, %v237, 0
      %v740 = vsel %vm546, %v238, 0
      %v743 = vsel %vm546, %v239, 0
      %v746 = vsel %vm546, %v240, 0
      %v749 = vsel %vm546, %v241, 0
      %v752 = vsel %vm546, %v242, 0
      %v755 = vsel %vm546, %v243, 0
      %v758 = vsel %vm546, %v244, 0
      %v761 = vsel %vm546, %v245, 0
      %v764 = vsel %vm546, %v246, 0
      %v767 = vsel %vm546, %v247, 0
      %v770 = vsel %vm546, %v248, 0
      %v773 = vsel %vm546, %v249, 0
      %v776 = vsel %vm546, %v250, 0
      %v779 = vsel %vm546, %v251, 0
      %v782 = vsel %vm546, %v252, 0
      %v785 = vsel %vm546, %v253, 0
      %v788 = vsel %vm546, %v254, 0
      %v791 = vsel %vm546, %v255, 0
      %v794 = vsel %vm546, %v256, 0
      %v797 = vsel %vm546, %v257, 0
      %v800 = vsel %vm546, %v258, 0
      %v803 = vsel %vm546, %v259, 0
      %v806 = vsel %vm546, %v260, 0
      %v809 = vsel %vm546, %v261, 0
      %v812 = vsel %vm546, %v262, 0
      %v815 = vsel %vm546, %v263, 0
      %v818 = vsel %vm546, %v264, 0
      %v821 = vsel %vm546, %v265, 0
      %v824 = vsel %vm546, %v266, 0
      %v827 = vsel %vm546, %v267, 0
      %v830 = vsel %vm546, %v268, 0
      %v833 = vsel %vm546, %v269, 0
      %v836 = vsel %vm546, %v270, 0
      %v839 = vsel %vm546, %v271, 0
      %v842 = vsel %vm546, %v272, 0
      %v845 = vsel %vm546, %v273, 0
      %v848 = vsel %vm546, %v274, 0
      %v851 = vsel %vm546, %v275, 0
      %v854 = vsel %vm546, %v276, 0
      %v857 = vsel %vm546, %v277, 0
      %v860 = vsel %vm546, %v278, 0
      %v863 = vsel %vm546, %v279, 0
      %v866 = vsel %vm546, %v280, 0
      %v869 = vsel %vm546, %v281, 0
      %v872 = vsel %vm546, %v282, 0
      %v875 = vsel %vm546, %v283, 0
      %v878 = vsel %vm546, %v284, 0
      %v881 = vsel %vm546, %v285, 0
      %v884 = vsel %vm546, %v286, 0
      %v887 = vsel %vm546, %v287, 0
      %v890 = vsel %vm546, %v288, 0
      %v893 = vsel %vm546, %v289, 0
      %v896 = vsel %vm546, %v290, 0
      %v899 = vsel %vm546, %v291, 0
      %v902 = vsel %vm546, %v292, 0
      %v905 = vsel %vm546, %v293, 0
      %v908 = vsel %vm546, %v294, 0
      %v911 = vsel %vm546, %v295, 0
      %v914 = vsel %vm546, %v296, 0
      %v917 = vsel %vm546, %v297, 0
      %v920 = vsel %vm546, %v298, 0
      %v923 = vsel %vm546, %v299, 0
      %v926 = vsel %vm546, %v300, 0
      %v929 = vsel %vm546, %v301, 0
      %v932 = vsel %vm546, %v302, 0
      %v935 = vsel %vm546, %v303, 0
      %v938 = vsel %vm546, %v304, 0
      %v941 = vsel %vm546, %v305, 0
      %v944 = vsel %vm546, %v306, 0
      %v947 = vsel %vm546, %v307, 0
      %v950 = vsel %vm546, %v308, 0
      %v953 = vsel %vm546, %v309, 0
      %v956 = vsel %vm546, %v310, 0
      %v959 = vsel %vm546, %v311, 0
      %v962 = vsel %vm546, %v312, 0
      %v965 = vsel %vm546, %v313, 0
      %v968 = vsel %vm546, %v314, 0
      %v971 = vsel %vm546, %v315, 0
      %v974 = vsel %vm546, %v316, 0
      %v977 = vsel %vm546, %v317, 0
      %v980 = vsel %vm546, %v318, 0
      %v983 = vsel %vm546, %v319, 0
      %v986 = vsel %vm546, %v320, 0
      %v989 = vsel %vm546, %v321, 0
      %v992 = vsel %vm546, %v322, 0
      %v995 = vsel %vm546, %v323, 0
      %v998 = vsel %vm546, %v324, 0
      %v1001 = vsel %vm546, %v325, 0
      %v1004 = vsel %vm546, %v326, 0
      %v1007 = vsel %vm546, %v327, 0
      %v1010 = vsel %vm546, %v328, 0
      %v1013 = vsel %vm546, %v329, 0
      %v1016 = vsel %vm546, %v330, 0
      %v1019 = vsel %vm546, %v331, 0
      %v1022 = vsel %vm546, %v332, 0
      %v1025 = vsel %vm546, %v333, 0
      %v1028 = vsel %vm546, %v334, 0
      %v1031 = vsel %vm546, %v335, 0
      %v1034 = vsel %vm546, %v336, 0
      %v1037 = vsel %vm546, %v337, 0
      %v1040 = vsel %vm546, %v338, 0
      %v1043 = vsel %vm546, %v339, 0
      %v1046 = vsel %vm546, %v340, 0
      %v1049 = vsel %vm546, %v341, 0
      %v1052 = vsel %vm546, %v342, 0
      %v1055 = vsel %vm546, %v343, 0
      %v1058 = vsel %vm546, %v344, 0
      %v1061 = vsel %vm546, %v345, 0
      %v1064 = vsel %vm546, %v346, 0
      %v1067 = vsel %vm546, %v347, 0
      %v1070 = vsel %vm546, %v348, 0
      %v1073 = vsel %vm546, %v349, 0
      %v1076 = vsel %vm546, %v350, 0
      %v1079 = vsel %vm546, %v351, 0
      %v1082 = vsel %vm546, %v352, 0
      %v1085 = vsel %vm546, %v353, 0
      %v1088 = vsel %vm546, %v354, 0
      %v1091 = vsel %vm546, %v355, 0
      %v1094 = vsel %vm546, %v356, 0
      %v1097 = vsel %vm546, %v357, 0
      %v1100 = vsel %vm546, %v358, 0
      %v1103 = vsel %vm546, %v359, 0
      %v1106 = vsel %vm546, %v360, 0
      %v1109 = vsel %vm546, %v361, 0
      %v1112 = vsel %vm546, %v362, 0
      %v1115 = vsel %vm546, %v363, 0
      %v1118 = vsel %vm546, %v364, 0
      %v1121 = vsel %vm546, %v365, 0
      %v1124 = vsel %vm546, %v366, 0
      %v1127 = vsel %vm546, %v367, 0
      %v1130 = vsel %vm546, %v368, 0
      %v1133 = vsel %vm546, %v369, 0
      %v1136 = vsel %vm546, %v370, 0
      %v1139 = vsel %vm546, %v371, 0
      %v1142 = vsel %vm546, %v372, 0
      %v1145 = vsel %vm546, %v373, 0
      %v1148 = vsel %vm546, %v374, 0
      %v1151 = vsel %vm546, %v375, 0
      %v1154 = vsel %vm546, %v376, 0
      %v1157 = vsel %vm546, %v377, 0
      %v1160 = vsel %vm546, %v378, 0
      %v1163 = vsel %vm546, %v379, 0
      %v1166 = vsel %vm546, %v380, 0
      %v1169 = vsel %vm546, %v381, 0
      %v1172 = vsel %vm546, %v382, 0
      %v1175 = vsel %vm546, %v383, 0
      %v1178 = vsel %vm546, %v384, 0
      %v1181 = vsel %vm546, %v385, 0
      %v1184 = vsel %vm546, %v386, 0
      %v1187 = vsel %vm546, %v387, 0
      %v1190 = vsel %vm546, %v388, 0
      %v1193 = vsel %vm546, %v389, 0
      %v1196 = vsel %vm546, %v390, 0
      %v1199 = vsel %vm546, %v391, 0
      %v1202 = vsel %vm546, %v392, 0
      %v1205 = vsel %vm546, %v393, 0
      %v1208 = vsel %vm546, %v394, 0
      %v1211 = vsel %vm546, %v395, 0
      %v1214 = vsel %vm546, %v396, 0
      %v1217 = vsel %vm546, %v397, 0
      %v1220 = vsel %vm546, %v398, 0
      %v1223 = vsel %vm546, %v399, 0
      %v1226 = vsel %vm546, %v400, 0
      %v1229 = vsel %vm546, %v401, 0
      %v1232 = vsel %vm546, %v402, 0
      %v1235 = vsel %vm546, %v403, 0
      %v1238 = vsel %vm546, %v404, 0
      %v1241 = vsel %vm546, %v405, 0
      %v1244 = vsel %vm546, %v406, 0
      %v1247 = vsel %vm546, %v407, 0
      %v1250 = vsel %vm546, %v408, 0
      %v1253 = vsel %vm546, %v409, 0
      %v1256 = vsel %vm546, %v410, 0
      %v1259 = vsel %vm546, %v411, 0
      %v1262 = vsel %vm546, %v412, 0
      %v1265 = vsel %vm546, %v413, 0
      %v1268 = vsel %vm546, %v414, 0
      %v1271 = vsel %vm546, %v415, 0
      %v1274 = vsel %vm546, %v416, 0
      %v1277 = vsel %vm546, %v417, 0
      %v1280 = vsel %vm546, %v418, 0
      %v1283 = vsel %vm546, %v419, 0
      %v1286 = vsel %vm546, %v420, 0
      %v1289 = vsel %vm546, %v421, 0
      %v1292 = vsel %vm546, %v422, 0
      %v1295 = vsel %vm546, %v423, 0
      %v1298 = vsel %vm546, %v424, 0
      %v1301 = vsel %vm546, %v425, 0
      %v1304 = vsel %vm546, %v426, 0
      %v1307 = vsel %vm546, %v427, 0
      %v1310 = vsel %vm546, %v428, 0
      %v1313 = vsel %vm546, %v429, 0
      %v1316 = vsel %vm546, %v430, 0
      %v1319 = vsel %vm546, %v431, 0
      %v1322 = vsel %vm546, %v432, 0
      %v1325 = vsel %vm546, %v433, 0
      %v1328 = vsel %vm546, %v434, 0
      %v1331 = vsel %vm546, %v435, 0
      %v1334 = vsel %vm546, %v436, 0
      %v1337 = vsel %vm546, %v437, 0
      %v1340 = vsel %vm546, %v438, 0
      %v1343 = vsel %vm546, %v439, 0
      %v1346 = vsel %vm546, %v440, 0
      %v1349 = vsel %vm546, %v441, 0
      %v1352 = vsel %vm546, %v442, 0
      %v1355 = vsel %vm546, %v443, 0
      %v1358 = vsel %vm546, %v444, 0
      %v1361 = vsel %vm546, %v445, 0
      %v1364 = vsel %vm546, %v446, 0
      %v1367 = vsel %vm546, %v447, 0
      %v1370 = vsel %vm546, %v448, 0
      %v1373 = vsel %vm546, %v449, 0
      %v1376 = vsel %vm546, %v450, 0
      %v1379 = vsel %vm546, %v451, 0
      %v1382 = vsel %vm546, %v452, 0
      %v1385 = vsel %vm546, %v453, 0
      %v1388 = vsel %vm546, %v454, 0
      %v1391 = vsel %vm546, %v455, 0
      %v1394 = vsel %vm546, %v456, 0
      %v1397 = vsel %vm546, %v457, 0
      %v1400 = vsel %vm546, %v458, 0
      %v1403 = vsel %vm546, %v459, 0
      %v1406 = vsel %vm546, %v460, 0
      %v1409 = vsel %vm546, %v461, 0
      %v1412 = vsel %vm546, %v462, 0
      %v1415 = vsel %vm546, %v463, 0
      %v1418 = vsel %vm546, %v464, 0
      %v1421 = vsel %vm546, %v465, 0
      %v1424 = vsel %vm546, %v466, 0
      %v1427 = vsel %vm546, %v467, 0
      %v1430 = vsel %vm546, %v468, 0
      %v1433 = vsel %vm546, %v469, 0
      %v1436 = vsel %vm546, %v470, 0
      %v1439 = vsel %vm546, %v471, 0
      %v1442 = vsel %vm546, %v472, 0
      %v1445 = vsel %vm546, %v473, 0
      %v1448 = vsel %vm546, %v474, 0
      %v1451 = vsel %vm546, %v475, 0
      %v1454 = vsel %vm546, %v476, 0
      %v1457 = vsel %vm546, %v477, 0
      %v1460 = vsel %vm546, %v478, 0
      %v1463 = vsel %vm546, %v479, 0
      %v1466 = vsel %vm546, %v480, 0
      %v1469 = vsel %vm546, %v481, 0
      %v1472 = vsel %vm546, %v482, 0
      %v1475 = vsel %vm546, %v483, 0
      %v1478 = vsel %vm546, %v484, 0
      %v1481 = vsel %vm546, %v485, 0
      %v1484 = vsel %vm546, %v486, 0
      %v1487 = vsel %vm546, %v487, 0
      %v1490 = vsel %vm546, %v488, 0
      %v1493 = vsel %vm546, %v489, 0
      %v1496 = vsel %vm546, %v490, 0
      %v1499 = vsel %vm546, %v491, 0
      %v1502 = vsel %vm546, %v492, 0
      %v1505 = vsel %vm546, %v493, 0
      %v1508 = vsel %vm546, %v494, 0
      %v1511 = vsel %vm546, %v495, 0
      %v1514 = vsel %vm546, %v496, 0
      %v1517 = vsel %vm546, %v497, 0
      %v1520 = vsel %vm546, %v498, 0
      %v1523 = vsel %vm546, %v499, 0
      %v1526 = vsel %vm546, %v500, 0
      %v1529 = vsel %vm546, %v501, 0
      %v1532 = vsel %vm546, %v502, 0
      %v1535 = vsel %vm546, %v503, 0
      %v1538 = vsel %vm546, %v504, 0
      %v1541 = vsel %vm546, %v505, 0
      %v1544 = vsel %vm546, %v506, 0
      %v1547 = vsel %vm546, %v507, 0
      %v1550 = vsel %vm546, %v508, 0
      %v1553 = vsel %vm546, %v509, 0
      %v1556 = vsel %vm546, %v510, 0
      %v1559 = vsel %vm546, %v511, 0
      %v1562 = vsel %vm546, %v512, 0
      %v1565 = vsel %vm546, %v513, 0
      %v1568 = vsel %vm546, %v514, 0
      %v1571 = vsel %vm546, %v515, 0
      %v1574 = vsel %vm546, %v516, 0
      %v1577 = vsel %vm546, %v517, 0
      %v1580 = vsel %vm546, %v518, 0
      %v1583 = vsel %vm546, %v519, 0
      %v1586 = vsel %vm546, %v520, 0
      %v1589 = vsel %vm546, %v521, 0
      %v1592 = vsel %vm546, %v522, 0
      %v1595 = vsel %vm546, %v523, 0
      %v1598 = vsel %vm546, %v524, 0
      %v1601 = vsel %vm546, %v525, 0
      %v1604 = vsel %vm546, %v526, 0
      %v1607 = vsel %vm546, %v527, 0
      %v1610 = vsel %vm546, %v528, 0
      %v1613 = vsel %vm546, %v529, 0
      %v1616 = vsel %vm546, %v530, 0
      %v1619 = vsel %vm546, %v531, 0
      %v1622 = vsel %vm546, %v532, 0
      %1624 = vmatprep.subr.mxu0 0.0
      %1625 = vmatpush1.msra.mxu0 0.0
      %1626 = vmatprep.subr.mxu0 0.0
      %1627 = vmatpush1.msra.mxu0 0.0
      %1628 = vmatprep.subr.mxu0 0.0
      %1629 = vmatpush1.msra.mxu0 0.0
      %1630 = vmatprep.subr.mxu0 0.0
      %1631 = vmatpush1.msra.mxu0 0.0
      %1632 = vmatprep.subr.mxu0 0.0
      %1633 = vmatpush1.msra.mxu0 0.0
      %1634 = vmatprep.subr.mxu0 0.0
      %1635 = vmatpush1.msra.mxu0 0.0
      %1636 = vmatprep.subr.mxu0 0.0
      %1637 = vmatpush1.msra.mxu0 0.0
      %1638 = vmatprep.subr.mxu0 0.0
      %1639 = vmatpush1.msra.mxu0 0.0
      %1640 = vmatprep.subr.mxu0 0.0
      %1641 = vmatpush1.msra.mxu0 0.0
      %1642 = vmatprep.subr.mxu0 0.0
      %1643 = vmatpush1.msra.mxu0 0.0
      %1644 = vmatprep.subr.mxu0 0.0
      %1645 = vmatpush1.msra.mxu0 %v538
      %1646 = vmatprep.subr.mxu0 0.0
      %1647 = vmatpush1.msra.mxu0 %v537
      %1648 = vmatprep.subr.mxu0 0.0
      %1649 = vmatpush1.msra.mxu0 %v536
      %1650 = vmatprep.subr.mxu0 0.0
      %1651 = vmatpush1.msra.mxu0 %v535
      %1652 = vmatprep.subr.mxu0 0.0
      %1653 = vmatpush1.msra.mxu0 %v534
      %1654 = vmatprep.subr.mxu0 0.0
      %1655 = vmatpush1.msra.mxu0 %v533
      %1656 = vmatprep.subr.mxu0 0.0
      %1657 = vmatpush2.msra.mxu0 0.0
      %1658 = vmatprep.subr.mxu0 0.0
      %1659 = vmatpush2.msra.mxu0 0.0
      %1660 = vmatprep.subr.mxu0 0.0
      %1661 = vmatpush2.msra.mxu0 0.0
      %1662 = vmatprep.subr.mxu0 0.0
      %1663 = vmatpush2.msra.mxu0 0.0
      %1664 = vmatprep.subr.mxu0 0.0
      %1665 = vmatpush2.msra.mxu0 0.0
      %1666 = vmatprep.subr.mxu0 0.0
      %1667 = vmatpush2.msra.mxu0 0.0
      %1668 = vmatprep.subr.mxu0 0.0
      %1669 = vmatpush2.msra.mxu0 0.0
      %1670 = vmatprep.subr.mxu0 0.0
      %1671 = vmatpush2.msra.mxu0 0.0
      %1672 = vmatprep.subr.mxu0 0.0
      %1673 = vmatpush2.msra.mxu0 0.0
      %1674 = vmatprep.subr.mxu0 0.0
      %1675 = vmatpush2.msra.mxu0 0.0
      %1676 = vmatprep.subr.mxu0 0.0
      %1677 = vmatpush2.msra.mxu0 0.0
      %1678 = vmatprep.subr.mxu0 0.0
      %1679 = vmatpush2.msra.mxu0 0.0
      %1680 = vmatprep.subr.mxu0 0.0
      %1681 = vmatpush2.msra.mxu0 0.0
      %1682 = vmatprep.subr.mxu0 0.0
      %1683 = vmatpush2.msra.mxu0 0.0
      %1684 = vmatprep.subr.mxu0 0.0
      %1685 = vmatpush2.msra.mxu0 0.0
      %1686 = vmatprep.subr.mxu0 0.0
      %1687 = vmatpush2.msra.mxu0 0.0
      %1688 = vmatprep.mubr.f32.mxu0 0.0
      %1689 = vmatmul.mubr.f32.gmra.mxu0 %v548
      %v1690 = vpop.f32.mrf.mxu0
      %v1691 = vadd.f32 %v544, %v1690
      %v1692 = vpop.f32.mrf.mxu0
      %1693 = vmatprep.mubr.f32.mxu0 0.0
      %1694 = vmatmul.mubr.f32.gmra.mxu0 %v551
      %v1695 = vpop.f32.mrf.mxu0
      %v1696 = vadd.f32 %v544, %v1695
      %v1697 = vpop.f32.mrf.mxu0
      %1698 = vmatprep.mubr.f32.mxu0 0.0
      %1699 = vmatmul.mubr.f32.gmra.mxu0 %v554
      %v1700 = vpop.f32.mrf.mxu0
      %v1701 = vadd.f32 %v544, %v1700
      %v1702 = vpop.f32.mrf.mxu0
      %1703 = vmatprep.mubr.f32.mxu0 0.0
      %1704 = vmatmul.mubr.f32.gmra.mxu0 %v557
      %v1705 = vpop.f32.mrf.mxu0
      %v1706 = vadd.f32 %v544, %v1705
      %v1707 = vpop.f32.mrf.mxu0
      %1708 = vmatprep.mubr.f32.mxu0 0.0
      %1709 = vmatmul.mubr.f32.gmra.mxu0 %v560
      %v1710 = vpop.f32.mrf.mxu0
      %v1711 = vadd.f32 %v544, %v1710
      %v1712 = vpop.f32.mrf.mxu0
      %1713 = vmatprep.mubr.f32.mxu0 0.0
      %1714 = vmatmul.mubr.f32.gmra.mxu0 %v563
      %v1715 = vpop.f32.mrf.mxu0
      %v1716 = vadd.f32 %v544, %v1715
      %v1717 = vpop.f32.mrf.mxu0
      %1718 = vmatprep.mubr.f32.mxu0 0.0
      %1719 = vmatmul.mubr.f32.gmra.mxu0 %v566
      %v1720 = vpop.f32.mrf.mxu0
      %v1721 = vadd.f32 %v544, %v1720
      %v1722 = vpop.f32.mrf.mxu0
      %1723 = vmatprep.mubr.f32.mxu0 0.0
      %1724 = vmatmul.mubr.f32.gmra.mxu0 %v569
      %v1725 = vpop.f32.mrf.mxu0
      %v1726 = vadd.f32 %v544, %v1725
      %v1727 = vpop.f32.mrf.mxu0
      %1728 = vmatprep.mubr.f32.mxu0 0.0
      %1729 = vmatmul.mubr.f32.gmra.mxu0 %v572
      %v1730 = vpop.f32.mrf.mxu0
      %v1731 = vadd.f32 %v544, %v1730
      %v1732 = vpop.f32.mrf.mxu0
      %1733 = vmatprep.mubr.f32.mxu0 0.0
      %1734 = vmatmul.mubr.f32.gmra.mxu0 %v575
      %v1735 = vpop.f32.mrf.mxu0
      %v1736 = vadd.f32 %v544, %v1735
      %v1737 = vpop.f32.mrf.mxu0
      %1738 = vmatprep.mubr.f32.mxu0 0.0
      %1739 = vmatmul.mubr.f32.gmra.mxu0 %v578
      %v1740 = vpop.f32.mrf.mxu0
      %v1741 = vadd.f32 %v544, %v1740
      %v1742 = vpop.f32.mrf.mxu0
      %1743 = vmatprep.mubr.f32.mxu0 0.0
      %1744 = vmatmul.mubr.f32.gmra.mxu0 %v581
      %v1745 = vpop.f32.mrf.mxu0
      %v1746 = vadd.f32 %v544, %v1745
      %v1747 = vpop.f32.mrf.mxu0
      %1748 = vmatprep.mubr.f32.mxu0 0.0
      %1749 = vmatmul.mubr.f32.gmra.mxu0 %v584
      %v1750 = vpop.f32.mrf.mxu0
      %v1751 = vadd.f32 %v544, %v1750
      %v1752 = vpop.f32.mrf.mxu0
      %1753 = vmatprep.mubr.f32.mxu0 0.0
      %1754 = vmatmul.mubr.f32.gmra.mxu0 %v587
      %v1755 = vpop.f32.mrf.mxu0
      %v1756 = vadd.f32 %v544, %v1755
      %v1757 = vpop.f32.mrf.mxu0
      %1758 = vmatprep.mubr.f32.mxu0 0.0
      %1759 = vmatmul.mubr.f32.gmra.mxu0 %v590
      %v1760 = vpop.f32.mrf.mxu0
      %v1761 = vadd.f32 %v544, %v1760
      %v1762 = vpop.f32.mrf.mxu0
      %1763 = vmatprep.mubr.f32.mxu0 0.0
      %1764 = vmatmul.mubr.f32.gmra.mxu0 %v593
      %v1765 = vpop.f32.mrf.mxu0
      %v1766 = vadd.f32 %v544, %v1765
      %v1767 = vpop.f32.mrf.mxu0
      %1768 = vmatprep.mubr.f32.mxu0 0.0
      %1769 = vmatmul.mubr.f32.gmra.mxu0 %v596
      %v1770 = vpop.f32.mrf.mxu0
      %v1771 = vadd.f32 %v544, %v1770
      %v1772 = vpop.f32.mrf.mxu0
      %1773 = vmatprep.mubr.f32.mxu0 0.0
      %1774 = vmatmul.mubr.f32.gmra.mxu0 %v599
      %v1775 = vpop.f32.mrf.mxu0
      %v1776 = vadd.f32 %v544, %v1775
      %v1777 = vpop.f32.mrf.mxu0
      %1778 = vmatprep.mubr.f32.mxu0 0.0
      %1779 = vmatmul.mubr.f32.gmra.mxu0 %v602
      %v1780 = vpop.f32.mrf.mxu0
      %v1781 = vadd.f32 %v544, %v1780
      %v1782 = vpop.f32.mrf.mxu0
      %1783 = vmatprep.mubr.f32.mxu0 0.0
      %1784 = vmatmul.mubr.f32.gmra.mxu0 %v605
      %v1785 = vpop.f32.mrf.mxu0
      %v1786 = vadd.f32 %v544, %v1785
      %v1787 = vpop.f32.mrf.mxu0
      %1788 = vmatprep.mubr.f32.mxu0 0.0
      %1789 = vmatmul.mubr.f32.gmra.mxu0 %v608
      %v1790 = vpop.f32.mrf.mxu0
      %v1791 = vadd.f32 %v544, %v1790
      %v1792 = vpop.f32.mrf.mxu0
      %1793 = vmatprep.mubr.f32.mxu0 0.0
      %1794 = vmatmul.mubr.f32.gmra.mxu0 %v611
      %v1795 = vpop.f32.mrf.mxu0
      %v1796 = vadd.f32 %v544, %v1795
      %v1797 = vpop.f32.mrf.mxu0
      %1798 = vmatprep.mubr.f32.mxu0 0.0
      %1799 = vmatmul.mubr.f32.gmra.mxu0 %v614
      %v1800 = vpop.f32.mrf.mxu0
      %v1801 = vadd.f32 %v544, %v1800
      %v1802 = vpop.f32.mrf.mxu0
      %1803 = vmatprep.mubr.f32.mxu0 0.0
      %1804 = vmatmul.mubr.f32.gmra.mxu0 %v617
      %v1805 = vpop.f32.mrf.mxu0
      %v1806 = vadd.f32 %v544, %v1805
      %v1807 = vpop.f32.mrf.mxu0
      %1808 = vmatprep.mubr.f32.mxu0 0.0
      %1809 = vmatmul.mubr.f32.gmra.mxu0 %v620
      %v1810 = vpop.f32.mrf.mxu0
      %v1811 = vadd.f32 %v544, %v1810
      %v1812 = vpop.f32.mrf.mxu0
      %1813 = vmatprep.mubr.f32.mxu0 0.0
      %1814 = vmatmul.mubr.f32.gmra.mxu0 %v623
      %v1815 = vpop.f32.mrf.mxu0
      %v1816 = vadd.f32 %v544, %v1815
      %v1817 = vpop.f32.mrf.mxu0
      %1818 = vmatprep.mubr.f32.mxu0 0.0
      %1819 = vmatmul.mubr.f32.gmra.mxu0 %v626
      %v1820 = vpop.f32.mrf.mxu0
      %v1821 = vadd.f32 %v544, %v1820
      %v1822 = vpop.f32.mrf.mxu0
      %1823 = vmatprep.mubr.f32.mxu0 0.0
      %1824 = vmatmul.mubr.f32.gmra.mxu0 %v629
      %v1825 = vpop.f32.mrf.mxu0
      %v1826 = vadd.f32 %v544, %v1825
      %v1827 = vpop.f32.mrf.mxu0
      %1828 = vmatprep.mubr.f32.mxu0 0.0
      %1829 = vmatmul.mubr.f32.gmra.mxu0 %v632
      %v1830 = vpop.f32.mrf.mxu0
      %v1831 = vadd.f32 %v544, %v1830
      %v1832 = vpop.f32.mrf.mxu0
      %1833 = vmatprep.mubr.f32.mxu0 0.0
      %1834 = vmatmul.mubr.f32.gmra.mxu0 %v635
      %v1835 = vpop.f32.mrf.mxu0
      %v1836 = vadd.f32 %v544, %v1835
      %v1837 = vpop.f32.mrf.mxu0
      %1838 = vmatprep.mubr.f32.mxu0 0.0
      %1839 = vmatmul.mubr.f32.gmra.mxu0 %v638
      %v1840 = vpop.f32.mrf.mxu0
      %v1841 = vadd.f32 %v544, %v1840
      %v1842 = vpop.f32.mrf.mxu0
      %1843 = vmatprep.mubr.f32.mxu0 0.0
      %1844 = vmatmul.mubr.f32.gmra.mxu0 %v641
      %v1845 = vpop.f32.mrf.mxu0
      %v1846 = vadd.f32 %v544, %v1845
      %v1847 = vpop.f32.mrf.mxu0
      %1848 = vmatprep.mubr.f32.mxu0 0.0
      %1849 = vmatmul.mubr.f32.gmra.mxu0 %v644
      %v1850 = vpop.f32.mrf.mxu0
      %v1851 = vadd.f32 %v544, %v1850
      %v1852 = vpop.f32.mrf.mxu0
      %1853 = vmatprep.mubr.f32.mxu0 0.0
      %1854 = vmatmul.mubr.f32.gmra.mxu0 %v647
      %v1855 = vpop.f32.mrf.mxu0
      %v1856 = vadd.f32 %v544, %v1855
      %v1857 = vpop.f32.mrf.mxu0
      %1858 = vmatprep.mubr.f32.mxu0 0.0
      %1859 = vmatmul.mubr.f32.gmra.mxu0 %v650
      %v1860 = vpop.f32.mrf.mxu0
      %v1861 = vadd.f32 %v544, %v1860
      %v1862 = vpop.f32.mrf.mxu0
      %1863 = vmatprep.mubr.f32.mxu0 0.0
      %1864 = vmatmul.mubr.f32.gmra.mxu0 %v653
      %v1865 = vpop.f32.mrf.mxu0
      %v1866 = vadd.f32 %v544, %v1865
      %v1867 = vpop.f32.mrf.mxu0
      %1868 = vmatprep.mubr.f32.mxu0 0.0
      %1869 = vmatmul.mubr.f32.gmra.mxu0 %v656
      %v1870 = vpop.f32.mrf.mxu0
      %v1871 = vadd.f32 %v544, %v1870
      %v1872 = vpop.f32.mrf.mxu0
      %1873 = vmatprep.mubr.f32.mxu0 0.0
      %1874 = vmatmul.mubr.f32.gmra.mxu0 %v659
      %v1875 = vpop.f32.mrf.mxu0
      %v1876 = vadd.f32 %v544, %v1875
      %v1877 = vpop.f32.mrf.mxu0
      %1878 = vmatprep.mubr.f32.mxu0 0.0
      %1879 = vmatmul.mubr.f32.gmra.mxu0 %v662
      %v1880 = vpop.f32.mrf.mxu0
      %v1881 = vadd.f32 %v544, %v1880
      %v1882 = vpop.f32.mrf.mxu0
      %1883 = vmatprep.mubr.f32.mxu0 0.0
      %1884 = vmatmul.mubr.f32.gmra.mxu0 %v665
      %v1885 = vpop.f32.mrf.mxu0
      %v1886 = vadd.f32 %v544, %v1885
      %v1887 = vpop.f32.mrf.mxu0
      %1888 = vmatprep.mubr.f32.mxu0 0.0
      %1889 = vmatmul.mubr.f32.gmra.mxu0 %v668
      %v1890 = vpop.f32.mrf.mxu0
      %v1891 = vadd.f32 %v544, %v1890
      %v1892 = vpop.f32.mrf.mxu0
      %1893 = vmatprep.mubr.f32.mxu0 0.0
      %1894 = vmatmul.mubr.f32.gmra.mxu0 %v671
      %v1895 = vpop.f32.mrf.mxu0
      %v1896 = vadd.f32 %v544, %v1895
      %v1897 = vpop.f32.mrf.mxu0
      %1898 = vmatprep.mubr.f32.mxu0 0.0
      %1899 = vmatmul.mubr.f32.gmra.mxu0 %v674
      %v1900 = vpop.f32.mrf.mxu0
      %v1901 = vadd.f32 %v544, %v1900
      %v1902 = vpop.f32.mrf.mxu0
      %1903 = vmatprep.mubr.f32.mxu0 0.0
      %1904 = vmatmul.mubr.f32.gmra.mxu0 %v677
      %v1905 = vpop.f32.mrf.mxu0
      %v1906 = vadd.f32 %v544, %v1905
      %v1907 = vpop.f32.mrf.mxu0
      %1908 = vmatprep.mubr.f32.mxu0 0.0
      %1909 = vmatmul.mubr.f32.gmra.mxu0 %v680
      %v1910 = vpop.f32.mrf.mxu0
      %v1911 = vadd.f32 %v544, %v1910
      %v1912 = vpop.f32.mrf.mxu0
      %1913 = vmatprep.mubr.f32.mxu0 0.0
      %1914 = vmatmul.mubr.f32.gmra.mxu0 %v683
      %v1915 = vpop.f32.mrf.mxu0
      %v1916 = vadd.f32 %v544, %v1915
      %v1917 = vpop.f32.mrf.mxu0
      %1918 = vmatprep.mubr.f32.mxu0 0.0
      %1919 = vmatmul.mubr.f32.gmra.mxu0 %v686
      %v1920 = vpop.f32.mrf.mxu0
      %v1921 = vadd.f32 %v544, %v1920
      %v1922 = vpop.f32.mrf.mxu0
      %1923 = vmatprep.mubr.f32.mxu0 0.0
      %1924 = vmatmul.mubr.f32.gmra.mxu0 %v689
      %v1925 = vpop.f32.mrf.mxu0
      %v1926 = vadd.f32 %v544, %v1925
      %v1927 = vpop.f32.mrf.mxu0
      %1928 = vmatprep.mubr.f32.mxu0 0.0
      %1929 = vmatmul.mubr.f32.gmra.mxu0 %v692
      %v1930 = vpop.f32.mrf.mxu0
      %v1931 = vadd.f32 %v544, %v1930
      %v1932 = vpop.f32.mrf.mxu0
      %1933 = vmatprep.mubr.f32.mxu0 0.0
      %1934 = vmatmul.mubr.f32.gmra.mxu0 %v695
      %v1935 = vpop.f32.mrf.mxu0
      %v1936 = vadd.f32 %v544, %v1935
      %v1937 = vpop.f32.mrf.mxu0
      %1938 = vmatprep.mubr.f32.mxu0 0.0
      %1939 = vmatmul.mubr.f32.gmra.mxu0 %v698
      %v1940 = vpop.f32.mrf.mxu0
      %v1941 = vadd.f32 %v544, %v1940
      %v1942 = vpop.f32.mrf.mxu0
      %1943 = vmatprep.mubr.f32.mxu0 0.0
      %1944 = vmatmul.mubr.f32.gmra.mxu0 %v701
      %v1945 = vpop.f32.mrf.mxu0
      %v1946 = vadd.f32 %v544, %v1945
      %v1947 = vpop.f32.mrf.mxu0
      %1948 = vmatprep.mubr.f32.mxu0 0.0
      %1949 = vmatmul.mubr.f32.gmra.mxu0 %v704
      %v1950 = vpop.f32.mrf.mxu0
      %v1951 = vadd.f32 %v544, %v1950
      %v1952 = vpop.f32.mrf.mxu0
      %1953 = vmatprep.mubr.f32.mxu0 0.0
      %1954 = vmatmul.mubr.f32.gmra.mxu0 %v707
      %v1955 = vpop.f32.mrf.mxu0
      %v1956 = vadd.f32 %v544, %v1955
      %v1957 = vpop.f32.mrf.mxu0
      %1958 = vmatprep.mubr.f32.mxu0 0.0
      %1959 = vmatmul.mubr.f32.gmra.mxu0 %v710
      %v1960 = vpop.f32.mrf.mxu0
      %v1961 = vadd.f32 %v544, %v1960
      %v1962 = vpop.f32.mrf.mxu0
      %1963 = vmatprep.mubr.f32.mxu0 0.0
      %1964 = vmatmul.mubr.f32.gmra.mxu0 %v713
      %v1965 = vpop.f32.mrf.mxu0
      %v1966 = vadd.f32 %v544, %v1965
      %v1967 = vpop.f32.mrf.mxu0
      %1968 = vmatprep.mubr.f32.mxu0 0.0
      %1969 = vmatmul.mubr.f32.gmra.mxu0 %v716
      %v1970 = vpop.f32.mrf.mxu0
      %v1971 = vadd.f32 %v544, %v1970
      %v1972 = vpop.f32.mrf.mxu0
      %1973 = vmatprep.mubr.f32.mxu0 0.0
      %1974 = vmatmul.mubr.f32.gmra.mxu0 %v719
      %v1975 = vpop.f32.mrf.mxu0
      %v1976 = vadd.f32 %v544, %v1975
      %v1977 = vpop.f32.mrf.mxu0
      %1978 = vmatprep.mubr.f32.mxu0 0.0
      %1979 = vmatmul.mubr.f32.gmra.mxu0 %v722
      %v1980 = vpop.f32.mrf.mxu0
      %v1981 = vadd.f32 %v544, %v1980
      %v1982 = vpop.f32.mrf.mxu0
      %1983 = vmatprep.mubr.f32.mxu0 0.0
      %1984 = vmatmul.mubr.f32.gmra.mxu0 %v725
      %v1985 = vpop.f32.mrf.mxu0
      %v1986 = vadd.f32 %v544, %v1985
      %v1987 = vpop.f32.mrf.mxu0
      %1988 = vmatprep.mubr.f32.mxu0 0.0
      %1989 = vmatmul.mubr.f32.gmra.mxu0 %v728
      %v1990 = vpop.f32.mrf.mxu0
      %v1991 = vadd.f32 %v544, %v1990
      %v1992 = vpop.f32.mrf.mxu0
      %1993 = vmatprep.mubr.f32.mxu0 0.0
      %1994 = vmatmul.mubr.f32.gmra.mxu0 %v731
      %v1995 = vpop.f32.mrf.mxu0
      %v1996 = vadd.f32 %v544, %v1995
      %v1997 = vpop.f32.mrf.mxu0
      %1998 = vmatprep.mubr.f32.mxu0 0.0
      %1999 = vmatmul.mubr.f32.gmra.mxu0 %v734
      %v2000 = vpop.f32.mrf.mxu0
      %v2001 = vadd.f32 %v544, %v2000
      %v2002 = vpop.f32.mrf.mxu0
      %2003 = vmatprep.mubr.f32.mxu0 0.0
      %2004 = vmatmul.mubr.f32.gmra.mxu0 %v737
      %v2005 = vpop.f32.mrf.mxu0
      %v2006 = vadd.f32 %v544, %v2005
      %v2007 = vpop.f32.mrf.mxu0
      %2008 = vmatprep.mubr.f32.mxu0 0.0
      %2009 = vmatmul.mubr.f32.gmra.mxu0 %v740
      %v2010 = vpop.f32.mrf.mxu0
      %v2011 = vadd.f32 %v544, %v2010
      %v2012 = vpop.f32.mrf.mxu0
      %2013 = vmatprep.mubr.f32.mxu0 0.0
      %2014 = vmatmul.mubr.f32.gmra.mxu0 %v743
      %v2015 = vpop.f32.mrf.mxu0
      %v2016 = vadd.f32 %v544, %v2015
      %v2017 = vpop.f32.mrf.mxu0
      %2018 = vmatprep.mubr.f32.mxu0 0.0
      %2019 = vmatmul.mubr.f32.gmra.mxu0 %v746
      %v2020 = vpop.f32.mrf.mxu0
      %v2021 = vadd.f32 %v544, %v2020
      %v2022 = vpop.f32.mrf.mxu0
      %2023 = vmatprep.mubr.f32.mxu0 0.0
      %2024 = vmatmul.mubr.f32.gmra.mxu0 %v749
      %v2025 = vpop.f32.mrf.mxu0
      %v2026 = vadd.f32 %v544, %v2025
      %v2027 = vpop.f32.mrf.mxu0
      %2028 = vmatprep.mubr.f32.mxu0 0.0
      %2029 = vmatmul.mubr.f32.gmra.mxu0 %v752
      %v2030 = vpop.f32.mrf.mxu0
      %v2031 = vadd.f32 %v544, %v2030
      %v2032 = vpop.f32.mrf.mxu0
      %2033 = vmatprep.mubr.f32.mxu0 0.0
      %2034 = vmatmul.mubr.f32.gmra.mxu0 %v755
      %v2035 = vpop.f32.mrf.mxu0
      %v2036 = vadd.f32 %v544, %v2035
      %v2037 = vpop.f32.mrf.mxu0
      %2038 = vmatprep.mubr.f32.mxu0 0.0
      %2039 = vmatmul.mubr.f32.gmra.mxu0 %v758
      %v2040 = vpop.f32.mrf.mxu0
      %v2041 = vadd.f32 %v544, %v2040
      %v2042 = vpop.f32.mrf.mxu0
      %2043 = vmatprep.mubr.f32.mxu0 0.0
      %2044 = vmatmul.mubr.f32.gmra.mxu0 %v761
      %v2045 = vpop.f32.mrf.mxu0
      %v2046 = vadd.f32 %v544, %v2045
      %v2047 = vpop.f32.mrf.mxu0
      %2048 = vmatprep.mubr.f32.mxu0 0.0
      %2049 = vmatmul.mubr.f32.gmra.mxu0 %v764
      %v2050 = vpop.f32.mrf.mxu0
      %v2051 = vadd.f32 %v544, %v2050
      %v2052 = vpop.f32.mrf.mxu0
      %2053 = vmatprep.mubr.f32.mxu0 0.0
      %2054 = vmatmul.mubr.f32.gmra.mxu0 %v767
      %v2055 = vpop.f32.mrf.mxu0
      %v2056 = vadd.f32 %v544, %v2055
      %v2057 = vpop.f32.mrf.mxu0
      %2058 = vmatprep.mubr.f32.mxu0 0.0
      %2059 = vmatmul.mubr.f32.gmra.mxu0 %v770
      %v2060 = vpop.f32.mrf.mxu0
      %v2061 = vadd.f32 %v544, %v2060
      %v2062 = vpop.f32.mrf.mxu0
      %2063 = vmatprep.mubr.f32.mxu0 0.0
      %2064 = vmatmul.mubr.f32.gmra.mxu0 %v773
      %v2065 = vpop.f32.mrf.mxu0
      %v2066 = vadd.f32 %v544, %v2065
      %v2067 = vpop.f32.mrf.mxu0
      %2068 = vmatprep.mubr.f32.mxu0 0.0
      %2069 = vmatmul.mubr.f32.gmra.mxu0 %v776
      %v2070 = vpop.f32.mrf.mxu0
      %v2071 = vadd.f32 %v544, %v2070
      %v2072 = vpop.f32.mrf.mxu0
      %2073 = vmatprep.mubr.f32.mxu0 0.0
      %2074 = vmatmul.mubr.f32.gmra.mxu0 %v779
      %v2075 = vpop.f32.mrf.mxu0
      %v2076 = vadd.f32 %v544, %v2075
      %v2077 = vpop.f32.mrf.mxu0
      %2078 = vmatprep.mubr.f32.mxu0 0.0
      %2079 = vmatmul.mubr.f32.gmra.mxu0 %v782
      %v2080 = vpop.f32.mrf.mxu0
      %v2081 = vadd.f32 %v544, %v2080
      %v2082 = vpop.f32.mrf.mxu0
      %2083 = vmatprep.mubr.f32.mxu0 0.0
      %2084 = vmatmul.mubr.f32.gmra.mxu0 %v785
      %v2085 = vpop.f32.mrf.mxu0
      %v2086 = vadd.f32 %v544, %v2085
      %v2087 = vpop.f32.mrf.mxu0
      %2088 = vmatprep.mubr.f32.mxu0 0.0
      %2089 = vmatmul.mubr.f32.gmra.mxu0 %v788
      %v2090 = vpop.f32.mrf.mxu0
      %v2091 = vadd.f32 %v544, %v2090
      %v2092 = vpop.f32.mrf.mxu0
      %2093 = vmatprep.mubr.f32.mxu0 0.0
      %2094 = vmatmul.mubr.f32.gmra.mxu0 %v791
      %v2095 = vpop.f32.mrf.mxu0
      %v2096 = vadd.f32 %v544, %v2095
      %v2097 = vpop.f32.mrf.mxu0
      %2098 = vmatprep.mubr.f32.mxu0 0.0
      %2099 = vmatmul.mubr.f32.gmra.mxu0 %v794
      %v2100 = vpop.f32.mrf.mxu0
      %v2101 = vadd.f32 %v544, %v2100
      %v2102 = vpop.f32.mrf.mxu0
      %2103 = vmatprep.mubr.f32.mxu0 0.0
      %2104 = vmatmul.mubr.f32.gmra.mxu0 %v797
      %v2105 = vpop.f32.mrf.mxu0
      %v2106 = vadd.f32 %v544, %v2105
      %v2107 = vpop.f32.mrf.mxu0
      %2108 = vmatprep.mubr.f32.mxu0 0.0
      %2109 = vmatmul.mubr.f32.gmra.mxu0 %v800
      %v2110 = vpop.f32.mrf.mxu0
      %v2111 = vadd.f32 %v544, %v2110
      %v2112 = vpop.f32.mrf.mxu0
      %2113 = vmatprep.mubr.f32.mxu0 0.0
      %2114 = vmatmul.mubr.f32.gmra.mxu0 %v803
      %v2115 = vpop.f32.mrf.mxu0
      %v2116 = vadd.f32 %v544, %v2115
      %v2117 = vpop.f32.mrf.mxu0
      %2118 = vmatprep.mubr.f32.mxu0 0.0
      %2119 = vmatmul.mubr.f32.gmra.mxu0 %v806
      %v2120 = vpop.f32.mrf.mxu0
      %v2121 = vadd.f32 %v544, %v2120
      %v2122 = vpop.f32.mrf.mxu0
      %2123 = vmatprep.mubr.f32.mxu0 0.0
      %2124 = vmatmul.mubr.f32.gmra.mxu0 %v809
      %v2125 = vpop.f32.mrf.mxu0
      %v2126 = vadd.f32 %v544, %v2125
      %v2127 = vpop.f32.mrf.mxu0
      %2128 = vmatprep.mubr.f32.mxu0 0.0
      %2129 = vmatmul.mubr.f32.gmra.mxu0 %v812
      %v2130 = vpop.f32.mrf.mxu0
      %v2131 = vadd.f32 %v544, %v2130
      %v2132 = vpop.f32.mrf.mxu0
      %2133 = vmatprep.mubr.f32.mxu0 0.0
      %2134 = vmatmul.mubr.f32.gmra.mxu0 %v815
      %v2135 = vpop.f32.mrf.mxu0
      %v2136 = vadd.f32 %v544, %v2135
      %v2137 = vpop.f32.mrf.mxu0
      %2138 = vmatprep.mubr.f32.mxu0 0.0
      %2139 = vmatmul.mubr.f32.gmra.mxu0 %v818
      %v2140 = vpop.f32.mrf.mxu0
      %v2141 = vadd.f32 %v544, %v2140
      %v2142 = vpop.f32.mrf.mxu0
      %2143 = vmatprep.mubr.f32.mxu0 0.0
      %2144 = vmatmul.mubr.f32.gmra.mxu0 %v821
      %v2145 = vpop.f32.mrf.mxu0
      %v2146 = vadd.f32 %v544, %v2145
      %v2147 = vpop.f32.mrf.mxu0
      %2148 = vmatprep.mubr.f32.mxu0 0.0
      %2149 = vmatmul.mubr.f32.gmra.mxu0 %v824
      %v2150 = vpop.f32.mrf.mxu0
      %v2151 = vadd.f32 %v544, %v2150
      %v2152 = vpop.f32.mrf.mxu0
      %2153 = vmatprep.mubr.f32.mxu0 0.0
      %2154 = vmatmul.mubr.f32.gmra.mxu0 %v827
      %v2155 = vpop.f32.mrf.mxu0
      %v2156 = vadd.f32 %v544, %v2155
      %v2157 = vpop.f32.mrf.mxu0
      %2158 = vmatprep.mubr.f32.mxu0 0.0
      %2159 = vmatmul.mubr.f32.gmra.mxu0 %v830
      %v2160 = vpop.f32.mrf.mxu0
      %v2161 = vadd.f32 %v544, %v2160
      %v2162 = vpop.f32.mrf.mxu0
      %2163 = vmatprep.mubr.f32.mxu0 0.0
      %2164 = vmatmul.mubr.f32.gmra.mxu0 %v833
      %v2165 = vpop.f32.mrf.mxu0
      %v2166 = vadd.f32 %v544, %v2165
      %v2167 = vpop.f32.mrf.mxu0
      %2168 = vmatprep.mubr.f32.mxu0 0.0
      %2169 = vmatmul.mubr.f32.gmra.mxu0 %v836
      %v2170 = vpop.f32.mrf.mxu0
      %v2171 = vadd.f32 %v544, %v2170
      %v2172 = vpop.f32.mrf.mxu0
      %2173 = vmatprep.mubr.f32.mxu0 0.0
      %2174 = vmatmul.mubr.f32.gmra.mxu0 %v839
      %v2175 = vpop.f32.mrf.mxu0
      %v2176 = vadd.f32 %v544, %v2175
      %v2177 = vpop.f32.mrf.mxu0
      %2178 = vmatprep.mubr.f32.mxu0 0.0
      %2179 = vmatmul.mubr.f32.gmra.mxu0 %v842
      %v2180 = vpop.f32.mrf.mxu0
      %v2181 = vadd.f32 %v544, %v2180
      %v2182 = vpop.f32.mrf.mxu0
      %2183 = vmatprep.mubr.f32.mxu0 0.0
      %2184 = vmatmul.mubr.f32.gmra.mxu0 %v845
      %v2185 = vpop.f32.mrf.mxu0
      %v2186 = vadd.f32 %v544, %v2185
      %v2187 = vpop.f32.mrf.mxu0
      %2188 = vmatprep.mubr.f32.mxu0 0.0
      %2189 = vmatmul.mubr.f32.gmra.mxu0 %v848
      %v2190 = vpop.f32.mrf.mxu0
      %v2191 = vadd.f32 %v544, %v2190
      %v2192 = vpop.f32.mrf.mxu0
      %2193 = vmatprep.mubr.f32.mxu0 0.0
      %2194 = vmatmul.mubr.f32.gmra.mxu0 %v851
      %v2195 = vpop.f32.mrf.mxu0
      %v2196 = vadd.f32 %v544, %v2195
      %v2197 = vpop.f32.mrf.mxu0
      %2198 = vmatprep.mubr.f32.mxu0 0.0
      %2199 = vmatmul.mubr.f32.gmra.mxu0 %v854
      %v2200 = vpop.f32.mrf.mxu0
      %v2201 = vadd.f32 %v544, %v2200
      %v2202 = vpop.f32.mrf.mxu0
      %2203 = vmatprep.mubr.f32.mxu0 0.0
      %2204 = vmatmul.mubr.f32.gmra.mxu0 %v857
      %v2205 = vpop.f32.mrf.mxu0
      %v2206 = vadd.f32 %v544, %v2205
      %v2207 = vpop.f32.mrf.mxu0
      %2208 = vmatprep.mubr.f32.mxu0 0.0
      %2209 = vmatmul.mubr.f32.gmra.mxu0 %v860
      %v2210 = vpop.f32.mrf.mxu0
      %v2211 = vadd.f32 %v544, %v2210
      %v2212 = vpop.f32.mrf.mxu0
      %2213 = vmatprep.mubr.f32.mxu0 0.0
      %2214 = vmatmul.mubr.f32.gmra.mxu0 %v863
      %v2215 = vpop.f32.mrf.mxu0
      %v2216 = vadd.f32 %v544, %v2215
      %v2217 = vpop.f32.mrf.mxu0
      %2218 = vmatprep.mubr.f32.mxu0 0.0
      %2219 = vmatmul.mubr.f32.gmra.mxu0 %v866
      %v2220 = vpop.f32.mrf.mxu0
      %v2221 = vadd.f32 %v544, %v2220
      %v2222 = vpop.f32.mrf.mxu0
      %2223 = vmatprep.mubr.f32.mxu0 0.0
      %2224 = vmatmul.mubr.f32.gmra.mxu0 %v869
      %v2225 = vpop.f32.mrf.mxu0
      %v2226 = vadd.f32 %v544, %v2225
      %v2227 = vpop.f32.mrf.mxu0
      %2228 = vmatprep.mubr.f32.mxu0 0.0
      %2229 = vmatmul.mubr.f32.gmra.mxu0 %v872
      %v2230 = vpop.f32.mrf.mxu0
      %v2231 = vadd.f32 %v544, %v2230
      %v2232 = vpop.f32.mrf.mxu0
      %2233 = vmatprep.mubr.f32.mxu0 0.0
      %2234 = vmatmul.mubr.f32.gmra.mxu0 %v875
      %v2235 = vpop.f32.mrf.mxu0
      %v2236 = vadd.f32 %v544, %v2235
      %v2237 = vpop.f32.mrf.mxu0
      %2238 = vmatprep.mubr.f32.mxu0 0.0
      %2239 = vmatmul.mubr.f32.gmra.mxu0 %v878
      %v2240 = vpop.f32.mrf.mxu0
      %v2241 = vadd.f32 %v544, %v2240
      %v2242 = vpop.f32.mrf.mxu0
      %2243 = vmatprep.mubr.f32.mxu0 0.0
      %2244 = vmatmul.mubr.f32.gmra.mxu0 %v881
      %v2245 = vpop.f32.mrf.mxu0
      %v2246 = vadd.f32 %v544, %v2245
      %v2247 = vpop.f32.mrf.mxu0
      %2248 = vmatprep.mubr.f32.mxu0 0.0
      %2249 = vmatmul.mubr.f32.gmra.mxu0 %v884
      %v2250 = vpop.f32.mrf.mxu0
      %v2251 = vadd.f32 %v544, %v2250
      %v2252 = vpop.f32.mrf.mxu0
      %2253 = vmatprep.mubr.f32.mxu0 0.0
      %2254 = vmatmul.mubr.f32.gmra.mxu0 %v887
      %v2255 = vpop.f32.mrf.mxu0
      %v2256 = vadd.f32 %v544, %v2255
      %v2257 = vpop.f32.mrf.mxu0
      %2258 = vmatprep.mubr.f32.mxu0 0.0
      %2259 = vmatmul.mubr.f32.gmra.mxu0 %v890
      %v2260 = vpop.f32.mrf.mxu0
      %v2261 = vadd.f32 %v544, %v2260
      %v2262 = vpop.f32.mrf.mxu0
      %2263 = vmatprep.mubr.f32.mxu0 0.0
      %2264 = vmatmul.mubr.f32.gmra.mxu0 %v893
      %v2265 = vpop.f32.mrf.mxu0
      %v2266 = vadd.f32 %v544, %v2265
      %v2267 = vpop.f32.mrf.mxu0
      %2268 = vmatprep.mubr.f32.mxu0 0.0
      %2269 = vmatmul.mubr.f32.gmra.mxu0 %v896
      %v2270 = vpop.f32.mrf.mxu0
      %v2271 = vadd.f32 %v544, %v2270
      %v2272 = vpop.f32.mrf.mxu0
      %2273 = vmatprep.mubr.f32.mxu0 0.0
      %2274 = vmatmul.mubr.f32.gmra.mxu0 %v899
      %v2275 = vpop.f32.mrf.mxu0
      %v2276 = vadd.f32 %v544, %v2275
      %v2277 = vpop.f32.mrf.mxu0
      %2278 = vmatprep.mubr.f32.mxu0 0.0
      %2279 = vmatmul.mubr.f32.gmra.mxu0 %v902
      %v2280 = vpop.f32.mrf.mxu0
      %v2281 = vadd.f32 %v544, %v2280
      %v2282 = vpop.f32.mrf.mxu0
      %2283 = vmatprep.mubr.f32.mxu0 0.0
      %2284 = vmatmul.mubr.f32.gmra.mxu0 %v905
      %v2285 = vpop.f32.mrf.mxu0
      %v2286 = vadd.f32 %v544, %v2285
      %v2287 = vpop.f32.mrf.mxu0
      %2288 = vmatprep.mubr.f32.mxu0 0.0
      %2289 = vmatmul.mubr.f32.gmra.mxu0 %v908
      %v2290 = vpop.f32.mrf.mxu0
      %v2291 = vadd.f32 %v544, %v2290
      %v2292 = vpop.f32.mrf.mxu0
      %2293 = vmatprep.mubr.f32.mxu0 0.0
      %2294 = vmatmul.mubr.f32.gmra.mxu0 %v911
      %v2295 = vpop.f32.mrf.mxu0
      %v2296 = vadd.f32 %v544, %v2295
      %v2297 = vpop.f32.mrf.mxu0
      %2298 = vmatprep.mubr.f32.mxu0 0.0
      %2299 = vmatmul.mubr.f32.gmra.mxu0 %v914
      %v2300 = vpop.f32.mrf.mxu0
      %v2301 = vadd.f32 %v544, %v2300
      %v2302 = vpop.f32.mrf.mxu0
      %2303 = vmatprep.mubr.f32.mxu0 0.0
      %2304 = vmatmul.mubr.f32.gmra.mxu0 %v917
      %v2305 = vpop.f32.mrf.mxu0
      %v2306 = vadd.f32 %v544, %v2305
      %v2307 = vpop.f32.mrf.mxu0
      %2308 = vmatprep.mubr.f32.mxu0 0.0
      %2309 = vmatmul.mubr.f32.gmra.mxu0 %v920
      %v2310 = vpop.f32.mrf.mxu0
      %v2311 = vadd.f32 %v544, %v2310
      %v2312 = vpop.f32.mrf.mxu0
      %2313 = vmatprep.mubr.f32.mxu0 0.0
      %2314 = vmatmul.mubr.f32.gmra.mxu0 %v923
      %v2315 = vpop.f32.mrf.mxu0
      %v2316 = vadd.f32 %v544, %v2315
      %v2317 = vpop.f32.mrf.mxu0
      %2318 = vmatprep.mubr.f32.mxu0 0.0
      %2319 = vmatmul.mubr.f32.gmra.mxu0 %v926
      %v2320 = vpop.f32.mrf.mxu0
      %v2321 = vadd.f32 %v544, %v2320
      %v2322 = vpop.f32.mrf.mxu0
      %2323 = vmatprep.mubr.f32.mxu0 0.0
      %2324 = vmatmul.mubr.f32.gmra.mxu0 %v929
      %v2325 = vpop.f32.mrf.mxu0
      %v2326 = vadd.f32 %v544, %v2325
      %v2327 = vpop.f32.mrf.mxu0
      %2328 = vmatprep.mubr.f32.mxu0 0.0
      %2329 = vmatmul.mubr.f32.gmra.mxu0 %v932
      %v2330 = vpop.f32.mrf.mxu0
      %v2331 = vadd.f32 %v544, %v2330
      %v2332 = vpop.f32.mrf.mxu0
      %2333 = vmatprep.mubr.f32.mxu0 0.0
      %2334 = vmatmul.mubr.f32.gmra.mxu0 %v935
      %v2335 = vpop.f32.mrf.mxu0
      %v2336 = vadd.f32 %v544, %v2335
      %v2337 = vpop.f32.mrf.mxu0
      %2338 = vmatprep.mubr.f32.mxu0 0.0
      %2339 = vmatmul.mubr.f32.gmra.mxu0 %v938
      %v2340 = vpop.f32.mrf.mxu0
      %v2341 = vadd.f32 %v544, %v2340
      %v2342 = vpop.f32.mrf.mxu0
      %2343 = vmatprep.mubr.f32.mxu0 0.0
      %2344 = vmatmul.mubr.f32.gmra.mxu0 %v941
      %v2345 = vpop.f32.mrf.mxu0
      %v2346 = vadd.f32 %v544, %v2345
      %v2347 = vpop.f32.mrf.mxu0
      %2348 = vmatprep.mubr.f32.mxu0 0.0
      %2349 = vmatmul.mubr.f32.gmra.mxu0 %v944
      %v2350 = vpop.f32.mrf.mxu0
      %v2351 = vadd.f32 %v544, %v2350
      %v2352 = vpop.f32.mrf.mxu0
      %2353 = vmatprep.mubr.f32.mxu0 0.0
      %2354 = vmatmul.mubr.f32.gmra.mxu0 %v947
      %v2355 = vpop.f32.mrf.mxu0
      %v2356 = vadd.f32 %v544, %v2355
      %v2357 = vpop.f32.mrf.mxu0
      %2358 = vmatprep.mubr.f32.mxu0 0.0
      %2359 = vmatmul.mubr.f32.gmra.mxu0 %v950
      %v2360 = vpop.f32.mrf.mxu0
      %v2361 = vadd.f32 %v544, %v2360
      %v2362 = vpop.f32.mrf.mxu0
      %2363 = vmatprep.mubr.f32.mxu0 0.0
      %2364 = vmatmul.mubr.f32.gmra.mxu0 %v953
      %v2365 = vpop.f32.mrf.mxu0
      %v2366 = vadd.f32 %v544, %v2365
      %v2367 = vpop.f32.mrf.mxu0
      %2368 = vmatprep.mubr.f32.mxu0 0.0
      %2369 = vmatmul.mubr.f32.gmra.mxu0 %v956
      %v2370 = vpop.f32.mrf.mxu0
      %v2371 = vadd.f32 %v544, %v2370
      %v2372 = vpop.f32.mrf.mxu0
      %2373 = vmatprep.mubr.f32.mxu0 0.0
      %2374 = vmatmul.mubr.f32.gmra.mxu0 %v959
      %v2375 = vpop.f32.mrf.mxu0
      %v2376 = vadd.f32 %v544, %v2375
      %v2377 = vpop.f32.mrf.mxu0
      %2378 = vmatprep.mubr.f32.mxu0 0.0
      %2379 = vmatmul.mubr.f32.gmra.mxu0 %v962
      %v2380 = vpop.f32.mrf.mxu0
      %v2381 = vadd.f32 %v544, %v2380
      %v2382 = vpop.f32.mrf.mxu0
      %2383 = vmatprep.mubr.f32.mxu0 0.0
      %2384 = vmatmul.mubr.f32.gmra.mxu0 %v965
      %v2385 = vpop.f32.mrf.mxu0
      %v2386 = vadd.f32 %v544, %v2385
      %v2387 = vpop.f32.mrf.mxu0
      %2388 = vmatprep.mubr.f32.mxu0 0.0
      %2389 = vmatmul.mubr.f32.gmra.mxu0 %v968
      %v2390 = vpop.f32.mrf.mxu0
      %v2391 = vadd.f32 %v544, %v2390
      %v2392 = vpop.f32.mrf.mxu0
      %2393 = vmatprep.mubr.f32.mxu0 0.0
      %2394 = vmatmul.mubr.f32.gmra.mxu0 %v971
      %v2395 = vpop.f32.mrf.mxu0
      %v2396 = vadd.f32 %v544, %v2395
      %v2397 = vpop.f32.mrf.mxu0
      %2398 = vmatprep.mubr.f32.mxu0 0.0
      %2399 = vmatmul.mubr.f32.gmra.mxu0 %v974
      %v2400 = vpop.f32.mrf.mxu0
      %v2401 = vadd.f32 %v544, %v2400
      %v2402 = vpop.f32.mrf.mxu0
      %2403 = vmatprep.mubr.f32.mxu0 0.0
      %2404 = vmatmul.mubr.f32.gmra.mxu0 %v977
      %v2405 = vpop.f32.mrf.mxu0
      %v2406 = vadd.f32 %v544, %v2405
      %v2407 = vpop.f32.mrf.mxu0
      %2408 = vmatprep.mubr.f32.mxu0 0.0
      %2409 = vmatmul.mubr.f32.gmra.mxu0 %v980
      %v2410 = vpop.f32.mrf.mxu0
      %v2411 = vadd.f32 %v544, %v2410
      %v2412 = vpop.f32.mrf.mxu0
      %2413 = vmatprep.mubr.f32.mxu0 0.0
      %2414 = vmatmul.mubr.f32.gmra.mxu0 %v983
      %v2415 = vpop.f32.mrf.mxu0
      %v2416 = vadd.f32 %v544, %v2415
      %v2417 = vpop.f32.mrf.mxu0
      %2418 = vmatprep.mubr.f32.mxu0 0.0
      %2419 = vmatmul.mubr.f32.gmra.mxu0 %v986
      %v2420 = vpop.f32.mrf.mxu0
      %v2421 = vadd.f32 %v544, %v2420
      %v2422 = vpop.f32.mrf.mxu0
      %2423 = vmatprep.mubr.f32.mxu0 0.0
      %2424 = vmatmul.mubr.f32.gmra.mxu0 %v989
      %v2425 = vpop.f32.mrf.mxu0
      %v2426 = vadd.f32 %v544, %v2425
      %v2427 = vpop.f32.mrf.mxu0
      %2428 = vmatprep.mubr.f32.mxu0 0.0
      %2429 = vmatmul.mubr.f32.gmra.mxu0 %v992
      %v2430 = vpop.f32.mrf.mxu0
      %v2431 = vadd.f32 %v544, %v2430
      %v2432 = vpop.f32.mrf.mxu0
      %2433 = vmatprep.mubr.f32.mxu0 0.0
      %2434 = vmatmul.mubr.f32.gmra.mxu0 %v995
      %v2435 = vpop.f32.mrf.mxu0
      %v2436 = vadd.f32 %v544, %v2435
      %v2437 = vpop.f32.mrf.mxu0
      %2438 = vmatprep.mubr.f32.mxu0 0.0
      %2439 = vmatmul.mubr.f32.gmra.mxu0 %v998
      %v2440 = vpop.f32.mrf.mxu0
      %v2441 = vadd.f32 %v544, %v2440
      %v2442 = vpop.f32.mrf.mxu0
      %2443 = vmatprep.mubr.f32.mxu0 0.0
      %2444 = vmatmul.mubr.f32.gmra.mxu0 %v1001
      %v2445 = vpop.f32.mrf.mxu0
      %v2446 = vadd.f32 %v544, %v2445
      %v2447 = vpop.f32.mrf.mxu0
      %2448 = vmatprep.mubr.f32.mxu0 0.0
      %2449 = vmatmul.mubr.f32.gmra.mxu0 %v1004
      %v2450 = vpop.f32.mrf.mxu0
      %v2451 = vadd.f32 %v544, %v2450
      %v2452 = vpop.f32.mrf.mxu0
      %2453 = vmatprep.mubr.f32.mxu0 0.0
      %2454 = vmatmul.mubr.f32.gmra.mxu0 %v1007
      %v2455 = vpop.f32.mrf.mxu0
      %v2456 = vadd.f32 %v544, %v2455
      %v2457 = vpop.f32.mrf.mxu0
      %2458 = vmatprep.mubr.f32.mxu0 0.0
      %2459 = vmatmul.mubr.f32.gmra.mxu0 %v1010
      %v2460 = vpop.f32.mrf.mxu0
      %v2461 = vadd.f32 %v544, %v2460
      %v2462 = vpop.f32.mrf.mxu0
      %2463 = vmatprep.mubr.f32.mxu0 0.0
      %2464 = vmatmul.mubr.f32.gmra.mxu0 %v1013
      %v2465 = vpop.f32.mrf.mxu0
      %v2466 = vadd.f32 %v544, %v2465
      %v2467 = vpop.f32.mrf.mxu0
      %2468 = vmatprep.mubr.f32.mxu0 0.0
      %2469 = vmatmul.mubr.f32.gmra.mxu0 %v1016
      %v2470 = vpop.f32.mrf.mxu0
      %v2471 = vadd.f32 %v544, %v2470
      %v2472 = vpop.f32.mrf.mxu0
      %2473 = vmatprep.mubr.f32.mxu0 0.0
      %2474 = vmatmul.mubr.f32.gmra.mxu0 %v1019
      %v2475 = vpop.f32.mrf.mxu0
      %v2476 = vadd.f32 %v544, %v2475
      %v2477 = vpop.f32.mrf.mxu0
      %2478 = vmatprep.mubr.f32.mxu0 0.0
      %2479 = vmatmul.mubr.f32.gmra.mxu0 %v1022
      %v2480 = vpop.f32.mrf.mxu0
      %v2481 = vadd.f32 %v544, %v2480
      %v2482 = vpop.f32.mrf.mxu0
      %2483 = vmatprep.mubr.f32.mxu0 0.0
      %2484 = vmatmul.mubr.f32.gmra.mxu0 %v1025
      %v2485 = vpop.f32.mrf.mxu0
      %v2486 = vadd.f32 %v544, %v2485
      %v2487 = vpop.f32.mrf.mxu0
      %2488 = vmatprep.mubr.f32.mxu0 0.0
      %2489 = vmatmul.mubr.f32.gmra.mxu0 %v1028
      %v2490 = vpop.f32.mrf.mxu0
      %v2491 = vadd.f32 %v544, %v2490
      %v2492 = vpop.f32.mrf.mxu0
      %2493 = vmatprep.mubr.f32.mxu0 0.0
      %2494 = vmatmul.mubr.f32.gmra.mxu0 %v1031
      %v2495 = vpop.f32.mrf.mxu0
      %v2496 = vadd.f32 %v544, %v2495
      %v2497 = vpop.f32.mrf.mxu0
      %2498 = vmatprep.mubr.f32.mxu0 0.0
      %2499 = vmatmul.mubr.f32.gmra.mxu0 %v1034
      %v2500 = vpop.f32.mrf.mxu0
      %v2501 = vadd.f32 %v544, %v2500
      %v2502 = vpop.f32.mrf.mxu0
      %2503 = vmatprep.mubr.f32.mxu0 0.0
      %2504 = vmatmul.mubr.f32.gmra.mxu0 %v1037
      %v2505 = vpop.f32.mrf.mxu0
      %v2506 = vadd.f32 %v544, %v2505
      %v2507 = vpop.f32.mrf.mxu0
      %2508 = vmatprep.mubr.f32.mxu0 0.0
      %2509 = vmatmul.mubr.f32.gmra.mxu0 %v1040
      %v2510 = vpop.f32.mrf.mxu0
      %v2511 = vadd.f32 %v544, %v2510
      %v2512 = vpop.f32.mrf.mxu0
      %2513 = vmatprep.mubr.f32.mxu0 0.0
      %2514 = vmatmul.mubr.f32.gmra.mxu0 %v1043
      %v2515 = vpop.f32.mrf.mxu0
      %v2516 = vadd.f32 %v544, %v2515
      %v2517 = vpop.f32.mrf.mxu0
      %2518 = vmatprep.mubr.f32.mxu0 0.0
      %2519 = vmatmul.mubr.f32.gmra.mxu0 %v1046
      %v2520 = vpop.f32.mrf.mxu0
      %v2521 = vadd.f32 %v544, %v2520
      %v2522 = vpop.f32.mrf.mxu0
      %2523 = vmatprep.mubr.f32.mxu0 0.0
      %2524 = vmatmul.mubr.f32.gmra.mxu0 %v1049
      %v2525 = vpop.f32.mrf.mxu0
      %v2526 = vadd.f32 %v544, %v2525
      %v2527 = vpop.f32.mrf.mxu0
      %2528 = vmatprep.mubr.f32.mxu0 0.0
      %2529 = vmatmul.mubr.f32.gmra.mxu0 %v1052
      %v2530 = vpop.f32.mrf.mxu0
      %v2531 = vadd.f32 %v544, %v2530
      %v2532 = vpop.f32.mrf.mxu0
      %2533 = vmatprep.mubr.f32.mxu0 0.0
      %2534 = vmatmul.mubr.f32.gmra.mxu0 %v1055
      %v2535 = vpop.f32.mrf.mxu0
      %v2536 = vadd.f32 %v544, %v2535
      %v2537 = vpop.f32.mrf.mxu0
      %2538 = vmatprep.mubr.f32.mxu0 0.0
      %2539 = vmatmul.mubr.f32.gmra.mxu0 %v1058
      %v2540 = vpop.f32.mrf.mxu0
      %v2541 = vadd.f32 %v544, %v2540
      %v2542 = vpop.f32.mrf.mxu0
      %2543 = vmatprep.mubr.f32.mxu0 0.0
      %2544 = vmatmul.mubr.f32.gmra.mxu0 %v1061
      %v2545 = vpop.f32.mrf.mxu0
      %v2546 = vadd.f32 %v544, %v2545
      %v2547 = vpop.f32.mrf.mxu0
      %2548 = vmatprep.mubr.f32.mxu0 0.0
      %2549 = vmatmul.mubr.f32.gmra.mxu0 %v1064
      %v2550 = vpop.f32.mrf.mxu0
      %v2551 = vadd.f32 %v544, %v2550
      %v2552 = vpop.f32.mrf.mxu0
      %2553 = vmatprep.mubr.f32.mxu0 0.0
      %2554 = vmatmul.mubr.f32.gmra.mxu0 %v1067
      %v2555 = vpop.f32.mrf.mxu0
      %v2556 = vadd.f32 %v544, %v2555
      %v2557 = vpop.f32.mrf.mxu0
      %2558 = vmatprep.mubr.f32.mxu0 0.0
      %2559 = vmatmul.mubr.f32.gmra.mxu0 %v1070
      %v2560 = vpop.f32.mrf.mxu0
      %v2561 = vadd.f32 %v544, %v2560
      %v2562 = vpop.f32.mrf.mxu0
      %2563 = vmatprep.mubr.f32.mxu0 0.0
      %2564 = vmatmul.mubr.f32.gmra.mxu0 %v1073
      %v2565 = vpop.f32.mrf.mxu0
      %v2566 = vadd.f32 %v544, %v2565
      %v2567 = vpop.f32.mrf.mxu0
      %2568 = vmatprep.mubr.f32.mxu0 0.0
      %2569 = vmatmul.mubr.f32.gmra.mxu0 %v1076
      %v2570 = vpop.f32.mrf.mxu0
      %v2571 = vadd.f32 %v544, %v2570
      %v2572 = vpop.f32.mrf.mxu0
      %2573 = vmatprep.mubr.f32.mxu0 0.0
      %2574 = vmatmul.mubr.f32.gmra.mxu0 %v1079
      %v2575 = vpop.f32.mrf.mxu0
      %v2576 = vadd.f32 %v544, %v2575
      %v2577 = vpop.f32.mrf.mxu0
      %2578 = vmatprep.mubr.f32.mxu0 0.0
      %2579 = vmatmul.mubr.f32.gmra.mxu0 %v1082
      %v2580 = vpop.f32.mrf.mxu0
      %v2581 = vadd.f32 %v544, %v2580
      %v2582 = vpop.f32.mrf.mxu0
      %2583 = vmatprep.mubr.f32.mxu0 0.0
      %2584 = vmatmul.mubr.f32.gmra.mxu0 %v1085
      %v2585 = vpop.f32.mrf.mxu0
      %v2586 = vadd.f32 %v544, %v2585
      %v2587 = vpop.f32.mrf.mxu0
      %2588 = vmatprep.mubr.f32.mxu0 0.0
      %2589 = vmatmul.mubr.f32.gmra.mxu0 %v1088
      %v2590 = vpop.f32.mrf.mxu0
      %v2591 = vadd.f32 %v544, %v2590
      %v2592 = vpop.f32.mrf.mxu0
      %2593 = vmatprep.mubr.f32.mxu0 0.0
      %2594 = vmatmul.mubr.f32.gmra.mxu0 %v1091
      %v2595 = vpop.f32.mrf.mxu0
      %v2596 = vadd.f32 %v544, %v2595
      %v2597 = vpop.f32.mrf.mxu0
      %2598 = vmatprep.mubr.f32.mxu0 0.0
      %2599 = vmatmul.mubr.f32.gmra.mxu0 %v1094
      %v2600 = vpop.f32.mrf.mxu0
      %v2601 = vadd.f32 %v544, %v2600
      %v2602 = vpop.f32.mrf.mxu0
      %2603 = vmatprep.mubr.f32.mxu0 0.0
      %2604 = vmatmul.mubr.f32.gmra.mxu0 %v1097
      %v2605 = vpop.f32.mrf.mxu0
      %v2606 = vadd.f32 %v544, %v2605
      %v2607 = vpop.f32.mrf.mxu0
      %2608 = vmatprep.mubr.f32.mxu0 0.0
      %2609 = vmatmul.mubr.f32.gmra.mxu0 %v1100
      %v2610 = vpop.f32.mrf.mxu0
      %v2611 = vadd.f32 %v544, %v2610
      %v2612 = vpop.f32.mrf.mxu0
      %2613 = vmatprep.mubr.f32.mxu0 0.0
      %2614 = vmatmul.mubr.f32.gmra.mxu0 %v1103
      %v2615 = vpop.f32.mrf.mxu0
      %v2616 = vadd.f32 %v544, %v2615
      %v2617 = vpop.f32.mrf.mxu0
      %2618 = vmatprep.mubr.f32.mxu0 0.0
      %2619 = vmatmul.mubr.f32.gmra.mxu0 %v1106
      %v2620 = vpop.f32.mrf.mxu0
      %v2621 = vadd.f32 %v544, %v2620
      %v2622 = vpop.f32.mrf.mxu0
      %2623 = vmatprep.mubr.f32.mxu0 0.0
      %2624 = vmatmul.mubr.f32.gmra.mxu0 %v1109
      %v2625 = vpop.f32.mrf.mxu0
      %v2626 = vadd.f32 %v544, %v2625
      %v2627 = vpop.f32.mrf.mxu0
      %2628 = vmatprep.mubr.f32.mxu0 0.0
      %2629 = vmatmul.mubr.f32.gmra.mxu0 %v1112
      %v2630 = vpop.f32.mrf.mxu0
      %v2631 = vadd.f32 %v544, %v2630
      %v2632 = vpop.f32.mrf.mxu0
      %2633 = vmatprep.mubr.f32.mxu0 0.0
      %2634 = vmatmul.mubr.f32.gmra.mxu0 %v1115
      %v2635 = vpop.f32.mrf.mxu0
      %v2636 = vadd.f32 %v544, %v2635
      %v2637 = vpop.f32.mrf.mxu0
      %2638 = vmatprep.mubr.f32.mxu0 0.0
      %2639 = vmatmul.mubr.f32.gmra.mxu0 %v1118
      %v2640 = vpop.f32.mrf.mxu0
      %v2641 = vadd.f32 %v544, %v2640
      %v2642 = vpop.f32.mrf.mxu0
      %2643 = vmatprep.mubr.f32.mxu0 0.0
      %2644 = vmatmul.mubr.f32.gmra.mxu0 %v1121
      %v2645 = vpop.f32.mrf.mxu0
      %v2646 = vadd.f32 %v544, %v2645
      %v2647 = vpop.f32.mrf.mxu0
      %2648 = vmatprep.mubr.f32.mxu0 0.0
      %2649 = vmatmul.mubr.f32.gmra.mxu0 %v1124
      %v2650 = vpop.f32.mrf.mxu0
      %v2651 = vadd.f32 %v544, %v2650
      %v2652 = vpop.f32.mrf.mxu0
      %2653 = vmatprep.mubr.f32.mxu0 0.0
      %2654 = vmatmul.mubr.f32.gmra.mxu0 %v1127
      %v2655 = vpop.f32.mrf.mxu0
      %v2656 = vadd.f32 %v544, %v2655
      %v2657 = vpop.f32.mrf.mxu0
      %2658 = vmatprep.mubr.f32.mxu0 0.0
      %2659 = vmatmul.mubr.f32.gmra.mxu0 %v1130
      %v2660 = vpop.f32.mrf.mxu0
      %v2661 = vadd.f32 %v544, %v2660
      %v2662 = vpop.f32.mrf.mxu0
      %2663 = vmatprep.mubr.f32.mxu0 0.0
      %2664 = vmatmul.mubr.f32.gmra.mxu0 %v1133
      %v2665 = vpop.f32.mrf.mxu0
      %v2666 = vadd.f32 %v544, %v2665
      %v2667 = vpop.f32.mrf.mxu0
      %2668 = vmatprep.mubr.f32.mxu0 0.0
      %2669 = vmatmul.mubr.f32.gmra.mxu0 %v1136
      %v2670 = vpop.f32.mrf.mxu0
      %v2671 = vadd.f32 %v544, %v2670
      %v2672 = vpop.f32.mrf.mxu0
      %2673 = vmatprep.mubr.f32.mxu0 0.0
      %2674 = vmatmul.mubr.f32.gmra.mxu0 %v1139
      %v2675 = vpop.f32.mrf.mxu0
      %v2676 = vadd.f32 %v544, %v2675
      %v2677 = vpop.f32.mrf.mxu0
      %2678 = vmatprep.mubr.f32.mxu0 0.0
      %2679 = vmatmul.mubr.f32.gmra.mxu0 %v1142
      %v2680 = vpop.f32.mrf.mxu0
      %v2681 = vadd.f32 %v544, %v2680
      %v2682 = vpop.f32.mrf.mxu0
      %2683 = vmatprep.mubr.f32.mxu0 0.0
      %2684 = vmatmul.mubr.f32.gmra.mxu0 %v1145
      %v2685 = vpop.f32.mrf.mxu0
      %v2686 = vadd.f32 %v544, %v2685
      %v2687 = vpop.f32.mrf.mxu0
      %2688 = vmatprep.mubr.f32.mxu0 0.0
      %2689 = vmatmul.mubr.f32.gmra.mxu0 %v1148
      %v2690 = vpop.f32.mrf.mxu0
      %v2691 = vadd.f32 %v544, %v2690
      %v2692 = vpop.f32.mrf.mxu0
      %2693 = vmatprep.mubr.f32.mxu0 0.0
      %2694 = vmatmul.mubr.f32.gmra.mxu0 %v1151
      %v2695 = vpop.f32.mrf.mxu0
      %v2696 = vadd.f32 %v544, %v2695
      %v2697 = vpop.f32.mrf.mxu0
      %2698 = vmatprep.mubr.f32.mxu0 0.0
      %2699 = vmatmul.mubr.f32.gmra.mxu0 %v1154
      %v2700 = vpop.f32.mrf.mxu0
      %v2701 = vadd.f32 %v544, %v2700
      %v2702 = vpop.f32.mrf.mxu0
      %2703 = vmatprep.mubr.f32.mxu0 0.0
      %2704 = vmatmul.mubr.f32.gmra.mxu0 %v1157
      %v2705 = vpop.f32.mrf.mxu0
      %v2706 = vadd.f32 %v544, %v2705
      %v2707 = vpop.f32.mrf.mxu0
      %2708 = vmatprep.mubr.f32.mxu0 0.0
      %2709 = vmatmul.mubr.f32.gmra.mxu0 %v1160
      %v2710 = vpop.f32.mrf.mxu0
      %v2711 = vadd.f32 %v544, %v2710
      %v2712 = vpop.f32.mrf.mxu0
      %2713 = vmatprep.mubr.f32.mxu0 0.0
      %2714 = vmatmul.mubr.f32.gmra.mxu0 %v1163
      %v2715 = vpop.f32.mrf.mxu0
      %v2716 = vadd.f32 %v544, %v2715
      %v2717 = vpop.f32.mrf.mxu0
      %2718 = vmatprep.mubr.f32.mxu0 0.0
      %2719 = vmatmul.mubr.f32.gmra.mxu0 %v1166
      %v2720 = vpop.f32.mrf.mxu0
      %v2721 = vadd.f32 %v544, %v2720
      %v2722 = vpop.f32.mrf.mxu0
      %2723 = vmatprep.mubr.f32.mxu0 0.0
      %2724 = vmatmul.mubr.f32.gmra.mxu0 %v1169
      %v2725 = vpop.f32.mrf.mxu0
      %v2726 = vadd.f32 %v544, %v2725
      %v2727 = vpop.f32.mrf.mxu0
      %2728 = vmatprep.mubr.f32.mxu0 0.0
      %2729 = vmatmul.mubr.f32.gmra.mxu0 %v1172
      %v2730 = vpop.f32.mrf.mxu0
      %v2731 = vadd.f32 %v544, %v2730
      %v2732 = vpop.f32.mrf.mxu0
      %2733 = vmatprep.mubr.f32.mxu0 0.0
      %2734 = vmatmul.mubr.f32.gmra.mxu0 %v1175
      %v2735 = vpop.f32.mrf.mxu0
      %v2736 = vadd.f32 %v544, %v2735
      %v2737 = vpop.f32.mrf.mxu0
      %2738 = vmatprep.mubr.f32.mxu0 0.0
      %2739 = vmatmul.mubr.f32.gmra.mxu0 %v1178
      %v2740 = vpop.f32.mrf.mxu0
      %v2741 = vadd.f32 %v544, %v2740
      %v2742 = vpop.f32.mrf.mxu0
      %2743 = vmatprep.mubr.f32.mxu0 0.0
      %2744 = vmatmul.mubr.f32.gmra.mxu0 %v1181
      %v2745 = vpop.f32.mrf.mxu0
      %v2746 = vadd.f32 %v544, %v2745
      %v2747 = vpop.f32.mrf.mxu0
      %2748 = vmatprep.mubr.f32.mxu0 0.0
      %2749 = vmatmul.mubr.f32.gmra.mxu0 %v1184
      %v2750 = vpop.f32.mrf.mxu0
      %v2751 = vadd.f32 %v544, %v2750
      %v2752 = vpop.f32.mrf.mxu0
      %2753 = vmatprep.mubr.f32.mxu0 0.0
      %2754 = vmatmul.mubr.f32.gmra.mxu0 %v1187
      %v2755 = vpop.f32.mrf.mxu0
      %v2756 = vadd.f32 %v544, %v2755
      %v2757 = vpop.f32.mrf.mxu0
      %2758 = vmatprep.mubr.f32.mxu0 0.0
      %2759 = vmatmul.mubr.f32.gmra.mxu0 %v1190
      %v2760 = vpop.f32.mrf.mxu0
      %v2761 = vadd.f32 %v544, %v2760
      %v2762 = vpop.f32.mrf.mxu0
      %2763 = vmatprep.mubr.f32.mxu0 0.0
      %2764 = vmatmul.mubr.f32.gmra.mxu0 %v1193
      %v2765 = vpop.f32.mrf.mxu0
      %v2766 = vadd.f32 %v544, %v2765
      %v2767 = vpop.f32.mrf.mxu0
      %2768 = vmatprep.mubr.f32.mxu0 0.0
      %2769 = vmatmul.mubr.f32.gmra.mxu0 %v1196
      %v2770 = vpop.f32.mrf.mxu0
      %v2771 = vadd.f32 %v544, %v2770
      %v2772 = vpop.f32.mrf.mxu0
      %2773 = vmatprep.mubr.f32.mxu0 0.0
      %2774 = vmatmul.mubr.f32.gmra.mxu0 %v1199
      %v2775 = vpop.f32.mrf.mxu0
      %v2776 = vadd.f32 %v544, %v2775
      %v2777 = vpop.f32.mrf.mxu0
      %2778 = vmatprep.mubr.f32.mxu0 0.0
      %2779 = vmatmul.mubr.f32.gmra.mxu0 %v1202
      %v2780 = vpop.f32.mrf.mxu0
      %v2781 = vadd.f32 %v544, %v2780
      %v2782 = vpop.f32.mrf.mxu0
      %2783 = vmatprep.mubr.f32.mxu0 0.0
      %2784 = vmatmul.mubr.f32.gmra.mxu0 %v1205
      %v2785 = vpop.f32.mrf.mxu0
      %v2786 = vadd.f32 %v544, %v2785
      %v2787 = vpop.f32.mrf.mxu0
      %2788 = vmatprep.mubr.f32.mxu0 0.0
      %2789 = vmatmul.mubr.f32.gmra.mxu0 %v1208
      %v2790 = vpop.f32.mrf.mxu0
      %v2791 = vadd.f32 %v544, %v2790
      %v2792 = vpop.f32.mrf.mxu0
      %2793 = vmatprep.mubr.f32.mxu0 0.0
      %2794 = vmatmul.mubr.f32.gmra.mxu0 %v1211
      %v2795 = vpop.f32.mrf.mxu0
      %v2796 = vadd.f32 %v544, %v2795
      %v2797 = vpop.f32.mrf.mxu0
      %2798 = vmatprep.mubr.f32.mxu0 0.0
      %2799 = vmatmul.mubr.f32.gmra.mxu0 %v1214
      %v2800 = vpop.f32.mrf.mxu0
      %v2801 = vadd.f32 %v544, %v2800
      %v2802 = vpop.f32.mrf.mxu0
      %2803 = vmatprep.mubr.f32.mxu0 0.0
      %2804 = vmatmul.mubr.f32.gmra.mxu0 %v1217
      %v2805 = vpop.f32.mrf.mxu0
      %v2806 = vadd.f32 %v544, %v2805
      %v2807 = vpop.f32.mrf.mxu0
      %2808 = vmatprep.mubr.f32.mxu0 0.0
      %2809 = vmatmul.mubr.f32.gmra.mxu0 %v1220
      %v2810 = vpop.f32.mrf.mxu0
      %v2811 = vadd.f32 %v544, %v2810
      %v2812 = vpop.f32.mrf.mxu0
      %2813 = vmatprep.mubr.f32.mxu0 0.0
      %2814 = vmatmul.mubr.f32.gmra.mxu0 %v1223
      %v2815 = vpop.f32.mrf.mxu0
      %v2816 = vadd.f32 %v544, %v2815
      %v2817 = vpop.f32.mrf.mxu0
      %2818 = vmatprep.mubr.f32.mxu0 0.0
      %2819 = vmatmul.mubr.f32.gmra.mxu0 %v1226
      %v2820 = vpop.f32.mrf.mxu0
      %v2821 = vadd.f32 %v544, %v2820
      %v2822 = vpop.f32.mrf.mxu0
      %2823 = vmatprep.mubr.f32.mxu0 0.0
      %2824 = vmatmul.mubr.f32.gmra.mxu0 %v1229
      %v2825 = vpop.f32.mrf.mxu0
      %v2826 = vadd.f32 %v544, %v2825
      %v2827 = vpop.f32.mrf.mxu0
      %2828 = vmatprep.mubr.f32.mxu0 0.0
      %2829 = vmatmul.mubr.f32.gmra.mxu0 %v1232
      %v2830 = vpop.f32.mrf.mxu0
      %v2831 = vadd.f32 %v544, %v2830
      %v2832 = vpop.f32.mrf.mxu0
      %2833 = vmatprep.mubr.f32.mxu0 0.0
      %2834 = vmatmul.mubr.f32.gmra.mxu0 %v1235
      %v2835 = vpop.f32.mrf.mxu0
      %v2836 = vadd.f32 %v544, %v2835
      %v2837 = vpop.f32.mrf.mxu0
      %2838 = vmatprep.mubr.f32.mxu0 0.0
      %2839 = vmatmul.mubr.f32.gmra.mxu0 %v1238
      %v2840 = vpop.f32.mrf.mxu0
      %v2841 = vadd.f32 %v544, %v2840
      %v2842 = vpop.f32.mrf.mxu0
      %2843 = vmatprep.mubr.f32.mxu0 0.0
      %2844 = vmatmul.mubr.f32.gmra.mxu0 %v1241
      %v2845 = vpop.f32.mrf.mxu0
      %v2846 = vadd.f32 %v544, %v2845
      %v2847 = vpop.f32.mrf.mxu0
      %2848 = vmatprep.mubr.f32.mxu0 0.0
      %2849 = vmatmul.mubr.f32.gmra.mxu0 %v1244
      %v2850 = vpop.f32.mrf.mxu0
      %v2851 = vadd.f32 %v544, %v2850
      %v2852 = vpop.f32.mrf.mxu0
      %2853 = vmatprep.mubr.f32.mxu0 0.0
      %2854 = vmatmul.mubr.f32.gmra.mxu0 %v1247
      %v2855 = vpop.f32.mrf.mxu0
      %v2856 = vadd.f32 %v544, %v2855
      %v2857 = vpop.f32.mrf.mxu0
      %2858 = vmatprep.mubr.f32.mxu0 0.0
      %2859 = vmatmul.mubr.f32.gmra.mxu0 %v1250
      %v2860 = vpop.f32.mrf.mxu0
      %v2861 = vadd.f32 %v544, %v2860
      %v2862 = vpop.f32.mrf.mxu0
      %2863 = vmatprep.mubr.f32.mxu0 0.0
      %2864 = vmatmul.mubr.f32.gmra.mxu0 %v1253
      %v2865 = vpop.f32.mrf.mxu0
      %v2866 = vadd.f32 %v544, %v2865
      %v2867 = vpop.f32.mrf.mxu0
      %2868 = vmatprep.mubr.f32.mxu0 0.0
      %2869 = vmatmul.mubr.f32.gmra.mxu0 %v1256
      %v2870 = vpop.f32.mrf.mxu0
      %v2871 = vadd.f32 %v544, %v2870
      %v2872 = vpop.f32.mrf.mxu0
      %2873 = vmatprep.mubr.f32.mxu0 0.0
      %2874 = vmatmul.mubr.f32.gmra.mxu0 %v1259
      %v2875 = vpop.f32.mrf.mxu0
      %v2876 = vadd.f32 %v544, %v2875
      %v2877 = vpop.f32.mrf.mxu0
      %2878 = vmatprep.mubr.f32.mxu0 0.0
      %2879 = vmatmul.mubr.f32.gmra.mxu0 %v1262
      %v2880 = vpop.f32.mrf.mxu0
      %v2881 = vadd.f32 %v544, %v2880
      %v2882 = vpop.f32.mrf.mxu0
      %2883 = vmatprep.mubr.f32.mxu0 0.0
      %2884 = vmatmul.mubr.f32.gmra.mxu0 %v1265
      %v2885 = vpop.f32.mrf.mxu0
      %v2886 = vadd.f32 %v544, %v2885
      %v2887 = vpop.f32.mrf.mxu0
      %2888 = vmatprep.mubr.f32.mxu0 0.0
      %2889 = vmatmul.mubr.f32.gmra.mxu0 %v1268
      %v2890 = vpop.f32.mrf.mxu0
      %v2891 = vadd.f32 %v544, %v2890
      %v2892 = vpop.f32.mrf.mxu0
      %2893 = vmatprep.mubr.f32.mxu0 0.0
      %2894 = vmatmul.mubr.f32.gmra.mxu0 %v1271
      %v2895 = vpop.f32.mrf.mxu0
      %v2896 = vadd.f32 %v544, %v2895
      %v2897 = vpop.f32.mrf.mxu0
      %2898 = vmatprep.mubr.f32.mxu0 0.0
      %2899 = vmatmul.mubr.f32.gmra.mxu0 %v1274
      %v2900 = vpop.f32.mrf.mxu0
      %v2901 = vadd.f32 %v544, %v2900
      %v2902 = vpop.f32.mrf.mxu0
      %2903 = vmatprep.mubr.f32.mxu0 0.0
      %2904 = vmatmul.mubr.f32.gmra.mxu0 %v1277
      %v2905 = vpop.f32.mrf.mxu0
      %v2906 = vadd.f32 %v544, %v2905
      %v2907 = vpop.f32.mrf.mxu0
      %2908 = vmatprep.mubr.f32.mxu0 0.0
      %2909 = vmatmul.mubr.f32.gmra.mxu0 %v1280
      %v2910 = vpop.f32.mrf.mxu0
      %v2911 = vadd.f32 %v544, %v2910
      %v2912 = vpop.f32.mrf.mxu0
      %2913 = vmatprep.mubr.f32.mxu0 0.0
      %2914 = vmatmul.mubr.f32.gmra.mxu0 %v1283
      %v2915 = vpop.f32.mrf.mxu0
      %v2916 = vadd.f32 %v544, %v2915
      %v2917 = vpop.f32.mrf.mxu0
      %2918 = vmatprep.mubr.f32.mxu0 0.0
      %2919 = vmatmul.mubr.f32.gmra.mxu0 %v1286
      %v2920 = vpop.f32.mrf.mxu0
      %v2921 = vadd.f32 %v544, %v2920
      %v2922 = vpop.f32.mrf.mxu0
      %2923 = vmatprep.mubr.f32.mxu0 0.0
      %2924 = vmatmul.mubr.f32.gmra.mxu0 %v1289
      %v2925 = vpop.f32.mrf.mxu0
      %v2926 = vadd.f32 %v544, %v2925
      %v2927 = vpop.f32.mrf.mxu0
      %2928 = vmatprep.mubr.f32.mxu0 0.0
      %2929 = vmatmul.mubr.f32.gmra.mxu0 %v1292
      %v2930 = vpop.f32.mrf.mxu0
      %v2931 = vadd.f32 %v544, %v2930
      %v2932 = vpop.f32.mrf.mxu0
      %2933 = vmatprep.mubr.f32.mxu0 0.0
      %2934 = vmatmul.mubr.f32.gmra.mxu0 %v1295
      %v2935 = vpop.f32.mrf.mxu0
      %v2936 = vadd.f32 %v544, %v2935
      %v2937 = vpop.f32.mrf.mxu0
      %2938 = vmatprep.mubr.f32.mxu0 0.0
      %2939 = vmatmul.mubr.f32.gmra.mxu0 %v1298
      %v2940 = vpop.f32.mrf.mxu0
      %v2941 = vadd.f32 %v544, %v2940
      %v2942 = vpop.f32.mrf.mxu0
      %2943 = vmatprep.mubr.f32.mxu0 0.0
      %2944 = vmatmul.mubr.f32.gmra.mxu0 %v1301
      %v2945 = vpop.f32.mrf.mxu0
      %v2946 = vadd.f32 %v544, %v2945
      %v2947 = vpop.f32.mrf.mxu0
      %2948 = vmatprep.mubr.f32.mxu0 0.0
      %2949 = vmatmul.mubr.f32.gmra.mxu0 %v1304
      %v2950 = vpop.f32.mrf.mxu0
      %v2951 = vadd.f32 %v544, %v2950
      %v2952 = vpop.f32.mrf.mxu0
      %2953 = vmatprep.mubr.f32.mxu0 0.0
      %2954 = vmatmul.mubr.f32.gmra.mxu0 %v1307
      %v2955 = vpop.f32.mrf.mxu0
      %v2956 = vadd.f32 %v544, %v2955
      %v2957 = vpop.f32.mrf.mxu0
      %2958 = vmatprep.mubr.f32.mxu0 0.0
      %2959 = vmatmul.mubr.f32.gmra.mxu0 %v1310
      %v2960 = vpop.f32.mrf.mxu0
      %v2961 = vadd.f32 %v544, %v2960
      %v2962 = vpop.f32.mrf.mxu0
      %2963 = vmatprep.mubr.f32.mxu0 0.0
      %2964 = vmatmul.mubr.f32.gmra.mxu0 %v1313
      %v2965 = vpop.f32.mrf.mxu0
      %v2966 = vadd.f32 %v544, %v2965
      %v2967 = vpop.f32.mrf.mxu0
      %2968 = vmatprep.mubr.f32.mxu0 0.0
      %2969 = vmatmul.mubr.f32.gmra.mxu0 %v1316
      %v2970 = vpop.f32.mrf.mxu0
      %v2971 = vadd.f32 %v544, %v2970
      %v2972 = vpop.f32.mrf.mxu0
      %2973 = vmatprep.mubr.f32.mxu0 0.0
      %2974 = vmatmul.mubr.f32.gmra.mxu0 %v1319
      %v2975 = vpop.f32.mrf.mxu0
      %v2976 = vadd.f32 %v544, %v2975
      %v2977 = vpop.f32.mrf.mxu0
      %2978 = vmatprep.mubr.f32.mxu0 0.0
      %2979 = vmatmul.mubr.f32.gmra.mxu0 %v1322
      %v2980 = vpop.f32.mrf.mxu0
      %v2981 = vadd.f32 %v544, %v2980
      %v2982 = vpop.f32.mrf.mxu0
      %2983 = vmatprep.mubr.f32.mxu0 0.0
      %2984 = vmatmul.mubr.f32.gmra.mxu0 %v1325
      %v2985 = vpop.f32.mrf.mxu0
      %v2986 = vadd.f32 %v544, %v2985
      %v2987 = vpop.f32.mrf.mxu0
      %2988 = vmatprep.mubr.f32.mxu0 0.0
      %2989 = vmatmul.mubr.f32.gmra.mxu0 %v1328
      %v2990 = vpop.f32.mrf.mxu0
      %v2991 = vadd.f32 %v544, %v2990
      %v2992 = vpop.f32.mrf.mxu0
      %2993 = vmatprep.mubr.f32.mxu0 0.0
      %2994 = vmatmul.mubr.f32.gmra.mxu0 %v1331
      %v2995 = vpop.f32.mrf.mxu0
      %v2996 = vadd.f32 %v544, %v2995
      %v2997 = vpop.f32.mrf.mxu0
      %2998 = vmatprep.mubr.f32.mxu0 0.0
      %2999 = vmatmul.mubr.f32.gmra.mxu0 %v1334
      %v3000 = vpop.f32.mrf.mxu0
      %v3001 = vadd.f32 %v544, %v3000
      %v3002 = vpop.f32.mrf.mxu0
      %3003 = vmatprep.mubr.f32.mxu0 0.0
      %3004 = vmatmul.mubr.f32.gmra.mxu0 %v1337
      %v3005 = vpop.f32.mrf.mxu0
      %v3006 = vadd.f32 %v544, %v3005
      %v3007 = vpop.f32.mrf.mxu0
      %3008 = vmatprep.mubr.f32.mxu0 0.0
      %3009 = vmatmul.mubr.f32.gmra.mxu0 %v1340
      %v3010 = vpop.f32.mrf.mxu0
      %v3011 = vadd.f32 %v544, %v3010
      %v3012 = vpop.f32.mrf.mxu0
      %3013 = vmatprep.mubr.f32.mxu0 0.0
      %3014 = vmatmul.mubr.f32.gmra.mxu0 %v1343
      %v3015 = vpop.f32.mrf.mxu0
      %v3016 = vadd.f32 %v544, %v3015
      %v3017 = vpop.f32.mrf.mxu0
      %3018 = vmatprep.mubr.f32.mxu0 0.0
      %3019 = vmatmul.mubr.f32.gmra.mxu0 %v1346
      %v3020 = vpop.f32.mrf.mxu0
      %v3021 = vadd.f32 %v544, %v3020
      %v3022 = vpop.f32.mrf.mxu0
      %3023 = vmatprep.mubr.f32.mxu0 0.0
      %3024 = vmatmul.mubr.f32.gmra.mxu0 %v1349
      %v3025 = vpop.f32.mrf.mxu0
      %v3026 = vadd.f32 %v544, %v3025
      %v3027 = vpop.f32.mrf.mxu0
      %3028 = vmatprep.mubr.f32.mxu0 0.0
      %3029 = vmatmul.mubr.f32.gmra.mxu0 %v1352
      %v3030 = vpop.f32.mrf.mxu0
      %v3031 = vadd.f32 %v544, %v3030
      %v3032 = vpop.f32.mrf.mxu0
      %3033 = vmatprep.mubr.f32.mxu0 0.0
      %3034 = vmatmul.mubr.f32.gmra.mxu0 %v1355
      %v3035 = vpop.f32.mrf.mxu0
      %v3036 = vadd.f32 %v544, %v3035
      %v3037 = vpop.f32.mrf.mxu0
      %3038 = vmatprep.mubr.f32.mxu0 0.0
      %3039 = vmatmul.mubr.f32.gmra.mxu0 %v1358
      %v3040 = vpop.f32.mrf.mxu0
      %v3041 = vadd.f32 %v544, %v3040
      %v3042 = vpop.f32.mrf.mxu0
      %3043 = vmatprep.mubr.f32.mxu0 0.0
      %3044 = vmatmul.mubr.f32.gmra.mxu0 %v1361
      %v3045 = vpop.f32.mrf.mxu0
      %v3046 = vadd.f32 %v544, %v3045
      %v3047 = vpop.f32.mrf.mxu0
      %3048 = vmatprep.mubr.f32.mxu0 0.0
      %3049 = vmatmul.mubr.f32.gmra.mxu0 %v1364
      %v3050 = vpop.f32.mrf.mxu0
      %v3051 = vadd.f32 %v544, %v3050
      %v3052 = vpop.f32.mrf.mxu0
      %3053 = vmatprep.mubr.f32.mxu0 0.0
      %3054 = vmatmul.mubr.f32.gmra.mxu0 %v1367
      %v3055 = vpop.f32.mrf.mxu0
      %v3056 = vadd.f32 %v544, %v3055
      %v3057 = vpop.f32.mrf.mxu0
      %3058 = vmatprep.mubr.f32.mxu0 0.0
      %3059 = vmatmul.mubr.f32.gmra.mxu0 %v1370
      %v3060 = vpop.f32.mrf.mxu0
      %v3061 = vadd.f32 %v544, %v3060
      %v3062 = vpop.f32.mrf.mxu0
      %3063 = vmatprep.mubr.f32.mxu0 0.0
      %3064 = vmatmul.mubr.f32.gmra.mxu0 %v1373
      %v3065 = vpop.f32.mrf.mxu0
      %v3066 = vadd.f32 %v544, %v3065
      %v3067 = vpop.f32.mrf.mxu0
      %3068 = vmatprep.mubr.f32.mxu0 0.0
      %3069 = vmatmul.mubr.f32.gmra.mxu0 %v1376
      %v3070 = vpop.f32.mrf.mxu0
      %v3071 = vadd.f32 %v544, %v3070
      %v3072 = vpop.f32.mrf.mxu0
      %3073 = vmatprep.mubr.f32.mxu0 0.0
      %3074 = vmatmul.mubr.f32.gmra.mxu0 %v1379
      %v3075 = vpop.f32.mrf.mxu0
      %v3076 = vadd.f32 %v544, %v3075
      %v3077 = vpop.f32.mrf.mxu0
      %3078 = vmatprep.mubr.f32.mxu0 0.0
      %3079 = vmatmul.mubr.f32.gmra.mxu0 %v1382
      %v3080 = vpop.f32.mrf.mxu0
      %v3081 = vadd.f32 %v544, %v3080
      %v3082 = vpop.f32.mrf.mxu0
      %3083 = vmatprep.mubr.f32.mxu0 0.0
      %3084 = vmatmul.mubr.f32.gmra.mxu0 %v1385
      %v3085 = vpop.f32.mrf.mxu0
      %v3086 = vadd.f32 %v544, %v3085
      %v3087 = vpop.f32.mrf.mxu0
      %3088 = vmatprep.mubr.f32.mxu0 0.0
      %3089 = vmatmul.mubr.f32.gmra.mxu0 %v1388
      %v3090 = vpop.f32.mrf.mxu0
      %v3091 = vadd.f32 %v544, %v3090
      %v3092 = vpop.f32.mrf.mxu0
      %3093 = vmatprep.mubr.f32.mxu0 0.0
      %3094 = vmatmul.mubr.f32.gmra.mxu0 %v1391
      %v3095 = vpop.f32.mrf.mxu0
      %v3096 = vadd.f32 %v544, %v3095
      %v3097 = vpop.f32.mrf.mxu0
      %3098 = vmatprep.mubr.f32.mxu0 0.0
      %3099 = vmatmul.mubr.f32.gmra.mxu0 %v1394
      %v3100 = vpop.f32.mrf.mxu0
      %v3101 = vadd.f32 %v544, %v3100
      %v3102 = vpop.f32.mrf.mxu0
      %3103 = vmatprep.mubr.f32.mxu0 0.0
      %3104 = vmatmul.mubr.f32.gmra.mxu0 %v1397
      %v3105 = vpop.f32.mrf.mxu0
      %v3106 = vadd.f32 %v544, %v3105
      %v3107 = vpop.f32.mrf.mxu0
      %3108 = vmatprep.mubr.f32.mxu0 0.0
      %3109 = vmatmul.mubr.f32.gmra.mxu0 %v1400
      %v3110 = vpop.f32.mrf.mxu0
      %v3111 = vadd.f32 %v544, %v3110
      %v3112 = vpop.f32.mrf.mxu0
      %3113 = vmatprep.mubr.f32.mxu0 0.0
      %3114 = vmatmul.mubr.f32.gmra.mxu0 %v1403
      %v3115 = vpop.f32.mrf.mxu0
      %v3116 = vadd.f32 %v544, %v3115
      %v3117 = vpop.f32.mrf.mxu0
      %3118 = vmatprep.mubr.f32.mxu0 0.0
      %3119 = vmatmul.mubr.f32.gmra.mxu0 %v1406
      %v3120 = vpop.f32.mrf.mxu0
      %v3121 = vadd.f32 %v544, %v3120
      %v3122 = vpop.f32.mrf.mxu0
      %3123 = vmatprep.mubr.f32.mxu0 0.0
      %3124 = vmatmul.mubr.f32.gmra.mxu0 %v1409
      %v3125 = vpop.f32.mrf.mxu0
      %v3126 = vadd.f32 %v544, %v3125
      %v3127 = vpop.f32.mrf.mxu0
      %3128 = vmatprep.mubr.f32.mxu0 0.0
      %3129 = vmatmul.mubr.f32.gmra.mxu0 %v1412
      %v3130 = vpop.f32.mrf.mxu0
      %v3131 = vadd.f32 %v544, %v3130
      %v3132 = vpop.f32.mrf.mxu0
      %3133 = vmatprep.mubr.f32.mxu0 0.0
      %3134 = vmatmul.mubr.f32.gmra.mxu0 %v1415
      %v3135 = vpop.f32.mrf.mxu0
      %v3136 = vadd.f32 %v544, %v3135
      %v3137 = vpop.f32.mrf.mxu0
      %3138 = vmatprep.mubr.f32.mxu0 0.0
      %3139 = vmatmul.mubr.f32.gmra.mxu0 %v1418
      %v3140 = vpop.f32.mrf.mxu0
      %v3141 = vadd.f32 %v544, %v3140
      %v3142 = vpop.f32.mrf.mxu0
      %3143 = vmatprep.mubr.f32.mxu0 0.0
      %3144 = vmatmul.mubr.f32.gmra.mxu0 %v1421
      %v3145 = vpop.f32.mrf.mxu0
      %v3146 = vadd.f32 %v544, %v3145
      %v3147 = vpop.f32.mrf.mxu0
      %3148 = vmatprep.mubr.f32.mxu0 0.0
      %3149 = vmatmul.mubr.f32.gmra.mxu0 %v1424
      %v3150 = vpop.f32.mrf.mxu0
      %v3151 = vadd.f32 %v544, %v3150
      %v3152 = vpop.f32.mrf.mxu0
      %3153 = vmatprep.mubr.f32.mxu0 0.0
      %3154 = vmatmul.mubr.f32.gmra.mxu0 %v1427
      %v3155 = vpop.f32.mrf.mxu0
      %v3156 = vadd.f32 %v544, %v3155
      %v3157 = vpop.f32.mrf.mxu0
      %3158 = vmatprep.mubr.f32.mxu0 0.0
      %3159 = vmatmul.mubr.f32.gmra.mxu0 %v1430
      %v3160 = vpop.f32.mrf.mxu0
      %v3161 = vadd.f32 %v544, %v3160
      %v3162 = vpop.f32.mrf.mxu0
      %3163 = vmatprep.mubr.f32.mxu0 0.0
      %3164 = vmatmul.mubr.f32.gmra.mxu0 %v1433
      %v3165 = vpop.f32.mrf.mxu0
      %v3166 = vadd.f32 %v544, %v3165
      %v3167 = vpop.f32.mrf.mxu0
      %3168 = vmatprep.mubr.f32.mxu0 0.0
      %3169 = vmatmul.mubr.f32.gmra.mxu0 %v1436
      %v3170 = vpop.f32.mrf.mxu0
      %v3171 = vadd.f32 %v544, %v3170
      %v3172 = vpop.f32.mrf.mxu0
      %3173 = vmatprep.mubr.f32.mxu0 0.0
      %3174 = vmatmul.mubr.f32.gmra.mxu0 %v1439
      %v3175 = vpop.f32.mrf.mxu0
      %v3176 = vadd.f32 %v544, %v3175
      %v3177 = vpop.f32.mrf.mxu0
      %3178 = vmatprep.mubr.f32.mxu0 0.0
      %3179 = vmatmul.mubr.f32.gmra.mxu0 %v1442
      %v3180 = vpop.f32.mrf.mxu0
      %v3181 = vadd.f32 %v544, %v3180
      %v3182 = vpop.f32.mrf.mxu0
      %3183 = vmatprep.mubr.f32.mxu0 0.0
      %3184 = vmatmul.mubr.f32.gmra.mxu0 %v1445
      %v3185 = vpop.f32.mrf.mxu0
      %v3186 = vadd.f32 %v544, %v3185
      %v3187 = vpop.f32.mrf.mxu0
      %3188 = vmatprep.mubr.f32.mxu0 0.0
      %3189 = vmatmul.mubr.f32.gmra.mxu0 %v1448
      %v3190 = vpop.f32.mrf.mxu0
      %v3191 = vadd.f32 %v544, %v3190
      %v3192 = vpop.f32.mrf.mxu0
      %3193 = vmatprep.mubr.f32.mxu0 0.0
      %3194 = vmatmul.mubr.f32.gmra.mxu0 %v1451
      %v3195 = vpop.f32.mrf.mxu0
      %v3196 = vadd.f32 %v544, %v3195
      %v3197 = vpop.f32.mrf.mxu0
      %3198 = vmatprep.mubr.f32.mxu0 0.0
      %3199 = vmatmul.mubr.f32.gmra.mxu0 %v1454
      %v3200 = vpop.f32.mrf.mxu0
      %v3201 = vadd.f32 %v544, %v3200
      %v3202 = vpop.f32.mrf.mxu0
      %3203 = vmatprep.mubr.f32.mxu0 0.0
      %3204 = vmatmul.mubr.f32.gmra.mxu0 %v1457
      %v3205 = vpop.f32.mrf.mxu0
      %v3206 = vadd.f32 %v544, %v3205
      %v3207 = vpop.f32.mrf.mxu0
      %3208 = vmatprep.mubr.f32.mxu0 0.0
      %3209 = vmatmul.mubr.f32.gmra.mxu0 %v1460
      %v3210 = vpop.f32.mrf.mxu0
      %v3211 = vadd.f32 %v544, %v3210
      %v3212 = vpop.f32.mrf.mxu0
      %3213 = vmatprep.mubr.f32.mxu0 0.0
      %3214 = vmatmul.mubr.f32.gmra.mxu0 %v1463
      %v3215 = vpop.f32.mrf.mxu0
      %v3216 = vadd.f32 %v544, %v3215
      %v3217 = vpop.f32.mrf.mxu0
      %3218 = vmatprep.mubr.f32.mxu0 0.0
      %3219 = vmatmul.mubr.f32.gmra.mxu0 %v1466
      %v3220 = vpop.f32.mrf.mxu0
      %v3221 = vadd.f32 %v544, %v3220
      %v3222 = vpop.f32.mrf.mxu0
      %3223 = vmatprep.mubr.f32.mxu0 0.0
      %3224 = vmatmul.mubr.f32.gmra.mxu0 %v1469
      %v3225 = vpop.f32.mrf.mxu0
      %v3226 = vadd.f32 %v544, %v3225
      %v3227 = vpop.f32.mrf.mxu0
      %3228 = vmatprep.mubr.f32.mxu0 0.0
      %3229 = vmatmul.mubr.f32.gmra.mxu0 %v1472
      %v3230 = vpop.f32.mrf.mxu0
      %v3231 = vadd.f32 %v544, %v3230
      %v3232 = vpop.f32.mrf.mxu0
      %3233 = vmatprep.mubr.f32.mxu0 0.0
      %3234 = vmatmul.mubr.f32.gmra.mxu0 %v1475
      %v3235 = vpop.f32.mrf.mxu0
      %v3236 = vadd.f32 %v544, %v3235
      %v3237 = vpop.f32.mrf.mxu0
      %3238 = vmatprep.mubr.f32.mxu0 0.0
      %3239 = vmatmul.mubr.f32.gmra.mxu0 %v1478
      %v3240 = vpop.f32.mrf.mxu0
      %v3241 = vadd.f32 %v544, %v3240
      %v3242 = vpop.f32.mrf.mxu0
      %3243 = vmatprep.mubr.f32.mxu0 0.0
      %3244 = vmatmul.mubr.f32.gmra.mxu0 %v1481
      %v3245 = vpop.f32.mrf.mxu0
      %v3246 = vadd.f32 %v544, %v3245
      %v3247 = vpop.f32.mrf.mxu0
      %3248 = vmatprep.mubr.f32.mxu0 0.0
      %3249 = vmatmul.mubr.f32.gmra.mxu0 %v1484
      %v3250 = vpop.f32.mrf.mxu0
      %v3251 = vadd.f32 %v544, %v3250
      %v3252 = vpop.f32.mrf.mxu0
      %3253 = vmatprep.mubr.f32.mxu0 0.0
      %3254 = vmatmul.mubr.f32.gmra.mxu0 %v1487
      %v3255 = vpop.f32.mrf.mxu0
      %v3256 = vadd.f32 %v544, %v3255
      %v3257 = vpop.f32.mrf.mxu0
      %3258 = vmatprep.mubr.f32.mxu0 0.0
      %3259 = vmatmul.mubr.f32.gmra.mxu0 %v1490
      %v3260 = vpop.f32.mrf.mxu0
      %v3261 = vadd.f32 %v544, %v3260
      %v3262 = vpop.f32.mrf.mxu0
      %3263 = vmatprep.mubr.f32.mxu0 0.0
      %3264 = vmatmul.mubr.f32.gmra.mxu0 %v1493
      %v3265 = vpop.f32.mrf.mxu0
      %v3266 = vadd.f32 %v544, %v3265
      %v3267 = vpop.f32.mrf.mxu0
      %3268 = vmatprep.mubr.f32.mxu0 0.0
      %3269 = vmatmul.mubr.f32.gmra.mxu0 %v1496
      %v3270 = vpop.f32.mrf.mxu0
      %v3271 = vadd.f32 %v544, %v3270
      %v3272 = vpop.f32.mrf.mxu0
      %3273 = vmatprep.mubr.f32.mxu0 0.0
      %3274 = vmatmul.mubr.f32.gmra.mxu0 %v1499
      %v3275 = vpop.f32.mrf.mxu0
      %v3276 = vadd.f32 %v544, %v3275
      %v3277 = vpop.f32.mrf.mxu0
      %3278 = vmatprep.mubr.f32.mxu0 0.0
      %3279 = vmatmul.mubr.f32.gmra.mxu0 %v1502
      %v3280 = vpop.f32.mrf.mxu0
      %v3281 = vadd.f32 %v544, %v3280
      %v3282 = vpop.f32.mrf.mxu0
      %3283 = vmatprep.mubr.f32.mxu0 0.0
      %3284 = vmatmul.mubr.f32.gmra.mxu0 %v1505
      %v3285 = vpop.f32.mrf.mxu0
      %v3286 = vadd.f32 %v544, %v3285
      %v3287 = vpop.f32.mrf.mxu0
      %3288 = vmatprep.mubr.f32.mxu0 0.0
      %3289 = vmatmul.mubr.f32.gmra.mxu0 %v1508
      %v3290 = vpop.f32.mrf.mxu0
      %v3291 = vadd.f32 %v544, %v3290
      %v3292 = vpop.f32.mrf.mxu0
      %3293 = vmatprep.mubr.f32.mxu0 0.0
      %3294 = vmatmul.mubr.f32.gmra.mxu0 %v1511
      %v3295 = vpop.f32.mrf.mxu0
      %v3296 = vadd.f32 %v544, %v3295
      %v3297 = vpop.f32.mrf.mxu0
      %3298 = vmatprep.mubr.f32.mxu0 0.0
      %3299 = vmatmul.mubr.f32.gmra.mxu0 %v1514
      %v3300 = vpop.f32.mrf.mxu0
      %v3301 = vadd.f32 %v544, %v3300
      %v3302 = vpop.f32.mrf.mxu0
      %3303 = vmatprep.mubr.f32.mxu0 0.0
      %3304 = vmatmul.mubr.f32.gmra.mxu0 %v1517
      %v3305 = vpop.f32.mrf.mxu0
      %v3306 = vadd.f32 %v544, %v3305
      %v3307 = vpop.f32.mrf.mxu0
      %3308 = vmatprep.mubr.f32.mxu0 0.0
      %3309 = vmatmul.mubr.f32.gmra.mxu0 %v1520
      %v3310 = vpop.f32.mrf.mxu0
      %v3311 = vadd.f32 %v544, %v3310
      %v3312 = vpop.f32.mrf.mxu0
      %3313 = vmatprep.mubr.f32.mxu0 0.0
      %3314 = vmatmul.mubr.f32.gmra.mxu0 %v1523
      %v3315 = vpop.f32.mrf.mxu0
      %v3316 = vadd.f32 %v544, %v3315
      %v3317 = vpop.f32.mrf.mxu0
      %3318 = vmatprep.mubr.f32.mxu0 0.0
      %3319 = vmatmul.mubr.f32.gmra.mxu0 %v1526
      %v3320 = vpop.f32.mrf.mxu0
      %v3321 = vadd.f32 %v544, %v3320
      %v3322 = vpop.f32.mrf.mxu0
      %3323 = vmatprep.mubr.f32.mxu0 0.0
      %3324 = vmatmul.mubr.f32.gmra.mxu0 %v1529
      %v3325 = vpop.f32.mrf.mxu0
      %v3326 = vadd.f32 %v544, %v3325
      %v3327 = vpop.f32.mrf.mxu0
      %3328 = vmatprep.mubr.f32.mxu0 0.0
      %3329 = vmatmul.mubr.f32.gmra.mxu0 %v1532
      %v3330 = vpop.f32.mrf.mxu0
      %v3331 = vadd.f32 %v544, %v3330
      %v3332 = vpop.f32.mrf.mxu0
      %3333 = vmatprep.mubr.f32.mxu0 0.0
      %3334 = vmatmul.mubr.f32.gmra.mxu0 %v1535
      %v3335 = vpop.f32.mrf.mxu0
      %v3336 = vadd.f32 %v544, %v3335
      %v3337 = vpop.f32.mrf.mxu0
      %3338 = vmatprep.mubr.f32.mxu0 0.0
      %3339 = vmatmul.mubr.f32.gmra.mxu0 %v1538
      %v3340 = vpop.f32.mrf.mxu0
      %v3341 = vadd.f32 %v544, %v3340
      %v3342 = vpop.f32.mrf.mxu0
      %3343 = vmatprep.mubr.f32.mxu0 0.0
      %3344 = vmatmul.mubr.f32.gmra.mxu0 %v1541
      %v3345 = vpop.f32.mrf.mxu0
      %v3346 = vadd.f32 %v544, %v3345
      %v3347 = vpop.f32.mrf.mxu0
      %3348 = vmatprep.mubr.f32.mxu0 0.0
      %3349 = vmatmul.mubr.f32.gmra.mxu0 %v1544
      %v3350 = vpop.f32.mrf.mxu0
      %v3351 = vadd.f32 %v544, %v3350
      %v3352 = vpop.f32.mrf.mxu0
      %3353 = vmatprep.mubr.f32.mxu0 0.0
      %3354 = vmatmul.mubr.f32.gmra.mxu0 %v1547
      %v3355 = vpop.f32.mrf.mxu0
      %v3356 = vadd.f32 %v544, %v3355
      %v3357 = vpop.f32.mrf.mxu0
      %3358 = vmatprep.mubr.f32.mxu0 0.0
      %3359 = vmatmul.mubr.f32.gmra.mxu0 %v1550
      %v3360 = vpop.f32.mrf.mxu0
      %v3361 = vadd.f32 %v544, %v3360
      %v3362 = vpop.f32.mrf.mxu0
      %3363 = vmatprep.mubr.f32.mxu0 0.0
      %3364 = vmatmul.mubr.f32.gmra.mxu0 %v1553
      %v3365 = vpop.f32.mrf.mxu0
      %v3366 = vadd.f32 %v544, %v3365
      %v3367 = vpop.f32.mrf.mxu0
      %3368 = vmatprep.mubr.f32.mxu0 0.0
      %3369 = vmatmul.mubr.f32.gmra.mxu0 %v1556
      %v3370 = vpop.f32.mrf.mxu0
      %v3371 = vadd.f32 %v544, %v3370
      %v3372 = vpop.f32.mrf.mxu0
      %3373 = vmatprep.mubr.f32.mxu0 0.0
      %3374 = vmatmul.mubr.f32.gmra.mxu0 %v1559
      %v3375 = vpop.f32.mrf.mxu0
      %v3376 = vadd.f32 %v544, %v3375
      %v3377 = vpop.f32.mrf.mxu0
      %3378 = vmatprep.mubr.f32.mxu0 0.0
      %3379 = vmatmul.mubr.f32.gmra.mxu0 %v1562
      %v3380 = vpop.f32.mrf.mxu0
      %v3381 = vadd.f32 %v544, %v3380
      %v3382 = vpop.f32.mrf.mxu0
      %3383 = vmatprep.mubr.f32.mxu0 0.0
      %3384 = vmatmul.mubr.f32.gmra.mxu0 %v1565
      %v3385 = vpop.f32.mrf.mxu0
      %v3386 = vadd.f32 %v544, %v3385
      %v3387 = vpop.f32.mrf.mxu0
      %3388 = vmatprep.mubr.f32.mxu0 0.0
      %3389 = vmatmul.mubr.f32.gmra.mxu0 %v1568
      %v3390 = vpop.f32.mrf.mxu0
      %v3391 = vadd.f32 %v544, %v3390
      %v3392 = vpop.f32.mrf.mxu0
      %3393 = vmatprep.mubr.f32.mxu0 0.0
      %3394 = vmatmul.mubr.f32.gmra.mxu0 %v1571
      %v3395 = vpop.f32.mrf.mxu0
      %v3396 = vadd.f32 %v544, %v3395
      %v3397 = vpop.f32.mrf.mxu0
      %3398 = vmatprep.mubr.f32.mxu0 0.0
      %3399 = vmatmul.mubr.f32.gmra.mxu0 %v1574
      %v3400 = vpop.f32.mrf.mxu0
      %v3401 = vadd.f32 %v544, %v3400
      %v3402 = vpop.f32.mrf.mxu0
      %3403 = vmatprep.mubr.f32.mxu0 0.0
      %3404 = vmatmul.mubr.f32.gmra.mxu0 %v1577
      %v3405 = vpop.f32.mrf.mxu0
      %v3406 = vadd.f32 %v544, %v3405
      %v3407 = vpop.f32.mrf.mxu0
      %3408 = vmatprep.mubr.f32.mxu0 0.0
      %3409 = vmatmul.mubr.f32.gmra.mxu0 %v1580
      %v3410 = vpop.f32.mrf.mxu0
      %v3411 = vadd.f32 %v544, %v3410
      %v3412 = vpop.f32.mrf.mxu0
      %3413 = vmatprep.mubr.f32.mxu0 0.0
      %3414 = vmatmul.mubr.f32.gmra.mxu0 %v1583
      %v3415 = vpop.f32.mrf.mxu0
      %v3416 = vadd.f32 %v544, %v3415
      %v3417 = vpop.f32.mrf.mxu0
      %3418 = vmatprep.mubr.f32.mxu0 0.0
      %3419 = vmatmul.mubr.f32.gmra.mxu0 %v1586
      %v3420 = vpop.f32.mrf.mxu0
      %v3421 = vadd.f32 %v544, %v3420
      %v3422 = vpop.f32.mrf.mxu0
      %3423 = vmatprep.mubr.f32.mxu0 0.0
      %3424 = vmatmul.mubr.f32.gmra.mxu0 %v1589
      %v3425 = vpop.f32.mrf.mxu0
      %v3426 = vadd.f32 %v544, %v3425
      %v3427 = vpop.f32.mrf.mxu0
      %3428 = vmatprep.mubr.f32.mxu0 0.0
      %3429 = vmatmul.mubr.f32.gmra.mxu0 %v1592
      %v3430 = vpop.f32.mrf.mxu0
      %v3431 = vadd.f32 %v544, %v3430
      %v3432 = vpop.f32.mrf.mxu0
      %3433 = vmatprep.mubr.f32.mxu0 0.0
      %3434 = vmatmul.mubr.f32.gmra.mxu0 %v1595
      %v3435 = vpop.f32.mrf.mxu0
      %v3436 = vadd.f32 %v544, %v3435
      %v3437 = vpop.f32.mrf.mxu0
      %3438 = vmatprep.mubr.f32.mxu0 0.0
      %3439 = vmatmul.mubr.f32.gmra.mxu0 %v1598
      %v3440 = vpop.f32.mrf.mxu0
      %v3441 = vadd.f32 %v544, %v3440
      %v3442 = vpop.f32.mrf.mxu0
      %3443 = vmatprep.mubr.f32.mxu0 0.0
      %3444 = vmatmul.mubr.f32.gmra.mxu0 %v1601
      %v3445 = vpop.f32.mrf.mxu0
      %v3446 = vadd.f32 %v544, %v3445
      %v3447 = vpop.f32.mrf.mxu0
      %3448 = vmatprep.mubr.f32.mxu0 0.0
      %3449 = vmatmul.mubr.f32.gmra.mxu0 %v1604
      %v3450 = vpop.f32.mrf.mxu0
      %v3451 = vadd.f32 %v544, %v3450
      %v3452 = vpop.f32.mrf.mxu0
      %3453 = vmatprep.mubr.f32.mxu0 0.0
      %3454 = vmatmul.mubr.f32.gmra.mxu0 %v1607
      %v3455 = vpop.f32.mrf.mxu0
      %v3456 = vadd.f32 %v544, %v3455
      %v3457 = vpop.f32.mrf.mxu0
      %3458 = vmatprep.mubr.f32.mxu0 0.0
      %3459 = vmatmul.mubr.f32.gmra.mxu0 %v1610
      %v3460 = vpop.f32.mrf.mxu0
      %v3461 = vadd.f32 %v544, %v3460
      %v3462 = vpop.f32.mrf.mxu0
      %3463 = vmatprep.mubr.f32.mxu0 0.0
      %3464 = vmatmul.mubr.f32.gmra.mxu0 %v1613
      %v3465 = vpop.f32.mrf.mxu0
      %v3466 = vadd.f32 %v544, %v3465
      %v3467 = vpop.f32.mrf.mxu0
      %3468 = vmatprep.mubr.f32.mxu0 0.0
      %3469 = vmatmul.mubr.f32.gmra.mxu0 %v1616
      %v3470 = vpop.f32.mrf.mxu0
      %v3471 = vadd.f32 %v544, %v3470
      %v3472 = vpop.f32.mrf.mxu0
      %3473 = vmatprep.mubr.f32.mxu0 0.0
      %3474 = vmatmul.mubr.f32.gmra.mxu0 %v1619
      %v3475 = vpop.f32.mrf.mxu0
      %v3476 = vadd.f32 %v544, %v3475
      %v3477 = vpop.f32.mrf.mxu0
      %3478 = vmatprep.mubr.f32.mxu0 0.0
      %3479 = vmatmul.mubr.f32.gmra.mxu0 %v1622
      %v3480 = vpop.f32.mrf.mxu0
      %v3481 = vadd.f32 %v544, %v3480
      %v3482 = vpop.f32.mrf.mxu0
      %3483 = vdwg.mxu0
      %v3484 = vmax.f32 %v1691, 0.0
      %v3485 = vmax.f32 %v1696, 0.0
      %v3486 = vmax.f32 %v1701, 0.0
      %v3487 = vmax.f32 %v1706, 0.0
      %v3488 = vmax.f32 %v1711, 0.0
      %v3489 = vmax.f32 %v1716, 0.0
      %v3490 = vmax.f32 %v1721, 0.0
      %v3491 = vmax.f32 %v1726, 0.0
      %v3492 = vmax.f32 %v1731, 0.0
      %v3493 = vmax.f32 %v1736, 0.0
      %v3494 = vmax.f32 %v1741, 0.0
      %v3495 = vmax.f32 %v1746, 0.0
      %v3496 = vmax.f32 %v1751, 0.0
      %v3497 = vmax.f32 %v1756, 0.0
      %v3498 = vmax.f32 %v1761, 0.0
      %v3499 = vmax.f32 %v1766, 0.0
      %v3500 = vmax.f32 %v1771, 0.0
      %v3501 = vmax.f32 %v1776, 0.0
      %v3502 = vmax.f32 %v1781, 0.0
      %v3503 = vmax.f32 %v1786, 0.0
      %v3504 = vmax.f32 %v1791, 0.0
      %v3505 = vmax.f32 %v1796, 0.0
      %v3506 = vmax.f32 %v1801, 0.0
      %v3507 = vmax.f32 %v1806, 0.0
      %v3508 = vmax.f32 %v1811, 0.0
      %v3509 = vmax.f32 %v1816, 0.0
      %v3510 = vmax.f32 %v1821, 0.0
      %v3511 = vmax.f32 %v1826, 0.0
      %v3512 = vmax.f32 %v1831, 0.0
      %v3513 = vmax.f32 %v1836, 0.0
      %v3514 = vmax.f32 %v1841, 0.0
      %v3515 = vmax.f32 %v1846, 0.0
      %v3516 = vmax.f32 %v1851, 0.0
      %v3517 = vmax.f32 %v1856, 0.0
      %v3518 = vmax.f32 %v1861, 0.0
      %v3519 = vmax.f32 %v1866, 0.0
      %v3520 = vmax.f32 %v1871, 0.0
      %v3521 = vmax.f32 %v1876, 0.0
      %v3522 = vmax.f32 %v1881, 0.0
      %v3523 = vmax.f32 %v1886, 0.0
      %v3524 = vmax.f32 %v1891, 0.0
      %v3525 = vmax.f32 %v1896, 0.0
      %v3526 = vmax.f32 %v1901, 0.0
      %v3527 = vmax.f32 %v1906, 0.0
      %v3528 = vmax.f32 %v1911, 0.0
      %v3529 = vmax.f32 %v1916, 0.0
      %v3530 = vmax.f32 %v1921, 0.0
      %v3531 = vmax.f32 %v1926, 0.0
      %v3532 = vmax.f32 %v1931, 0.0
      %v3533 = vmax.f32 %v1936, 0.0
      %v3534 = vmax.f32 %v1941, 0.0
      %v3535 = vmax.f32 %v1946, 0.0
      %v3536 = vmax.f32 %v1951, 0.0
      %v3537 = vmax.f32 %v1956, 0.0
      %v3538 = vmax.f32 %v1961, 0.0
      %v3539 = vmax.f32 %v1966, 0.0
      %v3540 = vmax.f32 %v1971, 0.0
      %v3541 = vmax.f32 %v1976, 0.0
      %v3542 = vmax.f32 %v1981, 0.0
      %v3543 = vmax.f32 %v1986, 0.0
      %v3544 = vmax.f32 %v1991, 0.0
      %v3545 = vmax.f32 %v1996, 0.0
      %v3546 = vmax.f32 %v2001, 0.0
      %v3547 = vmax.f32 %v2006, 0.0
      %v3548 = vmax.f32 %v2011, 0.0
      %v3549 = vmax.f32 %v2016, 0.0
      %v3550 = vmax.f32 %v2021, 0.0
      %v3551 = vmax.f32 %v2026, 0.0
      %v3552 = vmax.f32 %v2031, 0.0
      %v3553 = vmax.f32 %v2036, 0.0
      %v3554 = vmax.f32 %v2041, 0.0
      %v3555 = vmax.f32 %v2046, 0.0
      %v3556 = vmax.f32 %v2051, 0.0
      %v3557 = vmax.f32 %v2056, 0.0
      %v3558 = vmax.f32 %v2061, 0.0
      %v3559 = vmax.f32 %v2066, 0.0
      %v3560 = vmax.f32 %v2071, 0.0
      %v3561 = vmax.f32 %v2076, 0.0
      %v3562 = vmax.f32 %v2081, 0.0
      %v3563 = vmax.f32 %v2086, 0.0
      %v3564 = vmax.f32 %v2091, 0.0
      %v3565 = vmax.f32 %v2096, 0.0
      %v3566 = vmax.f32 %v2101, 0.0
      %v3567 = vmax.f32 %v2106, 0.0
      %v3568 = vmax.f32 %v2111, 0.0
      %v3569 = vmax.f32 %v2116, 0.0
      %v3570 = vmax.f32 %v2121, 0.0
      %v3571 = vmax.f32 %v2126, 0.0
      %v3572 = vmax.f32 %v2131, 0.0
      %v3573 = vmax.f32 %v2136, 0.0
      %v3574 = vmax.f32 %v2141, 0.0
      %v3575 = vmax.f32 %v2146, 0.0
      %v3576 = vmax.f32 %v2151, 0.0
      %v3577 = vmax.f32 %v2156, 0.0
      %v3578 = vmax.f32 %v2161, 0.0
      %v3579 = vmax.f32 %v2166, 0.0
      %v3580 = vmax.f32 %v2171, 0.0
      %v3581 = vmax.f32 %v2176, 0.0
      %v3582 = vmax.f32 %v2181, 0.0
      %v3583 = vmax.f32 %v2186, 0.0
      %v3584 = vmax.f32 %v2191, 0.0
      %v3585 = vmax.f32 %v2196, 0.0
      %v3586 = vmax.f32 %v2201, 0.0
      %v3587 = vmax.f32 %v2206, 0.0
      %v3588 = vmax.f32 %v2211, 0.0
      %v3589 = vmax.f32 %v2216, 0.0
      %v3590 = vmax.f32 %v2221, 0.0
      %v3591 = vmax.f32 %v2226, 0.0
      %v3592 = vmax.f32 %v2231, 0.0
      %v3593 = vmax.f32 %v2236, 0.0
      %v3594 = vmax.f32 %v2241, 0.0
      %v3595 = vmax.f32 %v2246, 0.0
      %v3596 = vmax.f32 %v2251, 0.0
      %v3597 = vmax.f32 %v2256, 0.0
      %v3598 = vmax.f32 %v2261, 0.0
      %v3599 = vmax.f32 %v2266, 0.0
      %v3600 = vmax.f32 %v2271, 0.0
      %v3601 = vmax.f32 %v2276, 0.0
      %v3602 = vmax.f32 %v2281, 0.0
      %v3603 = vmax.f32 %v2286, 0.0
      %v3604 = vmax.f32 %v2291, 0.0
      %v3605 = vmax.f32 %v2296, 0.0
      %v3606 = vmax.f32 %v2301, 0.0
      %v3607 = vmax.f32 %v2306, 0.0
      %v3608 = vmax.f32 %v2311, 0.0
      %v3609 = vmax.f32 %v2316, 0.0
      %v3610 = vmax.f32 %v2321, 0.0
      %v3611 = vmax.f32 %v2326, 0.0
      %v3612 = vmax.f32 %v2331, 0.0
      %v3613 = vmax.f32 %v2336, 0.0
      %v3614 = vmax.f32 %v2341, 0.0
      %v3615 = vmax.f32 %v2346, 0.0
      %v3616 = vmax.f32 %v2351, 0.0
      %v3617 = vmax.f32 %v2356, 0.0
      %v3618 = vmax.f32 %v2361, 0.0
      %v3619 = vmax.f32 %v2366, 0.0
      %v3620 = vmax.f32 %v2371, 0.0
      %v3621 = vmax.f32 %v2376, 0.0
      %v3622 = vmax.f32 %v2381, 0.0
      %v3623 = vmax.f32 %v2386, 0.0
      %v3624 = vmax.f32 %v2391, 0.0
      %v3625 = vmax.f32 %v2396, 0.0
      %v3626 = vmax.f32 %v2401, 0.0
      %v3627 = vmax.f32 %v2406, 0.0
      %v3628 = vmax.f32 %v2411, 0.0
      %v3629 = vmax.f32 %v2416, 0.0
      %v3630 = vmax.f32 %v2421, 0.0
      %v3631 = vmax.f32 %v2426, 0.0
      %v3632 = vmax.f32 %v2431, 0.0
      %v3633 = vmax.f32 %v2436, 0.0
      %v3634 = vmax.f32 %v2441, 0.0
      %v3635 = vmax.f32 %v2446, 0.0
      %v3636 = vmax.f32 %v2451, 0.0
      %v3637 = vmax.f32 %v2456, 0.0
      %v3638 = vmax.f32 %v2461, 0.0
      %v3639 = vmax.f32 %v2466, 0.0
      %v3640 = vmax.f32 %v2471, 0.0
      %v3641 = vmax.f32 %v2476, 0.0
      %v3642 = vmax.f32 %v2481, 0.0
      %v3643 = vmax.f32 %v2486, 0.0
      %v3644 = vmax.f32 %v2491, 0.0
      %v3645 = vmax.f32 %v2496, 0.0
      %v3646 = vmax.f32 %v2501, 0.0
      %v3647 = vmax.f32 %v2506, 0.0
      %v3648 = vmax.f32 %v2511, 0.0
      %v3649 = vmax.f32 %v2516, 0.0
      %v3650 = vmax.f32 %v2521, 0.0
      %v3651 = vmax.f32 %v2526, 0.0
      %v3652 = vmax.f32 %v2531, 0.0
      %v3653 = vmax.f32 %v2536, 0.0
      %v3654 = vmax.f32 %v2541, 0.0
      %v3655 = vmax.f32 %v2546, 0.0
      %v3656 = vmax.f32 %v2551, 0.0
      %v3657 = vmax.f32 %v2556, 0.0
      %v3658 = vmax.f32 %v2561, 0.0
      %v3659 = vmax.f32 %v2566, 0.0
      %v3660 = vmax.f32 %v2571, 0.0
      %v3661 = vmax.f32 %v2576, 0.0
      %v3662 = vmax.f32 %v2581, 0.0
      %v3663 = vmax.f32 %v2586, 0.0
      %v3664 = vmax.f32 %v2591, 0.0
      %v3665 = vmax.f32 %v2596, 0.0
      %v3666 = vmax.f32 %v2601, 0.0
      %v3667 = vmax.f32 %v2606, 0.0
      %v3668 = vmax.f32 %v2611, 0.0
      %v3669 = vmax.f32 %v2616, 0.0
      %v3670 = vmax.f32 %v2621, 0.0
      %v3671 = vmax.f32 %v2626, 0.0
      %v3672 = vmax.f32 %v2631, 0.0
      %v3673 = vmax.f32 %v2636, 0.0
      %v3674 = vmax.f32 %v2641, 0.0
      %v3675 = vmax.f32 %v2646, 0.0
      %v3676 = vmax.f32 %v2651, 0.0
      %v3677 = vmax.f32 %v2656, 0.0
      %v3678 = vmax.f32 %v2661, 0.0
      %v3679 = vmax.f32 %v2666, 0.0
      %v3680 = vmax.f32 %v2671, 0.0
      %v3681 = vmax.f32 %v2676, 0.0
      %v3682 = vmax.f32 %v2681, 0.0
      %v3683 = vmax.f32 %v2686, 0.0
      %v3684 = vmax.f32 %v2691, 0.0
      %v3685 = vmax.f32 %v2696, 0.0
      %v3686 = vmax.f32 %v2701, 0.0
      %v3687 = vmax.f32 %v2706, 0.0
      %v3688 = vmax.f32 %v2711, 0.0
      %v3689 = vmax.f32 %v2716, 0.0
      %v3690 = vmax.f32 %v2721, 0.0
      %v3691 = vmax.f32 %v2726, 0.0
      %v3692 = vmax.f32 %v2731, 0.0
      %v3693 = vmax.f32 %v2736, 0.0
      %v3694 = vmax.f32 %v2741, 0.0
      %v3695 = vmax.f32 %v2746, 0.0
      %v3696 = vmax.f32 %v2751, 0.0
      %v3697 = vmax.f32 %v2756, 0.0
      %v3698 = vmax.f32 %v2761, 0.0
      %v3699 = vmax.f32 %v2766, 0.0
      %v3700 = vmax.f32 %v2771, 0.0
      %v3701 = vmax.f32 %v2776, 0.0
      %v3702 = vmax.f32 %v2781, 0.0
      %v3703 = vmax.f32 %v2786, 0.0
      %v3704 = vmax.f32 %v2791, 0.0
      %v3705 = vmax.f32 %v2796, 0.0
      %v3706 = vmax.f32 %v2801, 0.0
      %v3707 = vmax.f32 %v2806, 0.0
      %v3708 = vmax.f32 %v2811, 0.0
      %v3709 = vmax.f32 %v2816, 0.0
      %v3710 = vmax.f32 %v2821, 0.0
      %v3711 = vmax.f32 %v2826, 0.0
      %v3712 = vmax.f32 %v2831, 0.0
      %v3713 = vmax.f32 %v2836, 0.0
      %v3714 = vmax.f32 %v2841, 0.0
      %v3715 = vmax.f32 %v2846, 0.0
      %v3716 = vmax.f32 %v2851, 0.0
      %v3717 = vmax.f32 %v2856, 0.0
      %v3718 = vmax.f32 %v2861, 0.0
      %v3719 = vmax.f32 %v2866, 0.0
      %v3720 = vmax.f32 %v2871, 0.0
      %v3721 = vmax.f32 %v2876, 0.0
      %v3722 = vmax.f32 %v2881, 0.0
      %v3723 = vmax.f32 %v2886, 0.0
      %v3724 = vmax.f32 %v2891, 0.0
      %v3725 = vmax.f32 %v2896, 0.0
      %v3726 = vmax.f32 %v2901, 0.0
      %v3727 = vmax.f32 %v2906, 0.0
      %v3728 = vmax.f32 %v2911, 0.0
      %v3729 = vmax.f32 %v2916, 0.0
      %v3730 = vmax.f32 %v2921, 0.0
      %v3731 = vmax.f32 %v2926, 0.0
      %v3732 = vmax.f32 %v2931, 0.0
      %v3733 = vmax.f32 %v2936, 0.0
      %v3734 = vmax.f32 %v2941, 0.0
      %v3735 = vmax.f32 %v2946, 0.0
      %v3736 = vmax.f32 %v2951, 0.0
      %v3737 = vmax.f32 %v2956, 0.0
      %v3738 = vmax.f32 %v2961, 0.0
      %v3739 = vmax.f32 %v2966, 0.0
      %v3740 = vmax.f32 %v2971, 0.0
      %v3741 = vmax.f32 %v2976, 0.0
      %v3742 = vmax.f32 %v2981, 0.0
      %v3743 = vmax.f32 %v2986, 0.0
      %v3744 = vmax.f32 %v2991, 0.0
      %v3745 = vmax.f32 %v2996, 0.0
      %v3746 = vmax.f32 %v3001, 0.0
      %v3747 = vmax.f32 %v3006, 0.0
      %v3748 = vmax.f32 %v3011, 0.0
      %v3749 = vmax.f32 %v3016, 0.0
      %v3750 = vmax.f32 %v3021, 0.0
      %v3751 = vmax.f32 %v3026, 0.0
      %v3752 = vmax.f32 %v3031, 0.0
      %v3753 = vmax.f32 %v3036, 0.0
      %v3754 = vmax.f32 %v3041, 0.0
      %v3755 = vmax.f32 %v3046, 0.0
      %v3756 = vmax.f32 %v3051, 0.0
      %v3757 = vmax.f32 %v3056, 0.0
      %v3758 = vmax.f32 %v3061, 0.0
      %v3759 = vmax.f32 %v3066, 0.0
      %v3760 = vmax.f32 %v3071, 0.0
      %v3761 = vmax.f32 %v3076, 0.0
      %v3762 = vmax.f32 %v3081, 0.0
      %v3763 = vmax.f32 %v3086, 0.0
      %v3764 = vmax.f32 %v3091, 0.0
      %v3765 = vmax.f32 %v3096, 0.0
      %v3766 = vmax.f32 %v3101, 0.0
      %v3767 = vmax.f32 %v3106, 0.0
      %v3768 = vmax.f32 %v3111, 0.0
      %v3769 = vmax.f32 %v3116, 0.0
      %v3770 = vmax.f32 %v3121, 0.0
      %v3771 = vmax.f32 %v3126, 0.0
      %v3772 = vmax.f32 %v3131, 0.0
      %v3773 = vmax.f32 %v3136, 0.0
      %v3774 = vmax.f32 %v3141, 0.0
      %v3775 = vmax.f32 %v3146, 0.0
      %v3776 = vmax.f32 %v3151, 0.0
      %v3777 = vmax.f32 %v3156, 0.0
      %v3778 = vmax.f32 %v3161, 0.0
      %v3779 = vmax.f32 %v3166, 0.0
      %v3780 = vmax.f32 %v3171, 0.0
      %v3781 = vmax.f32 %v3176, 0.0
      %v3782 = vmax.f32 %v3181, 0.0
      %v3783 = vmax.f32 %v3186, 0.0
      %v3784 = vmax.f32 %v3191, 0.0
      %v3785 = vmax.f32 %v3196, 0.0
      %v3786 = vmax.f32 %v3201, 0.0
      %v3787 = vmax.f32 %v3206, 0.0
      %v3788 = vmax.f32 %v3211, 0.0
      %v3789 = vmax.f32 %v3216, 0.0
      %v3790 = vmax.f32 %v3221, 0.0
      %v3791 = vmax.f32 %v3226, 0.0
      %v3792 = vmax.f32 %v3231, 0.0
      %v3793 = vmax.f32 %v3236, 0.0
      %v3794 = vmax.f32 %v3241, 0.0
      %v3795 = vmax.f32 %v3246, 0.0
      %v3796 = vmax.f32 %v3251, 0.0
      %v3797 = vmax.f32 %v3256, 0.0
      %v3798 = vmax.f32 %v3261, 0.0
      %v3799 = vmax.f32 %v3266, 0.0
      %v3800 = vmax.f32 %v3271, 0.0
      %v3801 = vmax.f32 %v3276, 0.0
      %v3802 = vmax.f32 %v3281, 0.0
      %v3803 = vmax.f32 %v3286, 0.0
      %v3804 = vmax.f32 %v3291, 0.0
      %v3805 = vmax.f32 %v3296, 0.0
      %v3806 = vmax.f32 %v3301, 0.0
      %v3807 = vmax.f32 %v3306, 0.0
      %v3808 = vmax.f32 %v3311, 0.0
      %v3809 = vmax.f32 %v3316, 0.0
      %v3810 = vmax.f32 %v3321, 0.0
      %v3811 = vmax.f32 %v3326, 0.0
      %v3812 = vmax.f32 %v3331, 0.0
      %v3813 = vmax.f32 %v3336, 0.0
      %v3814 = vmax.f32 %v3341, 0.0
      %v3815 = vmax.f32 %v3346, 0.0
      %v3816 = vmax.f32 %v3351, 0.0
      %v3817 = vmax.f32 %v3356, 0.0
      %v3818 = vmax.f32 %v3361, 0.0
      %v3819 = vmax.f32 %v3366, 0.0
      %v3820 = vmax.f32 %v3371, 0.0
      %v3821 = vmax.f32 %v3376, 0.0
      %v3822 = vmax.f32 %v3381, 0.0
      %v3823 = vmax.f32 %v3386, 0.0
      %v3824 = vmax.f32 %v3391, 0.0
      %v3825 = vmax.f32 %v3396, 0.0
      %v3826 = vmax.f32 %v3401, 0.0
      %v3827 = vmax.f32 %v3406, 0.0
      %v3828 = vmax.f32 %v3411, 0.0
      %v3829 = vmax.f32 %v3416, 0.0
      %v3830 = vmax.f32 %v3421, 0.0
      %v3831 = vmax.f32 %v3426, 0.0
      %v3832 = vmax.f32 %v3431, 0.0
      %v3833 = vmax.f32 %v3436, 0.0
      %v3834 = vmax.f32 %v3441, 0.0
      %v3835 = vmax.f32 %v3446, 0.0
      %v3836 = vmax.f32 %v3451, 0.0
      %v3837 = vmax.f32 %v3456, 0.0
      %v3838 = vmax.f32 %v3461, 0.0
      %v3839 = vmax.f32 %v3466, 0.0
      %v3840 = vmax.f32 %v3471, 0.0
      %v3841 = vmax.f32 %v3476, 0.0
      %v3842 = vmax.f32 %v3481, 0.0
      %3843 = vst [vmem:[%s172] sm:$0xff] %v3484
      %3844 = vst [vmem:[%s172 + $0x8] sm:$0xff] %v3485
      %3845 = vst [vmem:[%s172 + $0x10] sm:$0xff] %v3486
      %3846 = vst [vmem:[%s172 + $0x18] sm:$0xff] %v3487
      %3847 = vst [vmem:[%s172 + $0x20] sm:$0xff] %v3488
      %3848 = vst [vmem:[%s172 + $0x28] sm:$0xff] %v3489
      %3849 = vst [vmem:[%s172 + $0x30] sm:$0xff] %v3490
      %3850 = vst [vmem:[%s172 + $0x38] sm:$0xff] %v3491
      %3851 = vst [vmem:[%s172 + $0x40] sm:$0xff] %v3492
      %3852 = vst [vmem:[%s172 + $0x48] sm:$0xff] %v3493
      %3853 = vst [vmem:[%s172 + $0x50] sm:$0xff] %v3494
      %3854 = vst [vmem:[%s172 + $0x58] sm:$0xff] %v3495
      %3855 = vst [vmem:[%s172 + $0x60] sm:$0xff] %v3496
      %3856 = vst [vmem:[%s172 + $0x68] sm:$0xff] %v3497
      %3857 = vst [vmem:[%s172 + $0x70] sm:$0xff] %v3498
      %3858 = vst [vmem:[%s172 + $0x78] sm:$0xff] %v3499
      %3859 = vst [vmem:[%s172 + $0x80] sm:$0xff] %v3500
      %3860 = vst [vmem:[%s172 + $0x88] sm:$0xff] %v3501
      %3861 = vst [vmem:[%s172 + $0x90] sm:$0xff] %v3502
      %3862 = vst [vmem:[%s172 + $0x98] sm:$0xff] %v3503
      %3863 = vst [vmem:[%s172 + $0xa0] sm:$0xff] %v3504
      %3864 = vst [vmem:[%s172 + $0xa8] sm:$0xff] %v3505
      %3865 = vst [vmem:[%s172 + $0xb0] sm:$0xff] %v3506
      %3866 = vst [vmem:[%s172 + $0xb8] sm:$0xff] %v3507
      %3867 = vst [vmem:[%s172 + $0xc0] sm:$0xff] %v3508
      %3868 = vst [vmem:[%s172 + $0xc8] sm:$0xff] %v3509
      %3869 = vst [vmem:[%s172 + $0xd0] sm:$0xff] %v3510
      %3870 = vst [vmem:[%s172 + $0xd8] sm:$0xff] %v3511
      %3871 = vst [vmem:[%s172 + $0xe0] sm:$0xff] %v3512
      %3872 = vst [vmem:[%s172 + $0xe8] sm:$0xff] %v3513
      %3873 = vst [vmem:[%s172 + $0xf0] sm:$0xff] %v3514
      %3874 = vst [vmem:[%s172 + $0xf8] sm:$0xff] %v3515
      %3875 = vst [vmem:[%s172 + $0x100] sm:$0xff] %v3516
      %3876 = vst [vmem:[%s172 + $0x108] sm:$0xff] %v3517
      %3877 = vst [vmem:[%s172 + $0x110] sm:$0xff] %v3518
      %3878 = vst [vmem:[%s172 + $0x118] sm:$0xff] %v3519
      %3879 = vst [vmem:[%s172 + $0x120] sm:$0xff] %v3520
      %3880 = vst [vmem:[%s172 + $0x128] sm:$0xff] %v3521
      %3881 = vst [vmem:[%s172 + $0x130] sm:$0xff] %v3522
      %3882 = vst [vmem:[%s172 + $0x138] sm:$0xff] %v3523
      %3883 = vst [vmem:[%s172 + $0x140] sm:$0xff] %v3524
      %3884 = vst [vmem:[%s172 + $0x148] sm:$0xff] %v3525
      %3885 = vst [vmem:[%s172 + $0x150] sm:$0xff] %v3526
      %3886 = vst [vmem:[%s172 + $0x158] sm:$0xff] %v3527
      %3887 = vst [vmem:[%s172 + $0x160] sm:$0xff] %v3528
      %3888 = vst [vmem:[%s172 + $0x168] sm:$0xff] %v3529
      %3889 = vst [vmem:[%s172 + $0x170] sm:$0xff] %v3530
      %3890 = vst [vmem:[%s172 + $0x178] sm:$0xff] %v3531
      %3891 = vst [vmem:[%s172 + $0x180] sm:$0xff] %v3532
      %3892 = vst [vmem:[%s172 + $0x188] sm:$0xff] %v3533
      %3893 = vst [vmem:[%s172 + $0x190] sm:$0xff] %v3534
      %3894 = vst [vmem:[%s172 + $0x198] sm:$0xff] %v3535
      %3895 = vst [vmem:[%s172 + $0x1a0] sm:$0xff] %v3536
      %3896 = vst [vmem:[%s172 + $0x1a8] sm:$0xff] %v3537
      %3897 = vst [vmem:[%s172 + $0x1b0] sm:$0xff] %v3538
      %3898 = vst [vmem:[%s172 + $0x1b8] sm:$0xff] %v3539
      %3899 = vst [vmem:[%s172 + $0x1c0] sm:$0xff] %v3540
      %3900 = vst [vmem:[%s172 + $0x1c8] sm:$0xff] %v3541
      %3901 = vst [vmem:[%s172 + $0x1d0] sm:$0xff] %v3542
      %3902 = vst [vmem:[%s172 + $0x1d8] sm:$0xff] %v3543
      %3903 = vst [vmem:[%s172 + $0x1e0] sm:$0xff] %v3544
      %3904 = vst [vmem:[%s172 + $0x1e8] sm:$0xff] %v3545
      %3905 = vst [vmem:[%s172 + $0x1f0] sm:$0xff] %v3546
      %3906 = vst [vmem:[%s172 + $0x1f8] sm:$0xff] %v3547
      %3907 = vst [vmem:[%s172 + $0x200] sm:$0xff] %v3548
      %3908 = vst [vmem:[%s172 + $0x208] sm:$0xff] %v3549
      %3909 = vst [vmem:[%s172 + $0x210] sm:$0xff] %v3550
      %3910 = vst [vmem:[%s172 + $0x218] sm:$0xff] %v3551
      %3911 = vst [vmem:[%s172 + $0x220] sm:$0xff] %v3552
      %3912 = vst [vmem:[%s172 + $0x228] sm:$0xff] %v3553
      %3913 = vst [vmem:[%s172 + $0x230] sm:$0xff] %v3554
      %3914 = vst [vmem:[%s172 + $0x238] sm:$0xff] %v3555
      %3915 = vst [vmem:[%s172 + $0x240] sm:$0xff] %v3556
      %3916 = vst [vmem:[%s172 + $0x248] sm:$0xff] %v3557
      %3917 = vst [vmem:[%s172 + $0x250] sm:$0xff] %v3558
      %3918 = vst [vmem:[%s172 + $0x258] sm:$0xff] %v3559
      %3919 = vst [vmem:[%s172 + $0x260] sm:$0xff] %v3560
      %3920 = vst [vmem:[%s172 + $0x268] sm:$0xff] %v3561
      %3921 = vst [vmem:[%s172 + $0x270] sm:$0xff] %v3562
      %3922 = vst [vmem:[%s172 + $0x278] sm:$0xff] %v3563
      %3923 = vst [vmem:[%s172 + $0x280] sm:$0xff] %v3564
      %3924 = vst [vmem:[%s172 + $0x288] sm:$0xff] %v3565
      %3925 = vst [vmem:[%s172 + $0x290] sm:$0xff] %v3566
      %3926 = vst [vmem:[%s172 + $0x298] sm:$0xff] %v3567
      %3927 = vst [vmem:[%s172 + $0x2a0] sm:$0xff] %v3568
      %3928 = vst [vmem:[%s172 + $0x2a8] sm:$0xff] %v3569
      %3929 = vst [vmem:[%s172 + $0x2b0] sm:$0xff] %v3570
      %3930 = vst [vmem:[%s172 + $0x2b8] sm:$0xff] %v3571
      %3931 = vst [vmem:[%s172 + $0x2c0] sm:$0xff] %v3572
      %3932 = vst [vmem:[%s172 + $0x2c8] sm:$0xff] %v3573
      %3933 = vst [vmem:[%s172 + $0x2d0] sm:$0xff] %v3574
      %3934 = vst [vmem:[%s172 + $0x2d8] sm:$0xff] %v3575
      %3935 = vst [vmem:[%s172 + $0x2e0] sm:$0xff] %v3576
      %3936 = vst [vmem:[%s172 + $0x2e8] sm:$0xff] %v3577
      %3937 = vst [vmem:[%s172 + $0x2f0] sm:$0xff] %v3578
      %3938 = vst [vmem:[%s172 + $0x2f8] sm:$0xff] %v3579
      %3939 = vst [vmem:[%s172 + $0x300] sm:$0xff] %v3580
      %3940 = vst [vmem:[%s172 + $0x308] sm:$0xff] %v3581
      %3941 = vst [vmem:[%s172 + $0x310] sm:$0xff] %v3582
      %3942 = vst [vmem:[%s172 + $0x318] sm:$0xff] %v3583
      %3943 = vst [vmem:[%s172 + $0x320] sm:$0xff] %v3584
      %3944 = vst [vmem:[%s172 + $0x328] sm:$0xff] %v3585
      %3945 = vst [vmem:[%s172 + $0x330] sm:$0xff] %v3586
      %3946 = vst [vmem:[%s172 + $0x338] sm:$0xff] %v3587
      %3947 = vst [vmem:[%s172 + $0x340] sm:$0xff] %v3588
      %3948 = vst [vmem:[%s172 + $0x348] sm:$0xff] %v3589
      %3949 = vst [vmem:[%s172 + $0x350] sm:$0xff] %v3590
      %3950 = vst [vmem:[%s172 + $0x358] sm:$0xff] %v3591
      %3951 = vst [vmem:[%s172 + $0x360] sm:$0xff] %v3592
      %3952 = vst [vmem:[%s172 + $0x368] sm:$0xff] %v3593
      %3953 = vst [vmem:[%s172 + $0x370] sm:$0xff] %v3594
      %3954 = vst [vmem:[%s172 + $0x378] sm:$0xff] %v3595
      %3955 = vst [vmem:[%s172 + $0x380] sm:$0xff] %v3596
      %3956 = vst [vmem:[%s172 + $0x388] sm:$0xff] %v3597
      %3957 = vst [vmem:[%s172 + $0x390] sm:$0xff] %v3598
      %3958 = vst [vmem:[%s172 + $0x398] sm:$0xff] %v3599
      %3959 = vst [vmem:[%s172 + $0x3a0] sm:$0xff] %v3600
      %3960 = vst [vmem:[%s172 + $0x3a8] sm:$0xff] %v3601
      %3961 = vst [vmem:[%s172 + $0x3b0] sm:$0xff] %v3602
      %3962 = vst [vmem:[%s172 + $0x3b8] sm:$0xff] %v3603
      %3963 = vst [vmem:[%s172 + $0x3c0] sm:$0xff] %v3604
      %3964 = vst [vmem:[%s172 + $0x3c8] sm:$0xff] %v3605
      %3965 = vst [vmem:[%s172 + $0x3d0] sm:$0xff] %v3606
      %3966 = vst [vmem:[%s172 + $0x3d8] sm:$0xff] %v3607
      %3967 = vst [vmem:[%s172 + $0x3e0] sm:$0xff] %v3608
      %3968 = vst [vmem:[%s172 + $0x3e8] sm:$0xff] %v3609
      %3969 = vst [vmem:[%s172 + $0x3f0] sm:$0xff] %v3610
      %3970 = vst [vmem:[%s172 + $0x3f8] sm:$0xff] %v3611
      %3971 = vst [vmem:[%s172 + $0x400] sm:$0xff] %v3612
      %3972 = vst [vmem:[%s172 + $0x408] sm:$0xff] %v3613
      %3973 = vst [vmem:[%s172 + $0x410] sm:$0xff] %v3614
      %3974 = vst [vmem:[%s172 + $0x418] sm:$0xff] %v3615
      %3975 = vst [vmem:[%s172 + $0x420] sm:$0xff] %v3616
      %3976 = vst [vmem:[%s172 + $0x428] sm:$0xff] %v3617
      %3977 = vst [vmem:[%s172 + $0x430] sm:$0xff] %v3618
      %3978 = vst [vmem:[%s172 + $0x438] sm:$0xff] %v3619
      %3979 = vst [vmem:[%s172 + $0x440] sm:$0xff] %v3620
      %3980 = vst [vmem:[%s172 + $0x448] sm:$0xff] %v3621
      %3981 = vst [vmem:[%s172 + $0x450] sm:$0xff] %v3622
      %3982 = vst [vmem:[%s172 + $0x458] sm:$0xff] %v3623
      %3983 = vst [vmem:[%s172 + $0x460] sm:$0xff] %v3624
      %3984 = vst [vmem:[%s172 + $0x468] sm:$0xff] %v3625
      %3985 = vst [vmem:[%s172 + $0x470] sm:$0xff] %v3626
      %3986 = vst [vmem:[%s172 + $0x478] sm:$0xff] %v3627
      %3987 = vst [vmem:[%s172 + $0x480] sm:$0xff] %v3628
      %3988 = vst [vmem:[%s172 + $0x488] sm:$0xff] %v3629
      %3989 = vst [vmem:[%s172 + $0x490] sm:$0xff] %v3630
      %3990 = vst [vmem:[%s172 + $0x498] sm:$0xff] %v3631
      %3991 = vst [vmem:[%s172 + $0x4a0] sm:$0xff] %v3632
      %3992 = vst [vmem:[%s172 + $0x4a8] sm:$0xff] %v3633
      %3993 = vst [vmem:[%s172 + $0x4b0] sm:$0xff] %v3634
      %3994 = vst [vmem:[%s172 + $0x4b8] sm:$0xff] %v3635
      %3995 = vst [vmem:[%s172 + $0x4c0] sm:$0xff] %v3636
      %3996 = vst [vmem:[%s172 + $0x4c8] sm:$0xff] %v3637
      %3997 = vst [vmem:[%s172 + $0x4d0] sm:$0xff] %v3638
      %3998 = vst [vmem:[%s172 + $0x4d8] sm:$0xff] %v3639
      %3999 = vst [vmem:[%s172 + $0x4e0] sm:$0xff] %v3640
      %4000 = vst [vmem:[%s172 + $0x4e8] sm:$0xff] %v3641
      %4001 = vst [vmem:[%s172 + $0x4f0] sm:$0xff] %v3642
      %4002 = vst [vmem:[%s172 + $0x4f8] sm:$0xff] %v3643
      %4003 = vst [vmem:[%s172 + $0x500] sm:$0xff] %v3644
      %4004 = vst [vmem:[%s172 + $0x508] sm:$0xff] %v3645
      %4005 = vst [vmem:[%s172 + $0x510] sm:$0xff] %v3646
      %4006 = vst [vmem:[%s172 + $0x518] sm:$0xff] %v3647
      %4007 = vst [vmem:[%s172 + $0x520] sm:$0xff] %v3648
      %4008 = vst [vmem:[%s172 + $0x528] sm:$0xff] %v3649
      %4009 = vst [vmem:[%s172 + $0x530] sm:$0xff] %v3650
      %4010 = vst [vmem:[%s172 + $0x538] sm:$0xff] %v3651
      %4011 = vst [vmem:[%s172 + $0x540] sm:$0xff] %v3652
      %4012 = vst [vmem:[%s172 + $0x548] sm:$0xff] %v3653
      %4013 = vst [vmem:[%s172 + $0x550] sm:$0xff] %v3654
      %4014 = vst [vmem:[%s172 + $0x558] sm:$0xff] %v3655
      %4015 = vst [vmem:[%s172 + $0x560] sm:$0xff] %v3656
      %4016 = vst [vmem:[%s172 + $0x568] sm:$0xff] %v3657
      %4017 = vst [vmem:[%s172 + $0x570] sm:$0xff] %v3658
      %4018 = vst [vmem:[%s172 + $0x578] sm:$0xff] %v3659
      %4019 = vst [vmem:[%s172 + $0x580] sm:$0xff] %v3660
      %4020 = vst [vmem:[%s172 + $0x588] sm:$0xff] %v3661
      %4021 = vst [vmem:[%s172 + $0x590] sm:$0xff] %v3662
      %4022 = vst [vmem:[%s172 + $0x598] sm:$0xff] %v3663
      %4023 = vst [vmem:[%s172 + $0x5a0] sm:$0xff] %v3664
      %4024 = vst [vmem:[%s172 + $0x5a8] sm:$0xff] %v3665
      %4025 = vst [vmem:[%s172 + $0x5b0] sm:$0xff] %v3666
      %4026 = vst [vmem:[%s172 + $0x5b8] sm:$0xff] %v3667
      %4027 = vst [vmem:[%s172 + $0x5c0] sm:$0xff] %v3668
      %4028 = vst [vmem:[%s172 + $0x5c8] sm:$0xff] %v3669
      %4029 = vst [vmem:[%s172 + $0x5d0] sm:$0xff] %v3670
      %4030 = vst [vmem:[%s172 + $0x5d8] sm:$0xff] %v3671
      %4031 = vst [vmem:[%s172 + $0x5e0] sm:$0xff] %v3672
      %4032 = vst [vmem:[%s172 + $0x5e8] sm:$0xff] %v3673
      %4033 = vst [vmem:[%s172 + $0x5f0] sm:$0xff] %v3674
      %4034 = vst [vmem:[%s172 + $0x5f8] sm:$0xff] %v3675
      %4035 = vst [vmem:[%s172 + $0x600] sm:$0xff] %v3676
      %4036 = vst [vmem:[%s172 + $0x608] sm:$0xff] %v3677
      %4037 = vst [vmem:[%s172 + $0x610] sm:$0xff] %v3678
      %4038 = vst [vmem:[%s172 + $0x618] sm:$0xff] %v3679
      %4039 = vst [vmem:[%s172 + $0x620] sm:$0xff] %v3680
      %4040 = vst [vmem:[%s172 + $0x628] sm:$0xff] %v3681
      %4041 = vst [vmem:[%s172 + $0x630] sm:$0xff] %v3682
      %4042 = vst [vmem:[%s172 + $0x638] sm:$0xff] %v3683
      %4043 = vst [vmem:[%s172 + $0x640] sm:$0xff] %v3684
      %4044 = vst [vmem:[%s172 + $0x648] sm:$0xff] %v3685
      %4045 = vst [vmem:[%s172 + $0x650] sm:$0xff] %v3686
      %4046 = vst [vmem:[%s172 + $0x658] sm:$0xff] %v3687
      %4047 = vst [vmem:[%s172 + $0x660] sm:$0xff] %v3688
      %4048 = vst [vmem:[%s172 + $0x668] sm:$0xff] %v3689
      %4049 = vst [vmem:[%s172 + $0x670] sm:$0xff] %v3690
      %4050 = vst [vmem:[%s172 + $0x678] sm:$0xff] %v3691
      %4051 = vst [vmem:[%s172 + $0x680] sm:$0xff] %v3692
      %4052 = vst [vmem:[%s172 + $0x688] sm:$0xff] %v3693
      %4053 = vst [vmem:[%s172 + $0x690] sm:$0xff] %v3694
      %4054 = vst [vmem:[%s172 + $0x698] sm:$0xff] %v3695
      %4055 = vst [vmem:[%s172 + $0x6a0] sm:$0xff] %v3696
      %4056 = vst [vmem:[%s172 + $0x6a8] sm:$0xff] %v3697
      %4057 = vst [vmem:[%s172 + $0x6b0] sm:$0xff] %v3698
      %4058 = vst [vmem:[%s172 + $0x6b8] sm:$0xff] %v3699
      %4059 = vst [vmem:[%s172 + $0x6c0] sm:$0xff] %v3700
      %4060 = vst [vmem:[%s172 + $0x6c8] sm:$0xff] %v3701
      %4061 = vst [vmem:[%s172 + $0x6d0] sm:$0xff] %v3702
      %4062 = vst [vmem:[%s172 + $0x6d8] sm:$0xff] %v3703
      %4063 = vst [vmem:[%s172 + $0x6e0] sm:$0xff] %v3704
      %4064 = vst [vmem:[%s172 + $0x6e8] sm:$0xff] %v3705
      %4065 = vst [vmem:[%s172 + $0x6f0] sm:$0xff] %v3706
      %4066 = vst [vmem:[%s172 + $0x6f8] sm:$0xff] %v3707
      %4067 = vst [vmem:[%s172 + $0x700] sm:$0xff] %v3708
      %4068 = vst [vmem:[%s172 + $0x708] sm:$0xff] %v3709
      %4069 = vst [vmem:[%s172 + $0x710] sm:$0xff] %v3710
      %4070 = vst [vmem:[%s172 + $0x718] sm:$0xff] %v3711
      %4071 = vst [vmem:[%s172 + $0x720] sm:$0xff] %v3712
      %4072 = vst [vmem:[%s172 + $0x728] sm:$0xff] %v3713
      %4073 = vst [vmem:[%s172 + $0x730] sm:$0xff] %v3714
      %4074 = vst [vmem:[%s172 + $0x738] sm:$0xff] %v3715
      %4075 = vst [vmem:[%s172 + $0x740] sm:$0xff] %v3716
      %4076 = vst [vmem:[%s172 + $0x748] sm:$0xff] %v3717
      %4077 = vst [vmem:[%s172 + $0x750] sm:$0xff] %v3718
      %4078 = vst [vmem:[%s172 + $0x758] sm:$0xff] %v3719
      %4079 = vst [vmem:[%s172 + $0x760] sm:$0xff] %v3720
      %4080 = vst [vmem:[%s172 + $0x768] sm:$0xff] %v3721
      %4081 = vst [vmem:[%s172 + $0x770] sm:$0xff] %v3722
      %4082 = vst [vmem:[%s172 + $0x778] sm:$0xff] %v3723
      %4083 = vst [vmem:[%s172 + $0x780] sm:$0xff] %v3724
      %4084 = vst [vmem:[%s172 + $0x788] sm:$0xff] %v3725
      %4085 = vst [vmem:[%s172 + $0x790] sm:$0xff] %v3726
      %4086 = vst [vmem:[%s172 + $0x798] sm:$0xff] %v3727
      %4087 = vst [vmem:[%s172 + $0x7a0] sm:$0xff] %v3728
      %4088 = vst [vmem:[%s172 + $0x7a8] sm:$0xff] %v3729
      %4089 = vst [vmem:[%s172 + $0x7b0] sm:$0xff] %v3730
      %4090 = vst [vmem:[%s172 + $0x7b8] sm:$0xff] %v3731
      %4091 = vst [vmem:[%s172 + $0x7c0] sm:$0xff] %v3732
      %4092 = vst [vmem:[%s172 + $0x7c8] sm:$0xff] %v3733
      %4093 = vst [vmem:[%s172 + $0x7d0] sm:$0xff] %v3734
      %4094 = vst [vmem:[%s172 + $0x7d8] sm:$0xff] %v3735
      %4095 = vst [vmem:[%s172 + $0x7e0] sm:$0xff] %v3736
      %4096 = vst [vmem:[%s172 + $0x7e8] sm:$0xff] %v3737
      %4097 = vst [vmem:[%s172 + $0x7f0] sm:$0xff] %v3738
      %4098 = vst [vmem:[%s172 + $0x7f8] sm:$0xff] %v3739
      %4099 = vst [vmem:[%s172 + $0x800] sm:$0xff] %v3740
      %4100 = vst [vmem:[%s172 + $0x808] sm:$0xff] %v3741
      %4101 = vst [vmem:[%s172 + $0x810] sm:$0xff] %v3742
      %4102 = vst [vmem:[%s172 + $0x818] sm:$0xff] %v3743
      %4103 = vst [vmem:[%s172 + $0x820] sm:$0xff] %v3744
      %4104 = vst [vmem:[%s172 + $0x828] sm:$0xff] %v3745
      %4105 = vst [vmem:[%s172 + $0x830] sm:$0xff] %v3746
      %4106 = vst [vmem:[%s172 + $0x838] sm:$0xff] %v3747
      %4107 = vst [vmem:[%s172 + $0x840] sm:$0xff] %v3748
      %4108 = vst [vmem:[%s172 + $0x848] sm:$0xff] %v3749
      %4109 = vst [vmem:[%s172 + $0x850] sm:$0xff] %v3750
      %4110 = vst [vmem:[%s172 + $0x858] sm:$0xff] %v3751
      %4111 = vst [vmem:[%s172 + $0x860] sm:$0xff] %v3752
      %4112 = vst [vmem:[%s172 + $0x868] sm:$0xff] %v3753
      %4113 = vst [vmem:[%s172 + $0x870] sm:$0xff] %v3754
      %4114 = vst [vmem:[%s172 + $0x878] sm:$0xff] %v3755
      %4115 = vst [vmem:[%s172 + $0x880] sm:$0xff] %v3756
      %4116 = vst [vmem:[%s172 + $0x888] sm:$0xff] %v3757
      %4117 = vst [vmem:[%s172 + $0x890] sm:$0xff] %v3758
      %4118 = vst [vmem:[%s172 + $0x898] sm:$0xff] %v3759
      %4119 = vst [vmem:[%s172 + $0x8a0] sm:$0xff] %v3760
      %4120 = vst [vmem:[%s172 + $0x8a8] sm:$0xff] %v3761
      %4121 = vst [vmem:[%s172 + $0x8b0] sm:$0xff] %v3762
      %4122 = vst [vmem:[%s172 + $0x8b8] sm:$0xff] %v3763
      %4123 = vst [vmem:[%s172 + $0x8c0] sm:$0xff] %v3764
      %4124 = vst [vmem:[%s172 + $0x8c8] sm:$0xff] %v3765
      %4125 = vst [vmem:[%s172 + $0x8d0] sm:$0xff] %v3766
      %4126 = vst [vmem:[%s172 + $0x8d8] sm:$0xff] %v3767
      %4127 = vst [vmem:[%s172 + $0x8e0] sm:$0xff] %v3768
      %4128 = vst [vmem:[%s172 + $0x8e8] sm:$0xff] %v3769
      %4129 = vst [vmem:[%s172 + $0x8f0] sm:$0xff] %v3770
      %4130 = vst [vmem:[%s172 + $0x8f8] sm:$0xff] %v3771
      %4131 = vst [vmem:[%s172 + $0x900] sm:$0xff] %v3772
      %4132 = vst [vmem:[%s172 + $0x908] sm:$0xff] %v3773
      %4133 = vst [vmem:[%s172 + $0x910] sm:$0xff] %v3774
      %4134 = vst [vmem:[%s172 + $0x918] sm:$0xff] %v3775
      %4135 = vst [vmem:[%s172 + $0x920] sm:$0xff] %v3776
      %4136 = vst [vmem:[%s172 + $0x928] sm:$0xff] %v3777
      %4137 = vst [vmem:[%s172 + $0x930] sm:$0xff] %v3778
      %4138 = vst [vmem:[%s172 + $0x938] sm:$0xff] %v3779
      %4139 = vst [vmem:[%s172 + $0x940] sm:$0xff] %v3780
      %4140 = vst [vmem:[%s172 + $0x948] sm:$0xff] %v3781
      %4141 = vst [vmem:[%s172 + $0x950] sm:$0xff] %v3782
      %4142 = vst [vmem:[%s172 + $0x958] sm:$0xff] %v3783
      %4143 = vst [vmem:[%s172 + $0x960] sm:$0xff] %v3784
      %4144 = vst [vmem:[%s172 + $0x968] sm:$0xff] %v3785
      %4145 = vst [vmem:[%s172 + $0x970] sm:$0xff] %v3786
      %4146 = vst [vmem:[%s172 + $0x978] sm:$0xff] %v3787
      %4147 = vst [vmem:[%s172 + $0x980] sm:$0xff] %v3788
      %4148 = vst [vmem:[%s172 + $0x988] sm:$0xff] %v3789
      %4149 = vst [vmem:[%s172 + $0x990] sm:$0xff] %v3790
      %4150 = vst [vmem:[%s172 + $0x998] sm:$0xff] %v3791
      %4151 = vst [vmem:[%s172 + $0x9a0] sm:$0xff] %v3792
      %4152 = vst [vmem:[%s172 + $0x9a8] sm:$0xff] %v3793
      %4153 = vst [vmem:[%s172 + $0x9b0] sm:$0xff] %v3794
      %4154 = vst [vmem:[%s172 + $0x9b8] sm:$0xff] %v3795
      %4155 = vst [vmem:[%s172 + $0x9c0] sm:$0xff] %v3796
      %4156 = vst [vmem:[%s172 + $0x9c8] sm:$0xff] %v3797
      %4157 = vst [vmem:[%s172 + $0x9d0] sm:$0xff] %v3798
      %4158 = vst [vmem:[%s172 + $0x9d8] sm:$0xff] %v3799
      %4159 = vst [vmem:[%s172 + $0x9e0] sm:$0xff] %v3800
      %4160 = vst [vmem:[%s172 + $0x9e8] sm:$0xff] %v3801
      %4161 = vst [vmem:[%s172 + $0x9f0] sm:$0xff] %v3802
      %4162 = vst [vmem:[%s172 + $0x9f8] sm:$0xff] %v3803
      %4163 = vst [vmem:[%s172 + $0xa00] sm:$0xff] %v3804
      %4164 = vst [vmem:[%s172 + $0xa08] sm:$0xff] %v3805
      %4165 = vst [vmem:[%s172 + $0xa10] sm:$0xff] %v3806
      %4166 = vst [vmem:[%s172 + $0xa18] sm:$0xff] %v3807
      %4167 = vst [vmem:[%s172 + $0xa20] sm:$0xff] %v3808
      %4168 = vst [vmem:[%s172 + $0xa28] sm:$0xff] %v3809
      %4169 = vst [vmem:[%s172 + $0xa30] sm:$0xff] %v3810
      %4170 = vst [vmem:[%s172 + $0xa38] sm:$0xff] %v3811
      %4171 = vst [vmem:[%s172 + $0xa40] sm:$0xff] %v3812
      %4172 = vst [vmem:[%s172 + $0xa48] sm:$0xff] %v3813
      %4173 = vst [vmem:[%s172 + $0xa50] sm:$0xff] %v3814
      %4174 = vst [vmem:[%s172 + $0xa58] sm:$0xff] %v3815
      %4175 = vst [vmem:[%s172 + $0xa60] sm:$0xff] %v3816
      %4176 = vst [vmem:[%s172 + $0xa68] sm:$0xff] %v3817
      %4177 = vst [vmem:[%s172 + $0xa70] sm:$0xff] %v3818
      %4178 = vst [vmem:[%s172 + $0xa78] sm:$0xff] %v3819
      %4179 = vst [vmem:[%s172 + $0xa80] sm:$0xff] %v3820
      %4180 = vst [vmem:[%s172 + $0xa88] sm:$0xff] %v3821
      %4181 = vst [vmem:[%s172 + $0xa90] sm:$0xff] %v3822
      %4182 = vst [vmem:[%s172 + $0xa98] sm:$0xff] %v3823
      %4183 = vst [vmem:[%s172 + $0xaa0] sm:$0xff] %v3824
      %4184 = vst [vmem:[%s172 + $0xaa8] sm:$0xff] %v3825
      %4185 = vst [vmem:[%s172 + $0xab0] sm:$0xff] %v3826
      %4186 = vst [vmem:[%s172 + $0xab8] sm:$0xff] %v3827
      %4187 = vst [vmem:[%s172 + $0xac0] sm:$0xff] %v3828
      %4188 = vst [vmem:[%s172 + $0xac8] sm:$0xff] %v3829
      %4189 = vst [vmem:[%s172 + $0xad0] sm:$0xff] %v3830
      %4190 = vst [vmem:[%s172 + $0xad8] sm:$0xff] %v3831
      %4191 = vst [vmem:[%s172 + $0xae0] sm:$0xff] %v3832
      %4192 = vst [vmem:[%s172 + $0xae8] sm:$0xff] %v3833
      %4193 = vst [vmem:[%s172 + $0xaf0] sm:$0xff] %v3834
      %4194 = vst [vmem:[%s172 + $0xaf8] sm:$0xff] %v3835
      %4195 = vst [vmem:[%s172 + $0xb00] sm:$0xff] %v3836
      %4196 = vst [vmem:[%s172 + $0xb08] sm:$0xff] %v3837
      %4197 = vst [vmem:[%s172 + $0xb10] sm:$0xff] %v3838
      %4198 = vst [vmem:[%s172 + $0xb18] sm:$0xff] %v3839
      %4199 = vst [vmem:[%s172 + $0xb20] sm:$0xff] %v3840
      %4200 = vst [vmem:[%s172 + $0xb28] sm:$0xff] %v3841
      %4201 = vst [vmem:[%s172 + $0xb30] sm:$0xff] %v3842
      %s4202 = smul.u32 359, %s14
      %p4203 = scmp.lt.s32.totalorder %s4202, 1435
      %s4204 = scalar_select %p4203, %s4202, 1435
      %s4205 = smul.addr %s4204, 8
      %s4206 = scalar_lea.vmem %s3, %s4205
      // Predicated region
      $region33: #{a2c_forward.5} parent=31 // pred_check
        %p4207 = pneg %p100
      $region34: #{a2c_forward.5} parent=31 // pred_check_branch
        %4209 = sbr.rel (%p4207) target = $region36
      $region35: #{a2c_forward.5} parent=31 // pred_region
        %s4210 = smul.u32 359, %s14
      $region36: #{a2c_forward.5} parent=31 // pred_fallthru
        _
    $region32: #{a2c_forward.5} parent=5 // pred_fallthru
      _
    %p4211 = scmp.le.s32.totalorder 2, %s9
    // Predicated region
    $region37: #{a2c_forward.5} parent=5 // pred_check
      %p4212 = pneg %p4211
    $region38: #{a2c_forward.5} parent=5 // pred_check_branch
      %4214 = sbr.rel (%p4212) target = $region40
    $region39: #{a2c_forward.5} parent=5 // pred_region
      %s4215 = ssub.s32 %s9, 2
      // Predicated region
      $region41: #{a2c_forward.5} parent=39 // pred_check
        %p4216 = pneg %p106
      $region42: #{a2c_forward.5} parent=39 // pred_check_branch
        %4218 = sbr.rel (%p4216) target = $region44
      $region43: #{a2c_forward.5} parent=39 // pred_region
        %s4219 = smul.u32 359, %s15
        %p4220 = scmp.lt.s32.totalorder %s4219, 1435
        %s4221 = scalar_select %p4220, %s4219, 1435
        %s4222 = smul.addr %s4221, 8
        %s4223 = scalar_lea.vmem %s3, %s4222
      $region44: #{a2c_forward.5} parent=39 // pred_fallthru
        _
    $region40: #{a2c_forward.5} parent=5 // pred_fallthru
      _
  $region6: #{a2c_forward.5} parent=0 // loop_footer
    %s13 = sadd.s32 1, %s9
  $region7: #{a2c_forward.5} parent=0 // loop_footer_branch
    %8 = sbr.rel target = $region3
  $region8: #{a2c_forward.5} parent=0 // loop_exit
    _

// kernel: a2c_forward.6
$region0: #{a2c_forward.6}
  #allocation0 [shape = 'u32[]', space=smem, size = 0x4, offset = 0x4, fixed_abs, tag = 'smem constant byte address 0x4 - core index']
  #allocation1 [shape = 'u32[144,128]{1,0:T(1,128)}', space=vmem, size = 0x12000, scoped, tag = 'internal scratch']
  %s0 = inlined_call_operand.vmem [shape: f32[1248,512], index: 0, kind: input, shape index: {}]
  %s1 = inlined_call_operand.vmem [shape: f32[512,128], index: 1, kind: input, shape index: {}]
  %s2 = inlined_call_operand.vmem [shape: f32[1,128], index: 2, kind: input, shape index: {}]
  %s3 = inlined_call_operand.vmem [shape: f32[1248,128], index: 3, kind: output, shape index: {}]
  %s4 = sld [smem:[#allocation0]]
  $region45: #{a2c_forward.6} parent=0
    _
  %s6 = ssub.s32 1, %s4
  %s7 = scalar_select 0, %s6, %s4
  loop: start=0, step=1, limit=4
  $region2: #{a2c_forward.6} parent=0 // loop_pre_header
    _
  $region3: #{a2c_forward.6} parent=0 // loop_header
    %s9 = sphi 0, %s13
    %p10 = scmp.ge.s32.totalorder %s9, 4
    %s19 = sphi 0, %s21
    %s22 = sphi 0, %s19
    %s23 = sphi 0, %s22
    %s39 = sphi 0, %s23
    %s43 = sphi 0, %s43
    %s45 = sphi 0, %s43
    %s46 = sphi 0, %s45
    %s60 = sphi 0, %s46
    %s64 = sphi 0, %s64
    %s66 = sphi 0, %s64
    %s67 = sphi 0, %s66
    %s81 = sphi 0, %s67
    %s87 = sphi 0, %s89
    %s90 = sphi 0, %s87
    %s91 = sphi 0, %s90
    %s107 = sphi 0, %s91
  $region4: #{a2c_forward.6} parent=0 // loop_header_branch
    %12 = sbr.rel (%p10) target = $region8
  $region5: #{a2c_forward.6} parent=0 // loop_body
    %s14 = ssub.s32 %s9, 1
    %s15 = ssub.s32 %s9, 2
    %s16 = sadd.s32 %s9, 1
    %s17 = ssub.s32 %s9, %s16
    %p18 = scmp.eq.s32.totalorder %s17, 0
    %s20 = sadd.s32 %s19, 1
    %s21 = scalar_select %p18, %s19, %s20
    %p24 = pneg %p18
    %p25 = scmp.eq.s32.totalorder %s9, 1
    %p26 = por %p24, %p25
    %p27 = scmp.ne.s32.totalorder %s19, %s22
    %p28 = scmp.eq.s32.totalorder %s9, 0
    %p29 = por %p27, %p28
    %p30 = scmp.ne.s32.totalorder %s19, %s22
    %p31 = scmp.eq.s32.totalorder %s14, 1
    %p32 = por %p30, %p31
    %p33 = scmp.ne.s32.totalorder %s22, %s23
    %p34 = scmp.eq.s32.totalorder %s14, 0
    %p35 = por %p33, %p34
    %p36 = scmp.ne.s32.totalorder %s22, %s23
    %p37 = scmp.eq.s32.totalorder %s15, 1
    %p38 = por %p36, %p37
    %p40 = scmp.ne.s32.totalorder %s23, %s39
    %p41 = scmp.eq.s32.totalorder %s15, 0
    %p42 = por %p40, %p41
    %s44 = sadd.s32 %s43, 1
    %p47 = scmp.eq.s32.totalorder %s9, 1
    %p48 = scmp.ne.s32.totalorder %s43, %s45
    %p49 = scmp.eq.s32.totalorder %s9, 0
    %p50 = por %p48, %p49
    %p51 = scmp.ne.s32.totalorder %s43, %s45
    %p52 = scmp.eq.s32.totalorder %s14, 1
    %p53 = por %p51, %p52
    %p54 = scmp.ne.s32.totalorder %s45, %s46
    %p55 = scmp.eq.s32.totalorder %s14, 0
    %p56 = por %p54, %p55
    %p57 = scmp.ne.s32.totalorder %s45, %s46
    %p58 = scmp.eq.s32.totalorder %s15, 1
    %p59 = por %p57, %p58
    %p61 = scmp.ne.s32.totalorder %s46, %s60
    %p62 = scmp.eq.s32.totalorder %s15, 0
    %p63 = por %p61, %p62
    %s65 = sadd.s32 %s64, 1
    %p68 = scmp.eq.s32.totalorder %s9, 1
    %p69 = scmp.ne.s32.totalorder %s64, %s66
    %p70 = scmp.eq.s32.totalorder %s9, 0
    %p71 = por %p69, %p70
    %p72 = scmp.ne.s32.totalorder %s64, %s66
    %p73 = scmp.eq.s32.totalorder %s14, 1
    %p74 = por %p72, %p73
    %p75 = scmp.ne.s32.totalorder %s66, %s67
    %p76 = scmp.eq.s32.totalorder %s14, 0
    %p77 = por %p75, %p76
    %p78 = scmp.ne.s32.totalorder %s66, %s67
    %p79 = scmp.eq.s32.totalorder %s15, 1
    %p80 = por %p78, %p79
    %p82 = scmp.ne.s32.totalorder %s67, %s81
    %p83 = scmp.eq.s32.totalorder %s15, 0
    %p84 = por %p82, %p83
    %s85 = ssub.s32 %s9, %s16
    %p86 = scmp.eq.s32.totalorder %s85, 0
    %s88 = sadd.s32 %s87, 1
    %s89 = scalar_select %p86, %s87, %s88
    %p92 = pneg %p86
    %p93 = scmp.eq.s32.totalorder %s9, 1
    %p94 = por %p92, %p93
    %p95 = scmp.ne.s32.totalorder %s87, %s90
    %p96 = scmp.eq.s32.totalorder %s9, 0
    %p97 = por %p95, %p96
    %p98 = scmp.ne.s32.totalorder %s87, %s90
    %p99 = scmp.eq.s32.totalorder %s14, 1
    %p100 = por %p98, %p99
    %p101 = scmp.ne.s32.totalorder %s90, %s91
    %p102 = scmp.eq.s32.totalorder %s14, 0
    %p103 = por %p101, %p102
    %p104 = scmp.ne.s32.totalorder %s90, %s91
    %p105 = scmp.eq.s32.totalorder %s15, 1
    %p106 = por %p104, %p105
    %p108 = scmp.ne.s32.totalorder %s91, %s107
    %p109 = scmp.eq.s32.totalorder %s15, 0
    %p110 = por %p108, %p109
    %p111 = scmp.le.s32.totalorder 1, %s9
    %p112 = scmp.lt.s32.totalorder %s9, 3
    %p113 = pnand %p111, %p112
    %p114 = pneg %p113
    // Predicated region
    $region9: #{a2c_forward.6} parent=5 // pred_check
      _
    $region10: #{a2c_forward.6} parent=5 // pred_check_branch
      %116 = sbr.rel (%p113) target = $region12
    $region11: #{a2c_forward.6} parent=5 // pred_region
      %s117 = ssub.s32 %s9, 1
      // Predicated region
      $region13: #{a2c_forward.6} parent=11 // pred_check
        %p118 = pneg %p56
      $region14: #{a2c_forward.6} parent=11 // pred_check_branch
        %120 = sbr.rel (%p118) target = $region16
      $region15: #{a2c_forward.6} parent=11 // pred_region
        _
      $region16: #{a2c_forward.6} parent=11 // pred_fallthru
        _
      // Predicated region
      $region17: #{a2c_forward.6} parent=11 // pred_check
        %p121 = pneg %p77
      $region18: #{a2c_forward.6} parent=11 // pred_check_branch
        %123 = sbr.rel (%p121) target = $region20
      $region19: #{a2c_forward.6} parent=11 // pred_region
        _
      $region20: #{a2c_forward.6} parent=11 // pred_fallthru
        _
    $region12: #{a2c_forward.6} parent=5 // pred_fallthru
      _
    %p124 = scmp.lt.s32.totalorder %s9, 2
    // Predicated region
    $region21: #{a2c_forward.6} parent=5 // pred_check
      %p125 = pneg %p124
    $region22: #{a2c_forward.6} parent=5 // pred_check_branch
      %127 = sbr.rel (%p125) target = $region24
    $region23: #{a2c_forward.6} parent=5 // pred_region
      // Predicated region
      $region25: #{a2c_forward.6} parent=23 // pred_check
        %p128 = pneg %p29
      $region26: #{a2c_forward.6} parent=23 // pred_check_branch
        %130 = sbr.rel (%p128) target = $region28
      $region27: #{a2c_forward.6} parent=23 // pred_region
        %s131 = smul.u32 78, %s9
        %p132 = scmp.lt.s32.totalorder %s131, 155
        %s133 = scalar_select %p132, %s131, 155
        %s134 = smul.addr %s133, 4
        %s135 = smul.addr %s134, 8
        %s136 = scalar_lea.vmem %s0, %s135
        %s137 = smul.u32 78, %s9
      $region28: #{a2c_forward.6} parent=23 // pred_fallthru
        _
    $region24: #{a2c_forward.6} parent=5 // pred_fallthru
      _
    %p138 = scmp.le.s32.totalorder 1, %s9
    %p139 = scmp.lt.s32.totalorder %s9, 3
    %p140 = pnand %p138, %p139
    %p141 = pneg %p140
    // Predicated region
    $region29: #{a2c_forward.6} parent=5 // pred_check
      _
    $region30: #{a2c_forward.6} parent=5 // pred_check_branch
      %143 = sbr.rel (%p140) target = $region32
    $region31: #{a2c_forward.6} parent=5 // pred_region
      %s144 = ssub.s32 %s9, 1
      %s145 = smul.u32 78, %s14
      %p146 = scmp.lt.s32.totalorder %s145, 155
      %s147 = scalar_select %p146, %s145, 155
      %s148 = smul.addr %s147, 4
      %s149 = smul.addr %s148, 8
      %s150 = scalar_lea.vmem %s0, %s149
      %p151 = pneg %p35
      %p152 = pneg %p32
      %p153 = pneg %p56
      %p154 = pneg %p53
      %p155 = pneg %p77
      %p156 = pneg %p74
      %p157 = pneg %p103
      %p158 = pneg %p100
      %s159 = smul.u32 78, %s14
      %p160 = scmp.lt.s32.totalorder %s159, 155
      %s161 = scalar_select %p160, %s159, 155
      %s162 = smul.addr %s161, 8
      %s163 = scalar_lea.vmem %s3, %s162
      %s164 = smul.u32 78, %s14
      %p165 = scmp.lt.s32.totalorder %s164, 155
      %s166 = scalar_select %p165, %s164, 155
      %s167 = smul.addr %s166, 4
      %s168 = smul.addr %s167, 8
      %s169 = scalar_lea.vmem %s0, %s168
      %s170 = smul.u32 78, %s14
      %s171 = smul.u32 78, %s14
      %p172 = scmp.lt.s32.totalorder %s171, 155
      %s173 = scalar_select %p172, %s171, 155
      %s174 = smul.addr %s173, 8
      %s175 = scalar_lea.vmem %s3, %s174
      %s176 = smul.u32 78, %s14
      %v177 = vld [vmem:[%s169] sm:$0xff]
      %v178 = vld [vmem:[%s169 + $0x8] sm:$0xff]
      %v179 = vld [vmem:[%s169 + $0x10] sm:$0xff]
      %v180 = vld [vmem:[%s169 + $0x18] sm:$0xff]
      %v181 = vld [vmem:[%s169 + $0x20] sm:$0xff]
      %v182 = vld [vmem:[%s169 + $0x28] sm:$0xff]
      %v183 = vld [vmem:[%s169 + $0x30] sm:$0xff]
      %v184 = vld [vmem:[%s169 + $0x38] sm:$0xff]
      %v185 = vld [vmem:[%s169 + $0x40] sm:$0xff]
      %v186 = vld [vmem:[%s169 + $0x48] sm:$0xff]
      %v187 = vld [vmem:[%s169 + $0x50] sm:$0xff]
      %v188 = vld [vmem:[%s169 + $0x58] sm:$0xff]
      %v189 = vld [vmem:[%s169 + $0x60] sm:$0xff]
      %v190 = vld [vmem:[%s169 + $0x68] sm:$0xff]
      %v191 = vld [vmem:[%s169 + $0x70] sm:$0xff]
      %v192 = vld [vmem:[%s169 + $0x78] sm:$0xff]
      %v193 = vld [vmem:[%s169 + $0x80] sm:$0xff]
      %v194 = vld [vmem:[%s169 + $0x88] sm:$0xff]
      %v195 = vld [vmem:[%s169 + $0x90] sm:$0xff]
      %v196 = vld [vmem:[%s169 + $0x98] sm:$0xff]
      %v197 = vld [vmem:[%s169 + $0xa0] sm:$0xff]
      %v198 = vld [vmem:[%s169 + $0xa8] sm:$0xff]
      %v199 = vld [vmem:[%s169 + $0xb0] sm:$0xff]
      %v200 = vld [vmem:[%s169 + $0xb8] sm:$0xff]
      %v201 = vld [vmem:[%s169 + $0xc0] sm:$0xff]
      %v202 = vld [vmem:[%s169 + $0xc8] sm:$0xff]
      %v203 = vld [vmem:[%s169 + $0xd0] sm:$0xff]
      %v204 = vld [vmem:[%s169 + $0xd8] sm:$0xff]
      %v205 = vld [vmem:[%s169 + $0xe0] sm:$0xff]
      %v206 = vld [vmem:[%s169 + $0xe8] sm:$0xff]
      %v207 = vld [vmem:[%s169 + $0xf0] sm:$0xff]
      %v208 = vld [vmem:[%s169 + $0xf8] sm:$0xff]
      %v209 = vld [vmem:[%s169 + $0x100] sm:$0xff]
      %v210 = vld [vmem:[%s169 + $0x108] sm:$0xff]
      %v211 = vld [vmem:[%s169 + $0x110] sm:$0xff]
      %v212 = vld [vmem:[%s169 + $0x118] sm:$0xff]
      %v213 = vld [vmem:[%s169 + $0x120] sm:$0xff]
      %v214 = vld [vmem:[%s169 + $0x128] sm:$0xff]
      %v215 = vld [vmem:[%s169 + $0x130] sm:$0xff]
      %v216 = vld [vmem:[%s169 + $0x138] sm:$0xff]
      %v217 = vld [vmem:[%s169 + $0x140] sm:$0xff]
      %v218 = vld [vmem:[%s169 + $0x148] sm:$0xff]
      %v219 = vld [vmem:[%s169 + $0x150] sm:$0xff]
      %v220 = vld [vmem:[%s169 + $0x158] sm:$0xff]
      %v221 = vld [vmem:[%s169 + $0x160] sm:$0xff]
      %v222 = vld [vmem:[%s169 + $0x168] sm:$0xff]
      %v223 = vld [vmem:[%s169 + $0x170] sm:$0xff]
      %v224 = vld [vmem:[%s169 + $0x178] sm:$0xff]
      %v225 = vld [vmem:[%s169 + $0x180] sm:$0xff]
      %v226 = vld [vmem:[%s169 + $0x188] sm:$0xff]
      %v227 = vld [vmem:[%s169 + $0x190] sm:$0xff]
      %v228 = vld [vmem:[%s169 + $0x198] sm:$0xff]
      %v229 = vld [vmem:[%s169 + $0x1a0] sm:$0xff]
      %v230 = vld [vmem:[%s169 + $0x1a8] sm:$0xff]
      %v231 = vld [vmem:[%s169 + $0x1b0] sm:$0xff]
      %v232 = vld [vmem:[%s169 + $0x1b8] sm:$0xff]
      %v233 = vld [vmem:[%s169 + $0x1c0] sm:$0xff]
      %v234 = vld [vmem:[%s169 + $0x1c8] sm:$0xff]
      %v235 = vld [vmem:[%s169 + $0x1d0] sm:$0xff]
      %v236 = vld [vmem:[%s169 + $0x1d8] sm:$0xff]
      %v237 = vld [vmem:[%s169 + $0x1e0] sm:$0xff]
      %v238 = vld [vmem:[%s169 + $0x1e8] sm:$0xff]
      %v239 = vld [vmem:[%s169 + $0x1f0] sm:$0xff]
      %v240 = vld [vmem:[%s169 + $0x1f8] sm:$0xff]
      %v241 = vld [vmem:[%s169 + $0x200] sm:$0xff]
      %v242 = vld [vmem:[%s169 + $0x208] sm:$0xff]
      %v243 = vld [vmem:[%s169 + $0x210] sm:$0xff]
      %v244 = vld [vmem:[%s169 + $0x218] sm:$0xff]
      %v245 = vld [vmem:[%s169 + $0x220] sm:$0xff]
      %v246 = vld [vmem:[%s169 + $0x228] sm:$0xff]
      %v247 = vld [vmem:[%s169 + $0x230] sm:$0xff]
      %v248 = vld [vmem:[%s169 + $0x238] sm:$0xff]
      %v249 = vld [vmem:[%s169 + $0x240] sm:$0xff]
      %v250 = vld [vmem:[%s169 + $0x248] sm:$0xff]
      %v251 = vld [vmem:[%s169 + $0x250] sm:$0xff]
      %v252 = vld [vmem:[%s169 + $0x258] sm:$0xff]
      %v253 = vld [vmem:[%s169 + $0x260] sm:$0xff]
      %v254 = vld [vmem:[%s169 + $0x268] sm:$0xff]
      %v255 = vld [vmem:[%s169 + $0x270] sm:$0xff]
      %v256 = vld [vmem:[%s169 + $0x278] sm:$0xff]
      %v257 = vld [vmem:[%s169 + $0x280] sm:$0xff]
      %v258 = vld [vmem:[%s169 + $0x288] sm:$0xff]
      %v259 = vld [vmem:[%s169 + $0x290] sm:$0xff]
      %v260 = vld [vmem:[%s169 + $0x298] sm:$0xff]
      %v261 = vld [vmem:[%s169 + $0x2a0] sm:$0xff]
      %v262 = vld [vmem:[%s169 + $0x2a8] sm:$0xff]
      %v263 = vld [vmem:[%s169 + $0x2b0] sm:$0xff]
      %v264 = vld [vmem:[%s169 + $0x2b8] sm:$0xff]
      %v265 = vld [vmem:[%s169 + $0x2c0] sm:$0xff]
      %v266 = vld [vmem:[%s169 + $0x2c8] sm:$0xff]
      %v267 = vld [vmem:[%s169 + $0x2d0] sm:$0xff]
      %v268 = vld [vmem:[%s169 + $0x2d8] sm:$0xff]
      %v269 = vld [vmem:[%s169 + $0x2e0] sm:$0xff]
      %v270 = vld [vmem:[%s169 + $0x2e8] sm:$0xff]
      %v271 = vld [vmem:[%s169 + $0x2f0] sm:$0xff]
      %v272 = vld [vmem:[%s169 + $0x2f8] sm:$0xff]
      %v273 = vld [vmem:[%s169 + $0x300] sm:$0xff]
      %v274 = vld [vmem:[%s169 + $0x308] sm:$0xff]
      %v275 = vld [vmem:[%s169 + $0x310] sm:$0xff]
      %v276 = vld [vmem:[%s169 + $0x318] sm:$0xff]
      %v277 = vld [vmem:[%s169 + $0x320] sm:$0xff]
      %v278 = vld [vmem:[%s169 + $0x328] sm:$0xff]
      %v279 = vld [vmem:[%s169 + $0x330] sm:$0xff]
      %v280 = vld [vmem:[%s169 + $0x338] sm:$0xff]
      %v281 = vld [vmem:[%s169 + $0x340] sm:$0xff]
      %v282 = vld [vmem:[%s169 + $0x348] sm:$0xff]
      %v283 = vld [vmem:[%s169 + $0x350] sm:$0xff]
      %v284 = vld [vmem:[%s169 + $0x358] sm:$0xff]
      %v285 = vld [vmem:[%s169 + $0x360] sm:$0xff]
      %v286 = vld [vmem:[%s169 + $0x368] sm:$0xff]
      %v287 = vld [vmem:[%s169 + $0x370] sm:$0xff]
      %v288 = vld [vmem:[%s169 + $0x378] sm:$0xff]
      %v289 = vld [vmem:[%s169 + $0x380] sm:$0xff]
      %v290 = vld [vmem:[%s169 + $0x388] sm:$0xff]
      %v291 = vld [vmem:[%s169 + $0x390] sm:$0xff]
      %v292 = vld [vmem:[%s169 + $0x398] sm:$0xff]
      %v293 = vld [vmem:[%s169 + $0x3a0] sm:$0xff]
      %v294 = vld [vmem:[%s169 + $0x3a8] sm:$0xff]
      %v295 = vld [vmem:[%s169 + $0x3b0] sm:$0xff]
      %v296 = vld [vmem:[%s169 + $0x3b8] sm:$0xff]
      %v297 = vld [vmem:[%s169 + $0x3c0] sm:$0xff]
      %v298 = vld [vmem:[%s169 + $0x3c8] sm:$0xff]
      %v299 = vld [vmem:[%s169 + $0x3d0] sm:$0xff]
      %v300 = vld [vmem:[%s169 + $0x3d8] sm:$0xff]
      %v301 = vld [vmem:[%s169 + $0x3e0] sm:$0xff]
      %v302 = vld [vmem:[%s169 + $0x3e8] sm:$0xff]
      %v303 = vld [vmem:[%s169 + $0x3f0] sm:$0xff]
      %v304 = vld [vmem:[%s169 + $0x3f8] sm:$0xff]
      %v305 = vld [vmem:[%s169 + $0x400] sm:$0xff]
      %v306 = vld [vmem:[%s169 + $0x408] sm:$0xff]
      %v307 = vld [vmem:[%s169 + $0x410] sm:$0xff]
      %v308 = vld [vmem:[%s169 + $0x418] sm:$0xff]
      %v309 = vld [vmem:[%s169 + $0x420] sm:$0xff]
      %v310 = vld [vmem:[%s169 + $0x428] sm:$0xff]
      %v311 = vld [vmem:[%s169 + $0x430] sm:$0xff]
      %v312 = vld [vmem:[%s169 + $0x438] sm:$0xff]
      %v313 = vld [vmem:[%s169 + $0x440] sm:$0xff]
      %v314 = vld [vmem:[%s169 + $0x448] sm:$0xff]
      %v315 = vld [vmem:[%s169 + $0x450] sm:$0xff]
      %v316 = vld [vmem:[%s169 + $0x458] sm:$0xff]
      %v317 = vld [vmem:[%s169 + $0x460] sm:$0xff]
      %v318 = vld [vmem:[%s169 + $0x468] sm:$0xff]
      %v319 = vld [vmem:[%s169 + $0x470] sm:$0xff]
      %v320 = vld [vmem:[%s169 + $0x478] sm:$0xff]
      %v321 = vld [vmem:[%s169 + $0x480] sm:$0xff]
      %v322 = vld [vmem:[%s169 + $0x488] sm:$0xff]
      %v323 = vld [vmem:[%s169 + $0x490] sm:$0xff]
      %v324 = vld [vmem:[%s169 + $0x498] sm:$0xff]
      %v325 = vld [vmem:[%s169 + $0x4a0] sm:$0xff]
      %v326 = vld [vmem:[%s169 + $0x4a8] sm:$0xff]
      %v327 = vld [vmem:[%s169 + $0x4b0] sm:$0xff]
      %v328 = vld [vmem:[%s169 + $0x4b8] sm:$0xff]
      %v329 = vld [vmem:[%s169 + $0x4c0] sm:$0xff]
      %v330 = vld [vmem:[%s169 + $0x4c8] sm:$0xff]
      %v331 = vld [vmem:[%s169 + $0x4d0] sm:$0xff]
      %v332 = vld [vmem:[%s169 + $0x4d8] sm:$0xff]
      %v333 = vld [vmem:[%s169 + $0x4e0] sm:$0xff]
      %v334 = vld [vmem:[%s169 + $0x4e8] sm:$0xff]
      %v335 = vld [vmem:[%s169 + $0x4f0] sm:$0xff]
      %v336 = vld [vmem:[%s169 + $0x4f8] sm:$0xff]
      %v337 = vld [vmem:[%s169 + $0x500] sm:$0xff]
      %v338 = vld [vmem:[%s169 + $0x508] sm:$0xff]
      %v339 = vld [vmem:[%s169 + $0x510] sm:$0xff]
      %v340 = vld [vmem:[%s169 + $0x518] sm:$0xff]
      %v341 = vld [vmem:[%s169 + $0x520] sm:$0xff]
      %v342 = vld [vmem:[%s169 + $0x528] sm:$0xff]
      %v343 = vld [vmem:[%s169 + $0x530] sm:$0xff]
      %v344 = vld [vmem:[%s169 + $0x538] sm:$0xff]
      %v345 = vld [vmem:[%s169 + $0x540] sm:$0xff]
      %v346 = vld [vmem:[%s169 + $0x548] sm:$0xff]
      %v347 = vld [vmem:[%s169 + $0x550] sm:$0xff]
      %v348 = vld [vmem:[%s169 + $0x558] sm:$0xff]
      %v349 = vld [vmem:[%s169 + $0x560] sm:$0xff]
      %v350 = vld [vmem:[%s169 + $0x568] sm:$0xff]
      %v351 = vld [vmem:[%s169 + $0x570] sm:$0xff]
      %v352 = vld [vmem:[%s169 + $0x578] sm:$0xff]
      %v353 = vld [vmem:[%s169 + $0x580] sm:$0xff]
      %v354 = vld [vmem:[%s169 + $0x588] sm:$0xff]
      %v355 = vld [vmem:[%s169 + $0x590] sm:$0xff]
      %v356 = vld [vmem:[%s169 + $0x598] sm:$0xff]
      %v357 = vld [vmem:[%s169 + $0x5a0] sm:$0xff]
      %v358 = vld [vmem:[%s169 + $0x5a8] sm:$0xff]
      %v359 = vld [vmem:[%s169 + $0x5b0] sm:$0xff]
      %v360 = vld [vmem:[%s169 + $0x5b8] sm:$0xff]
      %v361 = vld [vmem:[%s169 + $0x5c0] sm:$0xff]
      %v362 = vld [vmem:[%s169 + $0x5c8] sm:$0xff]
      %v363 = vld [vmem:[%s169 + $0x5d0] sm:$0xff]
      %v364 = vld [vmem:[%s169 + $0x5d8] sm:$0xff]
      %v365 = vld [vmem:[%s169 + $0x5e0] sm:$0xff]
      %v366 = vld [vmem:[%s169 + $0x5e8] sm:$0xff]
      %v367 = vld [vmem:[%s169 + $0x5f0] sm:$0xff]
      %v368 = vld [vmem:[%s169 + $0x5f8] sm:$0xff]
      %v369 = vld [vmem:[%s169 + $0x600] sm:$0xff]
      %v370 = vld [vmem:[%s169 + $0x608] sm:$0xff]
      %v371 = vld [vmem:[%s169 + $0x610] sm:$0xff]
      %v372 = vld [vmem:[%s169 + $0x618] sm:$0xff]
      %v373 = vld [vmem:[%s169 + $0x620] sm:$0xff]
      %v374 = vld [vmem:[%s169 + $0x628] sm:$0xff]
      %v375 = vld [vmem:[%s169 + $0x630] sm:$0xff]
      %v376 = vld [vmem:[%s169 + $0x638] sm:$0xff]
      %v377 = vld [vmem:[%s169 + $0x640] sm:$0xff]
      %v378 = vld [vmem:[%s169 + $0x648] sm:$0xff]
      %v379 = vld [vmem:[%s169 + $0x650] sm:$0xff]
      %v380 = vld [vmem:[%s169 + $0x658] sm:$0xff]
      %v381 = vld [vmem:[%s169 + $0x660] sm:$0xff]
      %v382 = vld [vmem:[%s169 + $0x668] sm:$0xff]
      %v383 = vld [vmem:[%s169 + $0x670] sm:$0xff]
      %v384 = vld [vmem:[%s169 + $0x678] sm:$0xff]
      %v385 = vld [vmem:[%s169 + $0x680] sm:$0xff]
      %v386 = vld [vmem:[%s169 + $0x688] sm:$0xff]
      %v387 = vld [vmem:[%s169 + $0x690] sm:$0xff]
      %v388 = vld [vmem:[%s169 + $0x698] sm:$0xff]
      %v389 = vld [vmem:[%s169 + $0x6a0] sm:$0xff]
      %v390 = vld [vmem:[%s169 + $0x6a8] sm:$0xff]
      %v391 = vld [vmem:[%s169 + $0x6b0] sm:$0xff]
      %v392 = vld [vmem:[%s169 + $0x6b8] sm:$0xff]
      %v393 = vld [vmem:[%s169 + $0x6c0] sm:$0xff]
      %v394 = vld [vmem:[%s169 + $0x6c8] sm:$0xff]
      %v395 = vld [vmem:[%s169 + $0x6d0] sm:$0xff]
      %v396 = vld [vmem:[%s169 + $0x6d8] sm:$0xff]
      %v397 = vld [vmem:[%s169 + $0x6e0] sm:$0xff]
      %v398 = vld [vmem:[%s169 + $0x6e8] sm:$0xff]
      %v399 = vld [vmem:[%s169 + $0x6f0] sm:$0xff]
      %v400 = vld [vmem:[%s169 + $0x6f8] sm:$0xff]
      %v401 = vld [vmem:[%s169 + $0x700] sm:$0xff]
      %v402 = vld [vmem:[%s169 + $0x708] sm:$0xff]
      %v403 = vld [vmem:[%s169 + $0x710] sm:$0xff]
      %v404 = vld [vmem:[%s169 + $0x718] sm:$0xff]
      %v405 = vld [vmem:[%s169 + $0x720] sm:$0xff]
      %v406 = vld [vmem:[%s169 + $0x728] sm:$0xff]
      %v407 = vld [vmem:[%s169 + $0x730] sm:$0xff]
      %v408 = vld [vmem:[%s169 + $0x738] sm:$0xff]
      %v409 = vld [vmem:[%s169 + $0x740] sm:$0xff]
      %v410 = vld [vmem:[%s169 + $0x748] sm:$0xff]
      %v411 = vld [vmem:[%s169 + $0x750] sm:$0xff]
      %v412 = vld [vmem:[%s169 + $0x758] sm:$0xff]
      %v413 = vld [vmem:[%s169 + $0x760] sm:$0xff]
      %v414 = vld [vmem:[%s169 + $0x768] sm:$0xff]
      %v415 = vld [vmem:[%s169 + $0x770] sm:$0xff]
      %v416 = vld [vmem:[%s169 + $0x778] sm:$0xff]
      %v417 = vld [vmem:[%s169 + $0x780] sm:$0xff]
      %v418 = vld [vmem:[%s169 + $0x788] sm:$0xff]
      %v419 = vld [vmem:[%s169 + $0x790] sm:$0xff]
      %v420 = vld [vmem:[%s169 + $0x798] sm:$0xff]
      %v421 = vld [vmem:[%s169 + $0x7a0] sm:$0xff]
      %v422 = vld [vmem:[%s169 + $0x7a8] sm:$0xff]
      %v423 = vld [vmem:[%s169 + $0x7b0] sm:$0xff]
      %v424 = vld [vmem:[%s169 + $0x7b8] sm:$0xff]
      %v425 = vld [vmem:[%s169 + $0x7c0] sm:$0xff]
      %v426 = vld [vmem:[%s169 + $0x7c8] sm:$0xff]
      %v427 = vld [vmem:[%s169 + $0x7d0] sm:$0xff]
      %v428 = vld [vmem:[%s169 + $0x7d8] sm:$0xff]
      %v429 = vld [vmem:[%s169 + $0x7e0] sm:$0xff]
      %v430 = vld [vmem:[%s169 + $0x7e8] sm:$0xff]
      %v431 = vld [vmem:[%s169 + $0x7f0] sm:$0xff]
      %v432 = vld [vmem:[%s169 + $0x7f8] sm:$0xff]
      %v433 = vld [vmem:[%s169 + $0x800] sm:$0xff]
      %v434 = vld [vmem:[%s169 + $0x808] sm:$0xff]
      %v435 = vld [vmem:[%s169 + $0x810] sm:$0xff]
      %v436 = vld [vmem:[%s169 + $0x818] sm:$0xff]
      %v437 = vld [vmem:[%s169 + $0x820] sm:$0xff]
      %v438 = vld [vmem:[%s169 + $0x828] sm:$0xff]
      %v439 = vld [vmem:[%s169 + $0x830] sm:$0xff]
      %v440 = vld [vmem:[%s169 + $0x838] sm:$0xff]
      %v441 = vld [vmem:[%s169 + $0x840] sm:$0xff]
      %v442 = vld [vmem:[%s169 + $0x848] sm:$0xff]
      %v443 = vld [vmem:[%s169 + $0x850] sm:$0xff]
      %v444 = vld [vmem:[%s169 + $0x858] sm:$0xff]
      %v445 = vld [vmem:[%s169 + $0x860] sm:$0xff]
      %v446 = vld [vmem:[%s169 + $0x868] sm:$0xff]
      %v447 = vld [vmem:[%s169 + $0x870] sm:$0xff]
      %v448 = vld [vmem:[%s169 + $0x878] sm:$0xff]
      %v449 = vld [vmem:[%s169 + $0x880] sm:$0xff]
      %v450 = vld [vmem:[%s169 + $0x888] sm:$0xff]
      %v451 = vld [vmem:[%s169 + $0x890] sm:$0xff]
      %v452 = vld [vmem:[%s169 + $0x898] sm:$0xff]
      %v453 = vld [vmem:[%s169 + $0x8a0] sm:$0xff]
      %v454 = vld [vmem:[%s169 + $0x8a8] sm:$0xff]
      %v455 = vld [vmem:[%s169 + $0x8b0] sm:$0xff]
      %v456 = vld [vmem:[%s169 + $0x8b8] sm:$0xff]
      %v457 = vld [vmem:[%s169 + $0x8c0] sm:$0xff]
      %v458 = vld [vmem:[%s169 + $0x8c8] sm:$0xff]
      %v459 = vld [vmem:[%s169 + $0x8d0] sm:$0xff]
      %v460 = vld [vmem:[%s169 + $0x8d8] sm:$0xff]
      %v461 = vld [vmem:[%s169 + $0x8e0] sm:$0xff]
      %v462 = vld [vmem:[%s169 + $0x8e8] sm:$0xff]
      %v463 = vld [vmem:[%s169 + $0x8f0] sm:$0xff]
      %v464 = vld [vmem:[%s169 + $0x8f8] sm:$0xff]
      %v465 = vld [vmem:[%s169 + $0x900] sm:$0xff]
      %v466 = vld [vmem:[%s169 + $0x908] sm:$0xff]
      %v467 = vld [vmem:[%s169 + $0x910] sm:$0xff]
      %v468 = vld [vmem:[%s169 + $0x918] sm:$0xff]
      %v469 = vld [vmem:[%s169 + $0x920] sm:$0xff]
      %v470 = vld [vmem:[%s169 + $0x928] sm:$0xff]
      %v471 = vld [vmem:[%s169 + $0x930] sm:$0xff]
      %v472 = vld [vmem:[%s169 + $0x938] sm:$0xff]
      %v473 = vld [vmem:[%s169 + $0x940] sm:$0xff]
      %v474 = vld [vmem:[%s169 + $0x948] sm:$0xff]
      %v475 = vld [vmem:[%s169 + $0x950] sm:$0xff]
      %v476 = vld [vmem:[%s169 + $0x958] sm:$0xff]
      %v477 = vld [vmem:[%s169 + $0x960] sm:$0xff]
      %v478 = vld [vmem:[%s169 + $0x968] sm:$0xff]
      %v479 = vld [vmem:[%s169 + $0x970] sm:$0xff]
      %v480 = vld [vmem:[%s169 + $0x978] sm:$0xff]
      %v481 = vld [vmem:[%s169 + $0x980] sm:$0xff]
      %v482 = vld [vmem:[%s169 + $0x988] sm:$0xff]
      %v483 = vld [vmem:[%s169 + $0x990] sm:$0xff]
      %v484 = vld [vmem:[%s169 + $0x998] sm:$0xff]
      %v485 = vld [vmem:[%s169 + $0x9a0] sm:$0xff]
      %v486 = vld [vmem:[%s169 + $0x9a8] sm:$0xff]
      %v487 = vld [vmem:[%s169 + $0x9b0] sm:$0xff]
      %v488 = vld [vmem:[%s169 + $0x9b8] sm:$0xff]
      %v489 = vld [vmem:[%s1] sm:$0xff]
      %v490 = vld [vmem:[%s1 + $0x8] sm:$0xff]
      %v491 = vld [vmem:[%s1 + $0x10] sm:$0xff]
      %v492 = vld [vmem:[%s1 + $0x18] sm:$0xff]
      %v493 = vld [vmem:[%s1 + $0x20] sm:$0xff]
      %v494 = vld [vmem:[%s1 + $0x28] sm:$0xff]
      %v495 = vld [vmem:[%s1 + $0x30] sm:$0xff]
      %v496 = vld [vmem:[%s1 + $0x38] sm:$0xff]
      %v497 = vld [vmem:[%s1 + $0x40] sm:$0xff]
      %v498 = vld [vmem:[%s1 + $0x48] sm:$0xff]
      %v499 = vld [vmem:[%s1 + $0x50] sm:$0xff]
      %v500 = vld [vmem:[%s1 + $0x58] sm:$0xff]
      %v501 = vld [vmem:[%s1 + $0x60] sm:$0xff]
      %v502 = vld [vmem:[%s1 + $0x68] sm:$0xff]
      %v503 = vld [vmem:[%s1 + $0x70] sm:$0xff]
      %v504 = vld [vmem:[%s1 + $0x78] sm:$0xff]
      %v505 = vld [vmem:[%s1 + $0x80] sm:$0xff]
      %v506 = vld [vmem:[%s1 + $0x88] sm:$0xff]
      %v507 = vld [vmem:[%s1 + $0x90] sm:$0xff]
      %v508 = vld [vmem:[%s1 + $0x98] sm:$0xff]
      %v509 = vld [vmem:[%s1 + $0xa0] sm:$0xff]
      %v510 = vld [vmem:[%s1 + $0xa8] sm:$0xff]
      %v511 = vld [vmem:[%s1 + $0xb0] sm:$0xff]
      %v512 = vld [vmem:[%s1 + $0xb8] sm:$0xff]
      %v513 = vld [vmem:[%s1 + $0xc0] sm:$0xff]
      %v514 = vld [vmem:[%s1 + $0xc8] sm:$0xff]
      %v515 = vld [vmem:[%s1 + $0xd0] sm:$0xff]
      %v516 = vld [vmem:[%s1 + $0xd8] sm:$0xff]
      %v517 = vld [vmem:[%s1 + $0xe0] sm:$0xff]
      %v518 = vld [vmem:[%s1 + $0xe8] sm:$0xff]
      %v519 = vld [vmem:[%s1 + $0xf0] sm:$0xff]
      %v520 = vld [vmem:[%s1 + $0xf8] sm:$0xff]
      %v521 = vld [vmem:[%s1 + $0x100] sm:$0xff]
      %v522 = vld [vmem:[%s1 + $0x108] sm:$0xff]
      %v523 = vld [vmem:[%s1 + $0x110] sm:$0xff]
      %v524 = vld [vmem:[%s1 + $0x118] sm:$0xff]
      %v525 = vld [vmem:[%s1 + $0x120] sm:$0xff]
      %v526 = vld [vmem:[%s1 + $0x128] sm:$0xff]
      %v527 = vld [vmem:[%s1 + $0x130] sm:$0xff]
      %v528 = vld [vmem:[%s1 + $0x138] sm:$0xff]
      %v529 = vld [vmem:[%s1 + $0x140] sm:$0xff]
      %v530 = vld [vmem:[%s1 + $0x148] sm:$0xff]
      %v531 = vld [vmem:[%s1 + $0x150] sm:$0xff]
      %v532 = vld [vmem:[%s1 + $0x158] sm:$0xff]
      %v533 = vld [vmem:[%s1 + $0x160] sm:$0xff]
      %v534 = vld [vmem:[%s1 + $0x168] sm:$0xff]
      %v535 = vld [vmem:[%s1 + $0x170] sm:$0xff]
      %v536 = vld [vmem:[%s1 + $0x178] sm:$0xff]
      %v537 = vld [vmem:[%s1 + $0x180] sm:$0xff]
      %v538 = vld [vmem:[%s1 + $0x188] sm:$0xff]
      %v539 = vld [vmem:[%s1 + $0x190] sm:$0xff]
      %v540 = vld [vmem:[%s1 + $0x198] sm:$0xff]
      %v541 = vld [vmem:[%s1 + $0x1a0] sm:$0xff]
      %v542 = vld [vmem:[%s1 + $0x1a8] sm:$0xff]
      %v543 = vld [vmem:[%s1 + $0x1b0] sm:$0xff]
      %v544 = vld [vmem:[%s1 + $0x1b8] sm:$0xff]
      %v545 = vld [vmem:[%s1 + $0x1c0] sm:$0xff]
      %v546 = vld [vmem:[%s1 + $0x1c8] sm:$0xff]
      %v547 = vld [vmem:[%s1 + $0x1d0] sm:$0xff]
      %v548 = vld [vmem:[%s1 + $0x1d8] sm:$0xff]
      %v549 = vld [vmem:[%s1 + $0x1e0] sm:$0xff]
      %v550 = vld [vmem:[%s1 + $0x1e8] sm:$0xff]
      %v551 = vld [vmem:[%s1 + $0x1f0] sm:$0xff]
      %v552 = vld [vmem:[%s1 + $0x1f8] sm:$0xff]
      %v553 = vld [vmem:[%s2] sm:$0x1]
      %v555 = vlaneseq
      %v556 = vshrl.u32 %v555, 7
      %v557 = vsub.s32 0, %v556
      %v558 = vrot.slane %v553, %v557
      %560 = vmatprep.subr.mxu0 0.0
      %561 = vmatpush1.msra.mxu0 %v504
      %562 = vmatprep.subr.mxu0 0.0
      %563 = vmatpush1.msra.mxu0 %v503
      %564 = vmatprep.subr.mxu0 0.0
      %565 = vmatpush1.msra.mxu0 %v502
      %566 = vmatprep.subr.mxu0 0.0
      %567 = vmatpush1.msra.mxu0 %v501
      %568 = vmatprep.subr.mxu0 0.0
      %569 = vmatpush1.msra.mxu0 %v500
      %570 = vmatprep.subr.mxu0 0.0
      %571 = vmatpush1.msra.mxu0 %v499
      %572 = vmatprep.subr.mxu0 0.0
      %573 = vmatpush1.msra.mxu0 %v498
      %574 = vmatprep.subr.mxu0 0.0
      %575 = vmatpush1.msra.mxu0 %v497
      %576 = vmatprep.subr.mxu0 0.0
      %577 = vmatpush1.msra.mxu0 %v496
      %578 = vmatprep.subr.mxu0 0.0
      %579 = vmatpush1.msra.mxu0 %v495
      %580 = vmatprep.subr.mxu0 0.0
      %581 = vmatpush1.msra.mxu0 %v494
      %582 = vmatprep.subr.mxu0 0.0
      %583 = vmatpush1.msra.mxu0 %v493
      %584 = vmatprep.subr.mxu0 0.0
      %585 = vmatpush1.msra.mxu0 %v492
      %586 = vmatprep.subr.mxu0 0.0
      %587 = vmatpush1.msra.mxu0 %v491
      %588 = vmatprep.subr.mxu0 0.0
      %589 = vmatpush1.msra.mxu0 %v490
      %590 = vmatprep.subr.mxu0 0.0
      %591 = vmatpush1.msra.mxu0 %v489
      %592 = vmatprep.subr.mxu0 0.0
      %593 = vmatpush2.msra.mxu0 %v520
      %594 = vmatprep.subr.mxu0 0.0
      %595 = vmatpush2.msra.mxu0 %v519
      %596 = vmatprep.subr.mxu0 0.0
      %597 = vmatpush2.msra.mxu0 %v518
      %598 = vmatprep.subr.mxu0 0.0
      %599 = vmatpush2.msra.mxu0 %v517
      %600 = vmatprep.subr.mxu0 0.0
      %601 = vmatpush2.msra.mxu0 %v516
      %602 = vmatprep.subr.mxu0 0.0
      %603 = vmatpush2.msra.mxu0 %v515
      %604 = vmatprep.subr.mxu0 0.0
      %605 = vmatpush2.msra.mxu0 %v514
      %606 = vmatprep.subr.mxu0 0.0
      %607 = vmatpush2.msra.mxu0 %v513
      %608 = vmatprep.subr.mxu0 0.0
      %609 = vmatpush2.msra.mxu0 %v512
      %610 = vmatprep.subr.mxu0 0.0
      %611 = vmatpush2.msra.mxu0 %v511
      %612 = vmatprep.subr.mxu0 0.0
      %613 = vmatpush2.msra.mxu0 %v510
      %614 = vmatprep.subr.mxu0 0.0
      %615 = vmatpush2.msra.mxu0 %v509
      %616 = vmatprep.subr.mxu0 0.0
      %617 = vmatpush2.msra.mxu0 %v508
      %618 = vmatprep.subr.mxu0 0.0
      %619 = vmatpush2.msra.mxu0 %v507
      %620 = vmatprep.subr.mxu0 0.0
      %621 = vmatpush2.msra.mxu0 %v506
      %622 = vmatprep.subr.mxu0 0.0
      %623 = vmatpush2.msra.mxu0 %v505
      %624 = vmatprep.mubr.f32.mxu0 %v178
      %625 = vmatmul.mubr.f32.gmra.mxu0 %v177
      %v626 = vpop.f32.mrf.mxu0
      %v627 = vadd.f32 %v558, %v626
      %v628 = vpop.f32.mrf.mxu0
      %629 = vmatprep.mubr.f32.mxu0 %v182
      %630 = vmatmul.mubr.f32.gmra.mxu0 %v181
      %v631 = vpop.f32.mrf.mxu0
      %v632 = vadd.f32 %v558, %v631
      %v633 = vpop.f32.mrf.mxu0
      %634 = vmatprep.mubr.f32.mxu0 %v186
      %635 = vmatmul.mubr.f32.gmra.mxu0 %v185
      %v636 = vpop.f32.mrf.mxu0
      %v637 = vadd.f32 %v558, %v636
      %v638 = vpop.f32.mrf.mxu0
      %639 = vmatprep.mubr.f32.mxu0 %v190
      %640 = vmatmul.mubr.f32.gmra.mxu0 %v189
      %v641 = vpop.f32.mrf.mxu0
      %v642 = vadd.f32 %v558, %v641
      %v643 = vpop.f32.mrf.mxu0
      %644 = vmatprep.mubr.f32.mxu0 %v194
      %645 = vmatmul.mubr.f32.gmra.mxu0 %v193
      %v646 = vpop.f32.mrf.mxu0
      %v647 = vadd.f32 %v558, %v646
      %v648 = vpop.f32.mrf.mxu0
      %649 = vmatprep.mubr.f32.mxu0 %v198
      %650 = vmatmul.mubr.f32.gmra.mxu0 %v197
      %v651 = vpop.f32.mrf.mxu0
      %v652 = vadd.f32 %v558, %v651
      %v653 = vpop.f32.mrf.mxu0
      %654 = vmatprep.mubr.f32.mxu0 %v202
      %655 = vmatmul.mubr.f32.gmra.mxu0 %v201
      %v656 = vpop.f32.mrf.mxu0
      %v657 = vadd.f32 %v558, %v656
      %v658 = vpop.f32.mrf.mxu0
      %659 = vmatprep.mubr.f32.mxu0 %v206
      %660 = vmatmul.mubr.f32.gmra.mxu0 %v205
      %v661 = vpop.f32.mrf.mxu0
      %v662 = vadd.f32 %v558, %v661
      %v663 = vpop.f32.mrf.mxu0
      %664 = vmatprep.mubr.f32.mxu0 %v210
      %665 = vmatmul.mubr.f32.gmra.mxu0 %v209
      %v666 = vpop.f32.mrf.mxu0
      %v667 = vadd.f32 %v558, %v666
      %v668 = vpop.f32.mrf.mxu0
      %669 = vmatprep.mubr.f32.mxu0 %v214
      %670 = vmatmul.mubr.f32.gmra.mxu0 %v213
      %v671 = vpop.f32.mrf.mxu0
      %v672 = vadd.f32 %v558, %v671
      %v673 = vpop.f32.mrf.mxu0
      %674 = vmatprep.mubr.f32.mxu0 %v218
      %675 = vmatmul.mubr.f32.gmra.mxu0 %v217
      %v676 = vpop.f32.mrf.mxu0
      %v677 = vadd.f32 %v558, %v676
      %v678 = vpop.f32.mrf.mxu0
      %679 = vmatprep.mubr.f32.mxu0 %v222
      %680 = vmatmul.mubr.f32.gmra.mxu0 %v221
      %v681 = vpop.f32.mrf.mxu0
      %v682 = vadd.f32 %v558, %v681
      %v683 = vpop.f32.mrf.mxu0
      %684 = vmatprep.mubr.f32.mxu0 %v226
      %685 = vmatmul.mubr.f32.gmra.mxu0 %v225
      %v686 = vpop.f32.mrf.mxu0
      %v687 = vadd.f32 %v558, %v686
      %v688 = vpop.f32.mrf.mxu0
      %689 = vmatprep.mubr.f32.mxu0 %v230
      %690 = vmatmul.mubr.f32.gmra.mxu0 %v229
      %v691 = vpop.f32.mrf.mxu0
      %v692 = vadd.f32 %v558, %v691
      %v693 = vpop.f32.mrf.mxu0
      %694 = vmatprep.mubr.f32.mxu0 %v234
      %695 = vmatmul.mubr.f32.gmra.mxu0 %v233
      %v696 = vpop.f32.mrf.mxu0
      %v697 = vadd.f32 %v558, %v696
      %v698 = vpop.f32.mrf.mxu0
      %699 = vmatprep.mubr.f32.mxu0 %v238
      %700 = vmatmul.mubr.f32.gmra.mxu0 %v237
      %v701 = vpop.f32.mrf.mxu0
      %v702 = vadd.f32 %v558, %v701
      %v703 = vpop.f32.mrf.mxu0
      %704 = vmatprep.mubr.f32.mxu0 %v242
      %705 = vmatmul.mubr.f32.gmra.mxu0 %v241
      %v706 = vpop.f32.mrf.mxu0
      %v707 = vadd.f32 %v558, %v706
      %v708 = vpop.f32.mrf.mxu0
      %709 = vmatprep.mubr.f32.mxu0 %v246
      %710 = vmatmul.mubr.f32.gmra.mxu0 %v245
      %v711 = vpop.f32.mrf.mxu0
      %v712 = vadd.f32 %v558, %v711
      %v713 = vpop.f32.mrf.mxu0
      %714 = vmatprep.mubr.f32.mxu0 %v250
      %715 = vmatmul.mubr.f32.gmra.mxu0 %v249
      %v716 = vpop.f32.mrf.mxu0
      %v717 = vadd.f32 %v558, %v716
      %v718 = vpop.f32.mrf.mxu0
      %719 = vmatprep.mubr.f32.mxu0 %v254
      %720 = vmatmul.mubr.f32.gmra.mxu0 %v253
      %v721 = vpop.f32.mrf.mxu0
      %v722 = vadd.f32 %v558, %v721
      %v723 = vpop.f32.mrf.mxu0
      %724 = vmatprep.mubr.f32.mxu0 %v258
      %725 = vmatmul.mubr.f32.gmra.mxu0 %v257
      %v726 = vpop.f32.mrf.mxu0
      %v727 = vadd.f32 %v558, %v726
      %v728 = vpop.f32.mrf.mxu0
      %729 = vmatprep.mubr.f32.mxu0 %v262
      %730 = vmatmul.mubr.f32.gmra.mxu0 %v261
      %v731 = vpop.f32.mrf.mxu0
      %v732 = vadd.f32 %v558, %v731
      %v733 = vpop.f32.mrf.mxu0
      %734 = vmatprep.mubr.f32.mxu0 %v266
      %735 = vmatmul.mubr.f32.gmra.mxu0 %v265
      %v736 = vpop.f32.mrf.mxu0
      %v737 = vadd.f32 %v558, %v736
      %v738 = vpop.f32.mrf.mxu0
      %739 = vmatprep.mubr.f32.mxu0 %v270
      %740 = vmatmul.mubr.f32.gmra.mxu0 %v269
      %v741 = vpop.f32.mrf.mxu0
      %v742 = vadd.f32 %v558, %v741
      %v743 = vpop.f32.mrf.mxu0
      %744 = vmatprep.mubr.f32.mxu0 %v274
      %745 = vmatmul.mubr.f32.gmra.mxu0 %v273
      %v746 = vpop.f32.mrf.mxu0
      %v747 = vadd.f32 %v558, %v746
      %v748 = vpop.f32.mrf.mxu0
      %749 = vmatprep.mubr.f32.mxu0 %v278
      %750 = vmatmul.mubr.f32.gmra.mxu0 %v277
      %v751 = vpop.f32.mrf.mxu0
      %v752 = vadd.f32 %v558, %v751
      %v753 = vpop.f32.mrf.mxu0
      %754 = vmatprep.mubr.f32.mxu0 %v282
      %755 = vmatmul.mubr.f32.gmra.mxu0 %v281
      %v756 = vpop.f32.mrf.mxu0
      %v757 = vadd.f32 %v558, %v756
      %v758 = vpop.f32.mrf.mxu0
      %759 = vmatprep.mubr.f32.mxu0 %v286
      %760 = vmatmul.mubr.f32.gmra.mxu0 %v285
      %v761 = vpop.f32.mrf.mxu0
      %v762 = vadd.f32 %v558, %v761
      %v763 = vpop.f32.mrf.mxu0
      %764 = vmatprep.mubr.f32.mxu0 %v290
      %765 = vmatmul.mubr.f32.gmra.mxu0 %v289
      %v766 = vpop.f32.mrf.mxu0
      %v767 = vadd.f32 %v558, %v766
      %v768 = vpop.f32.mrf.mxu0
      %769 = vmatprep.mubr.f32.mxu0 %v294
      %770 = vmatmul.mubr.f32.gmra.mxu0 %v293
      %v771 = vpop.f32.mrf.mxu0
      %v772 = vadd.f32 %v558, %v771
      %v773 = vpop.f32.mrf.mxu0
      %774 = vmatprep.mubr.f32.mxu0 %v298
      %775 = vmatmul.mubr.f32.gmra.mxu0 %v297
      %v776 = vpop.f32.mrf.mxu0
      %v777 = vadd.f32 %v558, %v776
      %v778 = vpop.f32.mrf.mxu0
      %779 = vmatprep.mubr.f32.mxu0 %v302
      %780 = vmatmul.mubr.f32.gmra.mxu0 %v301
      %v781 = vpop.f32.mrf.mxu0
      %v782 = vadd.f32 %v558, %v781
      %v783 = vpop.f32.mrf.mxu0
      %784 = vmatprep.mubr.f32.mxu0 %v306
      %785 = vmatmul.mubr.f32.gmra.mxu0 %v305
      %v786 = vpop.f32.mrf.mxu0
      %v787 = vadd.f32 %v558, %v786
      %v788 = vpop.f32.mrf.mxu0
      %789 = vmatprep.mubr.f32.mxu0 %v310
      %790 = vmatmul.mubr.f32.gmra.mxu0 %v309
      %v791 = vpop.f32.mrf.mxu0
      %v792 = vadd.f32 %v558, %v791
      %v793 = vpop.f32.mrf.mxu0
      %794 = vmatprep.mubr.f32.mxu0 %v314
      %795 = vmatmul.mubr.f32.gmra.mxu0 %v313
      %v796 = vpop.f32.mrf.mxu0
      %v797 = vadd.f32 %v558, %v796
      %v798 = vpop.f32.mrf.mxu0
      %799 = vmatprep.mubr.f32.mxu0 %v318
      %800 = vmatmul.mubr.f32.gmra.mxu0 %v317
      %v801 = vpop.f32.mrf.mxu0
      %v802 = vadd.f32 %v558, %v801
      %v803 = vpop.f32.mrf.mxu0
      %804 = vmatprep.mubr.f32.mxu0 %v322
      %805 = vmatmul.mubr.f32.gmra.mxu0 %v321
      %v806 = vpop.f32.mrf.mxu0
      %v807 = vadd.f32 %v558, %v806
      %v808 = vpop.f32.mrf.mxu0
      %809 = vmatprep.mubr.f32.mxu0 %v326
      %810 = vmatmul.mubr.f32.gmra.mxu0 %v325
      %v811 = vpop.f32.mrf.mxu0
      %v812 = vadd.f32 %v558, %v811
      %v813 = vpop.f32.mrf.mxu0
      %814 = vmatprep.mubr.f32.mxu0 %v330
      %815 = vmatmul.mubr.f32.gmra.mxu0 %v329
      %v816 = vpop.f32.mrf.mxu0
      %v817 = vadd.f32 %v558, %v816
      %v818 = vpop.f32.mrf.mxu0
      %819 = vmatprep.mubr.f32.mxu0 %v334
      %820 = vmatmul.mubr.f32.gmra.mxu0 %v333
      %v821 = vpop.f32.mrf.mxu0
      %v822 = vadd.f32 %v558, %v821
      %v823 = vpop.f32.mrf.mxu0
      %824 = vmatprep.mubr.f32.mxu0 %v338
      %825 = vmatmul.mubr.f32.gmra.mxu0 %v337
      %v826 = vpop.f32.mrf.mxu0
      %v827 = vadd.f32 %v558, %v826
      %v828 = vpop.f32.mrf.mxu0
      %829 = vmatprep.mubr.f32.mxu0 %v342
      %830 = vmatmul.mubr.f32.gmra.mxu0 %v341
      %v831 = vpop.f32.mrf.mxu0
      %v832 = vadd.f32 %v558, %v831
      %v833 = vpop.f32.mrf.mxu0
      %834 = vmatprep.mubr.f32.mxu0 %v346
      %835 = vmatmul.mubr.f32.gmra.mxu0 %v345
      %v836 = vpop.f32.mrf.mxu0
      %v837 = vadd.f32 %v558, %v836
      %v838 = vpop.f32.mrf.mxu0
      %839 = vmatprep.mubr.f32.mxu0 %v350
      %840 = vmatmul.mubr.f32.gmra.mxu0 %v349
      %v841 = vpop.f32.mrf.mxu0
      %v842 = vadd.f32 %v558, %v841
      %v843 = vpop.f32.mrf.mxu0
      %844 = vmatprep.mubr.f32.mxu0 %v354
      %845 = vmatmul.mubr.f32.gmra.mxu0 %v353
      %v846 = vpop.f32.mrf.mxu0
      %v847 = vadd.f32 %v558, %v846
      %v848 = vpop.f32.mrf.mxu0
      %849 = vmatprep.mubr.f32.mxu0 %v358
      %850 = vmatmul.mubr.f32.gmra.mxu0 %v357
      %v851 = vpop.f32.mrf.mxu0
      %v852 = vadd.f32 %v558, %v851
      %v853 = vpop.f32.mrf.mxu0
      %854 = vmatprep.mubr.f32.mxu0 %v362
      %855 = vmatmul.mubr.f32.gmra.mxu0 %v361
      %v856 = vpop.f32.mrf.mxu0
      %v857 = vadd.f32 %v558, %v856
      %v858 = vpop.f32.mrf.mxu0
      %859 = vmatprep.mubr.f32.mxu0 %v366
      %860 = vmatmul.mubr.f32.gmra.mxu0 %v365
      %v861 = vpop.f32.mrf.mxu0
      %v862 = vadd.f32 %v558, %v861
      %v863 = vpop.f32.mrf.mxu0
      %864 = vmatprep.mubr.f32.mxu0 %v370
      %865 = vmatmul.mubr.f32.gmra.mxu0 %v369
      %v866 = vpop.f32.mrf.mxu0
      %v867 = vadd.f32 %v558, %v866
      %v868 = vpop.f32.mrf.mxu0
      %869 = vmatprep.mubr.f32.mxu0 %v374
      %870 = vmatmul.mubr.f32.gmra.mxu0 %v373
      %v871 = vpop.f32.mrf.mxu0
      %v872 = vadd.f32 %v558, %v871
      %v873 = vpop.f32.mrf.mxu0
      %874 = vmatprep.mubr.f32.mxu0 %v378
      %875 = vmatmul.mubr.f32.gmra.mxu0 %v377
      %v876 = vpop.f32.mrf.mxu0
      %v877 = vadd.f32 %v558, %v876
      %v878 = vpop.f32.mrf.mxu0
      %879 = vmatprep.mubr.f32.mxu0 %v382
      %880 = vmatmul.mubr.f32.gmra.mxu0 %v381
      %v881 = vpop.f32.mrf.mxu0
      %v882 = vadd.f32 %v558, %v881
      %v883 = vpop.f32.mrf.mxu0
      %884 = vmatprep.mubr.f32.mxu0 %v386
      %885 = vmatmul.mubr.f32.gmra.mxu0 %v385
      %v886 = vpop.f32.mrf.mxu0
      %v887 = vadd.f32 %v558, %v886
      %v888 = vpop.f32.mrf.mxu0
      %889 = vmatprep.mubr.f32.mxu0 %v390
      %890 = vmatmul.mubr.f32.gmra.mxu0 %v389
      %v891 = vpop.f32.mrf.mxu0
      %v892 = vadd.f32 %v558, %v891
      %v893 = vpop.f32.mrf.mxu0
      %894 = vmatprep.mubr.f32.mxu0 %v394
      %895 = vmatmul.mubr.f32.gmra.mxu0 %v393
      %v896 = vpop.f32.mrf.mxu0
      %v897 = vadd.f32 %v558, %v896
      %v898 = vpop.f32.mrf.mxu0
      %899 = vmatprep.mubr.f32.mxu0 %v398
      %900 = vmatmul.mubr.f32.gmra.mxu0 %v397
      %v901 = vpop.f32.mrf.mxu0
      %v902 = vadd.f32 %v558, %v901
      %v903 = vpop.f32.mrf.mxu0
      %904 = vmatprep.mubr.f32.mxu0 %v402
      %905 = vmatmul.mubr.f32.gmra.mxu0 %v401
      %v906 = vpop.f32.mrf.mxu0
      %v907 = vadd.f32 %v558, %v906
      %v908 = vpop.f32.mrf.mxu0
      %909 = vmatprep.mubr.f32.mxu0 %v406
      %910 = vmatmul.mubr.f32.gmra.mxu0 %v405
      %v911 = vpop.f32.mrf.mxu0
      %v912 = vadd.f32 %v558, %v911
      %v913 = vpop.f32.mrf.mxu0
      %914 = vmatprep.mubr.f32.mxu0 %v410
      %915 = vmatmul.mubr.f32.gmra.mxu0 %v409
      %v916 = vpop.f32.mrf.mxu0
      %v917 = vadd.f32 %v558, %v916
      %v918 = vpop.f32.mrf.mxu0
      %919 = vmatprep.mubr.f32.mxu0 %v414
      %920 = vmatmul.mubr.f32.gmra.mxu0 %v413
      %v921 = vpop.f32.mrf.mxu0
      %v922 = vadd.f32 %v558, %v921
      %v923 = vpop.f32.mrf.mxu0
      %924 = vmatprep.mubr.f32.mxu0 %v418
      %925 = vmatmul.mubr.f32.gmra.mxu0 %v417
      %v926 = vpop.f32.mrf.mxu0
      %v927 = vadd.f32 %v558, %v926
      %v928 = vpop.f32.mrf.mxu0
      %929 = vmatprep.mubr.f32.mxu0 %v422
      %930 = vmatmul.mubr.f32.gmra.mxu0 %v421
      %v931 = vpop.f32.mrf.mxu0
      %v932 = vadd.f32 %v558, %v931
      %v933 = vpop.f32.mrf.mxu0
      %934 = vmatprep.mubr.f32.mxu0 %v426
      %935 = vmatmul.mubr.f32.gmra.mxu0 %v425
      %v936 = vpop.f32.mrf.mxu0
      %v937 = vadd.f32 %v558, %v936
      %v938 = vpop.f32.mrf.mxu0
      %939 = vmatprep.mubr.f32.mxu0 %v430
      %940 = vmatmul.mubr.f32.gmra.mxu0 %v429
      %v941 = vpop.f32.mrf.mxu0
      %v942 = vadd.f32 %v558, %v941
      %v943 = vpop.f32.mrf.mxu0
      %944 = vmatprep.mubr.f32.mxu0 %v434
      %945 = vmatmul.mubr.f32.gmra.mxu0 %v433
      %v946 = vpop.f32.mrf.mxu0
      %v947 = vadd.f32 %v558, %v946
      %v948 = vpop.f32.mrf.mxu0
      %949 = vmatprep.mubr.f32.mxu0 %v438
      %950 = vmatmul.mubr.f32.gmra.mxu0 %v437
      %v951 = vpop.f32.mrf.mxu0
      %v952 = vadd.f32 %v558, %v951
      %v953 = vpop.f32.mrf.mxu0
      %954 = vmatprep.mubr.f32.mxu0 %v442
      %955 = vmatmul.mubr.f32.gmra.mxu0 %v441
      %v956 = vpop.f32.mrf.mxu0
      %v957 = vadd.f32 %v558, %v956
      %v958 = vpop.f32.mrf.mxu0
      %959 = vmatprep.mubr.f32.mxu0 %v446
      %960 = vmatmul.mubr.f32.gmra.mxu0 %v445
      %v961 = vpop.f32.mrf.mxu0
      %v962 = vadd.f32 %v558, %v961
      %v963 = vpop.f32.mrf.mxu0
      %964 = vmatprep.mubr.f32.mxu0 %v450
      %965 = vmatmul.mubr.f32.gmra.mxu0 %v449
      %v966 = vpop.f32.mrf.mxu0
      %v967 = vadd.f32 %v558, %v966
      %v968 = vpop.f32.mrf.mxu0
      %969 = vmatprep.mubr.f32.mxu0 %v454
      %970 = vmatmul.mubr.f32.gmra.mxu0 %v453
      %v971 = vpop.f32.mrf.mxu0
      %v972 = vadd.f32 %v558, %v971
      %v973 = vpop.f32.mrf.mxu0
      %974 = vmatprep.mubr.f32.mxu0 %v458
      %975 = vmatmul.mubr.f32.gmra.mxu0 %v457
      %v976 = vpop.f32.mrf.mxu0
      %v977 = vadd.f32 %v558, %v976
      %v978 = vpop.f32.mrf.mxu0
      %979 = vmatprep.mubr.f32.mxu0 %v462
      %980 = vmatmul.mubr.f32.gmra.mxu0 %v461
      %v981 = vpop.f32.mrf.mxu0
      %v982 = vadd.f32 %v558, %v981
      %v983 = vpop.f32.mrf.mxu0
      %984 = vmatprep.mubr.f32.mxu0 %v466
      %985 = vmatmul.mubr.f32.gmra.mxu0 %v465
      %v986 = vpop.f32.mrf.mxu0
      %v987 = vadd.f32 %v558, %v986
      %v988 = vpop.f32.mrf.mxu0
      %989 = vmatprep.mubr.f32.mxu0 %v470
      %990 = vmatmul.mubr.f32.gmra.mxu0 %v469
      %v991 = vpop.f32.mrf.mxu0
      %v992 = vadd.f32 %v558, %v991
      %v993 = vpop.f32.mrf.mxu0
      %994 = vmatprep.mubr.f32.mxu0 %v474
      %995 = vmatmul.mubr.f32.gmra.mxu0 %v473
      %v996 = vpop.f32.mrf.mxu0
      %v997 = vadd.f32 %v558, %v996
      %v998 = vpop.f32.mrf.mxu0
      %999 = vmatprep.mubr.f32.mxu0 %v478
      %1000 = vmatmul.mubr.f32.gmra.mxu0 %v477
      %v1001 = vpop.f32.mrf.mxu0
      %v1002 = vadd.f32 %v558, %v1001
      %v1003 = vpop.f32.mrf.mxu0
      %1004 = vmatprep.mubr.f32.mxu0 %v482
      %1005 = vmatmul.mubr.f32.gmra.mxu0 %v481
      %v1006 = vpop.f32.mrf.mxu0
      %v1007 = vadd.f32 %v558, %v1006
      %v1008 = vpop.f32.mrf.mxu0
      %1009 = vmatprep.mubr.f32.mxu0 %v486
      %1010 = vmatmul.mubr.f32.gmra.mxu0 %v485
      %v1011 = vpop.f32.mrf.mxu0
      %v1012 = vadd.f32 %v558, %v1011
      %v1013 = vpop.f32.mrf.mxu0
      %1014 = vdwg.mxu0
      %1015 = vmatprep.subr.mxu0 0.0
      %1016 = vmatpush1.msra.mxu0 %v536
      %1017 = vmatprep.subr.mxu0 0.0
      %1018 = vmatpush1.msra.mxu0 %v535
      %1019 = vmatprep.subr.mxu0 0.0
      %1020 = vmatpush1.msra.mxu0 %v534
      %1021 = vmatprep.subr.mxu0 0.0
      %1022 = vmatpush1.msra.mxu0 %v533
      %1023 = vmatprep.subr.mxu0 0.0
      %1024 = vmatpush1.msra.mxu0 %v532
      %1025 = vmatprep.subr.mxu0 0.0
      %1026 = vmatpush1.msra.mxu0 %v531
      %1027 = vmatprep.subr.mxu0 0.0
      %1028 = vmatpush1.msra.mxu0 %v530
      %1029 = vmatprep.subr.mxu0 0.0
      %1030 = vmatpush1.msra.mxu0 %v529
      %1031 = vmatprep.subr.mxu0 0.0
      %1032 = vmatpush1.msra.mxu0 %v528
      %1033 = vmatprep.subr.mxu0 0.0
      %1034 = vmatpush1.msra.mxu0 %v527
      %1035 = vmatprep.subr.mxu0 0.0
      %1036 = vmatpush1.msra.mxu0 %v526
      %1037 = vmatprep.subr.mxu0 0.0
      %1038 = vmatpush1.msra.mxu0 %v525
      %1039 = vmatprep.subr.mxu0 0.0
      %1040 = vmatpush1.msra.mxu0 %v524
      %1041 = vmatprep.subr.mxu0 0.0
      %1042 = vmatpush1.msra.mxu0 %v523
      %1043 = vmatprep.subr.mxu0 0.0
      %1044 = vmatpush1.msra.mxu0 %v522
      %1045 = vmatprep.subr.mxu0 0.0
      %1046 = vmatpush1.msra.mxu0 %v521
      %1047 = vmatprep.subr.mxu0 0.0
      %1048 = vmatpush2.msra.mxu0 %v552
      %1049 = vmatprep.subr.mxu0 0.0
      %1050 = vmatpush2.msra.mxu0 %v551
      %1051 = vmatprep.subr.mxu0 0.0
      %1052 = vmatpush2.msra.mxu0 %v550
      %1053 = vmatprep.subr.mxu0 0.0
      %1054 = vmatpush2.msra.mxu0 %v549
      %1055 = vmatprep.subr.mxu0 0.0
      %1056 = vmatpush2.msra.mxu0 %v548
      %1057 = vmatprep.subr.mxu0 0.0
      %1058 = vmatpush2.msra.mxu0 %v547
      %1059 = vmatprep.subr.mxu0 0.0
      %1060 = vmatpush2.msra.mxu0 %v546
      %1061 = vmatprep.subr.mxu0 0.0
      %1062 = vmatpush2.msra.mxu0 %v545
      %1063 = vmatprep.subr.mxu0 0.0
      %1064 = vmatpush2.msra.mxu0 %v544
      %1065 = vmatprep.subr.mxu0 0.0
      %1066 = vmatpush2.msra.mxu0 %v543
      %1067 = vmatprep.subr.mxu0 0.0
      %1068 = vmatpush2.msra.mxu0 %v542
      %1069 = vmatprep.subr.mxu0 0.0
      %1070 = vmatpush2.msra.mxu0 %v541
      %1071 = vmatprep.subr.mxu0 0.0
      %1072 = vmatpush2.msra.mxu0 %v540
      %1073 = vmatprep.subr.mxu0 0.0
      %1074 = vmatpush2.msra.mxu0 %v539
      %1075 = vmatprep.subr.mxu0 0.0
      %1076 = vmatpush2.msra.mxu0 %v538
      %1077 = vmatprep.subr.mxu0 0.0
      %1078 = vmatpush2.msra.mxu0 %v537
      %1079 = vmatprep.mubr.f32.mxu0 %v180
      %1080 = vmatmul.mubr.f32.gmra.mxu0 %v179
      %v1081 = vpop.f32.mrf.mxu0
      %v1082 = vadd.f32 %v627, %v1081
      %v1083 = vpop.f32.mrf.mxu0
      %1084 = vmatprep.mubr.f32.mxu0 %v184
      %1085 = vmatmul.mubr.f32.gmra.mxu0 %v183
      %v1086 = vpop.f32.mrf.mxu0
      %v1087 = vadd.f32 %v632, %v1086
      %v1088 = vpop.f32.mrf.mxu0
      %1089 = vmatprep.mubr.f32.mxu0 %v188
      %1090 = vmatmul.mubr.f32.gmra.mxu0 %v187
      %v1091 = vpop.f32.mrf.mxu0
      %v1092 = vadd.f32 %v637, %v1091
      %v1093 = vpop.f32.mrf.mxu0
      %1094 = vmatprep.mubr.f32.mxu0 %v192
      %1095 = vmatmul.mubr.f32.gmra.mxu0 %v191
      %v1096 = vpop.f32.mrf.mxu0
      %v1097 = vadd.f32 %v642, %v1096
      %v1098 = vpop.f32.mrf.mxu0
      %1099 = vmatprep.mubr.f32.mxu0 %v196
      %1100 = vmatmul.mubr.f32.gmra.mxu0 %v195
      %v1101 = vpop.f32.mrf.mxu0
      %v1102 = vadd.f32 %v647, %v1101
      %v1103 = vpop.f32.mrf.mxu0
      %1104 = vmatprep.mubr.f32.mxu0 %v200
      %1105 = vmatmul.mubr.f32.gmra.mxu0 %v199
      %v1106 = vpop.f32.mrf.mxu0
      %v1107 = vadd.f32 %v652, %v1106
      %v1108 = vpop.f32.mrf.mxu0
      %1109 = vmatprep.mubr.f32.mxu0 %v204
      %1110 = vmatmul.mubr.f32.gmra.mxu0 %v203
      %v1111 = vpop.f32.mrf.mxu0
      %v1112 = vadd.f32 %v657, %v1111
      %v1113 = vpop.f32.mrf.mxu0
      %1114 = vmatprep.mubr.f32.mxu0 %v208
      %1115 = vmatmul.mubr.f32.gmra.mxu0 %v207
      %v1116 = vpop.f32.mrf.mxu0
      %v1117 = vadd.f32 %v662, %v1116
      %v1118 = vpop.f32.mrf.mxu0
      %1119 = vmatprep.mubr.f32.mxu0 %v212
      %1120 = vmatmul.mubr.f32.gmra.mxu0 %v211
      %v1121 = vpop.f32.mrf.mxu0
      %v1122 = vadd.f32 %v667, %v1121
      %v1123 = vpop.f32.mrf.mxu0
      %1124 = vmatprep.mubr.f32.mxu0 %v216
      %1125 = vmatmul.mubr.f32.gmra.mxu0 %v215
      %v1126 = vpop.f32.mrf.mxu0
      %v1127 = vadd.f32 %v672, %v1126
      %v1128 = vpop.f32.mrf.mxu0
      %1129 = vmatprep.mubr.f32.mxu0 %v220
      %1130 = vmatmul.mubr.f32.gmra.mxu0 %v219
      %v1131 = vpop.f32.mrf.mxu0
      %v1132 = vadd.f32 %v677, %v1131
      %v1133 = vpop.f32.mrf.mxu0
      %1134 = vmatprep.mubr.f32.mxu0 %v224
      %1135 = vmatmul.mubr.f32.gmra.mxu0 %v223
      %v1136 = vpop.f32.mrf.mxu0
      %v1137 = vadd.f32 %v682, %v1136
      %v1138 = vpop.f32.mrf.mxu0
      %1139 = vmatprep.mubr.f32.mxu0 %v228
      %1140 = vmatmul.mubr.f32.gmra.mxu0 %v227
      %v1141 = vpop.f32.mrf.mxu0
      %v1142 = vadd.f32 %v687, %v1141
      %v1143 = vpop.f32.mrf.mxu0
      %1144 = vmatprep.mubr.f32.mxu0 %v232
      %1145 = vmatmul.mubr.f32.gmra.mxu0 %v231
      %v1146 = vpop.f32.mrf.mxu0
      %v1147 = vadd.f32 %v692, %v1146
      %v1148 = vpop.f32.mrf.mxu0
      %1149 = vmatprep.mubr.f32.mxu0 %v236
      %1150 = vmatmul.mubr.f32.gmra.mxu0 %v235
      %v1151 = vpop.f32.mrf.mxu0
      %v1152 = vadd.f32 %v697, %v1151
      %v1153 = vpop.f32.mrf.mxu0
      %1154 = vmatprep.mubr.f32.mxu0 %v240
      %1155 = vmatmul.mubr.f32.gmra.mxu0 %v239
      %v1156 = vpop.f32.mrf.mxu0
      %v1157 = vadd.f32 %v702, %v1156
      %v1158 = vpop.f32.mrf.mxu0
      %1159 = vmatprep.mubr.f32.mxu0 %v244
      %1160 = vmatmul.mubr.f32.gmra.mxu0 %v243
      %v1161 = vpop.f32.mrf.mxu0
      %v1162 = vadd.f32 %v707, %v1161
      %v1163 = vpop.f32.mrf.mxu0
      %1164 = vmatprep.mubr.f32.mxu0 %v248
      %1165 = vmatmul.mubr.f32.gmra.mxu0 %v247
      %v1166 = vpop.f32.mrf.mxu0
      %v1167 = vadd.f32 %v712, %v1166
      %v1168 = vpop.f32.mrf.mxu0
      %1169 = vmatprep.mubr.f32.mxu0 %v252
      %1170 = vmatmul.mubr.f32.gmra.mxu0 %v251
      %v1171 = vpop.f32.mrf.mxu0
      %v1172 = vadd.f32 %v717, %v1171
      %v1173 = vpop.f32.mrf.mxu0
      %1174 = vmatprep.mubr.f32.mxu0 %v256
      %1175 = vmatmul.mubr.f32.gmra.mxu0 %v255
      %v1176 = vpop.f32.mrf.mxu0
      %v1177 = vadd.f32 %v722, %v1176
      %v1178 = vpop.f32.mrf.mxu0
      %1179 = vmatprep.mubr.f32.mxu0 %v260
      %1180 = vmatmul.mubr.f32.gmra.mxu0 %v259
      %v1181 = vpop.f32.mrf.mxu0
      %v1182 = vadd.f32 %v727, %v1181
      %v1183 = vpop.f32.mrf.mxu0
      %1184 = vmatprep.mubr.f32.mxu0 %v264
      %1185 = vmatmul.mubr.f32.gmra.mxu0 %v263
      %v1186 = vpop.f32.mrf.mxu0
      %v1187 = vadd.f32 %v732, %v1186
      %v1188 = vpop.f32.mrf.mxu0
      %1189 = vmatprep.mubr.f32.mxu0 %v268
      %1190 = vmatmul.mubr.f32.gmra.mxu0 %v267
      %v1191 = vpop.f32.mrf.mxu0
      %v1192 = vadd.f32 %v737, %v1191
      %v1193 = vpop.f32.mrf.mxu0
      %1194 = vmatprep.mubr.f32.mxu0 %v272
      %1195 = vmatmul.mubr.f32.gmra.mxu0 %v271
      %v1196 = vpop.f32.mrf.mxu0
      %v1197 = vadd.f32 %v742, %v1196
      %v1198 = vpop.f32.mrf.mxu0
      %1199 = vmatprep.mubr.f32.mxu0 %v276
      %1200 = vmatmul.mubr.f32.gmra.mxu0 %v275
      %v1201 = vpop.f32.mrf.mxu0
      %v1202 = vadd.f32 %v747, %v1201
      %v1203 = vpop.f32.mrf.mxu0
      %1204 = vmatprep.mubr.f32.mxu0 %v280
      %1205 = vmatmul.mubr.f32.gmra.mxu0 %v279
      %v1206 = vpop.f32.mrf.mxu0
      %v1207 = vadd.f32 %v752, %v1206
      %v1208 = vpop.f32.mrf.mxu0
      %1209 = vmatprep.mubr.f32.mxu0 %v284
      %1210 = vmatmul.mubr.f32.gmra.mxu0 %v283
      %v1211 = vpop.f32.mrf.mxu0
      %v1212 = vadd.f32 %v757, %v1211
      %v1213 = vpop.f32.mrf.mxu0
      %1214 = vmatprep.mubr.f32.mxu0 %v288
      %1215 = vmatmul.mubr.f32.gmra.mxu0 %v287
      %v1216 = vpop.f32.mrf.mxu0
      %v1217 = vadd.f32 %v762, %v1216
      %v1218 = vpop.f32.mrf.mxu0
      %1219 = vmatprep.mubr.f32.mxu0 %v292
      %1220 = vmatmul.mubr.f32.gmra.mxu0 %v291
      %v1221 = vpop.f32.mrf.mxu0
      %v1222 = vadd.f32 %v767, %v1221
      %v1223 = vpop.f32.mrf.mxu0
      %1224 = vmatprep.mubr.f32.mxu0 %v296
      %1225 = vmatmul.mubr.f32.gmra.mxu0 %v295
      %v1226 = vpop.f32.mrf.mxu0
      %v1227 = vadd.f32 %v772, %v1226
      %v1228 = vpop.f32.mrf.mxu0
      %1229 = vmatprep.mubr.f32.mxu0 %v300
      %1230 = vmatmul.mubr.f32.gmra.mxu0 %v299
      %v1231 = vpop.f32.mrf.mxu0
      %v1232 = vadd.f32 %v777, %v1231
      %v1233 = vpop.f32.mrf.mxu0
      %1234 = vmatprep.mubr.f32.mxu0 %v304
      %1235 = vmatmul.mubr.f32.gmra.mxu0 %v303
      %v1236 = vpop.f32.mrf.mxu0
      %v1237 = vadd.f32 %v782, %v1236
      %v1238 = vpop.f32.mrf.mxu0
      %1239 = vmatprep.mubr.f32.mxu0 %v308
      %1240 = vmatmul.mubr.f32.gmra.mxu0 %v307
      %v1241 = vpop.f32.mrf.mxu0
      %v1242 = vadd.f32 %v787, %v1241
      %v1243 = vpop.f32.mrf.mxu0
      %1244 = vmatprep.mubr.f32.mxu0 %v312
      %1245 = vmatmul.mubr.f32.gmra.mxu0 %v311
      %v1246 = vpop.f32.mrf.mxu0
      %v1247 = vadd.f32 %v792, %v1246
      %v1248 = vpop.f32.mrf.mxu0
      %1249 = vmatprep.mubr.f32.mxu0 %v316
      %1250 = vmatmul.mubr.f32.gmra.mxu0 %v315
      %v1251 = vpop.f32.mrf.mxu0
      %v1252 = vadd.f32 %v797, %v1251
      %v1253 = vpop.f32.mrf.mxu0
      %1254 = vmatprep.mubr.f32.mxu0 %v320
      %1255 = vmatmul.mubr.f32.gmra.mxu0 %v319
      %v1256 = vpop.f32.mrf.mxu0
      %v1257 = vadd.f32 %v802, %v1256
      %v1258 = vpop.f32.mrf.mxu0
      %1259 = vmatprep.mubr.f32.mxu0 %v324
      %1260 = vmatmul.mubr.f32.gmra.mxu0 %v323
      %v1261 = vpop.f32.mrf.mxu0
      %v1262 = vadd.f32 %v807, %v1261
      %v1263 = vpop.f32.mrf.mxu0
      %1264 = vmatprep.mubr.f32.mxu0 %v328
      %1265 = vmatmul.mubr.f32.gmra.mxu0 %v327
      %v1266 = vpop.f32.mrf.mxu0
      %v1267 = vadd.f32 %v812, %v1266
      %v1268 = vpop.f32.mrf.mxu0
      %1269 = vmatprep.mubr.f32.mxu0 %v332
      %1270 = vmatmul.mubr.f32.gmra.mxu0 %v331
      %v1271 = vpop.f32.mrf.mxu0
      %v1272 = vadd.f32 %v817, %v1271
      %v1273 = vpop.f32.mrf.mxu0
      %1274 = vmatprep.mubr.f32.mxu0 %v336
      %1275 = vmatmul.mubr.f32.gmra.mxu0 %v335
      %v1276 = vpop.f32.mrf.mxu0
      %v1277 = vadd.f32 %v822, %v1276
      %v1278 = vpop.f32.mrf.mxu0
      %1279 = vmatprep.mubr.f32.mxu0 %v340
      %1280 = vmatmul.mubr.f32.gmra.mxu0 %v339
      %v1281 = vpop.f32.mrf.mxu0
      %v1282 = vadd.f32 %v827, %v1281
      %v1283 = vpop.f32.mrf.mxu0
      %1284 = vmatprep.mubr.f32.mxu0 %v344
      %1285 = vmatmul.mubr.f32.gmra.mxu0 %v343
      %v1286 = vpop.f32.mrf.mxu0
      %v1287 = vadd.f32 %v832, %v1286
      %v1288 = vpop.f32.mrf.mxu0
      %1289 = vmatprep.mubr.f32.mxu0 %v348
      %1290 = vmatmul.mubr.f32.gmra.mxu0 %v347
      %v1291 = vpop.f32.mrf.mxu0
      %v1292 = vadd.f32 %v837, %v1291
      %v1293 = vpop.f32.mrf.mxu0
      %1294 = vmatprep.mubr.f32.mxu0 %v352
      %1295 = vmatmul.mubr.f32.gmra.mxu0 %v351
      %v1296 = vpop.f32.mrf.mxu0
      %v1297 = vadd.f32 %v842, %v1296
      %v1298 = vpop.f32.mrf.mxu0
      %1299 = vmatprep.mubr.f32.mxu0 %v356
      %1300 = vmatmul.mubr.f32.gmra.mxu0 %v355
      %v1301 = vpop.f32.mrf.mxu0
      %v1302 = vadd.f32 %v847, %v1301
      %v1303 = vpop.f32.mrf.mxu0
      %1304 = vmatprep.mubr.f32.mxu0 %v360
      %1305 = vmatmul.mubr.f32.gmra.mxu0 %v359
      %v1306 = vpop.f32.mrf.mxu0
      %v1307 = vadd.f32 %v852, %v1306
      %v1308 = vpop.f32.mrf.mxu0
      %1309 = vmatprep.mubr.f32.mxu0 %v364
      %1310 = vmatmul.mubr.f32.gmra.mxu0 %v363
      %v1311 = vpop.f32.mrf.mxu0
      %v1312 = vadd.f32 %v857, %v1311
      %v1313 = vpop.f32.mrf.mxu0
      %1314 = vmatprep.mubr.f32.mxu0 %v368
      %1315 = vmatmul.mubr.f32.gmra.mxu0 %v367
      %v1316 = vpop.f32.mrf.mxu0
      %v1317 = vadd.f32 %v862, %v1316
      %v1318 = vpop.f32.mrf.mxu0
      %1319 = vmatprep.mubr.f32.mxu0 %v372
      %1320 = vmatmul.mubr.f32.gmra.mxu0 %v371
      %v1321 = vpop.f32.mrf.mxu0
      %v1322 = vadd.f32 %v867, %v1321
      %v1323 = vpop.f32.mrf.mxu0
      %1324 = vmatprep.mubr.f32.mxu0 %v376
      %1325 = vmatmul.mubr.f32.gmra.mxu0 %v375
      %v1326 = vpop.f32.mrf.mxu0
      %v1327 = vadd.f32 %v872, %v1326
      %v1328 = vpop.f32.mrf.mxu0
      %1329 = vmatprep.mubr.f32.mxu0 %v380
      %1330 = vmatmul.mubr.f32.gmra.mxu0 %v379
      %v1331 = vpop.f32.mrf.mxu0
      %v1332 = vadd.f32 %v877, %v1331
      %v1333 = vpop.f32.mrf.mxu0
      %1334 = vmatprep.mubr.f32.mxu0 %v384
      %1335 = vmatmul.mubr.f32.gmra.mxu0 %v383
      %v1336 = vpop.f32.mrf.mxu0
      %v1337 = vadd.f32 %v882, %v1336
      %v1338 = vpop.f32.mrf.mxu0
      %1339 = vmatprep.mubr.f32.mxu0 %v388
      %1340 = vmatmul.mubr.f32.gmra.mxu0 %v387
      %v1341 = vpop.f32.mrf.mxu0
      %v1342 = vadd.f32 %v887, %v1341
      %v1343 = vpop.f32.mrf.mxu0
      %1344 = vmatprep.mubr.f32.mxu0 %v392
      %1345 = vmatmul.mubr.f32.gmra.mxu0 %v391
      %v1346 = vpop.f32.mrf.mxu0
      %v1347 = vadd.f32 %v892, %v1346
      %v1348 = vpop.f32.mrf.mxu0
      %1349 = vmatprep.mubr.f32.mxu0 %v396
      %1350 = vmatmul.mubr.f32.gmra.mxu0 %v395
      %v1351 = vpop.f32.mrf.mxu0
      %v1352 = vadd.f32 %v897, %v1351
      %v1353 = vpop.f32.mrf.mxu0
      %1354 = vmatprep.mubr.f32.mxu0 %v400
      %1355 = vmatmul.mubr.f32.gmra.mxu0 %v399
      %v1356 = vpop.f32.mrf.mxu0
      %v1357 = vadd.f32 %v902, %v1356
      %v1358 = vpop.f32.mrf.mxu0
      %1359 = vmatprep.mubr.f32.mxu0 %v404
      %1360 = vmatmul.mubr.f32.gmra.mxu0 %v403
      %v1361 = vpop.f32.mrf.mxu0
      %v1362 = vadd.f32 %v907, %v1361
      %v1363 = vpop.f32.mrf.mxu0
      %1364 = vmatprep.mubr.f32.mxu0 %v408
      %1365 = vmatmul.mubr.f32.gmra.mxu0 %v407
      %v1366 = vpop.f32.mrf.mxu0
      %v1367 = vadd.f32 %v912, %v1366
      %v1368 = vpop.f32.mrf.mxu0
      %1369 = vmatprep.mubr.f32.mxu0 %v412
      %1370 = vmatmul.mubr.f32.gmra.mxu0 %v411
      %v1371 = vpop.f32.mrf.mxu0
      %v1372 = vadd.f32 %v917, %v1371
      %v1373 = vpop.f32.mrf.mxu0
      %1374 = vmatprep.mubr.f32.mxu0 %v416
      %1375 = vmatmul.mubr.f32.gmra.mxu0 %v415
      %v1376 = vpop.f32.mrf.mxu0
      %v1377 = vadd.f32 %v922, %v1376
      %v1378 = vpop.f32.mrf.mxu0
      %1379 = vmatprep.mubr.f32.mxu0 %v420
      %1380 = vmatmul.mubr.f32.gmra.mxu0 %v419
      %v1381 = vpop.f32.mrf.mxu0
      %v1382 = vadd.f32 %v927, %v1381
      %v1383 = vpop.f32.mrf.mxu0
      %1384 = vmatprep.mubr.f32.mxu0 %v424
      %1385 = vmatmul.mubr.f32.gmra.mxu0 %v423
      %v1386 = vpop.f32.mrf.mxu0
      %v1387 = vadd.f32 %v932, %v1386
      %v1388 = vpop.f32.mrf.mxu0
      %1389 = vmatprep.mubr.f32.mxu0 %v428
      %1390 = vmatmul.mubr.f32.gmra.mxu0 %v427
      %v1391 = vpop.f32.mrf.mxu0
      %v1392 = vadd.f32 %v937, %v1391
      %v1393 = vpop.f32.mrf.mxu0
      %1394 = vmatprep.mubr.f32.mxu0 %v432
      %1395 = vmatmul.mubr.f32.gmra.mxu0 %v431
      %v1396 = vpop.f32.mrf.mxu0
      %v1397 = vadd.f32 %v942, %v1396
      %v1398 = vpop.f32.mrf.mxu0
      %1399 = vmatprep.mubr.f32.mxu0 %v436
      %1400 = vmatmul.mubr.f32.gmra.mxu0 %v435
      %v1401 = vpop.f32.mrf.mxu0
      %v1402 = vadd.f32 %v947, %v1401
      %v1403 = vpop.f32.mrf.mxu0
      %1404 = vmatprep.mubr.f32.mxu0 %v440
      %1405 = vmatmul.mubr.f32.gmra.mxu0 %v439
      %v1406 = vpop.f32.mrf.mxu0
      %v1407 = vadd.f32 %v952, %v1406
      %v1408 = vpop.f32.mrf.mxu0
      %1409 = vmatprep.mubr.f32.mxu0 %v444
      %1410 = vmatmul.mubr.f32.gmra.mxu0 %v443
      %v1411 = vpop.f32.mrf.mxu0
      %v1412 = vadd.f32 %v957, %v1411
      %v1413 = vpop.f32.mrf.mxu0
      %1414 = vmatprep.mubr.f32.mxu0 %v448
      %1415 = vmatmul.mubr.f32.gmra.mxu0 %v447
      %v1416 = vpop.f32.mrf.mxu0
      %v1417 = vadd.f32 %v962, %v1416
      %v1418 = vpop.f32.mrf.mxu0
      %1419 = vmatprep.mubr.f32.mxu0 %v452
      %1420 = vmatmul.mubr.f32.gmra.mxu0 %v451
      %v1421 = vpop.f32.mrf.mxu0
      %v1422 = vadd.f32 %v967, %v1421
      %v1423 = vpop.f32.mrf.mxu0
      %1424 = vmatprep.mubr.f32.mxu0 %v456
      %1425 = vmatmul.mubr.f32.gmra.mxu0 %v455
      %v1426 = vpop.f32.mrf.mxu0
      %v1427 = vadd.f32 %v972, %v1426
      %v1428 = vpop.f32.mrf.mxu0
      %1429 = vmatprep.mubr.f32.mxu0 %v460
      %1430 = vmatmul.mubr.f32.gmra.mxu0 %v459
      %v1431 = vpop.f32.mrf.mxu0
      %v1432 = vadd.f32 %v977, %v1431
      %v1433 = vpop.f32.mrf.mxu0
      %1434 = vmatprep.mubr.f32.mxu0 %v464
      %1435 = vmatmul.mubr.f32.gmra.mxu0 %v463
      %v1436 = vpop.f32.mrf.mxu0
      %v1437 = vadd.f32 %v982, %v1436
      %v1438 = vpop.f32.mrf.mxu0
      %1439 = vmatprep.mubr.f32.mxu0 %v468
      %1440 = vmatmul.mubr.f32.gmra.mxu0 %v467
      %v1441 = vpop.f32.mrf.mxu0
      %v1442 = vadd.f32 %v987, %v1441
      %v1443 = vpop.f32.mrf.mxu0
      %1444 = vmatprep.mubr.f32.mxu0 %v472
      %1445 = vmatmul.mubr.f32.gmra.mxu0 %v471
      %v1446 = vpop.f32.mrf.mxu0
      %v1447 = vadd.f32 %v992, %v1446
      %v1448 = vpop.f32.mrf.mxu0
      %1449 = vmatprep.mubr.f32.mxu0 %v476
      %1450 = vmatmul.mubr.f32.gmra.mxu0 %v475
      %v1451 = vpop.f32.mrf.mxu0
      %v1452 = vadd.f32 %v997, %v1451
      %v1453 = vpop.f32.mrf.mxu0
      %1454 = vmatprep.mubr.f32.mxu0 %v480
      %1455 = vmatmul.mubr.f32.gmra.mxu0 %v479
      %v1456 = vpop.f32.mrf.mxu0
      %v1457 = vadd.f32 %v1002, %v1456
      %v1458 = vpop.f32.mrf.mxu0
      %1459 = vmatprep.mubr.f32.mxu0 %v484
      %1460 = vmatmul.mubr.f32.gmra.mxu0 %v483
      %v1461 = vpop.f32.mrf.mxu0
      %v1462 = vadd.f32 %v1007, %v1461
      %v1463 = vpop.f32.mrf.mxu0
      %1464 = vmatprep.mubr.f32.mxu0 %v488
      %1465 = vmatmul.mubr.f32.gmra.mxu0 %v487
      %v1466 = vpop.f32.mrf.mxu0
      %v1467 = vadd.f32 %v1012, %v1466
      %v1468 = vpop.f32.mrf.mxu0
      %1469 = vdwg.mxu0
      %v1470 = vmax.f32 %v1082, 0.0
      %v1471 = vmax.f32 %v1087, 0.0
      %v1472 = vmax.f32 %v1092, 0.0
      %v1473 = vmax.f32 %v1097, 0.0
      %v1474 = vmax.f32 %v1102, 0.0
      %v1475 = vmax.f32 %v1107, 0.0
      %v1476 = vmax.f32 %v1112, 0.0
      %v1477 = vmax.f32 %v1117, 0.0
      %v1478 = vmax.f32 %v1122, 0.0
      %v1479 = vmax.f32 %v1127, 0.0
      %v1480 = vmax.f32 %v1132, 0.0
      %v1481 = vmax.f32 %v1137, 0.0
      %v1482 = vmax.f32 %v1142, 0.0
      %v1483 = vmax.f32 %v1147, 0.0
      %v1484 = vmax.f32 %v1152, 0.0
      %v1485 = vmax.f32 %v1157, 0.0
      %v1486 = vmax.f32 %v1162, 0.0
      %v1487 = vmax.f32 %v1167, 0.0
      %v1488 = vmax.f32 %v1172, 0.0
      %v1489 = vmax.f32 %v1177, 0.0
      %v1490 = vmax.f32 %v1182, 0.0
      %v1491 = vmax.f32 %v1187, 0.0
      %v1492 = vmax.f32 %v1192, 0.0
      %v1493 = vmax.f32 %v1197, 0.0
      %v1494 = vmax.f32 %v1202, 0.0
      %v1495 = vmax.f32 %v1207, 0.0
      %v1496 = vmax.f32 %v1212, 0.0
      %v1497 = vmax.f32 %v1217, 0.0
      %v1498 = vmax.f32 %v1222, 0.0
      %v1499 = vmax.f32 %v1227, 0.0
      %v1500 = vmax.f32 %v1232, 0.0
      %v1501 = vmax.f32 %v1237, 0.0
      %v1502 = vmax.f32 %v1242, 0.0
      %v1503 = vmax.f32 %v1247, 0.0
      %v1504 = vmax.f32 %v1252, 0.0
      %v1505 = vmax.f32 %v1257, 0.0
      %v1506 = vmax.f32 %v1262, 0.0
      %v1507 = vmax.f32 %v1267, 0.0
      %v1508 = vmax.f32 %v1272, 0.0
      %v1509 = vmax.f32 %v1277, 0.0
      %v1510 = vmax.f32 %v1282, 0.0
      %v1511 = vmax.f32 %v1287, 0.0
      %v1512 = vmax.f32 %v1292, 0.0
      %v1513 = vmax.f32 %v1297, 0.0
      %v1514 = vmax.f32 %v1302, 0.0
      %v1515 = vmax.f32 %v1307, 0.0
      %v1516 = vmax.f32 %v1312, 0.0
      %v1517 = vmax.f32 %v1317, 0.0
      %v1518 = vmax.f32 %v1322, 0.0
      %v1519 = vmax.f32 %v1327, 0.0
      %v1520 = vmax.f32 %v1332, 0.0
      %v1521 = vmax.f32 %v1337, 0.0
      %v1522 = vmax.f32 %v1342, 0.0
      %v1523 = vmax.f32 %v1347, 0.0
      %v1524 = vmax.f32 %v1352, 0.0
      %v1525 = vmax.f32 %v1357, 0.0
      %v1526 = vmax.f32 %v1362, 0.0
      %v1527 = vmax.f32 %v1367, 0.0
      %v1528 = vmax.f32 %v1372, 0.0
      %v1529 = vmax.f32 %v1377, 0.0
      %v1530 = vmax.f32 %v1382, 0.0
      %v1531 = vmax.f32 %v1387, 0.0
      %v1532 = vmax.f32 %v1392, 0.0
      %v1533 = vmax.f32 %v1397, 0.0
      %v1534 = vmax.f32 %v1402, 0.0
      %v1535 = vmax.f32 %v1407, 0.0
      %v1536 = vmax.f32 %v1412, 0.0
      %v1537 = vmax.f32 %v1417, 0.0
      %v1538 = vmax.f32 %v1422, 0.0
      %v1539 = vmax.f32 %v1427, 0.0
      %v1540 = vmax.f32 %v1432, 0.0
      %v1541 = vmax.f32 %v1437, 0.0
      %v1542 = vmax.f32 %v1442, 0.0
      %v1543 = vmax.f32 %v1447, 0.0
      %v1544 = vmax.f32 %v1452, 0.0
      %v1545 = vmax.f32 %v1457, 0.0
      %v1546 = vmax.f32 %v1462, 0.0
      %v1547 = vmax.f32 %v1467, 0.0
      %1548 = vst [vmem:[%s175] sm:$0xff] %v1470
      %1549 = vst [vmem:[%s175 + $0x8] sm:$0xff] %v1471
      %1550 = vst [vmem:[%s175 + $0x10] sm:$0xff] %v1472
      %1551 = vst [vmem:[%s175 + $0x18] sm:$0xff] %v1473
      %1552 = vst [vmem:[%s175 + $0x20] sm:$0xff] %v1474
      %1553 = vst [vmem:[%s175 + $0x28] sm:$0xff] %v1475
      %1554 = vst [vmem:[%s175 + $0x30] sm:$0xff] %v1476
      %1555 = vst [vmem:[%s175 + $0x38] sm:$0xff] %v1477
      %1556 = vst [vmem:[%s175 + $0x40] sm:$0xff] %v1478
      %1557 = vst [vmem:[%s175 + $0x48] sm:$0xff] %v1479
      %1558 = vst [vmem:[%s175 + $0x50] sm:$0xff] %v1480
      %1559 = vst [vmem:[%s175 + $0x58] sm:$0xff] %v1481
      %1560 = vst [vmem:[%s175 + $0x60] sm:$0xff] %v1482
      %1561 = vst [vmem:[%s175 + $0x68] sm:$0xff] %v1483
      %1562 = vst [vmem:[%s175 + $0x70] sm:$0xff] %v1484
      %1563 = vst [vmem:[%s175 + $0x78] sm:$0xff] %v1485
      %1564 = vst [vmem:[%s175 + $0x80] sm:$0xff] %v1486
      %1565 = vst [vmem:[%s175 + $0x88] sm:$0xff] %v1487
      %1566 = vst [vmem:[%s175 + $0x90] sm:$0xff] %v1488
      %1567 = vst [vmem:[%s175 + $0x98] sm:$0xff] %v1489
      %1568 = vst [vmem:[%s175 + $0xa0] sm:$0xff] %v1490
      %1569 = vst [vmem:[%s175 + $0xa8] sm:$0xff] %v1491
      %1570 = vst [vmem:[%s175 + $0xb0] sm:$0xff] %v1492
      %1571 = vst [vmem:[%s175 + $0xb8] sm:$0xff] %v1493
      %1572 = vst [vmem:[%s175 + $0xc0] sm:$0xff] %v1494
      %1573 = vst [vmem:[%s175 + $0xc8] sm:$0xff] %v1495
      %1574 = vst [vmem:[%s175 + $0xd0] sm:$0xff] %v1496
      %1575 = vst [vmem:[%s175 + $0xd8] sm:$0xff] %v1497
      %1576 = vst [vmem:[%s175 + $0xe0] sm:$0xff] %v1498
      %1577 = vst [vmem:[%s175 + $0xe8] sm:$0xff] %v1499
      %1578 = vst [vmem:[%s175 + $0xf0] sm:$0xff] %v1500
      %1579 = vst [vmem:[%s175 + $0xf8] sm:$0xff] %v1501
      %1580 = vst [vmem:[%s175 + $0x100] sm:$0xff] %v1502
      %1581 = vst [vmem:[%s175 + $0x108] sm:$0xff] %v1503
      %1582 = vst [vmem:[%s175 + $0x110] sm:$0xff] %v1504
      %1583 = vst [vmem:[%s175 + $0x118] sm:$0xff] %v1505
      %1584 = vst [vmem:[%s175 + $0x120] sm:$0xff] %v1506
      %1585 = vst [vmem:[%s175 + $0x128] sm:$0xff] %v1507
      %1586 = vst [vmem:[%s175 + $0x130] sm:$0xff] %v1508
      %1587 = vst [vmem:[%s175 + $0x138] sm:$0xff] %v1509
      %1588 = vst [vmem:[%s175 + $0x140] sm:$0xff] %v1510
      %1589 = vst [vmem:[%s175 + $0x148] sm:$0xff] %v1511
      %1590 = vst [vmem:[%s175 + $0x150] sm:$0xff] %v1512
      %1591 = vst [vmem:[%s175 + $0x158] sm:$0xff] %v1513
      %1592 = vst [vmem:[%s175 + $0x160] sm:$0xff] %v1514
      %1593 = vst [vmem:[%s175 + $0x168] sm:$0xff] %v1515
      %1594 = vst [vmem:[%s175 + $0x170] sm:$0xff] %v1516
      %1595 = vst [vmem:[%s175 + $0x178] sm:$0xff] %v1517
      %1596 = vst [vmem:[%s175 + $0x180] sm:$0xff] %v1518
      %1597 = vst [vmem:[%s175 + $0x188] sm:$0xff] %v1519
      %1598 = vst [vmem:[%s175 + $0x190] sm:$0xff] %v1520
      %1599 = vst [vmem:[%s175 + $0x198] sm:$0xff] %v1521
      %1600 = vst [vmem:[%s175 + $0x1a0] sm:$0xff] %v1522
      %1601 = vst [vmem:[%s175 + $0x1a8] sm:$0xff] %v1523
      %1602 = vst [vmem:[%s175 + $0x1b0] sm:$0xff] %v1524
      %1603 = vst [vmem:[%s175 + $0x1b8] sm:$0xff] %v1525
      %1604 = vst [vmem:[%s175 + $0x1c0] sm:$0xff] %v1526
      %1605 = vst [vmem:[%s175 + $0x1c8] sm:$0xff] %v1527
      %1606 = vst [vmem:[%s175 + $0x1d0] sm:$0xff] %v1528
      %1607 = vst [vmem:[%s175 + $0x1d8] sm:$0xff] %v1529
      %1608 = vst [vmem:[%s175 + $0x1e0] sm:$0xff] %v1530
      %1609 = vst [vmem:[%s175 + $0x1e8] sm:$0xff] %v1531
      %1610 = vst [vmem:[%s175 + $0x1f0] sm:$0xff] %v1532
      %1611 = vst [vmem:[%s175 + $0x1f8] sm:$0xff] %v1533
      %1612 = vst [vmem:[%s175 + $0x200] sm:$0xff] %v1534
      %1613 = vst [vmem:[%s175 + $0x208] sm:$0xff] %v1535
      %1614 = vst [vmem:[%s175 + $0x210] sm:$0xff] %v1536
      %1615 = vst [vmem:[%s175 + $0x218] sm:$0xff] %v1537
      %1616 = vst [vmem:[%s175 + $0x220] sm:$0xff] %v1538
      %1617 = vst [vmem:[%s175 + $0x228] sm:$0xff] %v1539
      %1618 = vst [vmem:[%s175 + $0x230] sm:$0xff] %v1540
      %1619 = vst [vmem:[%s175 + $0x238] sm:$0xff] %v1541
      %1620 = vst [vmem:[%s175 + $0x240] sm:$0xff] %v1542
      %1621 = vst [vmem:[%s175 + $0x248] sm:$0xff] %v1543
      %1622 = vst [vmem:[%s175 + $0x250] sm:$0xff] %v1544
      %1623 = vst [vmem:[%s175 + $0x258] sm:$0xff] %v1545
      %1624 = vst [vmem:[%s175 + $0x260] sm:$0xff] %v1546
      %1625 = vst [vmem:[%s175 + $0x268] sm:$0xff] %v1547
      %s1626 = smul.u32 78, %s14
      %p1627 = scmp.lt.s32.totalorder %s1626, 155
      %s1628 = scalar_select %p1627, %s1626, 155
      %s1629 = smul.addr %s1628, 8
      %s1630 = scalar_lea.vmem %s3, %s1629
      // Predicated region
      $region33: #{a2c_forward.6} parent=31 // pred_check
        %p1631 = pneg %p100
      $region34: #{a2c_forward.6} parent=31 // pred_check_branch
        %1633 = sbr.rel (%p1631) target = $region36
      $region35: #{a2c_forward.6} parent=31 // pred_region
        %s1634 = smul.u32 78, %s14
      $region36: #{a2c_forward.6} parent=31 // pred_fallthru
        _
    $region32: #{a2c_forward.6} parent=5 // pred_fallthru
      _
    %p1635 = scmp.le.s32.totalorder 2, %s9
    // Predicated region
    $region37: #{a2c_forward.6} parent=5 // pred_check
      %p1636 = pneg %p1635
    $region38: #{a2c_forward.6} parent=5 // pred_check_branch
      %1638 = sbr.rel (%p1636) target = $region40
    $region39: #{a2c_forward.6} parent=5 // pred_region
      %s1639 = ssub.s32 %s9, 2
      // Predicated region
      $region41: #{a2c_forward.6} parent=39 // pred_check
        %p1640 = pneg %p106
      $region42: #{a2c_forward.6} parent=39 // pred_check_branch
        %1642 = sbr.rel (%p1640) target = $region44
      $region43: #{a2c_forward.6} parent=39 // pred_region
        %s1643 = smul.u32 78, %s15
        %p1644 = scmp.lt.s32.totalorder %s1643, 155
        %s1645 = scalar_select %p1644, %s1643, 155
        %s1646 = smul.addr %s1645, 8
        %s1647 = scalar_lea.vmem %s3, %s1646
      $region44: #{a2c_forward.6} parent=39 // pred_fallthru
        _
    $region40: #{a2c_forward.6} parent=5 // pred_fallthru
      _
  $region6: #{a2c_forward.6} parent=0 // loop_footer
    %s13 = sadd.s32 1, %s9
  $region7: #{a2c_forward.6} parent=0 // loop_footer_branch
    %8 = sbr.rel target = $region3
  $region8: #{a2c_forward.6} parent=0 // loop_exit
    _

// kernel: a2c_forward.7
$region0: #{a2c_forward.7}
  #allocation0 [shape = 'u32[]', space=smem, size = 0x4, offset = 0x4, fixed_abs, tag = 'smem constant byte address 0x4 - core index']
  #allocation1 [shape = 'u32[144,128]{1,0:T(1,128)}', space=vmem, size = 0x12000, scoped, tag = 'internal scratch']
  %s0 = inlined_call_operand.vmem [shape: f32[288,576], index: 0, kind: input, shape index: {}]
  %s1 = inlined_call_operand.vmem [shape: f32[576,128], index: 1, kind: input, shape index: {}]
  %s2 = inlined_call_operand.vmem [shape: f32[1,128], index: 2, kind: input, shape index: {}]
  %s3 = inlined_call_operand.vmem [shape: f32[288,128], index: 3, kind: output, shape index: {}]
  %s4 = sld [smem:[#allocation0]]
  $region22: #{a2c_forward.7} parent=0
    _
  %s6 = ssub.s32 1, %s4
  %s7 = scalar_select 0, %s6, %s4
  // Predicated region
  $region2: #{a2c_forward.7} parent=0 // pred_check
    _
  $region3: #{a2c_forward.7} parent=0 // pred_check_branch
    %9 = sbr.rel (0) target = $region5
  $region4: #{a2c_forward.7} parent=0 // pred_region
    _
  $region5: #{a2c_forward.7} parent=0 // pred_fallthru
    _
  // Predicated region
  $region6: #{a2c_forward.7} parent=0 // pred_check
    _
  $region7: #{a2c_forward.7} parent=0 // pred_check_branch
    %11 = sbr.rel (0) target = $region9
  $region8: #{a2c_forward.7} parent=0 // pred_region
    _
  $region9: #{a2c_forward.7} parent=0 // pred_fallthru
    _
  // Predicated region
  $region10: #{a2c_forward.7} parent=0 // pred_check
    _
  $region11: #{a2c_forward.7} parent=0 // pred_check_branch
    %13 = sbr.rel (0) target = $region13
  $region12: #{a2c_forward.7} parent=0 // pred_region
    _
  $region13: #{a2c_forward.7} parent=0 // pred_fallthru
    _
  %v14 = vld [vmem:[%s0] sm:$0xff]
  %v15 = vld [vmem:[%s0 + $0x8] sm:$0xff]
  %v16 = vld [vmem:[%s0 + $0x10] sm:$0xff]
  %v17 = vld [vmem:[%s0 + $0x18] sm:$0xff]
  %v18 = vld [vmem:[%s0 + $0x20] sm:$0xff]
  %v19 = vld [vmem:[%s0 + $0x28] sm:$0xff]
  %v20 = vld [vmem:[%s0 + $0x30] sm:$0xff]
  %v21 = vld [vmem:[%s0 + $0x38] sm:$0xff]
  %v22 = vld [vmem:[%s0 + $0x40] sm:$0xff]
  %v23 = vld [vmem:[%s0 + $0x48] sm:$0xff]
  %v24 = vld [vmem:[%s0 + $0x50] sm:$0xff]
  %v25 = vld [vmem:[%s0 + $0x58] sm:$0xff]
  %v26 = vld [vmem:[%s0 + $0x60] sm:$0xff]
  %v27 = vld [vmem:[%s0 + $0x68] sm:$0xff]
  %v28 = vld [vmem:[%s0 + $0x70] sm:$0xff]
  %v29 = vld [vmem:[%s0 + $0x78] sm:$0xff]
  %v30 = vld [vmem:[%s0 + $0x80] sm:$0xff]
  %v31 = vld [vmem:[%s0 + $0x88] sm:$0xff]
  %v32 = vld [vmem:[%s0 + $0x90] sm:$0xff]
  %v33 = vld [vmem:[%s0 + $0x98] sm:$0xff]
  %v34 = vld [vmem:[%s0 + $0xa0] sm:$0xff]
  %v35 = vld [vmem:[%s0 + $0xa8] sm:$0xff]
  %v36 = vld [vmem:[%s0 + $0xb0] sm:$0xff]
  %v37 = vld [vmem:[%s0 + $0xb8] sm:$0xff]
  %v38 = vld [vmem:[%s0 + $0xc0] sm:$0xff]
  %v39 = vld [vmem:[%s0 + $0xc8] sm:$0xff]
  %v40 = vld [vmem:[%s0 + $0xd0] sm:$0xff]
  %v41 = vld [vmem:[%s0 + $0xd8] sm:$0xff]
  %v42 = vld [vmem:[%s0 + $0xe0] sm:$0xff]
  %v43 = vld [vmem:[%s0 + $0xe8] sm:$0xff]
  %v44 = vld [vmem:[%s0 + $0xf0] sm:$0xff]
  %v45 = vld [vmem:[%s0 + $0xf8] sm:$0xff]
  %v46 = vld [vmem:[%s0 + $0x100] sm:$0xff]
  %v47 = vld [vmem:[%s0 + $0x108] sm:$0xff]
  %v48 = vld [vmem:[%s0 + $0x110] sm:$0xff]
  %v49 = vld [vmem:[%s0 + $0x118] sm:$0xff]
  %v50 = vld [vmem:[%s0 + $0x120] sm:$0xff]
  %v51 = vld [vmem:[%s0 + $0x128] sm:$0xff]
  %v52 = vld [vmem:[%s0 + $0x130] sm:$0xff]
  %v53 = vld [vmem:[%s0 + $0x138] sm:$0xff]
  %v54 = vld [vmem:[%s0 + $0x140] sm:$0xff]
  %v55 = vld [vmem:[%s0 + $0x148] sm:$0xff]
  %v56 = vld [vmem:[%s0 + $0x150] sm:$0xff]
  %v57 = vld [vmem:[%s0 + $0x158] sm:$0xff]
  %v58 = vld [vmem:[%s0 + $0x160] sm:$0xff]
  %v59 = vld [vmem:[%s0 + $0x168] sm:$0xff]
  %v60 = vld [vmem:[%s0 + $0x170] sm:$0xff]
  %v61 = vld [vmem:[%s0 + $0x178] sm:$0xff]
  %v62 = vld [vmem:[%s0 + $0x180] sm:$0xff]
  %v63 = vld [vmem:[%s0 + $0x188] sm:$0xff]
  %v64 = vld [vmem:[%s0 + $0x190] sm:$0xff]
  %v65 = vld [vmem:[%s0 + $0x198] sm:$0xff]
  %v66 = vld [vmem:[%s0 + $0x1a0] sm:$0xff]
  %v67 = vld [vmem:[%s0 + $0x1a8] sm:$0xff]
  %v68 = vld [vmem:[%s0 + $0x1b0] sm:$0xff]
  %v69 = vld [vmem:[%s0 + $0x1b8] sm:$0xff]
  %v70 = vld [vmem:[%s0 + $0x1c0] sm:$0xff]
  %v71 = vld [vmem:[%s0 + $0x1c8] sm:$0xff]
  %v72 = vld [vmem:[%s0 + $0x1d0] sm:$0xff]
  %v73 = vld [vmem:[%s0 + $0x1d8] sm:$0xff]
  %v74 = vld [vmem:[%s0 + $0x1e0] sm:$0xff]
  %v75 = vld [vmem:[%s0 + $0x1e8] sm:$0xff]
  %v76 = vld [vmem:[%s0 + $0x1f0] sm:$0xff]
  %v77 = vld [vmem:[%s0 + $0x1f8] sm:$0xff]
  %v78 = vld [vmem:[%s0 + $0x200] sm:$0xff]
  %v79 = vld [vmem:[%s0 + $0x208] sm:$0xff]
  %v80 = vld [vmem:[%s0 + $0x210] sm:$0xff]
  %v81 = vld [vmem:[%s0 + $0x218] sm:$0xff]
  %v82 = vld [vmem:[%s0 + $0x220] sm:$0xff]
  %v83 = vld [vmem:[%s0 + $0x228] sm:$0xff]
  %v84 = vld [vmem:[%s0 + $0x230] sm:$0xff]
  %v85 = vld [vmem:[%s0 + $0x238] sm:$0xff]
  %v86 = vld [vmem:[%s0 + $0x240] sm:$0xff]
  %v87 = vld [vmem:[%s0 + $0x248] sm:$0xff]
  %v88 = vld [vmem:[%s0 + $0x250] sm:$0xff]
  %v89 = vld [vmem:[%s0 + $0x258] sm:$0xff]
  %v90 = vld [vmem:[%s0 + $0x260] sm:$0xff]
  %v91 = vld [vmem:[%s0 + $0x268] sm:$0xff]
  %v92 = vld [vmem:[%s0 + $0x270] sm:$0xff]
  %v93 = vld [vmem:[%s0 + $0x278] sm:$0xff]
  %v94 = vld [vmem:[%s0 + $0x280] sm:$0xff]
  %v95 = vld [vmem:[%s0 + $0x288] sm:$0xff]
  %v96 = vld [vmem:[%s0 + $0x290] sm:$0xff]
  %v97 = vld [vmem:[%s0 + $0x298] sm:$0xff]
  %v98 = vld [vmem:[%s0 + $0x2a0] sm:$0xff]
  %v99 = vld [vmem:[%s0 + $0x2a8] sm:$0xff]
  %v100 = vld [vmem:[%s0 + $0x2b0] sm:$0xff]
  %v101 = vld [vmem:[%s0 + $0x2b8] sm:$0xff]
  %v102 = vld [vmem:[%s0 + $0x2c0] sm:$0xff]
  %v103 = vld [vmem:[%s0 + $0x2c8] sm:$0xff]
  %v104 = vld [vmem:[%s0 + $0x2d0] sm:$0xff]
  %v105 = vld [vmem:[%s0 + $0x2d8] sm:$0xff]
  %v106 = vld [vmem:[%s0 + $0x2e0] sm:$0xff]
  %v107 = vld [vmem:[%s0 + $0x2e8] sm:$0xff]
  %v108 = vld [vmem:[%s0 + $0x2f0] sm:$0xff]
  %v109 = vld [vmem:[%s0 + $0x2f8] sm:$0xff]
  %v110 = vld [vmem:[%s0 + $0x300] sm:$0xff]
  %v111 = vld [vmem:[%s0 + $0x308] sm:$0xff]
  %v112 = vld [vmem:[%s0 + $0x310] sm:$0xff]
  %v113 = vld [vmem:[%s0 + $0x318] sm:$0xff]
  %v114 = vld [vmem:[%s0 + $0x320] sm:$0xff]
  %v115 = vld [vmem:[%s0 + $0x328] sm:$0xff]
  %v116 = vld [vmem:[%s0 + $0x330] sm:$0xff]
  %v117 = vld [vmem:[%s0 + $0x338] sm:$0xff]
  %v118 = vld [vmem:[%s0 + $0x340] sm:$0xff]
  %v119 = vld [vmem:[%s0 + $0x348] sm:$0xff]
  %v120 = vld [vmem:[%s0 + $0x350] sm:$0xff]
  %v121 = vld [vmem:[%s0 + $0x358] sm:$0xff]
  %v122 = vld [vmem:[%s0 + $0x360] sm:$0xff]
  %v123 = vld [vmem:[%s0 + $0x368] sm:$0xff]
  %v124 = vld [vmem:[%s0 + $0x370] sm:$0xff]
  %v125 = vld [vmem:[%s0 + $0x378] sm:$0xff]
  %v126 = vld [vmem:[%s0 + $0x380] sm:$0xff]
  %v127 = vld [vmem:[%s0 + $0x388] sm:$0xff]
  %v128 = vld [vmem:[%s0 + $0x390] sm:$0xff]
  %v129 = vld [vmem:[%s0 + $0x398] sm:$0xff]
  %v130 = vld [vmem:[%s0 + $0x3a0] sm:$0xff]
  %v131 = vld [vmem:[%s0 + $0x3a8] sm:$0xff]
  %v132 = vld [vmem:[%s0 + $0x3b0] sm:$0xff]
  %v133 = vld [vmem:[%s0 + $0x3b8] sm:$0xff]
  %v134 = vld [vmem:[%s0 + $0x3c0] sm:$0xff]
  %v135 = vld [vmem:[%s0 + $0x3c8] sm:$0xff]
  %v136 = vld [vmem:[%s0 + $0x3d0] sm:$0xff]
  %v137 = vld [vmem:[%s0 + $0x3d8] sm:$0xff]
  %v138 = vld [vmem:[%s0 + $0x3e0] sm:$0xff]
  %v139 = vld [vmem:[%s0 + $0x3e8] sm:$0xff]
  %v140 = vld [vmem:[%s0 + $0x3f0] sm:$0xff]
  %v141 = vld [vmem:[%s0 + $0x3f8] sm:$0xff]
  %v142 = vld [vmem:[%s0 + $0x400] sm:$0xff]
  %v143 = vld [vmem:[%s0 + $0x408] sm:$0xff]
  %v144 = vld [vmem:[%s0 + $0x410] sm:$0xff]
  %v145 = vld [vmem:[%s0 + $0x418] sm:$0xff]
  %v146 = vld [vmem:[%s0 + $0x420] sm:$0xff]
  %v147 = vld [vmem:[%s0 + $0x428] sm:$0xff]
  %v148 = vld [vmem:[%s0 + $0x430] sm:$0xff]
  %v149 = vld [vmem:[%s0 + $0x438] sm:$0xff]
  %v150 = vld [vmem:[%s0 + $0x440] sm:$0xff]
  %v151 = vld [vmem:[%s0 + $0x448] sm:$0xff]
  %v152 = vld [vmem:[%s0 + $0x450] sm:$0xff]
  %v153 = vld [vmem:[%s0 + $0x458] sm:$0xff]
  %v154 = vld [vmem:[%s0 + $0x460] sm:$0xff]
  %v155 = vld [vmem:[%s0 + $0x468] sm:$0xff]
  %v156 = vld [vmem:[%s0 + $0x470] sm:$0xff]
  %v157 = vld [vmem:[%s0 + $0x478] sm:$0xff]
  %v158 = vld [vmem:[%s0 + $0x480] sm:$0xff]
  %v159 = vld [vmem:[%s0 + $0x488] sm:$0xff]
  %v160 = vld [vmem:[%s0 + $0x490] sm:$0xff]
  %v161 = vld [vmem:[%s0 + $0x498] sm:$0xff]
  %v162 = vld [vmem:[%s0 + $0x4a0] sm:$0xff]
  %v163 = vld [vmem:[%s0 + $0x4a8] sm:$0xff]
  %v164 = vld [vmem:[%s0 + $0x4b0] sm:$0xff]
  %v165 = vld [vmem:[%s0 + $0x4b8] sm:$0xff]
  %v166 = vld [vmem:[%s0 + $0x4c0] sm:$0xff]
  %v167 = vld [vmem:[%s0 + $0x4c8] sm:$0xff]
  %v168 = vld [vmem:[%s0 + $0x4d0] sm:$0xff]
  %v169 = vld [vmem:[%s0 + $0x4d8] sm:$0xff]
  %v170 = vld [vmem:[%s0 + $0x4e0] sm:$0xff]
  %v171 = vld [vmem:[%s0 + $0x4e8] sm:$0xff]
  %v172 = vld [vmem:[%s0 + $0x4f0] sm:$0xff]
  %v173 = vld [vmem:[%s0 + $0x4f8] sm:$0xff]
  %v174 = vld [vmem:[%s0 + $0x500] sm:$0xff]
  %v175 = vld [vmem:[%s0 + $0x508] sm:$0xff]
  %v176 = vld [vmem:[%s0 + $0x510] sm:$0xff]
  %v177 = vld [vmem:[%s0 + $0x518] sm:$0xff]
  %v178 = vld [vmem:[%s0 + $0x520] sm:$0xff]
  %v179 = vld [vmem:[%s0 + $0x528] sm:$0xff]
  %v180 = vld [vmem:[%s0 + $0x530] sm:$0xff]
  %v181 = vld [vmem:[%s0 + $0x538] sm:$0xff]
  %v182 = vld [vmem:[%s0 + $0x540] sm:$0xff]
  %v183 = vld [vmem:[%s0 + $0x548] sm:$0xff]
  %v184 = vld [vmem:[%s0 + $0x550] sm:$0xff]
  %v185 = vld [vmem:[%s0 + $0x558] sm:$0xff]
  %v186 = vld [vmem:[%s0 + $0x560] sm:$0xff]
  %v187 = vld [vmem:[%s0 + $0x568] sm:$0xff]
  %v188 = vld [vmem:[%s0 + $0x570] sm:$0xff]
  %v189 = vld [vmem:[%s0 + $0x578] sm:$0xff]
  %v190 = vld [vmem:[%s0 + $0x580] sm:$0xff]
  %v191 = vld [vmem:[%s0 + $0x588] sm:$0xff]
  %v192 = vld [vmem:[%s0 + $0x590] sm:$0xff]
  %v193 = vld [vmem:[%s0 + $0x598] sm:$0xff]
  %v194 = vld [vmem:[%s1] sm:$0xff]
  %v195 = vld [vmem:[%s1 + $0x8] sm:$0xff]
  %v196 = vld [vmem:[%s1 + $0x10] sm:$0xff]
  %v197 = vld [vmem:[%s1 + $0x18] sm:$0xff]
  %v198 = vld [vmem:[%s1 + $0x20] sm:$0xff]
  %v199 = vld [vmem:[%s1 + $0x28] sm:$0xff]
  %v200 = vld [vmem:[%s1 + $0x30] sm:$0xff]
  %v201 = vld [vmem:[%s1 + $0x38] sm:$0xff]
  %v202 = vld [vmem:[%s1 + $0x40] sm:$0xff]
  %v203 = vld [vmem:[%s1 + $0x48] sm:$0xff]
  %v204 = vld [vmem:[%s1 + $0x50] sm:$0xff]
  %v205 = vld [vmem:[%s1 + $0x58] sm:$0xff]
  %v206 = vld [vmem:[%s1 + $0x60] sm:$0xff]
  %v207 = vld [vmem:[%s1 + $0x68] sm:$0xff]
  %v208 = vld [vmem:[%s1 + $0x70] sm:$0xff]
  %v209 = vld [vmem:[%s1 + $0x78] sm:$0xff]
  %v210 = vld [vmem:[%s1 + $0x80] sm:$0xff]
  %v211 = vld [vmem:[%s1 + $0x88] sm:$0xff]
  %v212 = vld [vmem:[%s1 + $0x90] sm:$0xff]
  %v213 = vld [vmem:[%s1 + $0x98] sm:$0xff]
  %v214 = vld [vmem:[%s1 + $0xa0] sm:$0xff]
  %v215 = vld [vmem:[%s1 + $0xa8] sm:$0xff]
  %v216 = vld [vmem:[%s1 + $0xb0] sm:$0xff]
  %v217 = vld [vmem:[%s1 + $0xb8] sm:$0xff]
  %v218 = vld [vmem:[%s1 + $0xc0] sm:$0xff]
  %v219 = vld [vmem:[%s1 + $0xc8] sm:$0xff]
  %v220 = vld [vmem:[%s1 + $0xd0] sm:$0xff]
  %v221 = vld [vmem:[%s1 + $0xd8] sm:$0xff]
  %v222 = vld [vmem:[%s1 + $0xe0] sm:$0xff]
  %v223 = vld [vmem:[%s1 + $0xe8] sm:$0xff]
  %v224 = vld [vmem:[%s1 + $0xf0] sm:$0xff]
  %v225 = vld [vmem:[%s1 + $0xf8] sm:$0xff]
  %v226 = vld [vmem:[%s1 + $0x100] sm:$0xff]
  %v227 = vld [vmem:[%s1 + $0x108] sm:$0xff]
  %v228 = vld [vmem:[%s1 + $0x110] sm:$0xff]
  %v229 = vld [vmem:[%s1 + $0x118] sm:$0xff]
  %v230 = vld [vmem:[%s1 + $0x120] sm:$0xff]
  %v231 = vld [vmem:[%s1 + $0x128] sm:$0xff]
  %v232 = vld [vmem:[%s1 + $0x130] sm:$0xff]
  %v233 = vld [vmem:[%s1 + $0x138] sm:$0xff]
  %v234 = vld [vmem:[%s1 + $0x140] sm:$0xff]
  %v235 = vld [vmem:[%s1 + $0x148] sm:$0xff]
  %v236 = vld [vmem:[%s1 + $0x150] sm:$0xff]
  %v237 = vld [vmem:[%s1 + $0x158] sm:$0xff]
  %v238 = vld [vmem:[%s1 + $0x160] sm:$0xff]
  %v239 = vld [vmem:[%s1 + $0x168] sm:$0xff]
  %v240 = vld [vmem:[%s1 + $0x170] sm:$0xff]
  %v241 = vld [vmem:[%s1 + $0x178] sm:$0xff]
  %v242 = vld [vmem:[%s1 + $0x180] sm:$0xff]
  %v243 = vld [vmem:[%s1 + $0x188] sm:$0xff]
  %v244 = vld [vmem:[%s1 + $0x190] sm:$0xff]
  %v245 = vld [vmem:[%s1 + $0x198] sm:$0xff]
  %v246 = vld [vmem:[%s1 + $0x1a0] sm:$0xff]
  %v247 = vld [vmem:[%s1 + $0x1a8] sm:$0xff]
  %v248 = vld [vmem:[%s1 + $0x1b0] sm:$0xff]
  %v249 = vld [vmem:[%s1 + $0x1b8] sm:$0xff]
  %v250 = vld [vmem:[%s1 + $0x1c0] sm:$0xff]
  %v251 = vld [vmem:[%s1 + $0x1c8] sm:$0xff]
  %v252 = vld [vmem:[%s1 + $0x1d0] sm:$0xff]
  %v253 = vld [vmem:[%s1 + $0x1d8] sm:$0xff]
  %v254 = vld [vmem:[%s1 + $0x1e0] sm:$0xff]
  %v255 = vld [vmem:[%s1 + $0x1e8] sm:$0xff]
  %v256 = vld [vmem:[%s1 + $0x1f0] sm:$0xff]
  %v257 = vld [vmem:[%s1 + $0x1f8] sm:$0xff]
  %v258 = vld [vmem:[%s1 + $0x200] sm:$0xff]
  %v259 = vld [vmem:[%s1 + $0x208] sm:$0xff]
  %v260 = vld [vmem:[%s1 + $0x210] sm:$0xff]
  %v261 = vld [vmem:[%s1 + $0x218] sm:$0xff]
  %v262 = vld [vmem:[%s1 + $0x220] sm:$0xff]
  %v263 = vld [vmem:[%s1 + $0x228] sm:$0xff]
  %v264 = vld [vmem:[%s1 + $0x230] sm:$0xff]
  %v265 = vld [vmem:[%s1 + $0x238] sm:$0xff]
  %v266 = vld [vmem:[%s2] sm:$0x1]
  %v268 = vlaneseq
  %v269 = vshrl.u32 %v268, 7
  %v270 = vsub.s32 0, %v269
  %v271 = vrot.slane %v266, %v270
  %vm273 = vcmask 523264
  %v275 = vsel %vm273, %v18, 0
  %v278 = vsel %vm273, %v23, 0
  %v281 = vsel %vm273, %v28, 0
  %v284 = vsel %vm273, %v33, 0
  %v287 = vsel %vm273, %v38, 0
  %v290 = vsel %vm273, %v43, 0
  %v293 = vsel %vm273, %v48, 0
  %v296 = vsel %vm273, %v53, 0
  %v299 = vsel %vm273, %v58, 0
  %v302 = vsel %vm273, %v63, 0
  %v305 = vsel %vm273, %v68, 0
  %v308 = vsel %vm273, %v73, 0
  %v311 = vsel %vm273, %v78, 0
  %v314 = vsel %vm273, %v83, 0
  %v317 = vsel %vm273, %v88, 0
  %v320 = vsel %vm273, %v93, 0
  %v323 = vsel %vm273, %v98, 0
  %v326 = vsel %vm273, %v103, 0
  %v329 = vsel %vm273, %v108, 0
  %v332 = vsel %vm273, %v113, 0
  %v335 = vsel %vm273, %v118, 0
  %v338 = vsel %vm273, %v123, 0
  %v341 = vsel %vm273, %v128, 0
  %v344 = vsel %vm273, %v133, 0
  %v347 = vsel %vm273, %v138, 0
  %v350 = vsel %vm273, %v143, 0
  %v353 = vsel %vm273, %v148, 0
  %v356 = vsel %vm273, %v153, 0
  %v359 = vsel %vm273, %v158, 0
  %v362 = vsel %vm273, %v163, 0
  %v365 = vsel %vm273, %v168, 0
  %v368 = vsel %vm273, %v173, 0
  %v371 = vsel %vm273, %v178, 0
  %v374 = vsel %vm273, %v183, 0
  %v377 = vsel %vm273, %v188, 0
  %v380 = vsel %vm273, %v193, 0
  %382 = vmatprep.subr.mxu0 0.0
  %383 = vmatpush1.msra.mxu0 %v209
  %384 = vmatprep.subr.mxu0 0.0
  %385 = vmatpush1.msra.mxu0 %v208
  %386 = vmatprep.subr.mxu0 0.0
  %387 = vmatpush1.msra.mxu0 %v207
  %388 = vmatprep.subr.mxu0 0.0
  %389 = vmatpush1.msra.mxu0 %v206
  %390 = vmatprep.subr.mxu0 0.0
  %391 = vmatpush1.msra.mxu0 %v205
  %392 = vmatprep.subr.mxu0 0.0
  %393 = vmatpush1.msra.mxu0 %v204
  %394 = vmatprep.subr.mxu0 0.0
  %395 = vmatpush1.msra.mxu0 %v203
  %396 = vmatprep.subr.mxu0 0.0
  %397 = vmatpush1.msra.mxu0 %v202
  %398 = vmatprep.subr.mxu0 0.0
  %399 = vmatpush1.msra.mxu0 %v201
  %400 = vmatprep.subr.mxu0 0.0
  %401 = vmatpush1.msra.mxu0 %v200
  %402 = vmatprep.subr.mxu0 0.0
  %403 = vmatpush1.msra.mxu0 %v199
  %404 = vmatprep.subr.mxu0 0.0
  %405 = vmatpush1.msra.mxu0 %v198
  %406 = vmatprep.subr.mxu0 0.0
  %407 = vmatpush1.msra.mxu0 %v197
  %408 = vmatprep.subr.mxu0 0.0
  %409 = vmatpush1.msra.mxu0 %v196
  %410 = vmatprep.subr.mxu0 0.0
  %411 = vmatpush1.msra.mxu0 %v195
  %412 = vmatprep.subr.mxu0 0.0
  %413 = vmatpush1.msra.mxu0 %v194
  %414 = vmatprep.subr.mxu0 0.0
  %415 = vmatpush2.msra.mxu0 %v225
  %416 = vmatprep.subr.mxu0 0.0
  %417 = vmatpush2.msra.mxu0 %v224
  %418 = vmatprep.subr.mxu0 0.0
  %419 = vmatpush2.msra.mxu0 %v223
  %420 = vmatprep.subr.mxu0 0.0
  %421 = vmatpush2.msra.mxu0 %v222
  %422 = vmatprep.subr.mxu0 0.0
  %423 = vmatpush2.msra.mxu0 %v221
  %424 = vmatprep.subr.mxu0 0.0
  %425 = vmatpush2.msra.mxu0 %v220
  %426 = vmatprep.subr.mxu0 0.0
  %427 = vmatpush2.msra.mxu0 %v219
  %428 = vmatprep.subr.mxu0 0.0
  %429 = vmatpush2.msra.mxu0 %v218
  %430 = vmatprep.subr.mxu0 0.0
  %431 = vmatpush2.msra.mxu0 %v217
  %432 = vmatprep.subr.mxu0 0.0
  %433 = vmatpush2.msra.mxu0 %v216
  %434 = vmatprep.subr.mxu0 0.0
  %435 = vmatpush2.msra.mxu0 %v215
  %436 = vmatprep.subr.mxu0 0.0
  %437 = vmatpush2.msra.mxu0 %v214
  %438 = vmatprep.subr.mxu0 0.0
  %439 = vmatpush2.msra.mxu0 %v213
  %440 = vmatprep.subr.mxu0 0.0
  %441 = vmatpush2.msra.mxu0 %v212
  %442 = vmatprep.subr.mxu0 0.0
  %443 = vmatpush2.msra.mxu0 %v211
  %444 = vmatprep.subr.mxu0 0.0
  %445 = vmatpush2.msra.mxu0 %v210
  %446 = vmatprep.mubr.f32.mxu0 %v15
  %447 = vmatmul.mubr.f32.gmra.mxu0 %v14
  %v448 = vpop.f32.mrf.mxu0
  %v449 = vadd.f32 %v271, %v448
  %v450 = vpop.f32.mrf.mxu0
  %451 = vmatprep.mubr.f32.mxu0 %v20
  %452 = vmatmul.mubr.f32.gmra.mxu0 %v19
  %v453 = vpop.f32.mrf.mxu0
  %v454 = vadd.f32 %v271, %v453
  %v455 = vpop.f32.mrf.mxu0
  %456 = vmatprep.mubr.f32.mxu0 %v25
  %457 = vmatmul.mubr.f32.gmra.mxu0 %v24
  %v458 = vpop.f32.mrf.mxu0
  %v459 = vadd.f32 %v271, %v458
  %v460 = vpop.f32.mrf.mxu0
  %461 = vmatprep.mubr.f32.mxu0 %v30
  %462 = vmatmul.mubr.f32.gmra.mxu0 %v29
  %v463 = vpop.f32.mrf.mxu0
  %v464 = vadd.f32 %v271, %v463
  %v465 = vpop.f32.mrf.mxu0
  %466 = vmatprep.mubr.f32.mxu0 %v35
  %467 = vmatmul.mubr.f32.gmra.mxu0 %v34
  %v468 = vpop.f32.mrf.mxu0
  %v469 = vadd.f32 %v271, %v468
  %v470 = vpop.f32.mrf.mxu0
  %471 = vmatprep.mubr.f32.mxu0 %v40
  %472 = vmatmul.mubr.f32.gmra.mxu0 %v39
  %v473 = vpop.f32.mrf.mxu0
  %v474 = vadd.f32 %v271, %v473
  %v475 = vpop.f32.mrf.mxu0
  %476 = vmatprep.mubr.f32.mxu0 %v45
  %477 = vmatmul.mubr.f32.gmra.mxu0 %v44
  %v478 = vpop.f32.mrf.mxu0
  %v479 = vadd.f32 %v271, %v478
  %v480 = vpop.f32.mrf.mxu0
  %481 = vmatprep.mubr.f32.mxu0 %v50
  %482 = vmatmul.mubr.f32.gmra.mxu0 %v49
  %v483 = vpop.f32.mrf.mxu0
  %v484 = vadd.f32 %v271, %v483
  %v485 = vpop.f32.mrf.mxu0
  %486 = vmatprep.mubr.f32.mxu0 %v55
  %487 = vmatmul.mubr.f32.gmra.mxu0 %v54
  %v488 = vpop.f32.mrf.mxu0
  %v489 = vadd.f32 %v271, %v488
  %v490 = vpop.f32.mrf.mxu0
  %491 = vmatprep.mubr.f32.mxu0 %v60
  %492 = vmatmul.mubr.f32.gmra.mxu0 %v59
  %v493 = vpop.f32.mrf.mxu0
  %v494 = vadd.f32 %v271, %v493
  %v495 = vpop.f32.mrf.mxu0
  %496 = vmatprep.mubr.f32.mxu0 %v65
  %497 = vmatmul.mubr.f32.gmra.mxu0 %v64
  %v498 = vpop.f32.mrf.mxu0
  %v499 = vadd.f32 %v271, %v498
  %v500 = vpop.f32.mrf.mxu0
  %501 = vmatprep.mubr.f32.mxu0 %v70
  %502 = vmatmul.mubr.f32.gmra.mxu0 %v69
  %v503 = vpop.f32.mrf.mxu0
  %v504 = vadd.f32 %v271, %v503
  %v505 = vpop.f32.mrf.mxu0
  %506 = vmatprep.mubr.f32.mxu0 %v75
  %507 = vmatmul.mubr.f32.gmra.mxu0 %v74
  %v508 = vpop.f32.mrf.mxu0
  %v509 = vadd.f32 %v271, %v508
  %v510 = vpop.f32.mrf.mxu0
  %511 = vmatprep.mubr.f32.mxu0 %v80
  %512 = vmatmul.mubr.f32.gmra.mxu0 %v79
  %v513 = vpop.f32.mrf.mxu0
  %v514 = vadd.f32 %v271, %v513
  %v515 = vpop.f32.mrf.mxu0
  %516 = vmatprep.mubr.f32.mxu0 %v85
  %517 = vmatmul.mubr.f32.gmra.mxu0 %v84
  %v518 = vpop.f32.mrf.mxu0
  %v519 = vadd.f32 %v271, %v518
  %v520 = vpop.f32.mrf.mxu0
  %521 = vmatprep.mubr.f32.mxu0 %v90
  %522 = vmatmul.mubr.f32.gmra.mxu0 %v89
  %v523 = vpop.f32.mrf.mxu0
  %v524 = vadd.f32 %v271, %v523
  %v525 = vpop.f32.mrf.mxu0
  %526 = vmatprep.mubr.f32.mxu0 %v95
  %527 = vmatmul.mubr.f32.gmra.mxu0 %v94
  %v528 = vpop.f32.mrf.mxu0
  %v529 = vadd.f32 %v271, %v528
  %v530 = vpop.f32.mrf.mxu0
  %531 = vmatprep.mubr.f32.mxu0 %v100
  %532 = vmatmul.mubr.f32.gmra.mxu0 %v99
  %v533 = vpop.f32.mrf.mxu0
  %v534 = vadd.f32 %v271, %v533
  %v535 = vpop.f32.mrf.mxu0
  %536 = vmatprep.mubr.f32.mxu0 %v105
  %537 = vmatmul.mubr.f32.gmra.mxu0 %v104
  %v538 = vpop.f32.mrf.mxu0
  %v539 = vadd.f32 %v271, %v538
  %v540 = vpop.f32.mrf.mxu0
  %541 = vmatprep.mubr.f32.mxu0 %v110
  %542 = vmatmul.mubr.f32.gmra.mxu0 %v109
  %v543 = vpop.f32.mrf.mxu0
  %v544 = vadd.f32 %v271, %v543
  %v545 = vpop.f32.mrf.mxu0
  %546 = vmatprep.mubr.f32.mxu0 %v115
  %547 = vmatmul.mubr.f32.gmra.mxu0 %v114
  %v548 = vpop.f32.mrf.mxu0
  %v549 = vadd.f32 %v271, %v548
  %v550 = vpop.f32.mrf.mxu0
  %551 = vmatprep.mubr.f32.mxu0 %v120
  %552 = vmatmul.mubr.f32.gmra.mxu0 %v119
  %v553 = vpop.f32.mrf.mxu0
  %v554 = vadd.f32 %v271, %v553
  %v555 = vpop.f32.mrf.mxu0
  %556 = vmatprep.mubr.f32.mxu0 %v125
  %557 = vmatmul.mubr.f32.gmra.mxu0 %v124
  %v558 = vpop.f32.mrf.mxu0
  %v559 = vadd.f32 %v271, %v558
  %v560 = vpop.f32.mrf.mxu0
  %561 = vmatprep.mubr.f32.mxu0 %v130
  %562 = vmatmul.mubr.f32.gmra.mxu0 %v129
  %v563 = vpop.f32.mrf.mxu0
  %v564 = vadd.f32 %v271, %v563
  %v565 = vpop.f32.mrf.mxu0
  %566 = vmatprep.mubr.f32.mxu0 %v135
  %567 = vmatmul.mubr.f32.gmra.mxu0 %v134
  %v568 = vpop.f32.mrf.mxu0
  %v569 = vadd.f32 %v271, %v568
  %v570 = vpop.f32.mrf.mxu0
  %571 = vmatprep.mubr.f32.mxu0 %v140
  %572 = vmatmul.mubr.f32.gmra.mxu0 %v139
  %v573 = vpop.f32.mrf.mxu0
  %v574 = vadd.f32 %v271, %v573
  %v575 = vpop.f32.mrf.mxu0
  %576 = vmatprep.mubr.f32.mxu0 %v145
  %577 = vmatmul.mubr.f32.gmra.mxu0 %v144
  %v578 = vpop.f32.mrf.mxu0
  %v579 = vadd.f32 %v271, %v578
  %v580 = vpop.f32.mrf.mxu0
  %581 = vmatprep.mubr.f32.mxu0 %v150
  %582 = vmatmul.mubr.f32.gmra.mxu0 %v149
  %v583 = vpop.f32.mrf.mxu0
  %v584 = vadd.f32 %v271, %v583
  %v585 = vpop.f32.mrf.mxu0
  %586 = vmatprep.mubr.f32.mxu0 %v155
  %587 = vmatmul.mubr.f32.gmra.mxu0 %v154
  %v588 = vpop.f32.mrf.mxu0
  %v589 = vadd.f32 %v271, %v588
  %v590 = vpop.f32.mrf.mxu0
  %591 = vmatprep.mubr.f32.mxu0 %v160
  %592 = vmatmul.mubr.f32.gmra.mxu0 %v159
  %v593 = vpop.f32.mrf.mxu0
  %v594 = vadd.f32 %v271, %v593
  %v595 = vpop.f32.mrf.mxu0
  %596 = vmatprep.mubr.f32.mxu0 %v165
  %597 = vmatmul.mubr.f32.gmra.mxu0 %v164
  %v598 = vpop.f32.mrf.mxu0
  %v599 = vadd.f32 %v271, %v598
  %v600 = vpop.f32.mrf.mxu0
  %601 = vmatprep.mubr.f32.mxu0 %v170
  %602 = vmatmul.mubr.f32.gmra.mxu0 %v169
  %v603 = vpop.f32.mrf.mxu0
  %v604 = vadd.f32 %v271, %v603
  %v605 = vpop.f32.mrf.mxu0
  %606 = vmatprep.mubr.f32.mxu0 %v175
  %607 = vmatmul.mubr.f32.gmra.mxu0 %v174
  %v608 = vpop.f32.mrf.mxu0
  %v609 = vadd.f32 %v271, %v608
  %v610 = vpop.f32.mrf.mxu0
  %611 = vmatprep.mubr.f32.mxu0 %v180
  %612 = vmatmul.mubr.f32.gmra.mxu0 %v179
  %v613 = vpop.f32.mrf.mxu0
  %v614 = vadd.f32 %v271, %v613
  %v615 = vpop.f32.mrf.mxu0
  %616 = vmatprep.mubr.f32.mxu0 %v185
  %617 = vmatmul.mubr.f32.gmra.mxu0 %v184
  %v618 = vpop.f32.mrf.mxu0
  %v619 = vadd.f32 %v271, %v618
  %v620 = vpop.f32.mrf.mxu0
  %621 = vmatprep.mubr.f32.mxu0 %v190
  %622 = vmatmul.mubr.f32.gmra.mxu0 %v189
  %v623 = vpop.f32.mrf.mxu0
  %v624 = vadd.f32 %v271, %v623
  %v625 = vpop.f32.mrf.mxu0
  %626 = vdwg.mxu0
  %627 = vmatprep.subr.mxu0 0.0
  %628 = vmatpush1.msra.mxu0 %v241
  %629 = vmatprep.subr.mxu0 0.0
  %630 = vmatpush1.msra.mxu0 %v240
  %631 = vmatprep.subr.mxu0 0.0
  %632 = vmatpush1.msra.mxu0 %v239
  %633 = vmatprep.subr.mxu0 0.0
  %634 = vmatpush1.msra.mxu0 %v238
  %635 = vmatprep.subr.mxu0 0.0
  %636 = vmatpush1.msra.mxu0 %v237
  %637 = vmatprep.subr.mxu0 0.0
  %638 = vmatpush1.msra.mxu0 %v236
  %639 = vmatprep.subr.mxu0 0.0
  %640 = vmatpush1.msra.mxu0 %v235
  %641 = vmatprep.subr.mxu0 0.0
  %642 = vmatpush1.msra.mxu0 %v234
  %643 = vmatprep.subr.mxu0 0.0
  %644 = vmatpush1.msra.mxu0 %v233
  %645 = vmatprep.subr.mxu0 0.0
  %646 = vmatpush1.msra.mxu0 %v232
  %647 = vmatprep.subr.mxu0 0.0
  %648 = vmatpush1.msra.mxu0 %v231
  %649 = vmatprep.subr.mxu0 0.0
  %650 = vmatpush1.msra.mxu0 %v230
  %651 = vmatprep.subr.mxu0 0.0
  %652 = vmatpush1.msra.mxu0 %v229
  %653 = vmatprep.subr.mxu0 0.0
  %654 = vmatpush1.msra.mxu0 %v228
  %655 = vmatprep.subr.mxu0 0.0
  %656 = vmatpush1.msra.mxu0 %v227
  %657 = vmatprep.subr.mxu0 0.0
  %658 = vmatpush1.msra.mxu0 %v226
  %659 = vmatprep.subr.mxu0 0.0
  %660 = vmatpush2.msra.mxu0 %v257
  %661 = vmatprep.subr.mxu0 0.0
  %662 = vmatpush2.msra.mxu0 %v256
  %663 = vmatprep.subr.mxu0 0.0
  %664 = vmatpush2.msra.mxu0 %v255
  %665 = vmatprep.subr.mxu0 0.0
  %666 = vmatpush2.msra.mxu0 %v254
  %667 = vmatprep.subr.mxu0 0.0
  %668 = vmatpush2.msra.mxu0 %v253
  %669 = vmatprep.subr.mxu0 0.0
  %670 = vmatpush2.msra.mxu0 %v252
  %671 = vmatprep.subr.mxu0 0.0
  %672 = vmatpush2.msra.mxu0 %v251
  %673 = vmatprep.subr.mxu0 0.0
  %674 = vmatpush2.msra.mxu0 %v250
  %675 = vmatprep.subr.mxu0 0.0
  %676 = vmatpush2.msra.mxu0 %v249
  %677 = vmatprep.subr.mxu0 0.0
  %678 = vmatpush2.msra.mxu0 %v248
  %679 = vmatprep.subr.mxu0 0.0
  %680 = vmatpush2.msra.mxu0 %v247
  %681 = vmatprep.subr.mxu0 0.0
  %682 = vmatpush2.msra.mxu0 %v246
  %683 = vmatprep.subr.mxu0 0.0
  %684 = vmatpush2.msra.mxu0 %v245
  %685 = vmatprep.subr.mxu0 0.0
  %686 = vmatpush2.msra.mxu0 %v244
  %687 = vmatprep.subr.mxu0 0.0
  %688 = vmatpush2.msra.mxu0 %v243
  %689 = vmatprep.subr.mxu0 0.0
  %690 = vmatpush2.msra.mxu0 %v242
  %691 = vmatprep.mubr.f32.mxu0 %v17
  %692 = vmatmul.mubr.f32.gmra.mxu0 %v16
  %v693 = vpop.f32.mrf.mxu0
  %v694 = vadd.f32 %v449, %v693
  %v695 = vpop.f32.mrf.mxu0
  %696 = vmatprep.mubr.f32.mxu0 %v22
  %697 = vmatmul.mubr.f32.gmra.mxu0 %v21
  %v698 = vpop.f32.mrf.mxu0
  %v699 = vadd.f32 %v454, %v698
  %v700 = vpop.f32.mrf.mxu0
  %701 = vmatprep.mubr.f32.mxu0 %v27
  %702 = vmatmul.mubr.f32.gmra.mxu0 %v26
  %v703 = vpop.f32.mrf.mxu0
  %v704 = vadd.f32 %v459, %v703
  %v705 = vpop.f32.mrf.mxu0
  %706 = vmatprep.mubr.f32.mxu0 %v32
  %707 = vmatmul.mubr.f32.gmra.mxu0 %v31
  %v708 = vpop.f32.mrf.mxu0
  %v709 = vadd.f32 %v464, %v708
  %v710 = vpop.f32.mrf.mxu0
  %711 = vmatprep.mubr.f32.mxu0 %v37
  %712 = vmatmul.mubr.f32.gmra.mxu0 %v36
  %v713 = vpop.f32.mrf.mxu0
  %v714 = vadd.f32 %v469, %v713
  %v715 = vpop.f32.mrf.mxu0
  %716 = vmatprep.mubr.f32.mxu0 %v42
  %717 = vmatmul.mubr.f32.gmra.mxu0 %v41
  %v718 = vpop.f32.mrf.mxu0
  %v719 = vadd.f32 %v474, %v718
  %v720 = vpop.f32.mrf.mxu0
  %721 = vmatprep.mubr.f32.mxu0 %v47
  %722 = vmatmul.mubr.f32.gmra.mxu0 %v46
  %v723 = vpop.f32.mrf.mxu0
  %v724 = vadd.f32 %v479, %v723
  %v725 = vpop.f32.mrf.mxu0
  %726 = vmatprep.mubr.f32.mxu0 %v52
  %727 = vmatmul.mubr.f32.gmra.mxu0 %v51
  %v728 = vpop.f32.mrf.mxu0
  %v729 = vadd.f32 %v484, %v728
  %v730 = vpop.f32.mrf.mxu0
  %731 = vmatprep.mubr.f32.mxu0 %v57
  %732 = vmatmul.mubr.f32.gmra.mxu0 %v56
  %v733 = vpop.f32.mrf.mxu0
  %v734 = vadd.f32 %v489, %v733
  %v735 = vpop.f32.mrf.mxu0
  %736 = vmatprep.mubr.f32.mxu0 %v62
  %737 = vmatmul.mubr.f32.gmra.mxu0 %v61
  %v738 = vpop.f32.mrf.mxu0
  %v739 = vadd.f32 %v494, %v738
  %v740 = vpop.f32.mrf.mxu0
  %741 = vmatprep.mubr.f32.mxu0 %v67
  %742 = vmatmul.mubr.f32.gmra.mxu0 %v66
  %v743 = vpop.f32.mrf.mxu0
  %v744 = vadd.f32 %v499, %v743
  %v745 = vpop.f32.mrf.mxu0
  %746 = vmatprep.mubr.f32.mxu0 %v72
  %747 = vmatmul.mubr.f32.gmra.mxu0 %v71
  %v748 = vpop.f32.mrf.mxu0
  %v749 = vadd.f32 %v504, %v748
  %v750 = vpop.f32.mrf.mxu0
  %751 = vmatprep.mubr.f32.mxu0 %v77
  %752 = vmatmul.mubr.f32.gmra.mxu0 %v76
  %v753 = vpop.f32.mrf.mxu0
  %v754 = vadd.f32 %v509, %v753
  %v755 = vpop.f32.mrf.mxu0
  %756 = vmatprep.mubr.f32.mxu0 %v82
  %757 = vmatmul.mubr.f32.gmra.mxu0 %v81
  %v758 = vpop.f32.mrf.mxu0
  %v759 = vadd.f32 %v514, %v758
  %v760 = vpop.f32.mrf.mxu0
  %761 = vmatprep.mubr.f32.mxu0 %v87
  %762 = vmatmul.mubr.f32.gmra.mxu0 %v86
  %v763 = vpop.f32.mrf.mxu0
  %v764 = vadd.f32 %v519, %v763
  %v765 = vpop.f32.mrf.mxu0
  %766 = vmatprep.mubr.f32.mxu0 %v92
  %767 = vmatmul.mubr.f32.gmra.mxu0 %v91
  %v768 = vpop.f32.mrf.mxu0
  %v769 = vadd.f32 %v524, %v768
  %v770 = vpop.f32.mrf.mxu0
  %771 = vmatprep.mubr.f32.mxu0 %v97
  %772 = vmatmul.mubr.f32.gmra.mxu0 %v96
  %v773 = vpop.f32.mrf.mxu0
  %v774 = vadd.f32 %v529, %v773
  %v775 = vpop.f32.mrf.mxu0
  %776 = vmatprep.mubr.f32.mxu0 %v102
  %777 = vmatmul.mubr.f32.gmra.mxu0 %v101
  %v778 = vpop.f32.mrf.mxu0
  %v779 = vadd.f32 %v534, %v778
  %v780 = vpop.f32.mrf.mxu0
  %781 = vmatprep.mubr.f32.mxu0 %v107
  %782 = vmatmul.mubr.f32.gmra.mxu0 %v106
  %v783 = vpop.f32.mrf.mxu0
  %v784 = vadd.f32 %v539, %v783
  %v785 = vpop.f32.mrf.mxu0
  %786 = vmatprep.mubr.f32.mxu0 %v112
  %787 = vmatmul.mubr.f32.gmra.mxu0 %v111
  %v788 = vpop.f32.mrf.mxu0
  %v789 = vadd.f32 %v544, %v788
  %v790 = vpop.f32.mrf.mxu0
  %791 = vmatprep.mubr.f32.mxu0 %v117
  %792 = vmatmul.mubr.f32.gmra.mxu0 %v116
  %v793 = vpop.f32.mrf.mxu0
  %v794 = vadd.f32 %v549, %v793
  %v795 = vpop.f32.mrf.mxu0
  %796 = vmatprep.mubr.f32.mxu0 %v122
  %797 = vmatmul.mubr.f32.gmra.mxu0 %v121
  %v798 = vpop.f32.mrf.mxu0
  %v799 = vadd.f32 %v554, %v798
  %v800 = vpop.f32.mrf.mxu0
  %801 = vmatprep.mubr.f32.mxu0 %v127
  %802 = vmatmul.mubr.f32.gmra.mxu0 %v126
  %v803 = vpop.f32.mrf.mxu0
  %v804 = vadd.f32 %v559, %v803
  %v805 = vpop.f32.mrf.mxu0
  %806 = vmatprep.mubr.f32.mxu0 %v132
  %807 = vmatmul.mubr.f32.gmra.mxu0 %v131
  %v808 = vpop.f32.mrf.mxu0
  %v809 = vadd.f32 %v564, %v808
  %v810 = vpop.f32.mrf.mxu0
  %811 = vmatprep.mubr.f32.mxu0 %v137
  %812 = vmatmul.mubr.f32.gmra.mxu0 %v136
  %v813 = vpop.f32.mrf.mxu0
  %v814 = vadd.f32 %v569, %v813
  %v815 = vpop.f32.mrf.mxu0
  %816 = vmatprep.mubr.f32.mxu0 %v142
  %817 = vmatmul.mubr.f32.gmra.mxu0 %v141
  %v818 = vpop.f32.mrf.mxu0
  %v819 = vadd.f32 %v574, %v818
  %v820 = vpop.f32.mrf.mxu0
  %821 = vmatprep.mubr.f32.mxu0 %v147
  %822 = vmatmul.mubr.f32.gmra.mxu0 %v146
  %v823 = vpop.f32.mrf.mxu0
  %v824 = vadd.f32 %v579, %v823
  %v825 = vpop.f32.mrf.mxu0
  %826 = vmatprep.mubr.f32.mxu0 %v152
  %827 = vmatmul.mubr.f32.gmra.mxu0 %v151
  %v828 = vpop.f32.mrf.mxu0
  %v829 = vadd.f32 %v584, %v828
  %v830 = vpop.f32.mrf.mxu0
  %831 = vmatprep.mubr.f32.mxu0 %v157
  %832 = vmatmul.mubr.f32.gmra.mxu0 %v156
  %v833 = vpop.f32.mrf.mxu0
  %v834 = vadd.f32 %v589, %v833
  %v835 = vpop.f32.mrf.mxu0
  %836 = vmatprep.mubr.f32.mxu0 %v162
  %837 = vmatmul.mubr.f32.gmra.mxu0 %v161
  %v838 = vpop.f32.mrf.mxu0
  %v839 = vadd.f32 %v594, %v838
  %v840 = vpop.f32.mrf.mxu0
  %841 = vmatprep.mubr.f32.mxu0 %v167
  %842 = vmatmul.mubr.f32.gmra.mxu0 %v166
  %v843 = vpop.f32.mrf.mxu0
  %v844 = vadd.f32 %v599, %v843
  %v845 = vpop.f32.mrf.mxu0
  %846 = vmatprep.mubr.f32.mxu0 %v172
  %847 = vmatmul.mubr.f32.gmra.mxu0 %v171
  %v848 = vpop.f32.mrf.mxu0
  %v849 = vadd.f32 %v604, %v848
  %v850 = vpop.f32.mrf.mxu0
  %851 = vmatprep.mubr.f32.mxu0 %v177
  %852 = vmatmul.mubr.f32.gmra.mxu0 %v176
  %v853 = vpop.f32.mrf.mxu0
  %v854 = vadd.f32 %v609, %v853
  %v855 = vpop.f32.mrf.mxu0
  %856 = vmatprep.mubr.f32.mxu0 %v182
  %857 = vmatmul.mubr.f32.gmra.mxu0 %v181
  %v858 = vpop.f32.mrf.mxu0
  %v859 = vadd.f32 %v614, %v858
  %v860 = vpop.f32.mrf.mxu0
  %861 = vmatprep.mubr.f32.mxu0 %v187
  %862 = vmatmul.mubr.f32.gmra.mxu0 %v186
  %v863 = vpop.f32.mrf.mxu0
  %v864 = vadd.f32 %v619, %v863
  %v865 = vpop.f32.mrf.mxu0
  %866 = vmatprep.mubr.f32.mxu0 %v192
  %867 = vmatmul.mubr.f32.gmra.mxu0 %v191
  %v868 = vpop.f32.mrf.mxu0
  %v869 = vadd.f32 %v624, %v868
  %v870 = vpop.f32.mrf.mxu0
  %871 = vdwg.mxu0
  %872 = vmatprep.subr.mxu0 0.0
  %873 = vmatpush1.msra.mxu0 0.0
  %874 = vmatprep.subr.mxu0 0.0
  %875 = vmatpush1.msra.mxu0 0.0
  %876 = vmatprep.subr.mxu0 0.0
  %877 = vmatpush1.msra.mxu0 0.0
  %878 = vmatprep.subr.mxu0 0.0
  %879 = vmatpush1.msra.mxu0 0.0
  %880 = vmatprep.subr.mxu0 0.0
  %881 = vmatpush1.msra.mxu0 0.0
  %882 = vmatprep.subr.mxu0 0.0
  %883 = vmatpush1.msra.mxu0 0.0
  %884 = vmatprep.subr.mxu0 0.0
  %885 = vmatpush1.msra.mxu0 0.0
  %886 = vmatprep.subr.mxu0 0.0
  %887 = vmatpush1.msra.mxu0 0.0
  %888 = vmatprep.subr.mxu0 0.0
  %889 = vmatpush1.msra.mxu0 %v265
  %890 = vmatprep.subr.mxu0 0.0
  %891 = vmatpush1.msra.mxu0 %v264
  %892 = vmatprep.subr.mxu0 0.0
  %893 = vmatpush1.msra.mxu0 %v263
  %894 = vmatprep.subr.mxu0 0.0
  %895 = vmatpush1.msra.mxu0 %v262
  %896 = vmatprep.subr.mxu0 0.0
  %897 = vmatpush1.msra.mxu0 %v261
  %898 = vmatprep.subr.mxu0 0.0
  %899 = vmatpush1.msra.mxu0 %v260
  %900 = vmatprep.subr.mxu0 0.0
  %901 = vmatpush1.msra.mxu0 %v259
  %902 = vmatprep.subr.mxu0 0.0
  %903 = vmatpush1.msra.mxu0 %v258
  %904 = vmatprep.subr.mxu0 0.0
  %905 = vmatpush2.msra.mxu0 0.0
  %906 = vmatprep.subr.mxu0 0.0
  %907 = vmatpush2.msra.mxu0 0.0
  %908 = vmatprep.subr.mxu0 0.0
  %909 = vmatpush2.msra.mxu0 0.0
  %910 = vmatprep.subr.mxu0 0.0
  %911 = vmatpush2.msra.mxu0 0.0
  %912 = vmatprep.subr.mxu0 0.0
  %913 = vmatpush2.msra.mxu0 0.0
  %914 = vmatprep.subr.mxu0 0.0
  %915 = vmatpush2.msra.mxu0 0.0
  %916 = vmatprep.subr.mxu0 0.0
  %917 = vmatpush2.msra.mxu0 0.0
  %918 = vmatprep.subr.mxu0 0.0
  %919 = vmatpush2.msra.mxu0 0.0
  %920 = vmatprep.subr.mxu0 0.0
  %921 = vmatpush2.msra.mxu0 0.0
  %922 = vmatprep.subr.mxu0 0.0
  %923 = vmatpush2.msra.mxu0 0.0
  %924 = vmatprep.subr.mxu0 0.0
  %925 = vmatpush2.msra.mxu0 0.0
  %926 = vmatprep.subr.mxu0 0.0
  %927 = vmatpush2.msra.mxu0 0.0
  %928 = vmatprep.subr.mxu0 0.0
  %929 = vmatpush2.msra.mxu0 0.0
  %930 = vmatprep.subr.mxu0 0.0
  %931 = vmatpush2.msra.mxu0 0.0
  %932 = vmatprep.subr.mxu0 0.0
  %933 = vmatpush2.msra.mxu0 0.0
  %934 = vmatprep.subr.mxu0 0.0
  %935 = vmatpush2.msra.mxu0 0.0
  %936 = vmatprep.mubr.f32.mxu0 0.0
  %937 = vmatmul.mubr.f32.gmra.mxu0 %v275
  %v938 = vpop.f32.mrf.mxu0
  %v939 = vadd.f32 %v694, %v938
  %v940 = vpop.f32.mrf.mxu0
  %941 = vmatprep.mubr.f32.mxu0 0.0
  %942 = vmatmul.mubr.f32.gmra.mxu0 %v278
  %v943 = vpop.f32.mrf.mxu0
  %v944 = vadd.f32 %v699, %v943
  %v945 = vpop.f32.mrf.mxu0
  %946 = vmatprep.mubr.f32.mxu0 0.0
  %947 = vmatmul.mubr.f32.gmra.mxu0 %v281
  %v948 = vpop.f32.mrf.mxu0
  %v949 = vadd.f32 %v704, %v948
  %v950 = vpop.f32.mrf.mxu0
  %951 = vmatprep.mubr.f32.mxu0 0.0
  %952 = vmatmul.mubr.f32.gmra.mxu0 %v284
  %v953 = vpop.f32.mrf.mxu0
  %v954 = vadd.f32 %v709, %v953
  %v955 = vpop.f32.mrf.mxu0
  %956 = vmatprep.mubr.f32.mxu0 0.0
  %957 = vmatmul.mubr.f32.gmra.mxu0 %v287
  %v958 = vpop.f32.mrf.mxu0
  %v959 = vadd.f32 %v714, %v958
  %v960 = vpop.f32.mrf.mxu0
  %961 = vmatprep.mubr.f32.mxu0 0.0
  %962 = vmatmul.mubr.f32.gmra.mxu0 %v290
  %v963 = vpop.f32.mrf.mxu0
  %v964 = vadd.f32 %v719, %v963
  %v965 = vpop.f32.mrf.mxu0
  %966 = vmatprep.mubr.f32.mxu0 0.0
  %967 = vmatmul.mubr.f32.gmra.mxu0 %v293
  %v968 = vpop.f32.mrf.mxu0
  %v969 = vadd.f32 %v724, %v968
  %v970 = vpop.f32.mrf.mxu0
  %971 = vmatprep.mubr.f32.mxu0 0.0
  %972 = vmatmul.mubr.f32.gmra.mxu0 %v296
  %v973 = vpop.f32.mrf.mxu0
  %v974 = vadd.f32 %v729, %v973
  %v975 = vpop.f32.mrf.mxu0
  %976 = vmatprep.mubr.f32.mxu0 0.0
  %977 = vmatmul.mubr.f32.gmra.mxu0 %v299
  %v978 = vpop.f32.mrf.mxu0
  %v979 = vadd.f32 %v734, %v978
  %v980 = vpop.f32.mrf.mxu0
  %981 = vmatprep.mubr.f32.mxu0 0.0
  %982 = vmatmul.mubr.f32.gmra.mxu0 %v302
  %v983 = vpop.f32.mrf.mxu0
  %v984 = vadd.f32 %v739, %v983
  %v985 = vpop.f32.mrf.mxu0
  %986 = vmatprep.mubr.f32.mxu0 0.0
  %987 = vmatmul.mubr.f32.gmra.mxu0 %v305
  %v988 = vpop.f32.mrf.mxu0
  %v989 = vadd.f32 %v744, %v988
  %v990 = vpop.f32.mrf.mxu0
  %991 = vmatprep.mubr.f32.mxu0 0.0
  %992 = vmatmul.mubr.f32.gmra.mxu0 %v308
  %v993 = vpop.f32.mrf.mxu0
  %v994 = vadd.f32 %v749, %v993
  %v995 = vpop.f32.mrf.mxu0
  %996 = vmatprep.mubr.f32.mxu0 0.0
  %997 = vmatmul.mubr.f32.gmra.mxu0 %v311
  %v998 = vpop.f32.mrf.mxu0
  %v999 = vadd.f32 %v754, %v998
  %v1000 = vpop.f32.mrf.mxu0
  %1001 = vmatprep.mubr.f32.mxu0 0.0
  %1002 = vmatmul.mubr.f32.gmra.mxu0 %v314
  %v1003 = vpop.f32.mrf.mxu0
  %v1004 = vadd.f32 %v759, %v1003
  %v1005 = vpop.f32.mrf.mxu0
  %1006 = vmatprep.mubr.f32.mxu0 0.0
  %1007 = vmatmul.mubr.f32.gmra.mxu0 %v317
  %v1008 = vpop.f32.mrf.mxu0
  %v1009 = vadd.f32 %v764, %v1008
  %v1010 = vpop.f32.mrf.mxu0
  %1011 = vmatprep.mubr.f32.mxu0 0.0
  %1012 = vmatmul.mubr.f32.gmra.mxu0 %v320
  %v1013 = vpop.f32.mrf.mxu0
  %v1014 = vadd.f32 %v769, %v1013
  %v1015 = vpop.f32.mrf.mxu0
  %1016 = vmatprep.mubr.f32.mxu0 0.0
  %1017 = vmatmul.mubr.f32.gmra.mxu0 %v323
  %v1018 = vpop.f32.mrf.mxu0
  %v1019 = vadd.f32 %v774, %v1018
  %v1020 = vpop.f32.mrf.mxu0
  %1021 = vmatprep.mubr.f32.mxu0 0.0
  %1022 = vmatmul.mubr.f32.gmra.mxu0 %v326
  %v1023 = vpop.f32.mrf.mxu0
  %v1024 = vadd.f32 %v779, %v1023
  %v1025 = vpop.f32.mrf.mxu0
  %1026 = vmatprep.mubr.f32.mxu0 0.0
  %1027 = vmatmul.mubr.f32.gmra.mxu0 %v329
  %v1028 = vpop.f32.mrf.mxu0
  %v1029 = vadd.f32 %v784, %v1028
  %v1030 = vpop.f32.mrf.mxu0
  %1031 = vmatprep.mubr.f32.mxu0 0.0
  %1032 = vmatmul.mubr.f32.gmra.mxu0 %v332
  %v1033 = vpop.f32.mrf.mxu0
  %v1034 = vadd.f32 %v789, %v1033
  %v1035 = vpop.f32.mrf.mxu0
  %1036 = vmatprep.mubr.f32.mxu0 0.0
  %1037 = vmatmul.mubr.f32.gmra.mxu0 %v335
  %v1038 = vpop.f32.mrf.mxu0
  %v1039 = vadd.f32 %v794, %v1038
  %v1040 = vpop.f32.mrf.mxu0
  %1041 = vmatprep.mubr.f32.mxu0 0.0
  %1042 = vmatmul.mubr.f32.gmra.mxu0 %v338
  %v1043 = vpop.f32.mrf.mxu0
  %v1044 = vadd.f32 %v799, %v1043
  %v1045 = vpop.f32.mrf.mxu0
  %1046 = vmatprep.mubr.f32.mxu0 0.0
  %1047 = vmatmul.mubr.f32.gmra.mxu0 %v341
  %v1048 = vpop.f32.mrf.mxu0
  %v1049 = vadd.f32 %v804, %v1048
  %v1050 = vpop.f32.mrf.mxu0
  %1051 = vmatprep.mubr.f32.mxu0 0.0
  %1052 = vmatmul.mubr.f32.gmra.mxu0 %v344
  %v1053 = vpop.f32.mrf.mxu0
  %v1054 = vadd.f32 %v809, %v1053
  %v1055 = vpop.f32.mrf.mxu0
  %1056 = vmatprep.mubr.f32.mxu0 0.0
  %1057 = vmatmul.mubr.f32.gmra.mxu0 %v347
  %v1058 = vpop.f32.mrf.mxu0
  %v1059 = vadd.f32 %v814, %v1058
  %v1060 = vpop.f32.mrf.mxu0
  %1061 = vmatprep.mubr.f32.mxu0 0.0
  %1062 = vmatmul.mubr.f32.gmra.mxu0 %v350
  %v1063 = vpop.f32.mrf.mxu0
  %v1064 = vadd.f32 %v819, %v1063
  %v1065 = vpop.f32.mrf.mxu0
  %1066 = vmatprep.mubr.f32.mxu0 0.0
  %1067 = vmatmul.mubr.f32.gmra.mxu0 %v353
  %v1068 = vpop.f32.mrf.mxu0
  %v1069 = vadd.f32 %v824, %v1068
  %v1070 = vpop.f32.mrf.mxu0
  %1071 = vmatprep.mubr.f32.mxu0 0.0
  %1072 = vmatmul.mubr.f32.gmra.mxu0 %v356
  %v1073 = vpop.f32.mrf.mxu0
  %v1074 = vadd.f32 %v829, %v1073
  %v1075 = vpop.f32.mrf.mxu0
  %1076 = vmatprep.mubr.f32.mxu0 0.0
  %1077 = vmatmul.mubr.f32.gmra.mxu0 %v359
  %v1078 = vpop.f32.mrf.mxu0
  %v1079 = vadd.f32 %v834, %v1078
  %v1080 = vpop.f32.mrf.mxu0
  %1081 = vmatprep.mubr.f32.mxu0 0.0
  %1082 = vmatmul.mubr.f32.gmra.mxu0 %v362
  %v1083 = vpop.f32.mrf.mxu0
  %v1084 = vadd.f32 %v839, %v1083
  %v1085 = vpop.f32.mrf.mxu0
  %1086 = vmatprep.mubr.f32.mxu0 0.0
  %1087 = vmatmul.mubr.f32.gmra.mxu0 %v365
  %v1088 = vpop.f32.mrf.mxu0
  %v1089 = vadd.f32 %v844, %v1088
  %v1090 = vpop.f32.mrf.mxu0
  %1091 = vmatprep.mubr.f32.mxu0 0.0
  %1092 = vmatmul.mubr.f32.gmra.mxu0 %v368
  %v1093 = vpop.f32.mrf.mxu0
  %v1094 = vadd.f32 %v849, %v1093
  %v1095 = vpop.f32.mrf.mxu0
  %1096 = vmatprep.mubr.f32.mxu0 0.0
  %1097 = vmatmul.mubr.f32.gmra.mxu0 %v371
  %v1098 = vpop.f32.mrf.mxu0
  %v1099 = vadd.f32 %v854, %v1098
  %v1100 = vpop.f32.mrf.mxu0
  %1101 = vmatprep.mubr.f32.mxu0 0.0
  %1102 = vmatmul.mubr.f32.gmra.mxu0 %v374
  %v1103 = vpop.f32.mrf.mxu0
  %v1104 = vadd.f32 %v859, %v1103
  %v1105 = vpop.f32.mrf.mxu0
  %1106 = vmatprep.mubr.f32.mxu0 0.0
  %1107 = vmatmul.mubr.f32.gmra.mxu0 %v377
  %v1108 = vpop.f32.mrf.mxu0
  %v1109 = vadd.f32 %v864, %v1108
  %v1110 = vpop.f32.mrf.mxu0
  %1111 = vmatprep.mubr.f32.mxu0 0.0
  %1112 = vmatmul.mubr.f32.gmra.mxu0 %v380
  %v1113 = vpop.f32.mrf.mxu0
  %v1114 = vadd.f32 %v869, %v1113
  %v1115 = vpop.f32.mrf.mxu0
  %1116 = vdwg.mxu0
  %v1117 = vmax.f32 %v939, 0.0
  %v1118 = vmax.f32 %v944, 0.0
  %v1119 = vmax.f32 %v949, 0.0
  %v1120 = vmax.f32 %v954, 0.0
  %v1121 = vmax.f32 %v959, 0.0
  %v1122 = vmax.f32 %v964, 0.0
  %v1123 = vmax.f32 %v969, 0.0
  %v1124 = vmax.f32 %v974, 0.0
  %v1125 = vmax.f32 %v979, 0.0
  %v1126 = vmax.f32 %v984, 0.0
  %v1127 = vmax.f32 %v989, 0.0
  %v1128 = vmax.f32 %v994, 0.0
  %v1129 = vmax.f32 %v999, 0.0
  %v1130 = vmax.f32 %v1004, 0.0
  %v1131 = vmax.f32 %v1009, 0.0
  %v1132 = vmax.f32 %v1014, 0.0
  %v1133 = vmax.f32 %v1019, 0.0
  %v1134 = vmax.f32 %v1024, 0.0
  %v1135 = vmax.f32 %v1029, 0.0
  %v1136 = vmax.f32 %v1034, 0.0
  %v1137 = vmax.f32 %v1039, 0.0
  %v1138 = vmax.f32 %v1044, 0.0
  %v1139 = vmax.f32 %v1049, 0.0
  %v1140 = vmax.f32 %v1054, 0.0
  %v1141 = vmax.f32 %v1059, 0.0
  %v1142 = vmax.f32 %v1064, 0.0
  %v1143 = vmax.f32 %v1069, 0.0
  %v1144 = vmax.f32 %v1074, 0.0
  %v1145 = vmax.f32 %v1079, 0.0
  %v1146 = vmax.f32 %v1084, 0.0
  %v1147 = vmax.f32 %v1089, 0.0
  %v1148 = vmax.f32 %v1094, 0.0
  %v1149 = vmax.f32 %v1099, 0.0
  %v1150 = vmax.f32 %v1104, 0.0
  %v1151 = vmax.f32 %v1109, 0.0
  %v1152 = vmax.f32 %v1114, 0.0
  %1153 = vst [vmem:[%s3] sm:$0xff] %v1117
  %1154 = vst [vmem:[%s3 + $0x8] sm:$0xff] %v1118
  %1155 = vst [vmem:[%s3 + $0x10] sm:$0xff] %v1119
  %1156 = vst [vmem:[%s3 + $0x18] sm:$0xff] %v1120
  %1157 = vst [vmem:[%s3 + $0x20] sm:$0xff] %v1121
  %1158 = vst [vmem:[%s3 + $0x28] sm:$0xff] %v1122
  %1159 = vst [vmem:[%s3 + $0x30] sm:$0xff] %v1123
  %1160 = vst [vmem:[%s3 + $0x38] sm:$0xff] %v1124
  %1161 = vst [vmem:[%s3 + $0x40] sm:$0xff] %v1125
  %1162 = vst [vmem:[%s3 + $0x48] sm:$0xff] %v1126
  %1163 = vst [vmem:[%s3 + $0x50] sm:$0xff] %v1127
  %1164 = vst [vmem:[%s3 + $0x58] sm:$0xff] %v1128
  %1165 = vst [vmem:[%s3 + $0x60] sm:$0xff] %v1129
  %1166 = vst [vmem:[%s3 + $0x68] sm:$0xff] %v1130
  %1167 = vst [vmem:[%s3 + $0x70] sm:$0xff] %v1131
  %1168 = vst [vmem:[%s3 + $0x78] sm:$0xff] %v1132
  %1169 = vst [vmem:[%s3 + $0x80] sm:$0xff] %v1133
  %1170 = vst [vmem:[%s3 + $0x88] sm:$0xff] %v1134
  %1171 = vst [vmem:[%s3 + $0x90] sm:$0xff] %v1135
  %1172 = vst [vmem:[%s3 + $0x98] sm:$0xff] %v1136
  %1173 = vst [vmem:[%s3 + $0xa0] sm:$0xff] %v1137
  %1174 = vst [vmem:[%s3 + $0xa8] sm:$0xff] %v1138
  %1175 = vst [vmem:[%s3 + $0xb0] sm:$0xff] %v1139
  %1176 = vst [vmem:[%s3 + $0xb8] sm:$0xff] %v1140
  %1177 = vst [vmem:[%s3 + $0xc0] sm:$0xff] %v1141
  %1178 = vst [vmem:[%s3 + $0xc8] sm:$0xff] %v1142
  %1179 = vst [vmem:[%s3 + $0xd0] sm:$0xff] %v1143
  %1180 = vst [vmem:[%s3 + $0xd8] sm:$0xff] %v1144
  %1181 = vst [vmem:[%s3 + $0xe0] sm:$0xff] %v1145
  %1182 = vst [vmem:[%s3 + $0xe8] sm:$0xff] %v1146
  %1183 = vst [vmem:[%s3 + $0xf0] sm:$0xff] %v1147
  %1184 = vst [vmem:[%s3 + $0xf8] sm:$0xff] %v1148
  %1185 = vst [vmem:[%s3 + $0x100] sm:$0xff] %v1149
  %1186 = vst [vmem:[%s3 + $0x108] sm:$0xff] %v1150
  %1187 = vst [vmem:[%s3 + $0x110] sm:$0xff] %v1151
  %1188 = vst [vmem:[%s3 + $0x118] sm:$0xff] %v1152
  // Predicated region
  $region14: #{a2c_forward.7} parent=0 // pred_check
    _
  $region15: #{a2c_forward.7} parent=0 // pred_check_branch
    %1190 = sbr.rel (0) target = $region17
  $region16: #{a2c_forward.7} parent=0 // pred_region
    _
  $region17: #{a2c_forward.7} parent=0 // pred_fallthru
    _
  // Predicated region
  $region18: #{a2c_forward.7} parent=0 // pred_check
    _
  $region19: #{a2c_forward.7} parent=0 // pred_check_branch
    %1192 = sbr.rel (0) target = $region21
  $region20: #{a2c_forward.7} parent=0 // pred_region
    _
  $region21: #{a2c_forward.7} parent=0 // pred_fallthru
    _

// kernel: a2c_forward.8
$region0: #{a2c_forward.8}
  #allocation0 [shape = 'u32[]', space=smem, size = 0x4, offset = 0x4, fixed_abs, tag = 'smem constant byte address 0x4 - core index']
  #allocation1 [shape = 'u32[144,128]{1,0:T(1,128)}', space=vmem, size = 0x12000, scoped, tag = 'internal scratch']
  %s0 = inlined_call_operand.vmem [shape: f32[64,576], index: 0, kind: input, shape index: {}]
  %s1 = inlined_call_operand.vmem [shape: f32[576,128], index: 1, kind: input, shape index: {}]
  %s2 = inlined_call_operand.vmem [shape: f32[1,128], index: 2, kind: input, shape index: {}]
  %s3 = inlined_call_operand.vmem [shape: f32[64,128], index: 3, kind: output, shape index: {}]
  %s4 = sld [smem:[#allocation0]]
  $region22: #{a2c_forward.8} parent=0
    _
  %s6 = ssub.s32 1, %s4
  %s7 = scalar_select 0, %s6, %s4
  // Predicated region
  $region2: #{a2c_forward.8} parent=0 // pred_check
    _
  $region3: #{a2c_forward.8} parent=0 // pred_check_branch
    %9 = sbr.rel (0) target = $region5
  $region4: #{a2c_forward.8} parent=0 // pred_region
    _
  $region5: #{a2c_forward.8} parent=0 // pred_fallthru
    _
  // Predicated region
  $region6: #{a2c_forward.8} parent=0 // pred_check
    _
  $region7: #{a2c_forward.8} parent=0 // pred_check_branch
    %11 = sbr.rel (0) target = $region9
  $region8: #{a2c_forward.8} parent=0 // pred_region
    _
  $region9: #{a2c_forward.8} parent=0 // pred_fallthru
    _
  // Predicated region
  $region10: #{a2c_forward.8} parent=0 // pred_check
    _
  $region11: #{a2c_forward.8} parent=0 // pred_check_branch
    %13 = sbr.rel (0) target = $region13
  $region12: #{a2c_forward.8} parent=0 // pred_region
    _
  $region13: #{a2c_forward.8} parent=0 // pred_fallthru
    _
  %v14 = vld [vmem:[%s0] sm:$0xff]
  %v15 = vld [vmem:[%s0 + $0x8] sm:$0xff]
  %v16 = vld [vmem:[%s0 + $0x10] sm:$0xff]
  %v17 = vld [vmem:[%s0 + $0x18] sm:$0xff]
  %v18 = vld [vmem:[%s0 + $0x20] sm:$0xff]
  %v19 = vld [vmem:[%s0 + $0x28] sm:$0xff]
  %v20 = vld [vmem:[%s0 + $0x30] sm:$0xff]
  %v21 = vld [vmem:[%s0 + $0x38] sm:$0xff]
  %v22 = vld [vmem:[%s0 + $0x40] sm:$0xff]
  %v23 = vld [vmem:[%s0 + $0x48] sm:$0xff]
  %v24 = vld [vmem:[%s0 + $0x50] sm:$0xff]
  %v25 = vld [vmem:[%s0 + $0x58] sm:$0xff]
  %v26 = vld [vmem:[%s0 + $0x60] sm:$0xff]
  %v27 = vld [vmem:[%s0 + $0x68] sm:$0xff]
  %v28 = vld [vmem:[%s0 + $0x70] sm:$0xff]
  %v29 = vld [vmem:[%s0 + $0x78] sm:$0xff]
  %v30 = vld [vmem:[%s0 + $0x80] sm:$0xff]
  %v31 = vld [vmem:[%s0 + $0x88] sm:$0xff]
  %v32 = vld [vmem:[%s0 + $0x90] sm:$0xff]
  %v33 = vld [vmem:[%s0 + $0x98] sm:$0xff]
  %v34 = vld [vmem:[%s0 + $0xa0] sm:$0xff]
  %v35 = vld [vmem:[%s0 + $0xa8] sm:$0xff]
  %v36 = vld [vmem:[%s0 + $0xb0] sm:$0xff]
  %v37 = vld [vmem:[%s0 + $0xb8] sm:$0xff]
  %v38 = vld [vmem:[%s0 + $0xc0] sm:$0xff]
  %v39 = vld [vmem:[%s0 + $0xc8] sm:$0xff]
  %v40 = vld [vmem:[%s0 + $0xd0] sm:$0xff]
  %v41 = vld [vmem:[%s0 + $0xd8] sm:$0xff]
  %v42 = vld [vmem:[%s0 + $0xe0] sm:$0xff]
  %v43 = vld [vmem:[%s0 + $0xe8] sm:$0xff]
  %v44 = vld [vmem:[%s0 + $0xf0] sm:$0xff]
  %v45 = vld [vmem:[%s0 + $0xf8] sm:$0xff]
  %v46 = vld [vmem:[%s0 + $0x100] sm:$0xff]
  %v47 = vld [vmem:[%s0 + $0x108] sm:$0xff]
  %v48 = vld [vmem:[%s0 + $0x110] sm:$0xff]
  %v49 = vld [vmem:[%s0 + $0x118] sm:$0xff]
  %v50 = vld [vmem:[%s0 + $0x120] sm:$0xff]
  %v51 = vld [vmem:[%s0 + $0x128] sm:$0xff]
  %v52 = vld [vmem:[%s0 + $0x130] sm:$0xff]
  %v53 = vld [vmem:[%s0 + $0x138] sm:$0xff]
  %v54 = vld [vmem:[%s1] sm:$0xff]
  %v55 = vld [vmem:[%s1 + $0x8] sm:$0xff]
  %v56 = vld [vmem:[%s1 + $0x10] sm:$0xff]
  %v57 = vld [vmem:[%s1 + $0x18] sm:$0xff]
  %v58 = vld [vmem:[%s1 + $0x20] sm:$0xff]
  %v59 = vld [vmem:[%s1 + $0x28] sm:$0xff]
  %v60 = vld [vmem:[%s1 + $0x30] sm:$0xff]
  %v61 = vld [vmem:[%s1 + $0x38] sm:$0xff]
  %v62 = vld [vmem:[%s1 + $0x40] sm:$0xff]
  %v63 = vld [vmem:[%s1 + $0x48] sm:$0xff]
  %v64 = vld [vmem:[%s1 + $0x50] sm:$0xff]
  %v65 = vld [vmem:[%s1 + $0x58] sm:$0xff]
  %v66 = vld [vmem:[%s1 + $0x60] sm:$0xff]
  %v67 = vld [vmem:[%s1 + $0x68] sm:$0xff]
  %v68 = vld [vmem:[%s1 + $0x70] sm:$0xff]
  %v69 = vld [vmem:[%s1 + $0x78] sm:$0xff]
  %v70 = vld [vmem:[%s1 + $0x80] sm:$0xff]
  %v71 = vld [vmem:[%s1 + $0x88] sm:$0xff]
  %v72 = vld [vmem:[%s1 + $0x90] sm:$0xff]
  %v73 = vld [vmem:[%s1 + $0x98] sm:$0xff]
  %v74 = vld [vmem:[%s1 + $0xa0] sm:$0xff]
  %v75 = vld [vmem:[%s1 + $0xa8] sm:$0xff]
  %v76 = vld [vmem:[%s1 + $0xb0] sm:$0xff]
  %v77 = vld [vmem:[%s1 + $0xb8] sm:$0xff]
  %v78 = vld [vmem:[%s1 + $0xc0] sm:$0xff]
  %v79 = vld [vmem:[%s1 + $0xc8] sm:$0xff]
  %v80 = vld [vmem:[%s1 + $0xd0] sm:$0xff]
  %v81 = vld [vmem:[%s1 + $0xd8] sm:$0xff]
  %v82 = vld [vmem:[%s1 + $0xe0] sm:$0xff]
  %v83 = vld [vmem:[%s1 + $0xe8] sm:$0xff]
  %v84 = vld [vmem:[%s1 + $0xf0] sm:$0xff]
  %v85 = vld [vmem:[%s1 + $0xf8] sm:$0xff]
  %v86 = vld [vmem:[%s1 + $0x100] sm:$0xff]
  %v87 = vld [vmem:[%s1 + $0x108] sm:$0xff]
  %v88 = vld [vmem:[%s1 + $0x110] sm:$0xff]
  %v89 = vld [vmem:[%s1 + $0x118] sm:$0xff]
  %v90 = vld [vmem:[%s1 + $0x120] sm:$0xff]
  %v91 = vld [vmem:[%s1 + $0x128] sm:$0xff]
  %v92 = vld [vmem:[%s1 + $0x130] sm:$0xff]
  %v93 = vld [vmem:[%s1 + $0x138] sm:$0xff]
  %v94 = vld [vmem:[%s1 + $0x140] sm:$0xff]
  %v95 = vld [vmem:[%s1 + $0x148] sm:$0xff]
  %v96 = vld [vmem:[%s1 + $0x150] sm:$0xff]
  %v97 = vld [vmem:[%s1 + $0x158] sm:$0xff]
  %v98 = vld [vmem:[%s1 + $0x160] sm:$0xff]
  %v99 = vld [vmem:[%s1 + $0x168] sm:$0xff]
  %v100 = vld [vmem:[%s1 + $0x170] sm:$0xff]
  %v101 = vld [vmem:[%s1 + $0x178] sm:$0xff]
  %v102 = vld [vmem:[%s1 + $0x180] sm:$0xff]
  %v103 = vld [vmem:[%s1 + $0x188] sm:$0xff]
  %v104 = vld [vmem:[%s1 + $0x190] sm:$0xff]
  %v105 = vld [vmem:[%s1 + $0x198] sm:$0xff]
  %v106 = vld [vmem:[%s1 + $0x1a0] sm:$0xff]
  %v107 = vld [vmem:[%s1 + $0x1a8] sm:$0xff]
  %v108 = vld [vmem:[%s1 + $0x1b0] sm:$0xff]
  %v109 = vld [vmem:[%s1 + $0x1b8] sm:$0xff]
  %v110 = vld [vmem:[%s1 + $0x1c0] sm:$0xff]
  %v111 = vld [vmem:[%s1 + $0x1c8] sm:$0xff]
  %v112 = vld [vmem:[%s1 + $0x1d0] sm:$0xff]
  %v113 = vld [vmem:[%s1 + $0x1d8] sm:$0xff]
  %v114 = vld [vmem:[%s1 + $0x1e0] sm:$0xff]
  %v115 = vld [vmem:[%s1 + $0x1e8] sm:$0xff]
  %v116 = vld [vmem:[%s1 + $0x1f0] sm:$0xff]
  %v117 = vld [vmem:[%s1 + $0x1f8] sm:$0xff]
  %v118 = vld [vmem:[%s1 + $0x200] sm:$0xff]
  %v119 = vld [vmem:[%s1 + $0x208] sm:$0xff]
  %v120 = vld [vmem:[%s1 + $0x210] sm:$0xff]
  %v121 = vld [vmem:[%s1 + $0x218] sm:$0xff]
  %v122 = vld [vmem:[%s1 + $0x220] sm:$0xff]
  %v123 = vld [vmem:[%s1 + $0x228] sm:$0xff]
  %v124 = vld [vmem:[%s1 + $0x230] sm:$0xff]
  %v125 = vld [vmem:[%s1 + $0x238] sm:$0xff]
  %v126 = vld [vmem:[%s2] sm:$0x1]
  %v128 = vlaneseq
  %v129 = vshrl.u32 %v128, 7
  %v130 = vsub.s32 0, %v129
  %v131 = vrot.slane %v126, %v130
  %vm133 = vcmask 523264
  %v135 = vsel %vm133, %v18, 0
  %v138 = vsel %vm133, %v23, 0
  %v141 = vsel %vm133, %v28, 0
  %v144 = vsel %vm133, %v33, 0
  %v147 = vsel %vm133, %v38, 0
  %v150 = vsel %vm133, %v43, 0
  %v153 = vsel %vm133, %v48, 0
  %v156 = vsel %vm133, %v53, 0
  %158 = vmatprep.subr.mxu0 0.0
  %159 = vmatpush1.msra.mxu0 %v69
  %160 = vmatprep.subr.mxu0 0.0
  %161 = vmatpush1.msra.mxu0 %v68
  %162 = vmatprep.subr.mxu0 0.0
  %163 = vmatpush1.msra.mxu0 %v67
  %164 = vmatprep.subr.mxu0 0.0
  %165 = vmatpush1.msra.mxu0 %v66
  %166 = vmatprep.subr.mxu0 0.0
  %167 = vmatpush1.msra.mxu0 %v65
  %168 = vmatprep.subr.mxu0 0.0
  %169 = vmatpush1.msra.mxu0 %v64
  %170 = vmatprep.subr.mxu0 0.0
  %171 = vmatpush1.msra.mxu0 %v63
  %172 = vmatprep.subr.mxu0 0.0
  %173 = vmatpush1.msra.mxu0 %v62
  %174 = vmatprep.subr.mxu0 0.0
  %175 = vmatpush1.msra.mxu0 %v61
  %176 = vmatprep.subr.mxu0 0.0
  %177 = vmatpush1.msra.mxu0 %v60
  %178 = vmatprep.subr.mxu0 0.0
  %179 = vmatpush1.msra.mxu0 %v59
  %180 = vmatprep.subr.mxu0 0.0
  %181 = vmatpush1.msra.mxu0 %v58
  %182 = vmatprep.subr.mxu0 0.0
  %183 = vmatpush1.msra.mxu0 %v57
  %184 = vmatprep.subr.mxu0 0.0
  %185 = vmatpush1.msra.mxu0 %v56
  %186 = vmatprep.subr.mxu0 0.0
  %187 = vmatpush1.msra.mxu0 %v55
  %188 = vmatprep.subr.mxu0 0.0
  %189 = vmatpush1.msra.mxu0 %v54
  %190 = vmatprep.subr.mxu0 0.0
  %191 = vmatpush2.msra.mxu0 %v85
  %192 = vmatprep.subr.mxu0 0.0
  %193 = vmatpush2.msra.mxu0 %v84
  %194 = vmatprep.subr.mxu0 0.0
  %195 = vmatpush2.msra.mxu0 %v83
  %196 = vmatprep.subr.mxu0 0.0
  %197 = vmatpush2.msra.mxu0 %v82
  %198 = vmatprep.subr.mxu0 0.0
  %199 = vmatpush2.msra.mxu0 %v81
  %200 = vmatprep.subr.mxu0 0.0
  %201 = vmatpush2.msra.mxu0 %v80
  %202 = vmatprep.subr.mxu0 0.0
  %203 = vmatpush2.msra.mxu0 %v79
  %204 = vmatprep.subr.mxu0 0.0
  %205 = vmatpush2.msra.mxu0 %v78
  %206 = vmatprep.subr.mxu0 0.0
  %207 = vmatpush2.msra.mxu0 %v77
  %208 = vmatprep.subr.mxu0 0.0
  %209 = vmatpush2.msra.mxu0 %v76
  %210 = vmatprep.subr.mxu0 0.0
  %211 = vmatpush2.msra.mxu0 %v75
  %212 = vmatprep.subr.mxu0 0.0
  %213 = vmatpush2.msra.mxu0 %v74
  %214 = vmatprep.subr.mxu0 0.0
  %215 = vmatpush2.msra.mxu0 %v73
  %216 = vmatprep.subr.mxu0 0.0
  %217 = vmatpush2.msra.mxu0 %v72
  %218 = vmatprep.subr.mxu0 0.0
  %219 = vmatpush2.msra.mxu0 %v71
  %220 = vmatprep.subr.mxu0 0.0
  %221 = vmatpush2.msra.mxu0 %v70
  %222 = vmatprep.mubr.f32.mxu0 %v15
  %223 = vmatmul.mubr.f32.gmra.mxu0 %v14
  %v224 = vpop.f32.mrf.mxu0
  %v225 = vadd.f32 %v131, %v224
  %v226 = vpop.f32.mrf.mxu0
  %227 = vmatprep.mubr.f32.mxu0 %v20
  %228 = vmatmul.mubr.f32.gmra.mxu0 %v19
  %v229 = vpop.f32.mrf.mxu0
  %v230 = vadd.f32 %v131, %v229
  %v231 = vpop.f32.mrf.mxu0
  %232 = vmatprep.mubr.f32.mxu0 %v25
  %233 = vmatmul.mubr.f32.gmra.mxu0 %v24
  %v234 = vpop.f32.mrf.mxu0
  %v235 = vadd.f32 %v131, %v234
  %v236 = vpop.f32.mrf.mxu0
  %237 = vmatprep.mubr.f32.mxu0 %v30
  %238 = vmatmul.mubr.f32.gmra.mxu0 %v29
  %v239 = vpop.f32.mrf.mxu0
  %v240 = vadd.f32 %v131, %v239
  %v241 = vpop.f32.mrf.mxu0
  %242 = vmatprep.mubr.f32.mxu0 %v35
  %243 = vmatmul.mubr.f32.gmra.mxu0 %v34
  %v244 = vpop.f32.mrf.mxu0
  %v245 = vadd.f32 %v131, %v244
  %v246 = vpop.f32.mrf.mxu0
  %247 = vmatprep.mubr.f32.mxu0 %v40
  %248 = vmatmul.mubr.f32.gmra.mxu0 %v39
  %v249 = vpop.f32.mrf.mxu0
  %v250 = vadd.f32 %v131, %v249
  %v251 = vpop.f32.mrf.mxu0
  %252 = vmatprep.mubr.f32.mxu0 %v45
  %253 = vmatmul.mubr.f32.gmra.mxu0 %v44
  %v254 = vpop.f32.mrf.mxu0
  %v255 = vadd.f32 %v131, %v254
  %v256 = vpop.f32.mrf.mxu0
  %257 = vmatprep.mubr.f32.mxu0 %v50
  %258 = vmatmul.mubr.f32.gmra.mxu0 %v49
  %v259 = vpop.f32.mrf.mxu0
  %v260 = vadd.f32 %v131, %v259
  %v261 = vpop.f32.mrf.mxu0
  %262 = vdwg.mxu0
  %263 = vmatprep.subr.mxu0 0.0
  %264 = vmatpush1.msra.mxu0 %v101
  %265 = vmatprep.subr.mxu0 0.0
  %266 = vmatpush1.msra.mxu0 %v100
  %267 = vmatprep.subr.mxu0 0.0
  %268 = vmatpush1.msra.mxu0 %v99
  %269 = vmatprep.subr.mxu0 0.0
  %270 = vmatpush1.msra.mxu0 %v98
  %271 = vmatprep.subr.mxu0 0.0
  %272 = vmatpush1.msra.mxu0 %v97
  %273 = vmatprep.subr.mxu0 0.0
  %274 = vmatpush1.msra.mxu0 %v96
  %275 = vmatprep.subr.mxu0 0.0
  %276 = vmatpush1.msra.mxu0 %v95
  %277 = vmatprep.subr.mxu0 0.0
  %278 = vmatpush1.msra.mxu0 %v94
  %279 = vmatprep.subr.mxu0 0.0
  %280 = vmatpush1.msra.mxu0 %v93
  %281 = vmatprep.subr.mxu0 0.0
  %282 = vmatpush1.msra.mxu0 %v92
  %283 = vmatprep.subr.mxu0 0.0
  %284 = vmatpush1.msra.mxu0 %v91
  %285 = vmatprep.subr.mxu0 0.0
  %286 = vmatpush1.msra.mxu0 %v90
  %287 = vmatprep.subr.mxu0 0.0
  %288 = vmatpush1.msra.mxu0 %v89
  %289 = vmatprep.subr.mxu0 0.0
  %290 = vmatpush1.msra.mxu0 %v88
  %291 = vmatprep.subr.mxu0 0.0
  %292 = vmatpush1.msra.mxu0 %v87
  %293 = vmatprep.subr.mxu0 0.0
  %294 = vmatpush1.msra.mxu0 %v86
  %295 = vmatprep.subr.mxu0 0.0
  %296 = vmatpush2.msra.mxu0 %v117
  %297 = vmatprep.subr.mxu0 0.0
  %298 = vmatpush2.msra.mxu0 %v116
  %299 = vmatprep.subr.mxu0 0.0
  %300 = vmatpush2.msra.mxu0 %v115
  %301 = vmatprep.subr.mxu0 0.0
  %302 = vmatpush2.msra.mxu0 %v114
  %303 = vmatprep.subr.mxu0 0.0
  %304 = vmatpush2.msra.mxu0 %v113
  %305 = vmatprep.subr.mxu0 0.0
  %306 = vmatpush2.msra.mxu0 %v112
  %307 = vmatprep.subr.mxu0 0.0
  %308 = vmatpush2.msra.mxu0 %v111
  %309 = vmatprep.subr.mxu0 0.0
  %310 = vmatpush2.msra.mxu0 %v110
  %311 = vmatprep.subr.mxu0 0.0
  %312 = vmatpush2.msra.mxu0 %v109
  %313 = vmatprep.subr.mxu0 0.0
  %314 = vmatpush2.msra.mxu0 %v108
  %315 = vmatprep.subr.mxu0 0.0
  %316 = vmatpush2.msra.mxu0 %v107
  %317 = vmatprep.subr.mxu0 0.0
  %318 = vmatpush2.msra.mxu0 %v106
  %319 = vmatprep.subr.mxu0 0.0
  %320 = vmatpush2.msra.mxu0 %v105
  %321 = vmatprep.subr.mxu0 0.0
  %322 = vmatpush2.msra.mxu0 %v104
  %323 = vmatprep.subr.mxu0 0.0
  %324 = vmatpush2.msra.mxu0 %v103
  %325 = vmatprep.subr.mxu0 0.0
  %326 = vmatpush2.msra.mxu0 %v102
  %327 = vmatprep.mubr.f32.mxu0 %v17
  %328 = vmatmul.mubr.f32.gmra.mxu0 %v16
  %v329 = vpop.f32.mrf.mxu0
  %v330 = vadd.f32 %v225, %v329
  %v331 = vpop.f32.mrf.mxu0
  %332 = vmatprep.mubr.f32.mxu0 %v22
  %333 = vmatmul.mubr.f32.gmra.mxu0 %v21
  %v334 = vpop.f32.mrf.mxu0
  %v335 = vadd.f32 %v230, %v334
  %v336 = vpop.f32.mrf.mxu0
  %337 = vmatprep.mubr.f32.mxu0 %v27
  %338 = vmatmul.mubr.f32.gmra.mxu0 %v26
  %v339 = vpop.f32.mrf.mxu0
  %v340 = vadd.f32 %v235, %v339
  %v341 = vpop.f32.mrf.mxu0
  %342 = vmatprep.mubr.f32.mxu0 %v32
  %343 = vmatmul.mubr.f32.gmra.mxu0 %v31
  %v344 = vpop.f32.mrf.mxu0
  %v345 = vadd.f32 %v240, %v344
  %v346 = vpop.f32.mrf.mxu0
  %347 = vmatprep.mubr.f32.mxu0 %v37
  %348 = vmatmul.mubr.f32.gmra.mxu0 %v36
  %v349 = vpop.f32.mrf.mxu0
  %v350 = vadd.f32 %v245, %v349
  %v351 = vpop.f32.mrf.mxu0
  %352 = vmatprep.mubr.f32.mxu0 %v42
  %353 = vmatmul.mubr.f32.gmra.mxu0 %v41
  %v354 = vpop.f32.mrf.mxu0
  %v355 = vadd.f32 %v250, %v354
  %v356 = vpop.f32.mrf.mxu0
  %357 = vmatprep.mubr.f32.mxu0 %v47
  %358 = vmatmul.mubr.f32.gmra.mxu0 %v46
  %v359 = vpop.f32.mrf.mxu0
  %v360 = vadd.f32 %v255, %v359
  %v361 = vpop.f32.mrf.mxu0
  %362 = vmatprep.mubr.f32.mxu0 %v52
  %363 = vmatmul.mubr.f32.gmra.mxu0 %v51
  %v364 = vpop.f32.mrf.mxu0
  %v365 = vadd.f32 %v260, %v364
  %v366 = vpop.f32.mrf.mxu0
  %367 = vdwg.mxu0
  %368 = vmatprep.subr.mxu0 0.0
  %369 = vmatpush1.msra.mxu0 0.0
  %370 = vmatprep.subr.mxu0 0.0
  %371 = vmatpush1.msra.mxu0 0.0
  %372 = vmatprep.subr.mxu0 0.0
  %373 = vmatpush1.msra.mxu0 0.0
  %374 = vmatprep.subr.mxu0 0.0
  %375 = vmatpush1.msra.mxu0 0.0
  %376 = vmatprep.subr.mxu0 0.0
  %377 = vmatpush1.msra.mxu0 0.0
  %378 = vmatprep.subr.mxu0 0.0
  %379 = vmatpush1.msra.mxu0 0.0
  %380 = vmatprep.subr.mxu0 0.0
  %381 = vmatpush1.msra.mxu0 0.0
  %382 = vmatprep.subr.mxu0 0.0
  %383 = vmatpush1.msra.mxu0 0.0
  %384 = vmatprep.subr.mxu0 0.0
  %385 = vmatpush1.msra.mxu0 %v125
  %386 = vmatprep.subr.mxu0 0.0
  %387 = vmatpush1.msra.mxu0 %v124
  %388 = vmatprep.subr.mxu0 0.0
  %389 = vmatpush1.msra.mxu0 %v123
  %390 = vmatprep.subr.mxu0 0.0
  %391 = vmatpush1.msra.mxu0 %v122
  %392 = vmatprep.subr.mxu0 0.0
  %393 = vmatpush1.msra.mxu0 %v121
  %394 = vmatprep.subr.mxu0 0.0
  %395 = vmatpush1.msra.mxu0 %v120
  %396 = vmatprep.subr.mxu0 0.0
  %397 = vmatpush1.msra.mxu0 %v119
  %398 = vmatprep.subr.mxu0 0.0
  %399 = vmatpush1.msra.mxu0 %v118
  %400 = vmatprep.subr.mxu0 0.0
  %401 = vmatpush2.msra.mxu0 0.0
  %402 = vmatprep.subr.mxu0 0.0
  %403 = vmatpush2.msra.mxu0 0.0
  %404 = vmatprep.subr.mxu0 0.0
  %405 = vmatpush2.msra.mxu0 0.0
  %406 = vmatprep.subr.mxu0 0.0
  %407 = vmatpush2.msra.mxu0 0.0
  %408 = vmatprep.subr.mxu0 0.0
  %409 = vmatpush2.msra.mxu0 0.0
  %410 = vmatprep.subr.mxu0 0.0
  %411 = vmatpush2.msra.mxu0 0.0
  %412 = vmatprep.subr.mxu0 0.0
  %413 = vmatpush2.msra.mxu0 0.0
  %414 = vmatprep.subr.mxu0 0.0
  %415 = vmatpush2.msra.mxu0 0.0
  %416 = vmatprep.subr.mxu0 0.0
  %417 = vmatpush2.msra.mxu0 0.0
  %418 = vmatprep.subr.mxu0 0.0
  %419 = vmatpush2.msra.mxu0 0.0
  %420 = vmatprep.subr.mxu0 0.0
  %421 = vmatpush2.msra.mxu0 0.0
  %422 = vmatprep.subr.mxu0 0.0
  %423 = vmatpush2.msra.mxu0 0.0
  %424 = vmatprep.subr.mxu0 0.0
  %425 = vmatpush2.msra.mxu0 0.0
  %426 = vmatprep.subr.mxu0 0.0
  %427 = vmatpush2.msra.mxu0 0.0
  %428 = vmatprep.subr.mxu0 0.0
  %429 = vmatpush2.msra.mxu0 0.0
  %430 = vmatprep.subr.mxu0 0.0
  %431 = vmatpush2.msra.mxu0 0.0
  %432 = vmatprep.mubr.f32.mxu0 0.0
  %433 = vmatmul.mubr.f32.gmra.mxu0 %v135
  %v434 = vpop.f32.mrf.mxu0
  %v435 = vadd.f32 %v330, %v434
  %v436 = vpop.f32.mrf.mxu0
  %437 = vmatprep.mubr.f32.mxu0 0.0
  %438 = vmatmul.mubr.f32.gmra.mxu0 %v138
  %v439 = vpop.f32.mrf.mxu0
  %v440 = vadd.f32 %v335, %v439
  %v441 = vpop.f32.mrf.mxu0
  %442 = vmatprep.mubr.f32.mxu0 0.0
  %443 = vmatmul.mubr.f32.gmra.mxu0 %v141
  %v444 = vpop.f32.mrf.mxu0
  %v445 = vadd.f32 %v340, %v444
  %v446 = vpop.f32.mrf.mxu0
  %447 = vmatprep.mubr.f32.mxu0 0.0
  %448 = vmatmul.mubr.f32.gmra.mxu0 %v144
  %v449 = vpop.f32.mrf.mxu0
  %v450 = vadd.f32 %v345, %v449
  %v451 = vpop.f32.mrf.mxu0
  %452 = vmatprep.mubr.f32.mxu0 0.0
  %453 = vmatmul.mubr.f32.gmra.mxu0 %v147
  %v454 = vpop.f32.mrf.mxu0
  %v455 = vadd.f32 %v350, %v454
  %v456 = vpop.f32.mrf.mxu0
  %457 = vmatprep.mubr.f32.mxu0 0.0
  %458 = vmatmul.mubr.f32.gmra.mxu0 %v150
  %v459 = vpop.f32.mrf.mxu0
  %v460 = vadd.f32 %v355, %v459
  %v461 = vpop.f32.mrf.mxu0
  %462 = vmatprep.mubr.f32.mxu0 0.0
  %463 = vmatmul.mubr.f32.gmra.mxu0 %v153
  %v464 = vpop.f32.mrf.mxu0
  %v465 = vadd.f32 %v360, %v464
  %v466 = vpop.f32.mrf.mxu0
  %467 = vmatprep.mubr.f32.mxu0 0.0
  %468 = vmatmul.mubr.f32.gmra.mxu0 %v156
  %v469 = vpop.f32.mrf.mxu0
  %v470 = vadd.f32 %v365, %v469
  %v471 = vpop.f32.mrf.mxu0
  %472 = vdwg.mxu0
  %473 = vst [vmem:[%s3] sm:$0xff] %v435
  %474 = vst [vmem:[%s3 + $0x8] sm:$0xff] %v440
  %475 = vst [vmem:[%s3 + $0x10] sm:$0xff] %v445
  %476 = vst [vmem:[%s3 + $0x18] sm:$0xff] %v450
  %477 = vst [vmem:[%s3 + $0x20] sm:$0xff] %v455
  %478 = vst [vmem:[%s3 + $0x28] sm:$0xff] %v460
  %479 = vst [vmem:[%s3 + $0x30] sm:$0xff] %v465
  %480 = vst [vmem:[%s3 + $0x38] sm:$0xff] %v470
  // Predicated region
  $region14: #{a2c_forward.8} parent=0 // pred_check
    _
  $region15: #{a2c_forward.8} parent=0 // pred_check_branch
    %482 = sbr.rel (0) target = $region17
  $region16: #{a2c_forward.8} parent=0 // pred_region
    _
  $region17: #{a2c_forward.8} parent=0 // pred_fallthru
    _
  // Predicated region
  $region18: #{a2c_forward.8} parent=0 // pred_check
    _
  $region19: #{a2c_forward.8} parent=0 // pred_check_branch
    %484 = sbr.rel (0) target = $region21
  $region20: #{a2c_forward.8} parent=0 // pred_region
    _
  $region21: #{a2c_forward.8} parent=0 // pred_fallthru
    _

// kernel: a2c_forward.9
$region0: #{a2c_forward.9}
  #allocation0 [shape = 'u32[]', space=smem, size = 0x4, offset = 0x4, fixed_abs, tag = 'smem constant byte address 0x4 - core index']
  #allocation1 [shape = 'u32[144,128]{1,0:T(1,128)}', space=vmem, size = 0x12000, scoped, tag = 'internal scratch']
  %s0 = inlined_call_operand.vmem [shape: f32[8,1920], index: 0, kind: input, shape index: {}]
  %s1 = inlined_call_operand.vmem [shape: f32[1920,512], index: 1, kind: input, shape index: {}]
  %s2 = inlined_call_operand.vmem [shape: f32[1,512], index: 2, kind: input, shape index: {}]
  %s3 = inlined_call_operand.vmem [shape: f32[512,128], index: 3, kind: input, shape index: {}]
  %s4 = inlined_call_operand.vmem [shape: f32[1,128], index: 4, kind: input, shape index: {}]
  %s5 = inlined_call_operand.vmem [shape: f32[8,128], index: 5, kind: output, shape index: {}]
  %s6 = sld [smem:[#allocation0]]
  $region30: #{a2c_forward.9} parent=0
    _
  %s8 = ssub.s32 1, %s6
  %s9 = scalar_select 0, %s8, %s6
  // Predicated region
  $region2: #{a2c_forward.9} parent=0 // pred_check
    _
  $region3: #{a2c_forward.9} parent=0 // pred_check_branch
    %11 = sbr.rel (0) target = $region5
  $region4: #{a2c_forward.9} parent=0 // pred_region
    _
  $region5: #{a2c_forward.9} parent=0 // pred_fallthru
    _
  // Predicated region
  $region6: #{a2c_forward.9} parent=0 // pred_check
    _
  $region7: #{a2c_forward.9} parent=0 // pred_check_branch
    %13 = sbr.rel (0) target = $region9
  $region8: #{a2c_forward.9} parent=0 // pred_region
    _
  $region9: #{a2c_forward.9} parent=0 // pred_fallthru
    _
  // Predicated region
  $region10: #{a2c_forward.9} parent=0 // pred_check
    _
  $region11: #{a2c_forward.9} parent=0 // pred_check_branch
    %15 = sbr.rel (0) target = $region13
  $region12: #{a2c_forward.9} parent=0 // pred_region
    _
  $region13: #{a2c_forward.9} parent=0 // pred_fallthru
    _
  // Predicated region
  $region14: #{a2c_forward.9} parent=0 // pred_check
    _
  $region15: #{a2c_forward.9} parent=0 // pred_check_branch
    %17 = sbr.rel (0) target = $region17
  $region16: #{a2c_forward.9} parent=0 // pred_region
    _
  $region17: #{a2c_forward.9} parent=0 // pred_fallthru
    _
  // Predicated region
  $region18: #{a2c_forward.9} parent=0 // pred_check
    _
  $region19: #{a2c_forward.9} parent=0 // pred_check_branch
    %19 = sbr.rel (0) target = $region21
  $region20: #{a2c_forward.9} parent=0 // pred_region
    _
  $region21: #{a2c_forward.9} parent=0 // pred_fallthru
    _
  %v20 = vld [vmem:[%s0] sm:$0xff]
  %v21 = vld [vmem:[%s0 + $0x8] sm:$0xff]
  %v22 = vld [vmem:[%s0 + $0x10] sm:$0xff]
  %v23 = vld [vmem:[%s0 + $0x18] sm:$0xff]
  %v24 = vld [vmem:[%s0 + $0x20] sm:$0xff]
  %v25 = vld [vmem:[%s0 + $0x28] sm:$0xff]
  %v26 = vld [vmem:[%s0 + $0x30] sm:$0xff]
  %v27 = vld [vmem:[%s0 + $0x38] sm:$0xff]
  %v28 = vld [vmem:[%s0 + $0x40] sm:$0xff]
  %v29 = vld [vmem:[%s0 + $0x48] sm:$0xff]
  %v30 = vld [vmem:[%s0 + $0x50] sm:$0xff]
  %v31 = vld [vmem:[%s0 + $0x58] sm:$0xff]
  %v32 = vld [vmem:[%s0 + $0x60] sm:$0xff]
  %v33 = vld [vmem:[%s0 + $0x68] sm:$0xff]
  %v34 = vld [vmem:[%s0 + $0x70] sm:$0xff]
  %v35 = vld [vmem:[%s1] sm:$0xff]
  %v36 = vld [vmem:[%s1 + $0x8] sm:$0xff]
  %v37 = vld [vmem:[%s1 + $0x10] sm:$0xff]
  %v38 = vld [vmem:[%s1 + $0x18] sm:$0xff]
  %v39 = vld [vmem:[%s1 + $0x20] sm:$0xff]
  %v40 = vld [vmem:[%s1 + $0x28] sm:$0xff]
  %v41 = vld [vmem:[%s1 + $0x30] sm:$0xff]
  %v42 = vld [vmem:[%s1 + $0x38] sm:$0xff]
  %v43 = vld [vmem:[%s1 + $0x40] sm:$0xff]
  %v44 = vld [vmem:[%s1 + $0x48] sm:$0xff]
  %v45 = vld [vmem:[%s1 + $0x50] sm:$0xff]
  %v46 = vld [vmem:[%s1 + $0x58] sm:$0xff]
  %v47 = vld [vmem:[%s1 + $0x60] sm:$0xff]
  %v48 = vld [vmem:[%s1 + $0x68] sm:$0xff]
  %v49 = vld [vmem:[%s1 + $0x70] sm:$0xff]
  %v50 = vld [vmem:[%s1 + $0x78] sm:$0xff]
  %v51 = vld [vmem:[%s1 + $0x80] sm:$0xff]
  %v52 = vld [vmem:[%s1 + $0x88] sm:$0xff]
  %v53 = vld [vmem:[%s1 + $0x90] sm:$0xff]
  %v54 = vld [vmem:[%s1 + $0x98] sm:$0xff]
  %v55 = vld [vmem:[%s1 + $0xa0] sm:$0xff]
  %v56 = vld [vmem:[%s1 + $0xa8] sm:$0xff]
  %v57 = vld [vmem:[%s1 + $0xb0] sm:$0xff]
  %v58 = vld [vmem:[%s1 + $0xb8] sm:$0xff]
  %v59 = vld [vmem:[%s1 + $0xc0] sm:$0xff]
  %v60 = vld [vmem:[%s1 + $0xc8] sm:$0xff]
  %v61 = vld [vmem:[%s1 + $0xd0] sm:$0xff]
  %v62 = vld [vmem:[%s1 + $0xd8] sm:$0xff]
  %v63 = vld [vmem:[%s1 + $0xe0] sm:$0xff]
  %v64 = vld [vmem:[%s1 + $0xe8] sm:$0xff]
  %v65 = vld [vmem:[%s1 + $0xf0] sm:$0xff]
  %v66 = vld [vmem:[%s1 + $0xf8] sm:$0xff]
  %v67 = vld [vmem:[%s1 + $0x100] sm:$0xff]
  %v68 = vld [vmem:[%s1 + $0x108] sm:$0xff]
  %v69 = vld [vmem:[%s1 + $0x110] sm:$0xff]
  %v70 = vld [vmem:[%s1 + $0x118] sm:$0xff]
  %v71 = vld [vmem:[%s1 + $0x120] sm:$0xff]
  %v72 = vld [vmem:[%s1 + $0x128] sm:$0xff]
  %v73 = vld [vmem:[%s1 + $0x130] sm:$0xff]
  %v74 = vld [vmem:[%s1 + $0x138] sm:$0xff]
  %v75 = vld [vmem:[%s1 + $0x140] sm:$0xff]
  %v76 = vld [vmem:[%s1 + $0x148] sm:$0xff]
  %v77 = vld [vmem:[%s1 + $0x150] sm:$0xff]
  %v78 = vld [vmem:[%s1 + $0x158] sm:$0xff]
  %v79 = vld [vmem:[%s1 + $0x160] sm:$0xff]
  %v80 = vld [vmem:[%s1 + $0x168] sm:$0xff]
  %v81 = vld [vmem:[%s1 + $0x170] sm:$0xff]
  %v82 = vld [vmem:[%s1 + $0x178] sm:$0xff]
  %v83 = vld [vmem:[%s1 + $0x180] sm:$0xff]
  %v84 = vld [vmem:[%s1 + $0x188] sm:$0xff]
  %v85 = vld [vmem:[%s1 + $0x190] sm:$0xff]
  %v86 = vld [vmem:[%s1 + $0x198] sm:$0xff]
  %v87 = vld [vmem:[%s1 + $0x1a0] sm:$0xff]
  %v88 = vld [vmem:[%s1 + $0x1a8] sm:$0xff]
  %v89 = vld [vmem:[%s1 + $0x1b0] sm:$0xff]
  %v90 = vld [vmem:[%s1 + $0x1b8] sm:$0xff]
  %v91 = vld [vmem:[%s1 + $0x1c0] sm:$0xff]
  %v92 = vld [vmem:[%s1 + $0x1c8] sm:$0xff]
  %v93 = vld [vmem:[%s1 + $0x1d0] sm:$0xff]
  %v94 = vld [vmem:[%s1 + $0x1d8] sm:$0xff]
  %v95 = vld [vmem:[%s1 + $0x1e0] sm:$0xff]
  %v96 = vld [vmem:[%s1 + $0x1e8] sm:$0xff]
  %v97 = vld [vmem:[%s1 + $0x1f0] sm:$0xff]
  %v98 = vld [vmem:[%s1 + $0x1f8] sm:$0xff]
  %v99 = vld [vmem:[%s1 + $0x200] sm:$0xff]
  %v100 = vld [vmem:[%s1 + $0x208] sm:$0xff]
  %v101 = vld [vmem:[%s1 + $0x210] sm:$0xff]
  %v102 = vld [vmem:[%s1 + $0x218] sm:$0xff]
  %v103 = vld [vmem:[%s1 + $0x220] sm:$0xff]
  %v104 = vld [vmem:[%s1 + $0x228] sm:$0xff]
  %v105 = vld [vmem:[%s1 + $0x230] sm:$0xff]
  %v106 = vld [vmem:[%s1 + $0x238] sm:$0xff]
  %v107 = vld [vmem:[%s1 + $0x240] sm:$0xff]
  %v108 = vld [vmem:[%s1 + $0x248] sm:$0xff]
  %v109 = vld [vmem:[%s1 + $0x250] sm:$0xff]
  %v110 = vld [vmem:[%s1 + $0x258] sm:$0xff]
  %v111 = vld [vmem:[%s1 + $0x260] sm:$0xff]
  %v112 = vld [vmem:[%s1 + $0x268] sm:$0xff]
  %v113 = vld [vmem:[%s1 + $0x270] sm:$0xff]
  %v114 = vld [vmem:[%s1 + $0x278] sm:$0xff]
  %v115 = vld [vmem:[%s1 + $0x280] sm:$0xff]
  %v116 = vld [vmem:[%s1 + $0x288] sm:$0xff]
  %v117 = vld [vmem:[%s1 + $0x290] sm:$0xff]
  %v118 = vld [vmem:[%s1 + $0x298] sm:$0xff]
  %v119 = vld [vmem:[%s1 + $0x2a0] sm:$0xff]
  %v120 = vld [vmem:[%s1 + $0x2a8] sm:$0xff]
  %v121 = vld [vmem:[%s1 + $0x2b0] sm:$0xff]
  %v122 = vld [vmem:[%s1 + $0x2b8] sm:$0xff]
  %v123 = vld [vmem:[%s1 + $0x2c0] sm:$0xff]
  %v124 = vld [vmem:[%s1 + $0x2c8] sm:$0xff]
  %v125 = vld [vmem:[%s1 + $0x2d0] sm:$0xff]
  %v126 = vld [vmem:[%s1 + $0x2d8] sm:$0xff]
  %v127 = vld [vmem:[%s1 + $0x2e0] sm:$0xff]
  %v128 = vld [vmem:[%s1 + $0x2e8] sm:$0xff]
  %v129 = vld [vmem:[%s1 + $0x2f0] sm:$0xff]
  %v130 = vld [vmem:[%s1 + $0x2f8] sm:$0xff]
  %v131 = vld [vmem:[%s1 + $0x300] sm:$0xff]
  %v132 = vld [vmem:[%s1 + $0x308] sm:$0xff]
  %v133 = vld [vmem:[%s1 + $0x310] sm:$0xff]
  %v134 = vld [vmem:[%s1 + $0x318] sm:$0xff]
  %v135 = vld [vmem:[%s1 + $0x320] sm:$0xff]
  %v136 = vld [vmem:[%s1 + $0x328] sm:$0xff]
  %v137 = vld [vmem:[%s1 + $0x330] sm:$0xff]
  %v138 = vld [vmem:[%s1 + $0x338] sm:$0xff]
  %v139 = vld [vmem:[%s1 + $0x340] sm:$0xff]
  %v140 = vld [vmem:[%s1 + $0x348] sm:$0xff]
  %v141 = vld [vmem:[%s1 + $0x350] sm:$0xff]
  %v142 = vld [vmem:[%s1 + $0x358] sm:$0xff]
  %v143 = vld [vmem:[%s1 + $0x360] sm:$0xff]
  %v144 = vld [vmem:[%s1 + $0x368] sm:$0xff]
  %v145 = vld [vmem:[%s1 + $0x370] sm:$0xff]
  %v146 = vld [vmem:[%s1 + $0x378] sm:$0xff]
  %v147 = vld [vmem:[%s1 + $0x380] sm:$0xff]
  %v148 = vld [vmem:[%s1 + $0x388] sm:$0xff]
  %v149 = vld [vmem:[%s1 + $0x390] sm:$0xff]
  %v150 = vld [vmem:[%s1 + $0x398] sm:$0xff]
  %v151 = vld [vmem:[%s1 + $0x3a0] sm:$0xff]
  %v152 = vld [vmem:[%s1 + $0x3a8] sm:$0xff]
  %v153 = vld [vmem:[%s1 + $0x3b0] sm:$0xff]
  %v154 = vld [vmem:[%s1 + $0x3b8] sm:$0xff]
  %v155 = vld [vmem:[%s1 + $0x3c0] sm:$0xff]
  %v156 = vld [vmem:[%s1 + $0x3c8] sm:$0xff]
  %v157 = vld [vmem:[%s1 + $0x3d0] sm:$0xff]
  %v158 = vld [vmem:[%s1 + $0x3d8] sm:$0xff]
  %v159 = vld [vmem:[%s1 + $0x3e0] sm:$0xff]
  %v160 = vld [vmem:[%s1 + $0x3e8] sm:$0xff]
  %v161 = vld [vmem:[%s1 + $0x3f0] sm:$0xff]
  %v162 = vld [vmem:[%s1 + $0x3f8] sm:$0xff]
  %v163 = vld [vmem:[%s1 + $0x400] sm:$0xff]
  %v164 = vld [vmem:[%s1 + $0x408] sm:$0xff]
  %v165 = vld [vmem:[%s1 + $0x410] sm:$0xff]
  %v166 = vld [vmem:[%s1 + $0x418] sm:$0xff]
  %v167 = vld [vmem:[%s1 + $0x420] sm:$0xff]
  %v168 = vld [vmem:[%s1 + $0x428] sm:$0xff]
  %v169 = vld [vmem:[%s1 + $0x430] sm:$0xff]
  %v170 = vld [vmem:[%s1 + $0x438] sm:$0xff]
  %v171 = vld [vmem:[%s1 + $0x440] sm:$0xff]
  %v172 = vld [vmem:[%s1 + $0x448] sm:$0xff]
  %v173 = vld [vmem:[%s1 + $0x450] sm:$0xff]
  %v174 = vld [vmem:[%s1 + $0x458] sm:$0xff]
  %v175 = vld [vmem:[%s1 + $0x460] sm:$0xff]
  %v176 = vld [vmem:[%s1 + $0x468] sm:$0xff]
  %v177 = vld [vmem:[%s1 + $0x470] sm:$0xff]
  %v178 = vld [vmem:[%s1 + $0x478] sm:$0xff]
  %v179 = vld [vmem:[%s1 + $0x480] sm:$0xff]
  %v180 = vld [vmem:[%s1 + $0x488] sm:$0xff]
  %v181 = vld [vmem:[%s1 + $0x490] sm:$0xff]
  %v182 = vld [vmem:[%s1 + $0x498] sm:$0xff]
  %v183 = vld [vmem:[%s1 + $0x4a0] sm:$0xff]
  %v184 = vld [vmem:[%s1 + $0x4a8] sm:$0xff]
  %v185 = vld [vmem:[%s1 + $0x4b0] sm:$0xff]
  %v186 = vld [vmem:[%s1 + $0x4b8] sm:$0xff]
  %v187 = vld [vmem:[%s1 + $0x4c0] sm:$0xff]
  %v188 = vld [vmem:[%s1 + $0x4c8] sm:$0xff]
  %v189 = vld [vmem:[%s1 + $0x4d0] sm:$0xff]
  %v190 = vld [vmem:[%s1 + $0x4d8] sm:$0xff]
  %v191 = vld [vmem:[%s1 + $0x4e0] sm:$0xff]
  %v192 = vld [vmem:[%s1 + $0x4e8] sm:$0xff]
  %v193 = vld [vmem:[%s1 + $0x4f0] sm:$0xff]
  %v194 = vld [vmem:[%s1 + $0x4f8] sm:$0xff]
  %v195 = vld [vmem:[%s1 + $0x500] sm:$0xff]
  %v196 = vld [vmem:[%s1 + $0x508] sm:$0xff]
  %v197 = vld [vmem:[%s1 + $0x510] sm:$0xff]
  %v198 = vld [vmem:[%s1 + $0x518] sm:$0xff]
  %v199 = vld [vmem:[%s1 + $0x520] sm:$0xff]
  %v200 = vld [vmem:[%s1 + $0x528] sm:$0xff]
  %v201 = vld [vmem:[%s1 + $0x530] sm:$0xff]
  %v202 = vld [vmem:[%s1 + $0x538] sm:$0xff]
  %v203 = vld [vmem:[%s1 + $0x540] sm:$0xff]
  %v204 = vld [vmem:[%s1 + $0x548] sm:$0xff]
  %v205 = vld [vmem:[%s1 + $0x550] sm:$0xff]
  %v206 = vld [vmem:[%s1 + $0x558] sm:$0xff]
  %v207 = vld [vmem:[%s1 + $0x560] sm:$0xff]
  %v208 = vld [vmem:[%s1 + $0x568] sm:$0xff]
  %v209 = vld [vmem:[%s1 + $0x570] sm:$0xff]
  %v210 = vld [vmem:[%s1 + $0x578] sm:$0xff]
  %v211 = vld [vmem:[%s1 + $0x580] sm:$0xff]
  %v212 = vld [vmem:[%s1 + $0x588] sm:$0xff]
  %v213 = vld [vmem:[%s1 + $0x590] sm:$0xff]
  %v214 = vld [vmem:[%s1 + $0x598] sm:$0xff]
  %v215 = vld [vmem:[%s1 + $0x5a0] sm:$0xff]
  %v216 = vld [vmem:[%s1 + $0x5a8] sm:$0xff]
  %v217 = vld [vmem:[%s1 + $0x5b0] sm:$0xff]
  %v218 = vld [vmem:[%s1 + $0x5b8] sm:$0xff]
  %v219 = vld [vmem:[%s1 + $0x5c0] sm:$0xff]
  %v220 = vld [vmem:[%s1 + $0x5c8] sm:$0xff]
  %v221 = vld [vmem:[%s1 + $0x5d0] sm:$0xff]
  %v222 = vld [vmem:[%s1 + $0x5d8] sm:$0xff]
  %v223 = vld [vmem:[%s1 + $0x5e0] sm:$0xff]
  %v224 = vld [vmem:[%s1 + $0x5e8] sm:$0xff]
  %v225 = vld [vmem:[%s1 + $0x5f0] sm:$0xff]
  %v226 = vld [vmem:[%s1 + $0x5f8] sm:$0xff]
  %v227 = vld [vmem:[%s1 + $0x600] sm:$0xff]
  %v228 = vld [vmem:[%s1 + $0x608] sm:$0xff]
  %v229 = vld [vmem:[%s1 + $0x610] sm:$0xff]
  %v230 = vld [vmem:[%s1 + $0x618] sm:$0xff]
  %v231 = vld [vmem:[%s1 + $0x620] sm:$0xff]
  %v232 = vld [vmem:[%s1 + $0x628] sm:$0xff]
  %v233 = vld [vmem:[%s1 + $0x630] sm:$0xff]
  %v234 = vld [vmem:[%s1 + $0x638] sm:$0xff]
  %v235 = vld [vmem:[%s1 + $0x640] sm:$0xff]
  %v236 = vld [vmem:[%s1 + $0x648] sm:$0xff]
  %v237 = vld [vmem:[%s1 + $0x650] sm:$0xff]
  %v238 = vld [vmem:[%s1 + $0x658] sm:$0xff]
  %v239 = vld [vmem:[%s1 + $0x660] sm:$0xff]
  %v240 = vld [vmem:[%s1 + $0x668] sm:$0xff]
  %v241 = vld [vmem:[%s1 + $0x670] sm:$0xff]
  %v242 = vld [vmem:[%s1 + $0x678] sm:$0xff]
  %v243 = vld [vmem:[%s1 + $0x680] sm:$0xff]
  %v244 = vld [vmem:[%s1 + $0x688] sm:$0xff]
  %v245 = vld [vmem:[%s1 + $0x690] sm:$0xff]
  %v246 = vld [vmem:[%s1 + $0x698] sm:$0xff]
  %v247 = vld [vmem:[%s1 + $0x6a0] sm:$0xff]
  %v248 = vld [vmem:[%s1 + $0x6a8] sm:$0xff]
  %v249 = vld [vmem:[%s1 + $0x6b0] sm:$0xff]
  %v250 = vld [vmem:[%s1 + $0x6b8] sm:$0xff]
  %v251 = vld [vmem:[%s1 + $0x6c0] sm:$0xff]
  %v252 = vld [vmem:[%s1 + $0x6c8] sm:$0xff]
  %v253 = vld [vmem:[%s1 + $0x6d0] sm:$0xff]
  %v254 = vld [vmem:[%s1 + $0x6d8] sm:$0xff]
  %v255 = vld [vmem:[%s1 + $0x6e0] sm:$0xff]
  %v256 = vld [vmem:[%s1 + $0x6e8] sm:$0xff]
  %v257 = vld [vmem:[%s1 + $0x6f0] sm:$0xff]
  %v258 = vld [vmem:[%s1 + $0x6f8] sm:$0xff]
  %v259 = vld [vmem:[%s1 + $0x700] sm:$0xff]
  %v260 = vld [vmem:[%s1 + $0x708] sm:$0xff]
  %v261 = vld [vmem:[%s1 + $0x710] sm:$0xff]
  %v262 = vld [vmem:[%s1 + $0x718] sm:$0xff]
  %v263 = vld [vmem:[%s1 + $0x720] sm:$0xff]
  %v264 = vld [vmem:[%s1 + $0x728] sm:$0xff]
  %v265 = vld [vmem:[%s1 + $0x730] sm:$0xff]
  %v266 = vld [vmem:[%s1 + $0x738] sm:$0xff]
  %v267 = vld [vmem:[%s1 + $0x740] sm:$0xff]
  %v268 = vld [vmem:[%s1 + $0x748] sm:$0xff]
  %v269 = vld [vmem:[%s1 + $0x750] sm:$0xff]
  %v270 = vld [vmem:[%s1 + $0x758] sm:$0xff]
  %v271 = vld [vmem:[%s1 + $0x760] sm:$0xff]
  %v272 = vld [vmem:[%s1 + $0x768] sm:$0xff]
  %v273 = vld [vmem:[%s1 + $0x770] sm:$0xff]
  %v274 = vld [vmem:[%s1 + $0x778] sm:$0xff]
  %v275 = vld [vmem:[%s1 + $0x780] sm:$0xff]
  %v276 = vld [vmem:[%s1 + $0x788] sm:$0xff]
  %v277 = vld [vmem:[%s1 + $0x790] sm:$0xff]
  %v278 = vld [vmem:[%s1 + $0x798] sm:$0xff]
  %v279 = vld [vmem:[%s1 + $0x7a0] sm:$0xff]
  %v280 = vld [vmem:[%s1 + $0x7a8] sm:$0xff]
  %v281 = vld [vmem:[%s1 + $0x7b0] sm:$0xff]
  %v282 = vld [vmem:[%s1 + $0x7b8] sm:$0xff]
  %v283 = vld [vmem:[%s1 + $0x7c0] sm:$0xff]
  %v284 = vld [vmem:[%s1 + $0x7c8] sm:$0xff]
  %v285 = vld [vmem:[%s1 + $0x7d0] sm:$0xff]
  %v286 = vld [vmem:[%s1 + $0x7d8] sm:$0xff]
  %v287 = vld [vmem:[%s1 + $0x7e0] sm:$0xff]
  %v288 = vld [vmem:[%s1 + $0x7e8] sm:$0xff]
  %v289 = vld [vmem:[%s1 + $0x7f0] sm:$0xff]
  %v290 = vld [vmem:[%s1 + $0x7f8] sm:$0xff]
  %v291 = vld [vmem:[%s1 + $0x800] sm:$0xff]
  %v292 = vld [vmem:[%s1 + $0x808] sm:$0xff]
  %v293 = vld [vmem:[%s1 + $0x810] sm:$0xff]
  %v294 = vld [vmem:[%s1 + $0x818] sm:$0xff]
  %v295 = vld [vmem:[%s1 + $0x820] sm:$0xff]
  %v296 = vld [vmem:[%s1 + $0x828] sm:$0xff]
  %v297 = vld [vmem:[%s1 + $0x830] sm:$0xff]
  %v298 = vld [vmem:[%s1 + $0x838] sm:$0xff]
  %v299 = vld [vmem:[%s1 + $0x840] sm:$0xff]
  %v300 = vld [vmem:[%s1 + $0x848] sm:$0xff]
  %v301 = vld [vmem:[%s1 + $0x850] sm:$0xff]
  %v302 = vld [vmem:[%s1 + $0x858] sm:$0xff]
  %v303 = vld [vmem:[%s1 + $0x860] sm:$0xff]
  %v304 = vld [vmem:[%s1 + $0x868] sm:$0xff]
  %v305 = vld [vmem:[%s1 + $0x870] sm:$0xff]
  %v306 = vld [vmem:[%s1 + $0x878] sm:$0xff]
  %v307 = vld [vmem:[%s1 + $0x880] sm:$0xff]
  %v308 = vld [vmem:[%s1 + $0x888] sm:$0xff]
  %v309 = vld [vmem:[%s1 + $0x890] sm:$0xff]
  %v310 = vld [vmem:[%s1 + $0x898] sm:$0xff]
  %v311 = vld [vmem:[%s1 + $0x8a0] sm:$0xff]
  %v312 = vld [vmem:[%s1 + $0x8a8] sm:$0xff]
  %v313 = vld [vmem:[%s1 + $0x8b0] sm:$0xff]
  %v314 = vld [vmem:[%s1 + $0x8b8] sm:$0xff]
  %v315 = vld [vmem:[%s1 + $0x8c0] sm:$0xff]
  %v316 = vld [vmem:[%s1 + $0x8c8] sm:$0xff]
  %v317 = vld [vmem:[%s1 + $0x8d0] sm:$0xff]
  %v318 = vld [vmem:[%s1 + $0x8d8] sm:$0xff]
  %v319 = vld [vmem:[%s1 + $0x8e0] sm:$0xff]
  %v320 = vld [vmem:[%s1 + $0x8e8] sm:$0xff]
  %v321 = vld [vmem:[%s1 + $0x8f0] sm:$0xff]
  %v322 = vld [vmem:[%s1 + $0x8f8] sm:$0xff]
  %v323 = vld [vmem:[%s1 + $0x900] sm:$0xff]
  %v324 = vld [vmem:[%s1 + $0x908] sm:$0xff]
  %v325 = vld [vmem:[%s1 + $0x910] sm:$0xff]
  %v326 = vld [vmem:[%s1 + $0x918] sm:$0xff]
  %v327 = vld [vmem:[%s1 + $0x920] sm:$0xff]
  %v328 = vld [vmem:[%s1 + $0x928] sm:$0xff]
  %v329 = vld [vmem:[%s1 + $0x930] sm:$0xff]
  %v330 = vld [vmem:[%s1 + $0x938] sm:$0xff]
  %v331 = vld [vmem:[%s1 + $0x940] sm:$0xff]
  %v332 = vld [vmem:[%s1 + $0x948] sm:$0xff]
  %v333 = vld [vmem:[%s1 + $0x950] sm:$0xff]
  %v334 = vld [vmem:[%s1 + $0x958] sm:$0xff]
  %v335 = vld [vmem:[%s1 + $0x960] sm:$0xff]
  %v336 = vld [vmem:[%s1 + $0x968] sm:$0xff]
  %v337 = vld [vmem:[%s1 + $0x970] sm:$0xff]
  %v338 = vld [vmem:[%s1 + $0x978] sm:$0xff]
  %v339 = vld [vmem:[%s1 + $0x980] sm:$0xff]
  %v340 = vld [vmem:[%s1 + $0x988] sm:$0xff]
  %v341 = vld [vmem:[%s1 + $0x990] sm:$0xff]
  %v342 = vld [vmem:[%s1 + $0x998] sm:$0xff]
  %v343 = vld [vmem:[%s1 + $0x9a0] sm:$0xff]
  %v344 = vld [vmem:[%s1 + $0x9a8] sm:$0xff]
  %v345 = vld [vmem:[%s1 + $0x9b0] sm:$0xff]
  %v346 = vld [vmem:[%s1 + $0x9b8] sm:$0xff]
  %v347 = vld [vmem:[%s1 + $0x9c0] sm:$0xff]
  %v348 = vld [vmem:[%s1 + $0x9c8] sm:$0xff]
  %v349 = vld [vmem:[%s1 + $0x9d0] sm:$0xff]
  %v350 = vld [vmem:[%s1 + $0x9d8] sm:$0xff]
  %v351 = vld [vmem:[%s1 + $0x9e0] sm:$0xff]
  %v352 = vld [vmem:[%s1 + $0x9e8] sm:$0xff]
  %v353 = vld [vmem:[%s1 + $0x9f0] sm:$0xff]
  %v354 = vld [vmem:[%s1 + $0x9f8] sm:$0xff]
  %v355 = vld [vmem:[%s1 + $0xa00] sm:$0xff]
  %v356 = vld [vmem:[%s1 + $0xa08] sm:$0xff]
  %v357 = vld [vmem:[%s1 + $0xa10] sm:$0xff]
  %v358 = vld [vmem:[%s1 + $0xa18] sm:$0xff]
  %v359 = vld [vmem:[%s1 + $0xa20] sm:$0xff]
  %v360 = vld [vmem:[%s1 + $0xa28] sm:$0xff]
  %v361 = vld [vmem:[%s1 + $0xa30] sm:$0xff]
  %v362 = vld [vmem:[%s1 + $0xa38] sm:$0xff]
  %v363 = vld [vmem:[%s1 + $0xa40] sm:$0xff]
  %v364 = vld [vmem:[%s1 + $0xa48] sm:$0xff]
  %v365 = vld [vmem:[%s1 + $0xa50] sm:$0xff]
  %v366 = vld [vmem:[%s1 + $0xa58] sm:$0xff]
  %v367 = vld [vmem:[%s1 + $0xa60] sm:$0xff]
  %v368 = vld [vmem:[%s1 + $0xa68] sm:$0xff]
  %v369 = vld [vmem:[%s1 + $0xa70] sm:$0xff]
  %v370 = vld [vmem:[%s1 + $0xa78] sm:$0xff]
  %v371 = vld [vmem:[%s1 + $0xa80] sm:$0xff]
  %v372 = vld [vmem:[%s1 + $0xa88] sm:$0xff]
  %v373 = vld [vmem:[%s1 + $0xa90] sm:$0xff]
  %v374 = vld [vmem:[%s1 + $0xa98] sm:$0xff]
  %v375 = vld [vmem:[%s1 + $0xaa0] sm:$0xff]
  %v376 = vld [vmem:[%s1 + $0xaa8] sm:$0xff]
  %v377 = vld [vmem:[%s1 + $0xab0] sm:$0xff]
  %v378 = vld [vmem:[%s1 + $0xab8] sm:$0xff]
  %v379 = vld [vmem:[%s1 + $0xac0] sm:$0xff]
  %v380 = vld [vmem:[%s1 + $0xac8] sm:$0xff]
  %v381 = vld [vmem:[%s1 + $0xad0] sm:$0xff]
  %v382 = vld [vmem:[%s1 + $0xad8] sm:$0xff]
  %v383 = vld [vmem:[%s1 + $0xae0] sm:$0xff]
  %v384 = vld [vmem:[%s1 + $0xae8] sm:$0xff]
  %v385 = vld [vmem:[%s1 + $0xaf0] sm:$0xff]
  %v386 = vld [vmem:[%s1 + $0xaf8] sm:$0xff]
  %v387 = vld [vmem:[%s1 + $0xb00] sm:$0xff]
  %v388 = vld [vmem:[%s1 + $0xb08] sm:$0xff]
  %v389 = vld [vmem:[%s1 + $0xb10] sm:$0xff]
  %v390 = vld [vmem:[%s1 + $0xb18] sm:$0xff]
  %v391 = vld [vmem:[%s1 + $0xb20] sm:$0xff]
  %v392 = vld [vmem:[%s1 + $0xb28] sm:$0xff]
  %v393 = vld [vmem:[%s1 + $0xb30] sm:$0xff]
  %v394 = vld [vmem:[%s1 + $0xb38] sm:$0xff]
  %v395 = vld [vmem:[%s1 + $0xb40] sm:$0xff]
  %v396 = vld [vmem:[%s1 + $0xb48] sm:$0xff]
  %v397 = vld [vmem:[%s1 + $0xb50] sm:$0xff]
  %v398 = vld [vmem:[%s1 + $0xb58] sm:$0xff]
  %v399 = vld [vmem:[%s1 + $0xb60] sm:$0xff]
  %v400 = vld [vmem:[%s1 + $0xb68] sm:$0xff]
  %v401 = vld [vmem:[%s1 + $0xb70] sm:$0xff]
  %v402 = vld [vmem:[%s1 + $0xb78] sm:$0xff]
  %v403 = vld [vmem:[%s1 + $0xb80] sm:$0xff]
  %v404 = vld [vmem:[%s1 + $0xb88] sm:$0xff]
  %v405 = vld [vmem:[%s1 + $0xb90] sm:$0xff]
  %v406 = vld [vmem:[%s1 + $0xb98] sm:$0xff]
  %v407 = vld [vmem:[%s1 + $0xba0] sm:$0xff]
  %v408 = vld [vmem:[%s1 + $0xba8] sm:$0xff]
  %v409 = vld [vmem:[%s1 + $0xbb0] sm:$0xff]
  %v410 = vld [vmem:[%s1 + $0xbb8] sm:$0xff]
  %v411 = vld [vmem:[%s1 + $0xbc0] sm:$0xff]
  %v412 = vld [vmem:[%s1 + $0xbc8] sm:$0xff]
  %v413 = vld [vmem:[%s1 + $0xbd0] sm:$0xff]
  %v414 = vld [vmem:[%s1 + $0xbd8] sm:$0xff]
  %v415 = vld [vmem:[%s1 + $0xbe0] sm:$0xff]
  %v416 = vld [vmem:[%s1 + $0xbe8] sm:$0xff]
  %v417 = vld [vmem:[%s1 + $0xbf0] sm:$0xff]
  %v418 = vld [vmem:[%s1 + $0xbf8] sm:$0xff]
  %v419 = vld [vmem:[%s1 + $0xc00] sm:$0xff]
  %v420 = vld [vmem:[%s1 + $0xc08] sm:$0xff]
  %v421 = vld [vmem:[%s1 + $0xc10] sm:$0xff]
  %v422 = vld [vmem:[%s1 + $0xc18] sm:$0xff]
  %v423 = vld [vmem:[%s1 + $0xc20] sm:$0xff]
  %v424 = vld [vmem:[%s1 + $0xc28] sm:$0xff]
  %v425 = vld [vmem:[%s1 + $0xc30] sm:$0xff]
  %v426 = vld [vmem:[%s1 + $0xc38] sm:$0xff]
  %v427 = vld [vmem:[%s1 + $0xc40] sm:$0xff]
  %v428 = vld [vmem:[%s1 + $0xc48] sm:$0xff]
  %v429 = vld [vmem:[%s1 + $0xc50] sm:$0xff]
  %v430 = vld [vmem:[%s1 + $0xc58] sm:$0xff]
  %v431 = vld [vmem:[%s1 + $0xc60] sm:$0xff]
  %v432 = vld [vmem:[%s1 + $0xc68] sm:$0xff]
  %v433 = vld [vmem:[%s1 + $0xc70] sm:$0xff]
  %v434 = vld [vmem:[%s1 + $0xc78] sm:$0xff]
  %v435 = vld [vmem:[%s1 + $0xc80] sm:$0xff]
  %v436 = vld [vmem:[%s1 + $0xc88] sm:$0xff]
  %v437 = vld [vmem:[%s1 + $0xc90] sm:$0xff]
  %v438 = vld [vmem:[%s1 + $0xc98] sm:$0xff]
  %v439 = vld [vmem:[%s1 + $0xca0] sm:$0xff]
  %v440 = vld [vmem:[%s1 + $0xca8] sm:$0xff]
  %v441 = vld [vmem:[%s1 + $0xcb0] sm:$0xff]
  %v442 = vld [vmem:[%s1 + $0xcb8] sm:$0xff]
  %v443 = vld [vmem:[%s1 + $0xcc0] sm:$0xff]
  %v444 = vld [vmem:[%s1 + $0xcc8] sm:$0xff]
  %v445 = vld [vmem:[%s1 + $0xcd0] sm:$0xff]
  %v446 = vld [vmem:[%s1 + $0xcd8] sm:$0xff]
  %v447 = vld [vmem:[%s1 + $0xce0] sm:$0xff]
  %v448 = vld [vmem:[%s1 + $0xce8] sm:$0xff]
  %v449 = vld [vmem:[%s1 + $0xcf0] sm:$0xff]
  %v450 = vld [vmem:[%s1 + $0xcf8] sm:$0xff]
  %v451 = vld [vmem:[%s1 + $0xd00] sm:$0xff]
  %v452 = vld [vmem:[%s1 + $0xd08] sm:$0xff]
  %v453 = vld [vmem:[%s1 + $0xd10] sm:$0xff]
  %v454 = vld [vmem:[%s1 + $0xd18] sm:$0xff]
  %v455 = vld [vmem:[%s1 + $0xd20] sm:$0xff]
  %v456 = vld [vmem:[%s1 + $0xd28] sm:$0xff]
  %v457 = vld [vmem:[%s1 + $0xd30] sm:$0xff]
  %v458 = vld [vmem:[%s1 + $0xd38] sm:$0xff]
  %v459 = vld [vmem:[%s1 + $0xd40] sm:$0xff]
  %v460 = vld [vmem:[%s1 + $0xd48] sm:$0xff]
  %v461 = vld [vmem:[%s1 + $0xd50] sm:$0xff]
  %v462 = vld [vmem:[%s1 + $0xd58] sm:$0xff]
  %v463 = vld [vmem:[%s1 + $0xd60] sm:$0xff]
  %v464 = vld [vmem:[%s1 + $0xd68] sm:$0xff]
  %v465 = vld [vmem:[%s1 + $0xd70] sm:$0xff]
  %v466 = vld [vmem:[%s1 + $0xd78] sm:$0xff]
  %v467 = vld [vmem:[%s1 + $0xd80] sm:$0xff]
  %v468 = vld [vmem:[%s1 + $0xd88] sm:$0xff]
  %v469 = vld [vmem:[%s1 + $0xd90] sm:$0xff]
  %v470 = vld [vmem:[%s1 + $0xd98] sm:$0xff]
  %v471 = vld [vmem:[%s1 + $0xda0] sm:$0xff]
  %v472 = vld [vmem:[%s1 + $0xda8] sm:$0xff]
  %v473 = vld [vmem:[%s1 + $0xdb0] sm:$0xff]
  %v474 = vld [vmem:[%s1 + $0xdb8] sm:$0xff]
  %v475 = vld [vmem:[%s1 + $0xdc0] sm:$0xff]
  %v476 = vld [vmem:[%s1 + $0xdc8] sm:$0xff]
  %v477 = vld [vmem:[%s1 + $0xdd0] sm:$0xff]
  %v478 = vld [vmem:[%s1 + $0xdd8] sm:$0xff]
  %v479 = vld [vmem:[%s1 + $0xde0] sm:$0xff]
  %v480 = vld [vmem:[%s1 + $0xde8] sm:$0xff]
  %v481 = vld [vmem:[%s1 + $0xdf0] sm:$0xff]
  %v482 = vld [vmem:[%s1 + $0xdf8] sm:$0xff]
  %v483 = vld [vmem:[%s1 + $0xe00] sm:$0xff]
  %v484 = vld [vmem:[%s1 + $0xe08] sm:$0xff]
  %v485 = vld [vmem:[%s1 + $0xe10] sm:$0xff]
  %v486 = vld [vmem:[%s1 + $0xe18] sm:$0xff]
  %v487 = vld [vmem:[%s1 + $0xe20] sm:$0xff]
  %v488 = vld [vmem:[%s1 + $0xe28] sm:$0xff]
  %v489 = vld [vmem:[%s1 + $0xe30] sm:$0xff]
  %v490 = vld [vmem:[%s1 + $0xe38] sm:$0xff]
  %v491 = vld [vmem:[%s1 + $0xe40] sm:$0xff]
  %v492 = vld [vmem:[%s1 + $0xe48] sm:$0xff]
  %v493 = vld [vmem:[%s1 + $0xe50] sm:$0xff]
  %v494 = vld [vmem:[%s1 + $0xe58] sm:$0xff]
  %v495 = vld [vmem:[%s1 + $0xe60] sm:$0xff]
  %v496 = vld [vmem:[%s1 + $0xe68] sm:$0xff]
  %v497 = vld [vmem:[%s1 + $0xe70] sm:$0xff]
  %v498 = vld [vmem:[%s1 + $0xe78] sm:$0xff]
  %v499 = vld [vmem:[%s1 + $0xe80] sm:$0xff]
  %v500 = vld [vmem:[%s1 + $0xe88] sm:$0xff]
  %v501 = vld [vmem:[%s1 + $0xe90] sm:$0xff]
  %v502 = vld [vmem:[%s1 + $0xe98] sm:$0xff]
  %v503 = vld [vmem:[%s1 + $0xea0] sm:$0xff]
  %v504 = vld [vmem:[%s1 + $0xea8] sm:$0xff]
  %v505 = vld [vmem:[%s1 + $0xeb0] sm:$0xff]
  %v506 = vld [vmem:[%s1 + $0xeb8] sm:$0xff]
  %v507 = vld [vmem:[%s1 + $0xec0] sm:$0xff]
  %v508 = vld [vmem:[%s1 + $0xec8] sm:$0xff]
  %v509 = vld [vmem:[%s1 + $0xed0] sm:$0xff]
  %v510 = vld [vmem:[%s1 + $0xed8] sm:$0xff]
  %v511 = vld [vmem:[%s1 + $0xee0] sm:$0xff]
  %v512 = vld [vmem:[%s1 + $0xee8] sm:$0xff]
  %v513 = vld [vmem:[%s1 + $0xef0] sm:$0xff]
  %v514 = vld [vmem:[%s1 + $0xef8] sm:$0xff]
  %v515 = vld [vmem:[%s1 + $0xf00] sm:$0xff]
  %v516 = vld [vmem:[%s1 + $0xf08] sm:$0xff]
  %v517 = vld [vmem:[%s1 + $0xf10] sm:$0xff]
  %v518 = vld [vmem:[%s1 + $0xf18] sm:$0xff]
  %v519 = vld [vmem:[%s1 + $0xf20] sm:$0xff]
  %v520 = vld [vmem:[%s1 + $0xf28] sm:$0xff]
  %v521 = vld [vmem:[%s1 + $0xf30] sm:$0xff]
  %v522 = vld [vmem:[%s1 + $0xf38] sm:$0xff]
  %v523 = vld [vmem:[%s1 + $0xf40] sm:$0xff]
  %v524 = vld [vmem:[%s1 + $0xf48] sm:$0xff]
  %v525 = vld [vmem:[%s1 + $0xf50] sm:$0xff]
  %v526 = vld [vmem:[%s1 + $0xf58] sm:$0xff]
  %v527 = vld [vmem:[%s1 + $0xf60] sm:$0xff]
  %v528 = vld [vmem:[%s1 + $0xf68] sm:$0xff]
  %v529 = vld [vmem:[%s1 + $0xf70] sm:$0xff]
  %v530 = vld [vmem:[%s1 + $0xf78] sm:$0xff]
  %v531 = vld [vmem:[%s1 + $0xf80] sm:$0xff]
  %v532 = vld [vmem:[%s1 + $0xf88] sm:$0xff]
  %v533 = vld [vmem:[%s1 + $0xf90] sm:$0xff]
  %v534 = vld [vmem:[%s1 + $0xf98] sm:$0xff]
  %v535 = vld [vmem:[%s1 + $0xfa0] sm:$0xff]
  %v536 = vld [vmem:[%s1 + $0xfa8] sm:$0xff]
  %v537 = vld [vmem:[%s1 + $0xfb0] sm:$0xff]
  %v538 = vld [vmem:[%s1 + $0xfb8] sm:$0xff]
  %v539 = vld [vmem:[%s1 + $0xfc0] sm:$0xff]
  %v540 = vld [vmem:[%s1 + $0xfc8] sm:$0xff]
  %v541 = vld [vmem:[%s1 + $0xfd0] sm:$0xff]
  %v542 = vld [vmem:[%s1 + $0xfd8] sm:$0xff]
  %v543 = vld [vmem:[%s1 + $0xfe0] sm:$0xff]
  %v544 = vld [vmem:[%s1 + $0xfe8] sm:$0xff]
  %v545 = vld [vmem:[%s1 + $0xff0] sm:$0xff]
  %v546 = vld [vmem:[%s1 + $0xff8] sm:$0xff]
  %v547 = vld [vmem:[%s1 + $0x1000] sm:$0xff]
  %v548 = vld [vmem:[%s1 + $0x1008] sm:$0xff]
  %v549 = vld [vmem:[%s1 + $0x1010] sm:$0xff]
  %v550 = vld [vmem:[%s1 + $0x1018] sm:$0xff]
  %v551 = vld [vmem:[%s1 + $0x1020] sm:$0xff]
  %v552 = vld [vmem:[%s1 + $0x1028] sm:$0xff]
  %v553 = vld [vmem:[%s1 + $0x1030] sm:$0xff]
  %v554 = vld [vmem:[%s1 + $0x1038] sm:$0xff]
  %v555 = vld [vmem:[%s1 + $0x1040] sm:$0xff]
  %v556 = vld [vmem:[%s1 + $0x1048] sm:$0xff]
  %v557 = vld [vmem:[%s1 + $0x1050] sm:$0xff]
  %v558 = vld [vmem:[%s1 + $0x1058] sm:$0xff]
  %v559 = vld [vmem:[%s1 + $0x1060] sm:$0xff]
  %v560 = vld [vmem:[%s1 + $0x1068] sm:$0xff]
  %v561 = vld [vmem:[%s1 + $0x1070] sm:$0xff]
  %v562 = vld [vmem:[%s1 + $0x1078] sm:$0xff]
  %v563 = vld [vmem:[%s1 + $0x1080] sm:$0xff]
  %v564 = vld [vmem:[%s1 + $0x1088] sm:$0xff]
  %v565 = vld [vmem:[%s1 + $0x1090] sm:$0xff]
  %v566 = vld [vmem:[%s1 + $0x1098] sm:$0xff]
  %v567 = vld [vmem:[%s1 + $0x10a0] sm:$0xff]
  %v568 = vld [vmem:[%s1 + $0x10a8] sm:$0xff]
  %v569 = vld [vmem:[%s1 + $0x10b0] sm:$0xff]
  %v570 = vld [vmem:[%s1 + $0x10b8] sm:$0xff]
  %v571 = vld [vmem:[%s1 + $0x10c0] sm:$0xff]
  %v572 = vld [vmem:[%s1 + $0x10c8] sm:$0xff]
  %v573 = vld [vmem:[%s1 + $0x10d0] sm:$0xff]
  %v574 = vld [vmem:[%s1 + $0x10d8] sm:$0xff]
  %v575 = vld [vmem:[%s1 + $0x10e0] sm:$0xff]
  %v576 = vld [vmem:[%s1 + $0x10e8] sm:$0xff]
  %v577 = vld [vmem:[%s1 + $0x10f0] sm:$0xff]
  %v578 = vld [vmem:[%s1 + $0x10f8] sm:$0xff]
  %v579 = vld [vmem:[%s1 + $0x1100] sm:$0xff]
  %v580 = vld [vmem:[%s1 + $0x1108] sm:$0xff]
  %v581 = vld [vmem:[%s1 + $0x1110] sm:$0xff]
  %v582 = vld [vmem:[%s1 + $0x1118] sm:$0xff]
  %v583 = vld [vmem:[%s1 + $0x1120] sm:$0xff]
  %v584 = vld [vmem:[%s1 + $0x1128] sm:$0xff]
  %v585 = vld [vmem:[%s1 + $0x1130] sm:$0xff]
  %v586 = vld [vmem:[%s1 + $0x1138] sm:$0xff]
  %v587 = vld [vmem:[%s1 + $0x1140] sm:$0xff]
  %v588 = vld [vmem:[%s1 + $0x1148] sm:$0xff]
  %v589 = vld [vmem:[%s1 + $0x1150] sm:$0xff]
  %v590 = vld [vmem:[%s1 + $0x1158] sm:$0xff]
  %v591 = vld [vmem:[%s1 + $0x1160] sm:$0xff]
  %v592 = vld [vmem:[%s1 + $0x1168] sm:$0xff]
  %v593 = vld [vmem:[%s1 + $0x1170] sm:$0xff]
  %v594 = vld [vmem:[%s1 + $0x1178] sm:$0xff]
  %v595 = vld [vmem:[%s1 + $0x1180] sm:$0xff]
  %v596 = vld [vmem:[%s1 + $0x1188] sm:$0xff]
  %v597 = vld [vmem:[%s1 + $0x1190] sm:$0xff]
  %v598 = vld [vmem:[%s1 + $0x1198] sm:$0xff]
  %v599 = vld [vmem:[%s1 + $0x11a0] sm:$0xff]
  %v600 = vld [vmem:[%s1 + $0x11a8] sm:$0xff]
  %v601 = vld [vmem:[%s1 + $0x11b0] sm:$0xff]
  %v602 = vld [vmem:[%s1 + $0x11b8] sm:$0xff]
  %v603 = vld [vmem:[%s1 + $0x11c0] sm:$0xff]
  %v604 = vld [vmem:[%s1 + $0x11c8] sm:$0xff]
  %v605 = vld [vmem:[%s1 + $0x11d0] sm:$0xff]
  %v606 = vld [vmem:[%s1 + $0x11d8] sm:$0xff]
  %v607 = vld [vmem:[%s1 + $0x11e0] sm:$0xff]
  %v608 = vld [vmem:[%s1 + $0x11e8] sm:$0xff]
  %v609 = vld [vmem:[%s1 + $0x11f0] sm:$0xff]
  %v610 = vld [vmem:[%s1 + $0x11f8] sm:$0xff]
  %v611 = vld [vmem:[%s1 + $0x1200] sm:$0xff]
  %v612 = vld [vmem:[%s1 + $0x1208] sm:$0xff]
  %v613 = vld [vmem:[%s1 + $0x1210] sm:$0xff]
  %v614 = vld [vmem:[%s1 + $0x1218] sm:$0xff]
  %v615 = vld [vmem:[%s1 + $0x1220] sm:$0xff]
  %v616 = vld [vmem:[%s1 + $0x1228] sm:$0xff]
  %v617 = vld [vmem:[%s1 + $0x1230] sm:$0xff]
  %v618 = vld [vmem:[%s1 + $0x1238] sm:$0xff]
  %v619 = vld [vmem:[%s1 + $0x1240] sm:$0xff]
  %v620 = vld [vmem:[%s1 + $0x1248] sm:$0xff]
  %v621 = vld [vmem:[%s1 + $0x1250] sm:$0xff]
  %v622 = vld [vmem:[%s1 + $0x1258] sm:$0xff]
  %v623 = vld [vmem:[%s1 + $0x1260] sm:$0xff]
  %v624 = vld [vmem:[%s1 + $0x1268] sm:$0xff]
  %v625 = vld [vmem:[%s1 + $0x1270] sm:$0xff]
  %v626 = vld [vmem:[%s1 + $0x1278] sm:$0xff]
  %v627 = vld [vmem:[%s1 + $0x1280] sm:$0xff]
  %v628 = vld [vmem:[%s1 + $0x1288] sm:$0xff]
  %v629 = vld [vmem:[%s1 + $0x1290] sm:$0xff]
  %v630 = vld [vmem:[%s1 + $0x1298] sm:$0xff]
  %v631 = vld [vmem:[%s1 + $0x12a0] sm:$0xff]
  %v632 = vld [vmem:[%s1 + $0x12a8] sm:$0xff]
  %v633 = vld [vmem:[%s1 + $0x12b0] sm:$0xff]
  %v634 = vld [vmem:[%s1 + $0x12b8] sm:$0xff]
  %v635 = vld [vmem:[%s1 + $0x12c0] sm:$0xff]
  %v636 = vld [vmem:[%s1 + $0x12c8] sm:$0xff]
  %v637 = vld [vmem:[%s1 + $0x12d0] sm:$0xff]
  %v638 = vld [vmem:[%s1 + $0x12d8] sm:$0xff]
  %v639 = vld [vmem:[%s1 + $0x12e0] sm:$0xff]
  %v640 = vld [vmem:[%s1 + $0x12e8] sm:$0xff]
  %v641 = vld [vmem:[%s1 + $0x12f0] sm:$0xff]
  %v642 = vld [vmem:[%s1 + $0x12f8] sm:$0xff]
  %v643 = vld [vmem:[%s1 + $0x1300] sm:$0xff]
  %v644 = vld [vmem:[%s1 + $0x1308] sm:$0xff]
  %v645 = vld [vmem:[%s1 + $0x1310] sm:$0xff]
  %v646 = vld [vmem:[%s1 + $0x1318] sm:$0xff]
  %v647 = vld [vmem:[%s1 + $0x1320] sm:$0xff]
  %v648 = vld [vmem:[%s1 + $0x1328] sm:$0xff]
  %v649 = vld [vmem:[%s1 + $0x1330] sm:$0xff]
  %v650 = vld [vmem:[%s1 + $0x1338] sm:$0xff]
  %v651 = vld [vmem:[%s1 + $0x1340] sm:$0xff]
  %v652 = vld [vmem:[%s1 + $0x1348] sm:$0xff]
  %v653 = vld [vmem:[%s1 + $0x1350] sm:$0xff]
  %v654 = vld [vmem:[%s1 + $0x1358] sm:$0xff]
  %v655 = vld [vmem:[%s1 + $0x1360] sm:$0xff]
  %v656 = vld [vmem:[%s1 + $0x1368] sm:$0xff]
  %v657 = vld [vmem:[%s1 + $0x1370] sm:$0xff]
  %v658 = vld [vmem:[%s1 + $0x1378] sm:$0xff]
  %v659 = vld [vmem:[%s1 + $0x1380] sm:$0xff]
  %v660 = vld [vmem:[%s1 + $0x1388] sm:$0xff]
  %v661 = vld [vmem:[%s1 + $0x1390] sm:$0xff]
  %v662 = vld [vmem:[%s1 + $0x1398] sm:$0xff]
  %v663 = vld [vmem:[%s1 + $0x13a0] sm:$0xff]
  %v664 = vld [vmem:[%s1 + $0x13a8] sm:$0xff]
  %v665 = vld [vmem:[%s1 + $0x13b0] sm:$0xff]
  %v666 = vld [vmem:[%s1 + $0x13b8] sm:$0xff]
  %v667 = vld [vmem:[%s1 + $0x13c0] sm:$0xff]
  %v668 = vld [vmem:[%s1 + $0x13c8] sm:$0xff]
  %v669 = vld [vmem:[%s1 + $0x13d0] sm:$0xff]
  %v670 = vld [vmem:[%s1 + $0x13d8] sm:$0xff]
  %v671 = vld [vmem:[%s1 + $0x13e0] sm:$0xff]
  %v672 = vld [vmem:[%s1 + $0x13e8] sm:$0xff]
  %v673 = vld [vmem:[%s1 + $0x13f0] sm:$0xff]
  %v674 = vld [vmem:[%s1 + $0x13f8] sm:$0xff]
  %v675 = vld [vmem:[%s1 + $0x1400] sm:$0xff]
  %v676 = vld [vmem:[%s1 + $0x1408] sm:$0xff]
  %v677 = vld [vmem:[%s1 + $0x1410] sm:$0xff]
  %v678 = vld [vmem:[%s1 + $0x1418] sm:$0xff]
  %v679 = vld [vmem:[%s1 + $0x1420] sm:$0xff]
  %v680 = vld [vmem:[%s1 + $0x1428] sm:$0xff]
  %v681 = vld [vmem:[%s1 + $0x1430] sm:$0xff]
  %v682 = vld [vmem:[%s1 + $0x1438] sm:$0xff]
  %v683 = vld [vmem:[%s1 + $0x1440] sm:$0xff]
  %v684 = vld [vmem:[%s1 + $0x1448] sm:$0xff]
  %v685 = vld [vmem:[%s1 + $0x1450] sm:$0xff]
  %v686 = vld [vmem:[%s1 + $0x1458] sm:$0xff]
  %v687 = vld [vmem:[%s1 + $0x1460] sm:$0xff]
  %v688 = vld [vmem:[%s1 + $0x1468] sm:$0xff]
  %v689 = vld [vmem:[%s1 + $0x1470] sm:$0xff]
  %v690 = vld [vmem:[%s1 + $0x1478] sm:$0xff]
  %v691 = vld [vmem:[%s1 + $0x1480] sm:$0xff]
  %v692 = vld [vmem:[%s1 + $0x1488] sm:$0xff]
  %v693 = vld [vmem:[%s1 + $0x1490] sm:$0xff]
  %v694 = vld [vmem:[%s1 + $0x1498] sm:$0xff]
  %v695 = vld [vmem:[%s1 + $0x14a0] sm:$0xff]
  %v696 = vld [vmem:[%s1 + $0x14a8] sm:$0xff]
  %v697 = vld [vmem:[%s1 + $0x14b0] sm:$0xff]
  %v698 = vld [vmem:[%s1 + $0x14b8] sm:$0xff]
  %v699 = vld [vmem:[%s1 + $0x14c0] sm:$0xff]
  %v700 = vld [vmem:[%s1 + $0x14c8] sm:$0xff]
  %v701 = vld [vmem:[%s1 + $0x14d0] sm:$0xff]
  %v702 = vld [vmem:[%s1 + $0x14d8] sm:$0xff]
  %v703 = vld [vmem:[%s1 + $0x14e0] sm:$0xff]
  %v704 = vld [vmem:[%s1 + $0x14e8] sm:$0xff]
  %v705 = vld [vmem:[%s1 + $0x14f0] sm:$0xff]
  %v706 = vld [vmem:[%s1 + $0x14f8] sm:$0xff]
  %v707 = vld [vmem:[%s1 + $0x1500] sm:$0xff]
  %v708 = vld [vmem:[%s1 + $0x1508] sm:$0xff]
  %v709 = vld [vmem:[%s1 + $0x1510] sm:$0xff]
  %v710 = vld [vmem:[%s1 + $0x1518] sm:$0xff]
  %v711 = vld [vmem:[%s1 + $0x1520] sm:$0xff]
  %v712 = vld [vmem:[%s1 + $0x1528] sm:$0xff]
  %v713 = vld [vmem:[%s1 + $0x1530] sm:$0xff]
  %v714 = vld [vmem:[%s1 + $0x1538] sm:$0xff]
  %v715 = vld [vmem:[%s1 + $0x1540] sm:$0xff]
  %v716 = vld [vmem:[%s1 + $0x1548] sm:$0xff]
  %v717 = vld [vmem:[%s1 + $0x1550] sm:$0xff]
  %v718 = vld [vmem:[%s1 + $0x1558] sm:$0xff]
  %v719 = vld [vmem:[%s1 + $0x1560] sm:$0xff]
  %v720 = vld [vmem:[%s1 + $0x1568] sm:$0xff]
  %v721 = vld [vmem:[%s1 + $0x1570] sm:$0xff]
  %v722 = vld [vmem:[%s1 + $0x1578] sm:$0xff]
  %v723 = vld [vmem:[%s1 + $0x1580] sm:$0xff]
  %v724 = vld [vmem:[%s1 + $0x1588] sm:$0xff]
  %v725 = vld [vmem:[%s1 + $0x1590] sm:$0xff]
  %v726 = vld [vmem:[%s1 + $0x1598] sm:$0xff]
  %v727 = vld [vmem:[%s1 + $0x15a0] sm:$0xff]
  %v728 = vld [vmem:[%s1 + $0x15a8] sm:$0xff]
  %v729 = vld [vmem:[%s1 + $0x15b0] sm:$0xff]
  %v730 = vld [vmem:[%s1 + $0x15b8] sm:$0xff]
  %v731 = vld [vmem:[%s1 + $0x15c0] sm:$0xff]
  %v732 = vld [vmem:[%s1 + $0x15c8] sm:$0xff]
  %v733 = vld [vmem:[%s1 + $0x15d0] sm:$0xff]
  %v734 = vld [vmem:[%s1 + $0x15d8] sm:$0xff]
  %v735 = vld [vmem:[%s1 + $0x15e0] sm:$0xff]
  %v736 = vld [vmem:[%s1 + $0x15e8] sm:$0xff]
  %v737 = vld [vmem:[%s1 + $0x15f0] sm:$0xff]
  %v738 = vld [vmem:[%s1 + $0x15f8] sm:$0xff]
  %v739 = vld [vmem:[%s1 + $0x1600] sm:$0xff]
  %v740 = vld [vmem:[%s1 + $0x1608] sm:$0xff]
  %v741 = vld [vmem:[%s1 + $0x1610] sm:$0xff]
  %v742 = vld [vmem:[%s1 + $0x1618] sm:$0xff]
  %v743 = vld [vmem:[%s1 + $0x1620] sm:$0xff]
  %v744 = vld [vmem:[%s1 + $0x1628] sm:$0xff]
  %v745 = vld [vmem:[%s1 + $0x1630] sm:$0xff]
  %v746 = vld [vmem:[%s1 + $0x1638] sm:$0xff]
  %v747 = vld [vmem:[%s1 + $0x1640] sm:$0xff]
  %v748 = vld [vmem:[%s1 + $0x1648] sm:$0xff]
  %v749 = vld [vmem:[%s1 + $0x1650] sm:$0xff]
  %v750 = vld [vmem:[%s1 + $0x1658] sm:$0xff]
  %v751 = vld [vmem:[%s1 + $0x1660] sm:$0xff]
  %v752 = vld [vmem:[%s1 + $0x1668] sm:$0xff]
  %v753 = vld [vmem:[%s1 + $0x1670] sm:$0xff]
  %v754 = vld [vmem:[%s1 + $0x1678] sm:$0xff]
  %v755 = vld [vmem:[%s1 + $0x1680] sm:$0xff]
  %v756 = vld [vmem:[%s1 + $0x1688] sm:$0xff]
  %v757 = vld [vmem:[%s1 + $0x1690] sm:$0xff]
  %v758 = vld [vmem:[%s1 + $0x1698] sm:$0xff]
  %v759 = vld [vmem:[%s1 + $0x16a0] sm:$0xff]
  %v760 = vld [vmem:[%s1 + $0x16a8] sm:$0xff]
  %v761 = vld [vmem:[%s1 + $0x16b0] sm:$0xff]
  %v762 = vld [vmem:[%s1 + $0x16b8] sm:$0xff]
  %v763 = vld [vmem:[%s1 + $0x16c0] sm:$0xff]
  %v764 = vld [vmem:[%s1 + $0x16c8] sm:$0xff]
  %v765 = vld [vmem:[%s1 + $0x16d0] sm:$0xff]
  %v766 = vld [vmem:[%s1 + $0x16d8] sm:$0xff]
  %v767 = vld [vmem:[%s1 + $0x16e0] sm:$0xff]
  %v768 = vld [vmem:[%s1 + $0x16e8] sm:$0xff]
  %v769 = vld [vmem:[%s1 + $0x16f0] sm:$0xff]
  %v770 = vld [vmem:[%s1 + $0x16f8] sm:$0xff]
  %v771 = vld [vmem:[%s1 + $0x1700] sm:$0xff]
  %v772 = vld [vmem:[%s1 + $0x1708] sm:$0xff]
  %v773 = vld [vmem:[%s1 + $0x1710] sm:$0xff]
  %v774 = vld [vmem:[%s1 + $0x1718] sm:$0xff]
  %v775 = vld [vmem:[%s1 + $0x1720] sm:$0xff]
  %v776 = vld [vmem:[%s1 + $0x1728] sm:$0xff]
  %v777 = vld [vmem:[%s1 + $0x1730] sm:$0xff]
  %v778 = vld [vmem:[%s1 + $0x1738] sm:$0xff]
  %v779 = vld [vmem:[%s1 + $0x1740] sm:$0xff]
  %v780 = vld [vmem:[%s1 + $0x1748] sm:$0xff]
  %v781 = vld [vmem:[%s1 + $0x1750] sm:$0xff]
  %v782 = vld [vmem:[%s1 + $0x1758] sm:$0xff]
  %v783 = vld [vmem:[%s1 + $0x1760] sm:$0xff]
  %v784 = vld [vmem:[%s1 + $0x1768] sm:$0xff]
  %v785 = vld [vmem:[%s1 + $0x1770] sm:$0xff]
  %v786 = vld [vmem:[%s1 + $0x1778] sm:$0xff]
  %v787 = vld [vmem:[%s1 + $0x1780] sm:$0xff]
  %v788 = vld [vmem:[%s1 + $0x1788] sm:$0xff]
  %v789 = vld [vmem:[%s1 + $0x1790] sm:$0xff]
  %v790 = vld [vmem:[%s1 + $0x1798] sm:$0xff]
  %v791 = vld [vmem:[%s1 + $0x17a0] sm:$0xff]
  %v792 = vld [vmem:[%s1 + $0x17a8] sm:$0xff]
  %v793 = vld [vmem:[%s1 + $0x17b0] sm:$0xff]
  %v794 = vld [vmem:[%s1 + $0x17b8] sm:$0xff]
  %v795 = vld [vmem:[%s1 + $0x17c0] sm:$0xff]
  %v796 = vld [vmem:[%s1 + $0x17c8] sm:$0xff]
  %v797 = vld [vmem:[%s1 + $0x17d0] sm:$0xff]
  %v798 = vld [vmem:[%s1 + $0x17d8] sm:$0xff]
  %v799 = vld [vmem:[%s1 + $0x17e0] sm:$0xff]
  %v800 = vld [vmem:[%s1 + $0x17e8] sm:$0xff]
  %v801 = vld [vmem:[%s1 + $0x17f0] sm:$0xff]
  %v802 = vld [vmem:[%s1 + $0x17f8] sm:$0xff]
  %v803 = vld [vmem:[%s1 + $0x1800] sm:$0xff]
  %v804 = vld [vmem:[%s1 + $0x1808] sm:$0xff]
  %v805 = vld [vmem:[%s1 + $0x1810] sm:$0xff]
  %v806 = vld [vmem:[%s1 + $0x1818] sm:$0xff]
  %v807 = vld [vmem:[%s1 + $0x1820] sm:$0xff]
  %v808 = vld [vmem:[%s1 + $0x1828] sm:$0xff]
  %v809 = vld [vmem:[%s1 + $0x1830] sm:$0xff]
  %v810 = vld [vmem:[%s1 + $0x1838] sm:$0xff]
  %v811 = vld [vmem:[%s1 + $0x1840] sm:$0xff]
  %v812 = vld [vmem:[%s1 + $0x1848] sm:$0xff]
  %v813 = vld [vmem:[%s1 + $0x1850] sm:$0xff]
  %v814 = vld [vmem:[%s1 + $0x1858] sm:$0xff]
  %v815 = vld [vmem:[%s1 + $0x1860] sm:$0xff]
  %v816 = vld [vmem:[%s1 + $0x1868] sm:$0xff]
  %v817 = vld [vmem:[%s1 + $0x1870] sm:$0xff]
  %v818 = vld [vmem:[%s1 + $0x1878] sm:$0xff]
  %v819 = vld [vmem:[%s1 + $0x1880] sm:$0xff]
  %v820 = vld [vmem:[%s1 + $0x1888] sm:$0xff]
  %v821 = vld [vmem:[%s1 + $0x1890] sm:$0xff]
  %v822 = vld [vmem:[%s1 + $0x1898] sm:$0xff]
  %v823 = vld [vmem:[%s1 + $0x18a0] sm:$0xff]
  %v824 = vld [vmem:[%s1 + $0x18a8] sm:$0xff]
  %v825 = vld [vmem:[%s1 + $0x18b0] sm:$0xff]
  %v826 = vld [vmem:[%s1 + $0x18b8] sm:$0xff]
  %v827 = vld [vmem:[%s1 + $0x18c0] sm:$0xff]
  %v828 = vld [vmem:[%s1 + $0x18c8] sm:$0xff]
  %v829 = vld [vmem:[%s1 + $0x18d0] sm:$0xff]
  %v830 = vld [vmem:[%s1 + $0x18d8] sm:$0xff]
  %v831 = vld [vmem:[%s1 + $0x18e0] sm:$0xff]
  %v832 = vld [vmem:[%s1 + $0x18e8] sm:$0xff]
  %v833 = vld [vmem:[%s1 + $0x18f0] sm:$0xff]
  %v834 = vld [vmem:[%s1 + $0x18f8] sm:$0xff]
  %v835 = vld [vmem:[%s1 + $0x1900] sm:$0xff]
  %v836 = vld [vmem:[%s1 + $0x1908] sm:$0xff]
  %v837 = vld [vmem:[%s1 + $0x1910] sm:$0xff]
  %v838 = vld [vmem:[%s1 + $0x1918] sm:$0xff]
  %v839 = vld [vmem:[%s1 + $0x1920] sm:$0xff]
  %v840 = vld [vmem:[%s1 + $0x1928] sm:$0xff]
  %v841 = vld [vmem:[%s1 + $0x1930] sm:$0xff]
  %v842 = vld [vmem:[%s1 + $0x1938] sm:$0xff]
  %v843 = vld [vmem:[%s1 + $0x1940] sm:$0xff]
  %v844 = vld [vmem:[%s1 + $0x1948] sm:$0xff]
  %v845 = vld [vmem:[%s1 + $0x1950] sm:$0xff]
  %v846 = vld [vmem:[%s1 + $0x1958] sm:$0xff]
  %v847 = vld [vmem:[%s1 + $0x1960] sm:$0xff]
  %v848 = vld [vmem:[%s1 + $0x1968] sm:$0xff]
  %v849 = vld [vmem:[%s1 + $0x1970] sm:$0xff]
  %v850 = vld [vmem:[%s1 + $0x1978] sm:$0xff]
  %v851 = vld [vmem:[%s1 + $0x1980] sm:$0xff]
  %v852 = vld [vmem:[%s1 + $0x1988] sm:$0xff]
  %v853 = vld [vmem:[%s1 + $0x1990] sm:$0xff]
  %v854 = vld [vmem:[%s1 + $0x1998] sm:$0xff]
  %v855 = vld [vmem:[%s1 + $0x19a0] sm:$0xff]
  %v856 = vld [vmem:[%s1 + $0x19a8] sm:$0xff]
  %v857 = vld [vmem:[%s1 + $0x19b0] sm:$0xff]
  %v858 = vld [vmem:[%s1 + $0x19b8] sm:$0xff]
  %v859 = vld [vmem:[%s1 + $0x19c0] sm:$0xff]
  %v860 = vld [vmem:[%s1 + $0x19c8] sm:$0xff]
  %v861 = vld [vmem:[%s1 + $0x19d0] sm:$0xff]
  %v862 = vld [vmem:[%s1 + $0x19d8] sm:$0xff]
  %v863 = vld [vmem:[%s1 + $0x19e0] sm:$0xff]
  %v864 = vld [vmem:[%s1 + $0x19e8] sm:$0xff]
  %v865 = vld [vmem:[%s1 + $0x19f0] sm:$0xff]
  %v866 = vld [vmem:[%s1 + $0x19f8] sm:$0xff]
  %v867 = vld [vmem:[%s1 + $0x1a00] sm:$0xff]
  %v868 = vld [vmem:[%s1 + $0x1a08] sm:$0xff]
  %v869 = vld [vmem:[%s1 + $0x1a10] sm:$0xff]
  %v870 = vld [vmem:[%s1 + $0x1a18] sm:$0xff]
  %v871 = vld [vmem:[%s1 + $0x1a20] sm:$0xff]
  %v872 = vld [vmem:[%s1 + $0x1a28] sm:$0xff]
  %v873 = vld [vmem:[%s1 + $0x1a30] sm:$0xff]
  %v874 = vld [vmem:[%s1 + $0x1a38] sm:$0xff]
  %v875 = vld [vmem:[%s1 + $0x1a40] sm:$0xff]
  %v876 = vld [vmem:[%s1 + $0x1a48] sm:$0xff]
  %v877 = vld [vmem:[%s1 + $0x1a50] sm:$0xff]
  %v878 = vld [vmem:[%s1 + $0x1a58] sm:$0xff]
  %v879 = vld [vmem:[%s1 + $0x1a60] sm:$0xff]
  %v880 = vld [vmem:[%s1 + $0x1a68] sm:$0xff]
  %v881 = vld [vmem:[%s1 + $0x1a70] sm:$0xff]
  %v882 = vld [vmem:[%s1 + $0x1a78] sm:$0xff]
  %v883 = vld [vmem:[%s1 + $0x1a80] sm:$0xff]
  %v884 = vld [vmem:[%s1 + $0x1a88] sm:$0xff]
  %v885 = vld [vmem:[%s1 + $0x1a90] sm:$0xff]
  %v886 = vld [vmem:[%s1 + $0x1a98] sm:$0xff]
  %v887 = vld [vmem:[%s1 + $0x1aa0] sm:$0xff]
  %v888 = vld [vmem:[%s1 + $0x1aa8] sm:$0xff]
  %v889 = vld [vmem:[%s1 + $0x1ab0] sm:$0xff]
  %v890 = vld [vmem:[%s1 + $0x1ab8] sm:$0xff]
  %v891 = vld [vmem:[%s1 + $0x1ac0] sm:$0xff]
  %v892 = vld [vmem:[%s1 + $0x1ac8] sm:$0xff]
  %v893 = vld [vmem:[%s1 + $0x1ad0] sm:$0xff]
  %v894 = vld [vmem:[%s1 + $0x1ad8] sm:$0xff]
  %v895 = vld [vmem:[%s1 + $0x1ae0] sm:$0xff]
  %v896 = vld [vmem:[%s1 + $0x1ae8] sm:$0xff]
  %v897 = vld [vmem:[%s1 + $0x1af0] sm:$0xff]
  %v898 = vld [vmem:[%s1 + $0x1af8] sm:$0xff]
  %v899 = vld [vmem:[%s1 + $0x1b00] sm:$0xff]
  %v900 = vld [vmem:[%s1 + $0x1b08] sm:$0xff]
  %v901 = vld [vmem:[%s1 + $0x1b10] sm:$0xff]
  %v902 = vld [vmem:[%s1 + $0x1b18] sm:$0xff]
  %v903 = vld [vmem:[%s1 + $0x1b20] sm:$0xff]
  %v904 = vld [vmem:[%s1 + $0x1b28] sm:$0xff]
  %v905 = vld [vmem:[%s1 + $0x1b30] sm:$0xff]
  %v906 = vld [vmem:[%s1 + $0x1b38] sm:$0xff]
  %v907 = vld [vmem:[%s1 + $0x1b40] sm:$0xff]
  %v908 = vld [vmem:[%s1 + $0x1b48] sm:$0xff]
  %v909 = vld [vmem:[%s1 + $0x1b50] sm:$0xff]
  %v910 = vld [vmem:[%s1 + $0x1b58] sm:$0xff]
  %v911 = vld [vmem:[%s1 + $0x1b60] sm:$0xff]
  %v912 = vld [vmem:[%s1 + $0x1b68] sm:$0xff]
  %v913 = vld [vmem:[%s1 + $0x1b70] sm:$0xff]
  %v914 = vld [vmem:[%s1 + $0x1b78] sm:$0xff]
  %v915 = vld [vmem:[%s1 + $0x1b80] sm:$0xff]
  %v916 = vld [vmem:[%s1 + $0x1b88] sm:$0xff]
  %v917 = vld [vmem:[%s1 + $0x1b90] sm:$0xff]
  %v918 = vld [vmem:[%s1 + $0x1b98] sm:$0xff]
  %v919 = vld [vmem:[%s1 + $0x1ba0] sm:$0xff]
  %v920 = vld [vmem:[%s1 + $0x1ba8] sm:$0xff]
  %v921 = vld [vmem:[%s1 + $0x1bb0] sm:$0xff]
  %v922 = vld [vmem:[%s1 + $0x1bb8] sm:$0xff]
  %v923 = vld [vmem:[%s1 + $0x1bc0] sm:$0xff]
  %v924 = vld [vmem:[%s1 + $0x1bc8] sm:$0xff]
  %v925 = vld [vmem:[%s1 + $0x1bd0] sm:$0xff]
  %v926 = vld [vmem:[%s1 + $0x1bd8] sm:$0xff]
  %v927 = vld [vmem:[%s1 + $0x1be0] sm:$0xff]
  %v928 = vld [vmem:[%s1 + $0x1be8] sm:$0xff]
  %v929 = vld [vmem:[%s1 + $0x1bf0] sm:$0xff]
  %v930 = vld [vmem:[%s1 + $0x1bf8] sm:$0xff]
  %v931 = vld [vmem:[%s1 + $0x1c00] sm:$0xff]
  %v932 = vld [vmem:[%s1 + $0x1c08] sm:$0xff]
  %v933 = vld [vmem:[%s1 + $0x1c10] sm:$0xff]
  %v934 = vld [vmem:[%s1 + $0x1c18] sm:$0xff]
  %v935 = vld [vmem:[%s1 + $0x1c20] sm:$0xff]
  %v936 = vld [vmem:[%s1 + $0x1c28] sm:$0xff]
  %v937 = vld [vmem:[%s1 + $0x1c30] sm:$0xff]
  %v938 = vld [vmem:[%s1 + $0x1c38] sm:$0xff]
  %v939 = vld [vmem:[%s1 + $0x1c40] sm:$0xff]
  %v940 = vld [vmem:[%s1 + $0x1c48] sm:$0xff]
  %v941 = vld [vmem:[%s1 + $0x1c50] sm:$0xff]
  %v942 = vld [vmem:[%s1 + $0x1c58] sm:$0xff]
  %v943 = vld [vmem:[%s1 + $0x1c60] sm:$0xff]
  %v944 = vld [vmem:[%s1 + $0x1c68] sm:$0xff]
  %v945 = vld [vmem:[%s1 + $0x1c70] sm:$0xff]
  %v946 = vld [vmem:[%s1 + $0x1c78] sm:$0xff]
  %v947 = vld [vmem:[%s1 + $0x1c80] sm:$0xff]
  %v948 = vld [vmem:[%s1 + $0x1c88] sm:$0xff]
  %v949 = vld [vmem:[%s1 + $0x1c90] sm:$0xff]
  %v950 = vld [vmem:[%s1 + $0x1c98] sm:$0xff]
  %v951 = vld [vmem:[%s1 + $0x1ca0] sm:$0xff]
  %v952 = vld [vmem:[%s1 + $0x1ca8] sm:$0xff]
  %v953 = vld [vmem:[%s1 + $0x1cb0] sm:$0xff]
  %v954 = vld [vmem:[%s1 + $0x1cb8] sm:$0xff]
  %v955 = vld [vmem:[%s1 + $0x1cc0] sm:$0xff]
  %v956 = vld [vmem:[%s1 + $0x1cc8] sm:$0xff]
  %v957 = vld [vmem:[%s1 + $0x1cd0] sm:$0xff]
  %v958 = vld [vmem:[%s1 + $0x1cd8] sm:$0xff]
  %v959 = vld [vmem:[%s1 + $0x1ce0] sm:$0xff]
  %v960 = vld [vmem:[%s1 + $0x1ce8] sm:$0xff]
  %v961 = vld [vmem:[%s1 + $0x1cf0] sm:$0xff]
  %v962 = vld [vmem:[%s1 + $0x1cf8] sm:$0xff]
  %v963 = vld [vmem:[%s1 + $0x1d00] sm:$0xff]
  %v964 = vld [vmem:[%s1 + $0x1d08] sm:$0xff]
  %v965 = vld [vmem:[%s1 + $0x1d10] sm:$0xff]
  %v966 = vld [vmem:[%s1 + $0x1d18] sm:$0xff]
  %v967 = vld [vmem:[%s1 + $0x1d20] sm:$0xff]
  %v968 = vld [vmem:[%s1 + $0x1d28] sm:$0xff]
  %v969 = vld [vmem:[%s1 + $0x1d30] sm:$0xff]
  %v970 = vld [vmem:[%s1 + $0x1d38] sm:$0xff]
  %v971 = vld [vmem:[%s1 + $0x1d40] sm:$0xff]
  %v972 = vld [vmem:[%s1 + $0x1d48] sm:$0xff]
  %v973 = vld [vmem:[%s1 + $0x1d50] sm:$0xff]
  %v974 = vld [vmem:[%s1 + $0x1d58] sm:$0xff]
  %v975 = vld [vmem:[%s1 + $0x1d60] sm:$0xff]
  %v976 = vld [vmem:[%s1 + $0x1d68] sm:$0xff]
  %v977 = vld [vmem:[%s1 + $0x1d70] sm:$0xff]
  %v978 = vld [vmem:[%s1 + $0x1d78] sm:$0xff]
  %v979 = vld [vmem:[%s1 + $0x1d80] sm:$0xff]
  %v980 = vld [vmem:[%s1 + $0x1d88] sm:$0xff]
  %v981 = vld [vmem:[%s1 + $0x1d90] sm:$0xff]
  %v982 = vld [vmem:[%s1 + $0x1d98] sm:$0xff]
  %v983 = vld [vmem:[%s1 + $0x1da0] sm:$0xff]
  %v984 = vld [vmem:[%s1 + $0x1da8] sm:$0xff]
  %v985 = vld [vmem:[%s1 + $0x1db0] sm:$0xff]
  %v986 = vld [vmem:[%s1 + $0x1db8] sm:$0xff]
  %v987 = vld [vmem:[%s1 + $0x1dc0] sm:$0xff]
  %v988 = vld [vmem:[%s1 + $0x1dc8] sm:$0xff]
  %v989 = vld [vmem:[%s1 + $0x1dd0] sm:$0xff]
  %v990 = vld [vmem:[%s1 + $0x1dd8] sm:$0xff]
  %v991 = vld [vmem:[%s1 + $0x1de0] sm:$0xff]
  %v992 = vld [vmem:[%s1 + $0x1de8] sm:$0xff]
  %v993 = vld [vmem:[%s1 + $0x1df0] sm:$0xff]
  %v994 = vld [vmem:[%s1 + $0x1df8] sm:$0xff]
  %v995 = vld [vmem:[%s2] sm:$0xf]
  %v997 = vlaneseq
  %v998 = vshrl.u32 %v997, 7
  %v999 = vsub.s32 0, %v998
  %v1000 = vrot.slane %v995, %v999
  %v1001 = vlaneseq
  %v1002 = vshrl.u32 %v1001, 7
  %v1003 = vsub.s32 1, %v1002
  %v1004 = vrot.slane %v995, %v1003
  %v1005 = vlaneseq
  %v1006 = vshrl.u32 %v1005, 7
  %v1007 = vsub.s32 2, %v1006
  %v1008 = vrot.slane %v995, %v1007
  %v1009 = vlaneseq
  %v1010 = vshrl.u32 %v1009, 7
  %v1011 = vsub.s32 3, %v1010
  %v1012 = vrot.slane %v995, %v1011
  %1017 = vmatprep.subr.mxu0 %v96
  %1018 = vmatpush1.msra.mxu0 %v95
  %1019 = vmatprep.subr.mxu0 %v92
  %1020 = vmatpush1.msra.mxu0 %v91
  %1021 = vmatprep.subr.mxu0 %v88
  %1022 = vmatpush1.msra.mxu0 %v87
  %1023 = vmatprep.subr.mxu0 %v84
  %1024 = vmatpush1.msra.mxu0 %v83
  %1025 = vmatprep.subr.mxu0 %v80
  %1026 = vmatpush1.msra.mxu0 %v79
  %1027 = vmatprep.subr.mxu0 %v76
  %1028 = vmatpush1.msra.mxu0 %v75
  %1029 = vmatprep.subr.mxu0 %v72
  %1030 = vmatpush1.msra.mxu0 %v71
  %1031 = vmatprep.subr.mxu0 %v68
  %1032 = vmatpush1.msra.mxu0 %v67
  %1033 = vmatprep.subr.mxu0 %v64
  %1034 = vmatpush1.msra.mxu0 %v63
  %1035 = vmatprep.subr.mxu0 %v60
  %1036 = vmatpush1.msra.mxu0 %v59
  %1037 = vmatprep.subr.mxu0 %v56
  %1038 = vmatpush1.msra.mxu0 %v55
  %1039 = vmatprep.subr.mxu0 %v52
  %1040 = vmatpush1.msra.mxu0 %v51
  %1041 = vmatprep.subr.mxu0 %v48
  %1042 = vmatpush1.msra.mxu0 %v47
  %1043 = vmatprep.subr.mxu0 %v44
  %1044 = vmatpush1.msra.mxu0 %v43
  %1045 = vmatprep.subr.mxu0 %v40
  %1046 = vmatpush1.msra.mxu0 %v39
  %1047 = vmatprep.subr.mxu0 %v36
  %1048 = vmatpush1.msra.mxu0 %v35
  %1049 = vmatprep.subr.mxu0 %v160
  %1050 = vmatpush2.msra.mxu0 %v159
  %1051 = vmatprep.subr.mxu0 %v156
  %1052 = vmatpush2.msra.mxu0 %v155
  %1053 = vmatprep.subr.mxu0 %v152
  %1054 = vmatpush2.msra.mxu0 %v151
  %1055 = vmatprep.subr.mxu0 %v148
  %1056 = vmatpush2.msra.mxu0 %v147
  %1057 = vmatprep.subr.mxu0 %v144
  %1058 = vmatpush2.msra.mxu0 %v143
  %1059 = vmatprep.subr.mxu0 %v140
  %1060 = vmatpush2.msra.mxu0 %v139
  %1061 = vmatprep.subr.mxu0 %v136
  %1062 = vmatpush2.msra.mxu0 %v135
  %1063 = vmatprep.subr.mxu0 %v132
  %1064 = vmatpush2.msra.mxu0 %v131
  %1065 = vmatprep.subr.mxu0 %v128
  %1066 = vmatpush2.msra.mxu0 %v127
  %1067 = vmatprep.subr.mxu0 %v124
  %1068 = vmatpush2.msra.mxu0 %v123
  %1069 = vmatprep.subr.mxu0 %v120
  %1070 = vmatpush2.msra.mxu0 %v119
  %1071 = vmatprep.subr.mxu0 %v116
  %1072 = vmatpush2.msra.mxu0 %v115
  %1073 = vmatprep.subr.mxu0 %v112
  %1074 = vmatpush2.msra.mxu0 %v111
  %1075 = vmatprep.subr.mxu0 %v108
  %1076 = vmatpush2.msra.mxu0 %v107
  %1077 = vmatprep.subr.mxu0 %v104
  %1078 = vmatpush2.msra.mxu0 %v103
  %1079 = vmatprep.subr.mxu0 %v100
  %1080 = vmatpush2.msra.mxu0 %v99
  %1081 = vmatprep.mubr.f32.mxu0 %v21
  %1082 = vmatmul.mubr.f32.gmra.mxu0 %v20
  %v1083 = vpop.f32.mrf.mxu0
  %v1084 = vadd.f32 %v1000, %v1083
  %v1085 = vpop.f32.mrf.mxu0
  %v1086 = vadd.f32 %v1004, %v1085
  %1087 = vdwg.mxu0
  %1088 = vmatprep.subr.mxu0 %v224
  %1089 = vmatpush1.msra.mxu0 %v223
  %1090 = vmatprep.subr.mxu0 %v220
  %1091 = vmatpush1.msra.mxu0 %v219
  %1092 = vmatprep.subr.mxu0 %v216
  %1093 = vmatpush1.msra.mxu0 %v215
  %1094 = vmatprep.subr.mxu0 %v212
  %1095 = vmatpush1.msra.mxu0 %v211
  %1096 = vmatprep.subr.mxu0 %v208
  %1097 = vmatpush1.msra.mxu0 %v207
  %1098 = vmatprep.subr.mxu0 %v204
  %1099 = vmatpush1.msra.mxu0 %v203
  %1100 = vmatprep.subr.mxu0 %v200
  %1101 = vmatpush1.msra.mxu0 %v199
  %1102 = vmatprep.subr.mxu0 %v196
  %1103 = vmatpush1.msra.mxu0 %v195
  %1104 = vmatprep.subr.mxu0 %v192
  %1105 = vmatpush1.msra.mxu0 %v191
  %1106 = vmatprep.subr.mxu0 %v188
  %1107 = vmatpush1.msra.mxu0 %v187
  %1108 = vmatprep.subr.mxu0 %v184
  %1109 = vmatpush1.msra.mxu0 %v183
  %1110 = vmatprep.subr.mxu0 %v180
  %1111 = vmatpush1.msra.mxu0 %v179
  %1112 = vmatprep.subr.mxu0 %v176
  %1113 = vmatpush1.msra.mxu0 %v175
  %1114 = vmatprep.subr.mxu0 %v172
  %1115 = vmatpush1.msra.mxu0 %v171
  %1116 = vmatprep.subr.mxu0 %v168
  %1117 = vmatpush1.msra.mxu0 %v167
  %1118 = vmatprep.subr.mxu0 %v164
  %1119 = vmatpush1.msra.mxu0 %v163
  %1120 = vmatprep.subr.mxu0 %v288
  %1121 = vmatpush2.msra.mxu0 %v287
  %1122 = vmatprep.subr.mxu0 %v284
  %1123 = vmatpush2.msra.mxu0 %v283
  %1124 = vmatprep.subr.mxu0 %v280
  %1125 = vmatpush2.msra.mxu0 %v279
  %1126 = vmatprep.subr.mxu0 %v276
  %1127 = vmatpush2.msra.mxu0 %v275
  %1128 = vmatprep.subr.mxu0 %v272
  %1129 = vmatpush2.msra.mxu0 %v271
  %1130 = vmatprep.subr.mxu0 %v268
  %1131 = vmatpush2.msra.mxu0 %v267
  %1132 = vmatprep.subr.mxu0 %v264
  %1133 = vmatpush2.msra.mxu0 %v263
  %1134 = vmatprep.subr.mxu0 %v260
  %1135 = vmatpush2.msra.mxu0 %v259
  %1136 = vmatprep.subr.mxu0 %v256
  %1137 = vmatpush2.msra.mxu0 %v255
  %1138 = vmatprep.subr.mxu0 %v252
  %1139 = vmatpush2.msra.mxu0 %v251
  %1140 = vmatprep.subr.mxu0 %v248
  %1141 = vmatpush2.msra.mxu0 %v247
  %1142 = vmatprep.subr.mxu0 %v244
  %1143 = vmatpush2.msra.mxu0 %v243
  %1144 = vmatprep.subr.mxu0 %v240
  %1145 = vmatpush2.msra.mxu0 %v239
  %1146 = vmatprep.subr.mxu0 %v236
  %1147 = vmatpush2.msra.mxu0 %v235
  %1148 = vmatprep.subr.mxu0 %v232
  %1149 = vmatpush2.msra.mxu0 %v231
  %1150 = vmatprep.subr.mxu0 %v228
  %1151 = vmatpush2.msra.mxu0 %v227
  %1152 = vmatprep.mubr.f32.mxu0 %v23
  %1153 = vmatmul.mubr.f32.gmra.mxu0 %v22
  %v1154 = vpop.f32.mrf.mxu0
  %v1155 = vadd.f32 %v1084, %v1154
  %v1156 = vpop.f32.mrf.mxu0
  %v1157 = vadd.f32 %v1086, %v1156
  %1158 = vdwg.mxu0
  %1159 = vmatprep.subr.mxu0 %v352
  %1160 = vmatpush1.msra.mxu0 %v351
  %1161 = vmatprep.subr.mxu0 %v348
  %1162 = vmatpush1.msra.mxu0 %v347
  %1163 = vmatprep.subr.mxu0 %v344
  %1164 = vmatpush1.msra.mxu0 %v343
  %1165 = vmatprep.subr.mxu0 %v340
  %1166 = vmatpush1.msra.mxu0 %v339
  %1167 = vmatprep.subr.mxu0 %v336
  %1168 = vmatpush1.msra.mxu0 %v335
  %1169 = vmatprep.subr.mxu0 %v332
  %1170 = vmatpush1.msra.mxu0 %v331
  %1171 = vmatprep.subr.mxu0 %v328
  %1172 = vmatpush1.msra.mxu0 %v327
  %1173 = vmatprep.subr.mxu0 %v324
  %1174 = vmatpush1.msra.mxu0 %v323
  %1175 = vmatprep.subr.mxu0 %v320
  %1176 = vmatpush1.msra.mxu0 %v319
  %1177 = vmatprep.subr.mxu0 %v316
  %1178 = vmatpush1.msra.mxu0 %v315
  %1179 = vmatprep.subr.mxu0 %v312
  %1180 = vmatpush1.msra.mxu0 %v311
  %1181 = vmatprep.subr.mxu0 %v308
  %1182 = vmatpush1.msra.mxu0 %v307
  %1183 = vmatprep.subr.mxu0 %v304
  %1184 = vmatpush1.msra.mxu0 %v303
  %1185 = vmatprep.subr.mxu0 %v300
  %1186 = vmatpush1.msra.mxu0 %v299
  %1187 = vmatprep.subr.mxu0 %v296
  %1188 = vmatpush1.msra.mxu0 %v295
  %1189 = vmatprep.subr.mxu0 %v292
  %1190 = vmatpush1.msra.mxu0 %v291
  %1191 = vmatprep.subr.mxu0 %v416
  %1192 = vmatpush2.msra.mxu0 %v415
  %1193 = vmatprep.subr.mxu0 %v412
  %1194 = vmatpush2.msra.mxu0 %v411
  %1195 = vmatprep.subr.mxu0 %v408
  %1196 = vmatpush2.msra.mxu0 %v407
  %1197 = vmatprep.subr.mxu0 %v404
  %1198 = vmatpush2.msra.mxu0 %v403
  %1199 = vmatprep.subr.mxu0 %v400
  %1200 = vmatpush2.msra.mxu0 %v399
  %1201 = vmatprep.subr.mxu0 %v396
  %1202 = vmatpush2.msra.mxu0 %v395
  %1203 = vmatprep.subr.mxu0 %v392
  %1204 = vmatpush2.msra.mxu0 %v391
  %1205 = vmatprep.subr.mxu0 %v388
  %1206 = vmatpush2.msra.mxu0 %v387
  %1207 = vmatprep.subr.mxu0 %v384
  %1208 = vmatpush2.msra.mxu0 %v383
  %1209 = vmatprep.subr.mxu0 %v380
  %1210 = vmatpush2.msra.mxu0 %v379
  %1211 = vmatprep.subr.mxu0 %v376
  %1212 = vmatpush2.msra.mxu0 %v375
  %1213 = vmatprep.subr.mxu0 %v372
  %1214 = vmatpush2.msra.mxu0 %v371
  %1215 = vmatprep.subr.mxu0 %v368
  %1216 = vmatpush2.msra.mxu0 %v367
  %1217 = vmatprep.subr.mxu0 %v364
  %1218 = vmatpush2.msra.mxu0 %v363
  %1219 = vmatprep.subr.mxu0 %v360
  %1220 = vmatpush2.msra.mxu0 %v359
  %1221 = vmatprep.subr.mxu0 %v356
  %1222 = vmatpush2.msra.mxu0 %v355
  %1223 = vmatprep.mubr.f32.mxu0 %v25
  %1224 = vmatmul.mubr.f32.gmra.mxu0 %v24
  %v1225 = vpop.f32.mrf.mxu0
  %v1226 = vadd.f32 %v1155, %v1225
  %v1227 = vpop.f32.mrf.mxu0
  %v1228 = vadd.f32 %v1157, %v1227
  %1229 = vdwg.mxu0
  %1230 = vmatprep.subr.mxu0 %v480
  %1231 = vmatpush1.msra.mxu0 %v479
  %1232 = vmatprep.subr.mxu0 %v476
  %1233 = vmatpush1.msra.mxu0 %v475
  %1234 = vmatprep.subr.mxu0 %v472
  %1235 = vmatpush1.msra.mxu0 %v471
  %1236 = vmatprep.subr.mxu0 %v468
  %1237 = vmatpush1.msra.mxu0 %v467
  %1238 = vmatprep.subr.mxu0 %v464
  %1239 = vmatpush1.msra.mxu0 %v463
  %1240 = vmatprep.subr.mxu0 %v460
  %1241 = vmatpush1.msra.mxu0 %v459
  %1242 = vmatprep.subr.mxu0 %v456
  %1243 = vmatpush1.msra.mxu0 %v455
  %1244 = vmatprep.subr.mxu0 %v452
  %1245 = vmatpush1.msra.mxu0 %v451
  %1246 = vmatprep.subr.mxu0 %v448
  %1247 = vmatpush1.msra.mxu0 %v447
  %1248 = vmatprep.subr.mxu0 %v444
  %1249 = vmatpush1.msra.mxu0 %v443
  %1250 = vmatprep.subr.mxu0 %v440
  %1251 = vmatpush1.msra.mxu0 %v439
  %1252 = vmatprep.subr.mxu0 %v436
  %1253 = vmatpush1.msra.mxu0 %v435
  %1254 = vmatprep.subr.mxu0 %v432
  %1255 = vmatpush1.msra.mxu0 %v431
  %1256 = vmatprep.subr.mxu0 %v428
  %1257 = vmatpush1.msra.mxu0 %v427
  %1258 = vmatprep.subr.mxu0 %v424
  %1259 = vmatpush1.msra.mxu0 %v423
  %1260 = vmatprep.subr.mxu0 %v420
  %1261 = vmatpush1.msra.mxu0 %v419
  %1262 = vmatprep.subr.mxu0 %v544
  %1263 = vmatpush2.msra.mxu0 %v543
  %1264 = vmatprep.subr.mxu0 %v540
  %1265 = vmatpush2.msra.mxu0 %v539
  %1266 = vmatprep.subr.mxu0 %v536
  %1267 = vmatpush2.msra.mxu0 %v535
  %1268 = vmatprep.subr.mxu0 %v532
  %1269 = vmatpush2.msra.mxu0 %v531
  %1270 = vmatprep.subr.mxu0 %v528
  %1271 = vmatpush2.msra.mxu0 %v527
  %1272 = vmatprep.subr.mxu0 %v524
  %1273 = vmatpush2.msra.mxu0 %v523
  %1274 = vmatprep.subr.mxu0 %v520
  %1275 = vmatpush2.msra.mxu0 %v519
  %1276 = vmatprep.subr.mxu0 %v516
  %1277 = vmatpush2.msra.mxu0 %v515
  %1278 = vmatprep.subr.mxu0 %v512
  %1279 = vmatpush2.msra.mxu0 %v511
  %1280 = vmatprep.subr.mxu0 %v508
  %1281 = vmatpush2.msra.mxu0 %v507
  %1282 = vmatprep.subr.mxu0 %v504
  %1283 = vmatpush2.msra.mxu0 %v503
  %1284 = vmatprep.subr.mxu0 %v500
  %1285 = vmatpush2.msra.mxu0 %v499
  %1286 = vmatprep.subr.mxu0 %v496
  %1287 = vmatpush2.msra.mxu0 %v495
  %1288 = vmatprep.subr.mxu0 %v492
  %1289 = vmatpush2.msra.mxu0 %v491
  %1290 = vmatprep.subr.mxu0 %v488
  %1291 = vmatpush2.msra.mxu0 %v487
  %1292 = vmatprep.subr.mxu0 %v484
  %1293 = vmatpush2.msra.mxu0 %v483
  %1294 = vmatprep.mubr.f32.mxu0 %v27
  %1295 = vmatmul.mubr.f32.gmra.mxu0 %v26
  %v1296 = vpop.f32.mrf.mxu0
  %v1297 = vadd.f32 %v1226, %v1296
  %v1298 = vpop.f32.mrf.mxu0
  %v1299 = vadd.f32 %v1228, %v1298
  %1300 = vdwg.mxu0
  %1301 = vmatprep.subr.mxu0 %v608
  %1302 = vmatpush1.msra.mxu0 %v607
  %1303 = vmatprep.subr.mxu0 %v604
  %1304 = vmatpush1.msra.mxu0 %v603
  %1305 = vmatprep.subr.mxu0 %v600
  %1306 = vmatpush1.msra.mxu0 %v599
  %1307 = vmatprep.subr.mxu0 %v596
  %1308 = vmatpush1.msra.mxu0 %v595
  %1309 = vmatprep.subr.mxu0 %v592
  %1310 = vmatpush1.msra.mxu0 %v591
  %1311 = vmatprep.subr.mxu0 %v588
  %1312 = vmatpush1.msra.mxu0 %v587
  %1313 = vmatprep.subr.mxu0 %v584
  %1314 = vmatpush1.msra.mxu0 %v583
  %1315 = vmatprep.subr.mxu0 %v580
  %1316 = vmatpush1.msra.mxu0 %v579
  %1317 = vmatprep.subr.mxu0 %v576
  %1318 = vmatpush1.msra.mxu0 %v575
  %1319 = vmatprep.subr.mxu0 %v572
  %1320 = vmatpush1.msra.mxu0 %v571
  %1321 = vmatprep.subr.mxu0 %v568
  %1322 = vmatpush1.msra.mxu0 %v567
  %1323 = vmatprep.subr.mxu0 %v564
  %1324 = vmatpush1.msra.mxu0 %v563
  %1325 = vmatprep.subr.mxu0 %v560
  %1326 = vmatpush1.msra.mxu0 %v559
  %1327 = vmatprep.subr.mxu0 %v556
  %1328 = vmatpush1.msra.mxu0 %v555
  %1329 = vmatprep.subr.mxu0 %v552
  %1330 = vmatpush1.msra.mxu0 %v551
  %1331 = vmatprep.subr.mxu0 %v548
  %1332 = vmatpush1.msra.mxu0 %v547
  %1333 = vmatprep.subr.mxu0 %v672
  %1334 = vmatpush2.msra.mxu0 %v671
  %1335 = vmatprep.subr.mxu0 %v668
  %1336 = vmatpush2.msra.mxu0 %v667
  %1337 = vmatprep.subr.mxu0 %v664
  %1338 = vmatpush2.msra.mxu0 %v663
  %1339 = vmatprep.subr.mxu0 %v660
  %1340 = vmatpush2.msra.mxu0 %v659
  %1341 = vmatprep.subr.mxu0 %v656
  %1342 = vmatpush2.msra.mxu0 %v655
  %1343 = vmatprep.subr.mxu0 %v652
  %1344 = vmatpush2.msra.mxu0 %v651
  %1345 = vmatprep.subr.mxu0 %v648
  %1346 = vmatpush2.msra.mxu0 %v647
  %1347 = vmatprep.subr.mxu0 %v644
  %1348 = vmatpush2.msra.mxu0 %v643
  %1349 = vmatprep.subr.mxu0 %v640
  %1350 = vmatpush2.msra.mxu0 %v639
  %1351 = vmatprep.subr.mxu0 %v636
  %1352 = vmatpush2.msra.mxu0 %v635
  %1353 = vmatprep.subr.mxu0 %v632
  %1354 = vmatpush2.msra.mxu0 %v631
  %1355 = vmatprep.subr.mxu0 %v628
  %1356 = vmatpush2.msra.mxu0 %v627
  %1357 = vmatprep.subr.mxu0 %v624
  %1358 = vmatpush2.msra.mxu0 %v623
  %1359 = vmatprep.subr.mxu0 %v620
  %1360 = vmatpush2.msra.mxu0 %v619
  %1361 = vmatprep.subr.mxu0 %v616
  %1362 = vmatpush2.msra.mxu0 %v615
  %1363 = vmatprep.subr.mxu0 %v612
  %1364 = vmatpush2.msra.mxu0 %v611
  %1365 = vmatprep.mubr.f32.mxu0 %v29
  %1366 = vmatmul.mubr.f32.gmra.mxu0 %v28
  %v1367 = vpop.f32.mrf.mxu0
  %v1368 = vadd.f32 %v1297, %v1367
  %v1369 = vpop.f32.mrf.mxu0
  %v1370 = vadd.f32 %v1299, %v1369
  %1371 = vdwg.mxu0
  %1372 = vmatprep.subr.mxu0 %v736
  %1373 = vmatpush1.msra.mxu0 %v735
  %1374 = vmatprep.subr.mxu0 %v732
  %1375 = vmatpush1.msra.mxu0 %v731
  %1376 = vmatprep.subr.mxu0 %v728
  %1377 = vmatpush1.msra.mxu0 %v727
  %1378 = vmatprep.subr.mxu0 %v724
  %1379 = vmatpush1.msra.mxu0 %v723
  %1380 = vmatprep.subr.mxu0 %v720
  %1381 = vmatpush1.msra.mxu0 %v719
  %1382 = vmatprep.subr.mxu0 %v716
  %1383 = vmatpush1.msra.mxu0 %v715
  %1384 = vmatprep.subr.mxu0 %v712
  %1385 = vmatpush1.msra.mxu0 %v711
  %1386 = vmatprep.subr.mxu0 %v708
  %1387 = vmatpush1.msra.mxu0 %v707
  %1388 = vmatprep.subr.mxu0 %v704
  %1389 = vmatpush1.msra.mxu0 %v703
  %1390 = vmatprep.subr.mxu0 %v700
  %1391 = vmatpush1.msra.mxu0 %v699
  %1392 = vmatprep.subr.mxu0 %v696
  %1393 = vmatpush1.msra.mxu0 %v695
  %1394 = vmatprep.subr.mxu0 %v692
  %1395 = vmatpush1.msra.mxu0 %v691
  %1396 = vmatprep.subr.mxu0 %v688
  %1397 = vmatpush1.msra.mxu0 %v687
  %1398 = vmatprep.subr.mxu0 %v684
  %1399 = vmatpush1.msra.mxu0 %v683
  %1400 = vmatprep.subr.mxu0 %v680
  %1401 = vmatpush1.msra.mxu0 %v679
  %1402 = vmatprep.subr.mxu0 %v676
  %1403 = vmatpush1.msra.mxu0 %v675
  %1404 = vmatprep.subr.mxu0 %v800
  %1405 = vmatpush2.msra.mxu0 %v799
  %1406 = vmatprep.subr.mxu0 %v796
  %1407 = vmatpush2.msra.mxu0 %v795
  %1408 = vmatprep.subr.mxu0 %v792
  %1409 = vmatpush2.msra.mxu0 %v791
  %1410 = vmatprep.subr.mxu0 %v788
  %1411 = vmatpush2.msra.mxu0 %v787
  %1412 = vmatprep.subr.mxu0 %v784
  %1413 = vmatpush2.msra.mxu0 %v783
  %1414 = vmatprep.subr.mxu0 %v780
  %1415 = vmatpush2.msra.mxu0 %v779
  %1416 = vmatprep.subr.mxu0 %v776
  %1417 = vmatpush2.msra.mxu0 %v775
  %1418 = vmatprep.subr.mxu0 %v772
  %1419 = vmatpush2.msra.mxu0 %v771
  %1420 = vmatprep.subr.mxu0 %v768
  %1421 = vmatpush2.msra.mxu0 %v767
  %1422 = vmatprep.subr.mxu0 %v764
  %1423 = vmatpush2.msra.mxu0 %v763
  %1424 = vmatprep.subr.mxu0 %v760
  %1425 = vmatpush2.msra.mxu0 %v759
  %1426 = vmatprep.subr.mxu0 %v756
  %1427 = vmatpush2.msra.mxu0 %v755
  %1428 = vmatprep.subr.mxu0 %v752
  %1429 = vmatpush2.msra.mxu0 %v751
  %1430 = vmatprep.subr.mxu0 %v748
  %1431 = vmatpush2.msra.mxu0 %v747
  %1432 = vmatprep.subr.mxu0 %v744
  %1433 = vmatpush2.msra.mxu0 %v743
  %1434 = vmatprep.subr.mxu0 %v740
  %1435 = vmatpush2.msra.mxu0 %v739
  %1436 = vmatprep.mubr.f32.mxu0 %v31
  %1437 = vmatmul.mubr.f32.gmra.mxu0 %v30
  %v1438 = vpop.f32.mrf.mxu0
  %v1439 = vadd.f32 %v1368, %v1438
  %v1440 = vpop.f32.mrf.mxu0
  %v1441 = vadd.f32 %v1370, %v1440
  %1442 = vdwg.mxu0
  %1443 = vmatprep.subr.mxu0 %v864
  %1444 = vmatpush1.msra.mxu0 %v863
  %1445 = vmatprep.subr.mxu0 %v860
  %1446 = vmatpush1.msra.mxu0 %v859
  %1447 = vmatprep.subr.mxu0 %v856
  %1448 = vmatpush1.msra.mxu0 %v855
  %1449 = vmatprep.subr.mxu0 %v852
  %1450 = vmatpush1.msra.mxu0 %v851
  %1451 = vmatprep.subr.mxu0 %v848
  %1452 = vmatpush1.msra.mxu0 %v847
  %1453 = vmatprep.subr.mxu0 %v844
  %1454 = vmatpush1.msra.mxu0 %v843
  %1455 = vmatprep.subr.mxu0 %v840
  %1456 = vmatpush1.msra.mxu0 %v839
  %1457 = vmatprep.subr.mxu0 %v836
  %1458 = vmatpush1.msra.mxu0 %v835
  %1459 = vmatprep.subr.mxu0 %v832
  %1460 = vmatpush1.msra.mxu0 %v831
  %1461 = vmatprep.subr.mxu0 %v828
  %1462 = vmatpush1.msra.mxu0 %v827
  %1463 = vmatprep.subr.mxu0 %v824
  %1464 = vmatpush1.msra.mxu0 %v823
  %1465 = vmatprep.subr.mxu0 %v820
  %1466 = vmatpush1.msra.mxu0 %v819
  %1467 = vmatprep.subr.mxu0 %v816
  %1468 = vmatpush1.msra.mxu0 %v815
  %1469 = vmatprep.subr.mxu0 %v812
  %1470 = vmatpush1.msra.mxu0 %v811
  %1471 = vmatprep.subr.mxu0 %v808
  %1472 = vmatpush1.msra.mxu0 %v807
  %1473 = vmatprep.subr.mxu0 %v804
  %1474 = vmatpush1.msra.mxu0 %v803
  %1475 = vmatprep.subr.mxu0 %v928
  %1476 = vmatpush2.msra.mxu0 %v927
  %1477 = vmatprep.subr.mxu0 %v924
  %1478 = vmatpush2.msra.mxu0 %v923
  %1479 = vmatprep.subr.mxu0 %v920
  %1480 = vmatpush2.msra.mxu0 %v919
  %1481 = vmatprep.subr.mxu0 %v916
  %1482 = vmatpush2.msra.mxu0 %v915
  %1483 = vmatprep.subr.mxu0 %v912
  %1484 = vmatpush2.msra.mxu0 %v911
  %1485 = vmatprep.subr.mxu0 %v908
  %1486 = vmatpush2.msra.mxu0 %v907
  %1487 = vmatprep.subr.mxu0 %v904
  %1488 = vmatpush2.msra.mxu0 %v903
  %1489 = vmatprep.subr.mxu0 %v900
  %1490 = vmatpush2.msra.mxu0 %v899
  %1491 = vmatprep.subr.mxu0 %v896
  %1492 = vmatpush2.msra.mxu0 %v895
  %1493 = vmatprep.subr.mxu0 %v892
  %1494 = vmatpush2.msra.mxu0 %v891
  %1495 = vmatprep.subr.mxu0 %v888
  %1496 = vmatpush2.msra.mxu0 %v887
  %1497 = vmatprep.subr.mxu0 %v884
  %1498 = vmatpush2.msra.mxu0 %v883
  %1499 = vmatprep.subr.mxu0 %v880
  %1500 = vmatpush2.msra.mxu0 %v879
  %1501 = vmatprep.subr.mxu0 %v876
  %1502 = vmatpush2.msra.mxu0 %v875
  %1503 = vmatprep.subr.mxu0 %v872
  %1504 = vmatpush2.msra.mxu0 %v871
  %1505 = vmatprep.subr.mxu0 %v868
  %1506 = vmatpush2.msra.mxu0 %v867
  %1507 = vmatprep.mubr.f32.mxu0 %v33
  %1508 = vmatmul.mubr.f32.gmra.mxu0 %v32
  %v1509 = vpop.f32.mrf.mxu0
  %v1510 = vadd.f32 %v1439, %v1509
  %v1511 = vpop.f32.mrf.mxu0
  %v1512 = vadd.f32 %v1441, %v1511
  %1513 = vdwg.mxu0
  %1514 = vmatprep.subr.mxu0 %v992
  %1515 = vmatpush1.msra.mxu0 %v991
  %1516 = vmatprep.subr.mxu0 %v988
  %1517 = vmatpush1.msra.mxu0 %v987
  %1518 = vmatprep.subr.mxu0 %v984
  %1519 = vmatpush1.msra.mxu0 %v983
  %1520 = vmatprep.subr.mxu0 %v980
  %1521 = vmatpush1.msra.mxu0 %v979
  %1522 = vmatprep.subr.mxu0 %v976
  %1523 = vmatpush1.msra.mxu0 %v975
  %1524 = vmatprep.subr.mxu0 %v972
  %1525 = vmatpush1.msra.mxu0 %v971
  %1526 = vmatprep.subr.mxu0 %v968
  %1527 = vmatpush1.msra.mxu0 %v967
  %1528 = vmatprep.subr.mxu0 %v964
  %1529 = vmatpush1.msra.mxu0 %v963
  %1530 = vmatprep.subr.mxu0 %v960
  %1531 = vmatpush1.msra.mxu0 %v959
  %1532 = vmatprep.subr.mxu0 %v956
  %1533 = vmatpush1.msra.mxu0 %v955
  %1534 = vmatprep.subr.mxu0 %v952
  %1535 = vmatpush1.msra.mxu0 %v951
  %1536 = vmatprep.subr.mxu0 %v948
  %1537 = vmatpush1.msra.mxu0 %v947
  %1538 = vmatprep.subr.mxu0 %v944
  %1539 = vmatpush1.msra.mxu0 %v943
  %1540 = vmatprep.subr.mxu0 %v940
  %1541 = vmatpush1.msra.mxu0 %v939
  %1542 = vmatprep.subr.mxu0 %v936
  %1543 = vmatpush1.msra.mxu0 %v935
  %1544 = vmatprep.subr.mxu0 %v932
  %1545 = vmatpush1.msra.mxu0 %v931
  %1546 = vmatprep.subr.mxu0 0.0
  %1547 = vmatpush2.msra.mxu0 0.0
  %1548 = vmatprep.subr.mxu0 0.0
  %1549 = vmatpush2.msra.mxu0 0.0
  %1550 = vmatprep.subr.mxu0 0.0
  %1551 = vmatpush2.msra.mxu0 0.0
  %1552 = vmatprep.subr.mxu0 0.0
  %1553 = vmatpush2.msra.mxu0 0.0
  %1554 = vmatprep.subr.mxu0 0.0
  %1555 = vmatpush2.msra.mxu0 0.0
  %1556 = vmatprep.subr.mxu0 0.0
  %1557 = vmatpush2.msra.mxu0 0.0
  %1558 = vmatprep.subr.mxu0 0.0
  %1559 = vmatpush2.msra.mxu0 0.0
  %1560 = vmatprep.subr.mxu0 0.0
  %1561 = vmatpush2.msra.mxu0 0.0
  %1562 = vmatprep.subr.mxu0 0.0
  %1563 = vmatpush2.msra.mxu0 0.0
  %1564 = vmatprep.subr.mxu0 0.0
  %1565 = vmatpush2.msra.mxu0 0.0
  %1566 = vmatprep.subr.mxu0 0.0
  %1567 = vmatpush2.msra.mxu0 0.0
  %1568 = vmatprep.subr.mxu0 0.0
  %1569 = vmatpush2.msra.mxu0 0.0
  %1570 = vmatprep.subr.mxu0 0.0
  %1571 = vmatpush2.msra.mxu0 0.0
  %1572 = vmatprep.subr.mxu0 0.0
  %1573 = vmatpush2.msra.mxu0 0.0
  %1574 = vmatprep.subr.mxu0 0.0
  %1575 = vmatpush2.msra.mxu0 0.0
  %1576 = vmatprep.subr.mxu0 0.0
  %1577 = vmatpush2.msra.mxu0 0.0
  %1578 = vmatprep.mubr.f32.mxu0 0.0
  %1579 = vmatmul.mubr.f32.gmra.mxu0 %v34
  %v1580 = vpop.f32.mrf.mxu0
  %v1581 = vadd.f32 %v1510, %v1580
  %v1582 = vpop.f32.mrf.mxu0
  %v1583 = vadd.f32 %v1512, %v1582
  %1584 = vdwg.mxu0
  %1585 = vmatprep.subr.mxu0 %v98
  %1586 = vmatpush1.msra.mxu0 %v97
  %1587 = vmatprep.subr.mxu0 %v94
  %1588 = vmatpush1.msra.mxu0 %v93
  %1589 = vmatprep.subr.mxu0 %v90
  %1590 = vmatpush1.msra.mxu0 %v89
  %1591 = vmatprep.subr.mxu0 %v86
  %1592 = vmatpush1.msra.mxu0 %v85
  %1593 = vmatprep.subr.mxu0 %v82
  %1594 = vmatpush1.msra.mxu0 %v81
  %1595 = vmatprep.subr.mxu0 %v78
  %1596 = vmatpush1.msra.mxu0 %v77
  %1597 = vmatprep.subr.mxu0 %v74
  %1598 = vmatpush1.msra.mxu0 %v73
  %1599 = vmatprep.subr.mxu0 %v70
  %1600 = vmatpush1.msra.mxu0 %v69
  %1601 = vmatprep.subr.mxu0 %v66
  %1602 = vmatpush1.msra.mxu0 %v65
  %1603 = vmatprep.subr.mxu0 %v62
  %1604 = vmatpush1.msra.mxu0 %v61
  %1605 = vmatprep.subr.mxu0 %v58
  %1606 = vmatpush1.msra.mxu0 %v57
  %1607 = vmatprep.subr.mxu0 %v54
  %1608 = vmatpush1.msra.mxu0 %v53
  %1609 = vmatprep.subr.mxu0 %v50
  %1610 = vmatpush1.msra.mxu0 %v49
  %1611 = vmatprep.subr.mxu0 %v46
  %1612 = vmatpush1.msra.mxu0 %v45
  %1613 = vmatprep.subr.mxu0 %v42
  %1614 = vmatpush1.msra.mxu0 %v41
  %1615 = vmatprep.subr.mxu0 %v38
  %1616 = vmatpush1.msra.mxu0 %v37
  %1617 = vmatprep.subr.mxu0 %v162
  %1618 = vmatpush2.msra.mxu0 %v161
  %1619 = vmatprep.subr.mxu0 %v158
  %1620 = vmatpush2.msra.mxu0 %v157
  %1621 = vmatprep.subr.mxu0 %v154
  %1622 = vmatpush2.msra.mxu0 %v153
  %1623 = vmatprep.subr.mxu0 %v150
  %1624 = vmatpush2.msra.mxu0 %v149
  %1625 = vmatprep.subr.mxu0 %v146
  %1626 = vmatpush2.msra.mxu0 %v145
  %1627 = vmatprep.subr.mxu0 %v142
  %1628 = vmatpush2.msra.mxu0 %v141
  %1629 = vmatprep.subr.mxu0 %v138
  %1630 = vmatpush2.msra.mxu0 %v137
  %1631 = vmatprep.subr.mxu0 %v134
  %1632 = vmatpush2.msra.mxu0 %v133
  %1633 = vmatprep.subr.mxu0 %v130
  %1634 = vmatpush2.msra.mxu0 %v129
  %1635 = vmatprep.subr.mxu0 %v126
  %1636 = vmatpush2.msra.mxu0 %v125
  %1637 = vmatprep.subr.mxu0 %v122
  %1638 = vmatpush2.msra.mxu0 %v121
  %1639 = vmatprep.subr.mxu0 %v118
  %1640 = vmatpush2.msra.mxu0 %v117
  %1641 = vmatprep.subr.mxu0 %v114
  %1642 = vmatpush2.msra.mxu0 %v113
  %1643 = vmatprep.subr.mxu0 %v110
  %1644 = vmatpush2.msra.mxu0 %v109
  %1645 = vmatprep.subr.mxu0 %v106
  %1646 = vmatpush2.msra.mxu0 %v105
  %1647 = vmatprep.subr.mxu0 %v102
  %1648 = vmatpush2.msra.mxu0 %v101
  %1649 = vmatprep.mubr.f32.mxu0 %v21
  %1650 = vmatmul.mubr.f32.gmra.mxu0 %v20
  %v1651 = vpop.f32.mrf.mxu0
  %v1652 = vadd.f32 %v1008, %v1651
  %v1653 = vpop.f32.mrf.mxu0
  %v1654 = vadd.f32 %v1012, %v1653
  %1655 = vdwg.mxu0
  %1656 = vmatprep.subr.mxu0 %v226
  %1657 = vmatpush1.msra.mxu0 %v225
  %1658 = vmatprep.subr.mxu0 %v222
  %1659 = vmatpush1.msra.mxu0 %v221
  %1660 = vmatprep.subr.mxu0 %v218
  %1661 = vmatpush1.msra.mxu0 %v217
  %1662 = vmatprep.subr.mxu0 %v214
  %1663 = vmatpush1.msra.mxu0 %v213
  %1664 = vmatprep.subr.mxu0 %v210
  %1665 = vmatpush1.msra.mxu0 %v209
  %1666 = vmatprep.subr.mxu0 %v206
  %1667 = vmatpush1.msra.mxu0 %v205
  %1668 = vmatprep.subr.mxu0 %v202
  %1669 = vmatpush1.msra.mxu0 %v201
  %1670 = vmatprep.subr.mxu0 %v198
  %1671 = vmatpush1.msra.mxu0 %v197
  %1672 = vmatprep.subr.mxu0 %v194
  %1673 = vmatpush1.msra.mxu0 %v193
  %1674 = vmatprep.subr.mxu0 %v190
  %1675 = vmatpush1.msra.mxu0 %v189
  %1676 = vmatprep.subr.mxu0 %v186
  %1677 = vmatpush1.msra.mxu0 %v185
  %1678 = vmatprep.subr.mxu0 %v182
  %1679 = vmatpush1.msra.mxu0 %v181
  %1680 = vmatprep.subr.mxu0 %v178
  %1681 = vmatpush1.msra.mxu0 %v177
  %1682 = vmatprep.subr.mxu0 %v174
  %1683 = vmatpush1.msra.mxu0 %v173
  %1684 = vmatprep.subr.mxu0 %v170
  %1685 = vmatpush1.msra.mxu0 %v169
  %1686 = vmatprep.subr.mxu0 %v166
  %1687 = vmatpush1.msra.mxu0 %v165
  %1688 = vmatprep.subr.mxu0 %v290
  %1689 = vmatpush2.msra.mxu0 %v289
  %1690 = vmatprep.subr.mxu0 %v286
  %1691 = vmatpush2.msra.mxu0 %v285
  %1692 = vmatprep.subr.mxu0 %v282
  %1693 = vmatpush2.msra.mxu0 %v281
  %1694 = vmatprep.subr.mxu0 %v278
  %1695 = vmatpush2.msra.mxu0 %v277
  %1696 = vmatprep.subr.mxu0 %v274
  %1697 = vmatpush2.msra.mxu0 %v273
  %1698 = vmatprep.subr.mxu0 %v270
  %1699 = vmatpush2.msra.mxu0 %v269
  %1700 = vmatprep.subr.mxu0 %v266
  %1701 = vmatpush2.msra.mxu0 %v265
  %1702 = vmatprep.subr.mxu0 %v262
  %1703 = vmatpush2.msra.mxu0 %v261
  %1704 = vmatprep.subr.mxu0 %v258
  %1705 = vmatpush2.msra.mxu0 %v257
  %1706 = vmatprep.subr.mxu0 %v254
  %1707 = vmatpush2.msra.mxu0 %v253
  %1708 = vmatprep.subr.mxu0 %v250
  %1709 = vmatpush2.msra.mxu0 %v249
  %1710 = vmatprep.subr.mxu0 %v246
  %1711 = vmatpush2.msra.mxu0 %v245
  %1712 = vmatprep.subr.mxu0 %v242
  %1713 = vmatpush2.msra.mxu0 %v241
  %1714 = vmatprep.subr.mxu0 %v238
  %1715 = vmatpush2.msra.mxu0 %v237
  %1716 = vmatprep.subr.mxu0 %v234
  %1717 = vmatpush2.msra.mxu0 %v233
  %1718 = vmatprep.subr.mxu0 %v230
  %1719 = vmatpush2.msra.mxu0 %v229
  %1720 = vmatprep.mubr.f32.mxu0 %v23
  %1721 = vmatmul.mubr.f32.gmra.mxu0 %v22
  %v1722 = vpop.f32.mrf.mxu0
  %v1723 = vadd.f32 %v1652, %v1722
  %v1724 = vpop.f32.mrf.mxu0
  %v1725 = vadd.f32 %v1654, %v1724
  %1726 = vdwg.mxu0
  %1727 = vmatprep.subr.mxu0 %v354
  %1728 = vmatpush1.msra.mxu0 %v353
  %1729 = vmatprep.subr.mxu0 %v350
  %1730 = vmatpush1.msra.mxu0 %v349
  %1731 = vmatprep.subr.mxu0 %v346
  %1732 = vmatpush1.msra.mxu0 %v345
  %1733 = vmatprep.subr.mxu0 %v342
  %1734 = vmatpush1.msra.mxu0 %v341
  %1735 = vmatprep.subr.mxu0 %v338
  %1736 = vmatpush1.msra.mxu0 %v337
  %1737 = vmatprep.subr.mxu0 %v334
  %1738 = vmatpush1.msra.mxu0 %v333
  %1739 = vmatprep.subr.mxu0 %v330
  %1740 = vmatpush1.msra.mxu0 %v329
  %1741 = vmatprep.subr.mxu0 %v326
  %1742 = vmatpush1.msra.mxu0 %v325
  %1743 = vmatprep.subr.mxu0 %v322
  %1744 = vmatpush1.msra.mxu0 %v321
  %1745 = vmatprep.subr.mxu0 %v318
  %1746 = vmatpush1.msra.mxu0 %v317
  %1747 = vmatprep.subr.mxu0 %v314
  %1748 = vmatpush1.msra.mxu0 %v313
  %1749 = vmatprep.subr.mxu0 %v310
  %1750 = vmatpush1.msra.mxu0 %v309
  %1751 = vmatprep.subr.mxu0 %v306
  %1752 = vmatpush1.msra.mxu0 %v305
  %1753 = vmatprep.subr.mxu0 %v302
  %1754 = vmatpush1.msra.mxu0 %v301
  %1755 = vmatprep.subr.mxu0 %v298
  %1756 = vmatpush1.msra.mxu0 %v297
  %1757 = vmatprep.subr.mxu0 %v294
  %1758 = vmatpush1.msra.mxu0 %v293
  %1759 = vmatprep.subr.mxu0 %v418
  %1760 = vmatpush2.msra.mxu0 %v417
  %1761 = vmatprep.subr.mxu0 %v414
  %1762 = vmatpush2.msra.mxu0 %v413
  %1763 = vmatprep.subr.mxu0 %v410
  %1764 = vmatpush2.msra.mxu0 %v409
  %1765 = vmatprep.subr.mxu0 %v406
  %1766 = vmatpush2.msra.mxu0 %v405
  %1767 = vmatprep.subr.mxu0 %v402
  %1768 = vmatpush2.msra.mxu0 %v401
  %1769 = vmatprep.subr.mxu0 %v398
  %1770 = vmatpush2.msra.mxu0 %v397
  %1771 = vmatprep.subr.mxu0 %v394
  %1772 = vmatpush2.msra.mxu0 %v393
  %1773 = vmatprep.subr.mxu0 %v390
  %1774 = vmatpush2.msra.mxu0 %v389
  %1775 = vmatprep.subr.mxu0 %v386
  %1776 = vmatpush2.msra.mxu0 %v385
  %1777 = vmatprep.subr.mxu0 %v382
  %1778 = vmatpush2.msra.mxu0 %v381
  %1779 = vmatprep.subr.mxu0 %v378
  %1780 = vmatpush2.msra.mxu0 %v377
  %1781 = vmatprep.subr.mxu0 %v374
  %1782 = vmatpush2.msra.mxu0 %v373
  %1783 = vmatprep.subr.mxu0 %v370
  %1784 = vmatpush2.msra.mxu0 %v369
  %1785 = vmatprep.subr.mxu0 %v366
  %1786 = vmatpush2.msra.mxu0 %v365
  %1787 = vmatprep.subr.mxu0 %v362
  %1788 = vmatpush2.msra.mxu0 %v361
  %1789 = vmatprep.subr.mxu0 %v358
  %1790 = vmatpush2.msra.mxu0 %v357
  %1791 = vmatprep.mubr.f32.mxu0 %v25
  %1792 = vmatmul.mubr.f32.gmra.mxu0 %v24
  %v1793 = vpop.f32.mrf.mxu0
  %v1794 = vadd.f32 %v1723, %v1793
  %v1795 = vpop.f32.mrf.mxu0
  %v1796 = vadd.f32 %v1725, %v1795
  %1797 = vdwg.mxu0
  %1798 = vmatprep.subr.mxu0 %v482
  %1799 = vmatpush1.msra.mxu0 %v481
  %1800 = vmatprep.subr.mxu0 %v478
  %1801 = vmatpush1.msra.mxu0 %v477
  %1802 = vmatprep.subr.mxu0 %v474
  %1803 = vmatpush1.msra.mxu0 %v473
  %1804 = vmatprep.subr.mxu0 %v470
  %1805 = vmatpush1.msra.mxu0 %v469
  %1806 = vmatprep.subr.mxu0 %v466
  %1807 = vmatpush1.msra.mxu0 %v465
  %1808 = vmatprep.subr.mxu0 %v462
  %1809 = vmatpush1.msra.mxu0 %v461
  %1810 = vmatprep.subr.mxu0 %v458
  %1811 = vmatpush1.msra.mxu0 %v457
  %1812 = vmatprep.subr.mxu0 %v454
  %1813 = vmatpush1.msra.mxu0 %v453
  %1814 = vmatprep.subr.mxu0 %v450
  %1815 = vmatpush1.msra.mxu0 %v449
  %1816 = vmatprep.subr.mxu0 %v446
  %1817 = vmatpush1.msra.mxu0 %v445
  %1818 = vmatprep.subr.mxu0 %v442
  %1819 = vmatpush1.msra.mxu0 %v441
  %1820 = vmatprep.subr.mxu0 %v438
  %1821 = vmatpush1.msra.mxu0 %v437
  %1822 = vmatprep.subr.mxu0 %v434
  %1823 = vmatpush1.msra.mxu0 %v433
  %1824 = vmatprep.subr.mxu0 %v430
  %1825 = vmatpush1.msra.mxu0 %v429
  %1826 = vmatprep.subr.mxu0 %v426
  %1827 = vmatpush1.msra.mxu0 %v425
  %1828 = vmatprep.subr.mxu0 %v422
  %1829 = vmatpush1.msra.mxu0 %v421
  %1830 = vmatprep.subr.mxu0 %v546
  %1831 = vmatpush2.msra.mxu0 %v545
  %1832 = vmatprep.subr.mxu0 %v542
  %1833 = vmatpush2.msra.mxu0 %v541
  %1834 = vmatprep.subr.mxu0 %v538
  %1835 = vmatpush2.msra.mxu0 %v537
  %1836 = vmatprep.subr.mxu0 %v534
  %1837 = vmatpush2.msra.mxu0 %v533
  %1838 = vmatprep.subr.mxu0 %v530
  %1839 = vmatpush2.msra.mxu0 %v529
  %1840 = vmatprep.subr.mxu0 %v526
  %1841 = vmatpush2.msra.mxu0 %v525
  %1842 = vmatprep.subr.mxu0 %v522
  %1843 = vmatpush2.msra.mxu0 %v521
  %1844 = vmatprep.subr.mxu0 %v518
  %1845 = vmatpush2.msra.mxu0 %v517
  %1846 = vmatprep.subr.mxu0 %v514
  %1847 = vmatpush2.msra.mxu0 %v513
  %1848 = vmatprep.subr.mxu0 %v510
  %1849 = vmatpush2.msra.mxu0 %v509
  %1850 = vmatprep.subr.mxu0 %v506
  %1851 = vmatpush2.msra.mxu0 %v505
  %1852 = vmatprep.subr.mxu0 %v502
  %1853 = vmatpush2.msra.mxu0 %v501
  %1854 = vmatprep.subr.mxu0 %v498
  %1855 = vmatpush2.msra.mxu0 %v497
  %1856 = vmatprep.subr.mxu0 %v494
  %1857 = vmatpush2.msra.mxu0 %v493
  %1858 = vmatprep.subr.mxu0 %v490
  %1859 = vmatpush2.msra.mxu0 %v489
  %1860 = vmatprep.subr.mxu0 %v486
  %1861 = vmatpush2.msra.mxu0 %v485
  %1862 = vmatprep.mubr.f32.mxu0 %v27
  %1863 = vmatmul.mubr.f32.gmra.mxu0 %v26
  %v1864 = vpop.f32.mrf.mxu0
  %v1865 = vadd.f32 %v1794, %v1864
  %v1866 = vpop.f32.mrf.mxu0
  %v1867 = vadd.f32 %v1796, %v1866
  %1868 = vdwg.mxu0
  %1869 = vmatprep.subr.mxu0 %v610
  %1870 = vmatpush1.msra.mxu0 %v609
  %1871 = vmatprep.subr.mxu0 %v606
  %1872 = vmatpush1.msra.mxu0 %v605
  %1873 = vmatprep.subr.mxu0 %v602
  %1874 = vmatpush1.msra.mxu0 %v601
  %1875 = vmatprep.subr.mxu0 %v598
  %1876 = vmatpush1.msra.mxu0 %v597
  %1877 = vmatprep.subr.mxu0 %v594
  %1878 = vmatpush1.msra.mxu0 %v593
  %1879 = vmatprep.subr.mxu0 %v590
  %1880 = vmatpush1.msra.mxu0 %v589
  %1881 = vmatprep.subr.mxu0 %v586
  %1882 = vmatpush1.msra.mxu0 %v585
  %1883 = vmatprep.subr.mxu0 %v582
  %1884 = vmatpush1.msra.mxu0 %v581
  %1885 = vmatprep.subr.mxu0 %v578
  %1886 = vmatpush1.msra.mxu0 %v577
  %1887 = vmatprep.subr.mxu0 %v574
  %1888 = vmatpush1.msra.mxu0 %v573
  %1889 = vmatprep.subr.mxu0 %v570
  %1890 = vmatpush1.msra.mxu0 %v569
  %1891 = vmatprep.subr.mxu0 %v566
  %1892 = vmatpush1.msra.mxu0 %v565
  %1893 = vmatprep.subr.mxu0 %v562
  %1894 = vmatpush1.msra.mxu0 %v561
  %1895 = vmatprep.subr.mxu0 %v558
  %1896 = vmatpush1.msra.mxu0 %v557
  %1897 = vmatprep.subr.mxu0 %v554
  %1898 = vmatpush1.msra.mxu0 %v553
  %1899 = vmatprep.subr.mxu0 %v550
  %1900 = vmatpush1.msra.mxu0 %v549
  %1901 = vmatprep.subr.mxu0 %v674
  %1902 = vmatpush2.msra.mxu0 %v673
  %1903 = vmatprep.subr.mxu0 %v670
  %1904 = vmatpush2.msra.mxu0 %v669
  %1905 = vmatprep.subr.mxu0 %v666
  %1906 = vmatpush2.msra.mxu0 %v665
  %1907 = vmatprep.subr.mxu0 %v662
  %1908 = vmatpush2.msra.mxu0 %v661
  %1909 = vmatprep.subr.mxu0 %v658
  %1910 = vmatpush2.msra.mxu0 %v657
  %1911 = vmatprep.subr.mxu0 %v654
  %1912 = vmatpush2.msra.mxu0 %v653
  %1913 = vmatprep.subr.mxu0 %v650
  %1914 = vmatpush2.msra.mxu0 %v649
  %1915 = vmatprep.subr.mxu0 %v646
  %1916 = vmatpush2.msra.mxu0 %v645
  %1917 = vmatprep.subr.mxu0 %v642
  %1918 = vmatpush2.msra.mxu0 %v641
  %1919 = vmatprep.subr.mxu0 %v638
  %1920 = vmatpush2.msra.mxu0 %v637
  %1921 = vmatprep.subr.mxu0 %v634
  %1922 = vmatpush2.msra.mxu0 %v633
  %1923 = vmatprep.subr.mxu0 %v630
  %1924 = vmatpush2.msra.mxu0 %v629
  %1925 = vmatprep.subr.mxu0 %v626
  %1926 = vmatpush2.msra.mxu0 %v625
  %1927 = vmatprep.subr.mxu0 %v622
  %1928 = vmatpush2.msra.mxu0 %v621
  %1929 = vmatprep.subr.mxu0 %v618
  %1930 = vmatpush2.msra.mxu0 %v617
  %1931 = vmatprep.subr.mxu0 %v614
  %1932 = vmatpush2.msra.mxu0 %v613
  %1933 = vmatprep.mubr.f32.mxu0 %v29
  %1934 = vmatmul.mubr.f32.gmra.mxu0 %v28
  %v1935 = vpop.f32.mrf.mxu0
  %v1936 = vadd.f32 %v1865, %v1935
  %v1937 = vpop.f32.mrf.mxu0
  %v1938 = vadd.f32 %v1867, %v1937
  %1939 = vdwg.mxu0
  %1940 = vmatprep.subr.mxu0 %v738
  %1941 = vmatpush1.msra.mxu0 %v737
  %1942 = vmatprep.subr.mxu0 %v734
  %1943 = vmatpush1.msra.mxu0 %v733
  %1944 = vmatprep.subr.mxu0 %v730
  %1945 = vmatpush1.msra.mxu0 %v729
  %1946 = vmatprep.subr.mxu0 %v726
  %1947 = vmatpush1.msra.mxu0 %v725
  %1948 = vmatprep.subr.mxu0 %v722
  %1949 = vmatpush1.msra.mxu0 %v721
  %1950 = vmatprep.subr.mxu0 %v718
  %1951 = vmatpush1.msra.mxu0 %v717
  %1952 = vmatprep.subr.mxu0 %v714
  %1953 = vmatpush1.msra.mxu0 %v713
  %1954 = vmatprep.subr.mxu0 %v710
  %1955 = vmatpush1.msra.mxu0 %v709
  %1956 = vmatprep.subr.mxu0 %v706
  %1957 = vmatpush1.msra.mxu0 %v705
  %1958 = vmatprep.subr.mxu0 %v702
  %1959 = vmatpush1.msra.mxu0 %v701
  %1960 = vmatprep.subr.mxu0 %v698
  %1961 = vmatpush1.msra.mxu0 %v697
  %1962 = vmatprep.subr.mxu0 %v694
  %1963 = vmatpush1.msra.mxu0 %v693
  %1964 = vmatprep.subr.mxu0 %v690
  %1965 = vmatpush1.msra.mxu0 %v689
  %1966 = vmatprep.subr.mxu0 %v686
  %1967 = vmatpush1.msra.mxu0 %v685
  %1968 = vmatprep.subr.mxu0 %v682
  %1969 = vmatpush1.msra.mxu0 %v681
  %1970 = vmatprep.subr.mxu0 %v678
  %1971 = vmatpush1.msra.mxu0 %v677
  %1972 = vmatprep.subr.mxu0 %v802
  %1973 = vmatpush2.msra.mxu0 %v801
  %1974 = vmatprep.subr.mxu0 %v798
  %1975 = vmatpush2.msra.mxu0 %v797
  %1976 = vmatprep.subr.mxu0 %v794
  %1977 = vmatpush2.msra.mxu0 %v793
  %1978 = vmatprep.subr.mxu0 %v790
  %1979 = vmatpush2.msra.mxu0 %v789
  %1980 = vmatprep.subr.mxu0 %v786
  %1981 = vmatpush2.msra.mxu0 %v785
  %1982 = vmatprep.subr.mxu0 %v782
  %1983 = vmatpush2.msra.mxu0 %v781
  %1984 = vmatprep.subr.mxu0 %v778
  %1985 = vmatpush2.msra.mxu0 %v777
  %1986 = vmatprep.subr.mxu0 %v774
  %1987 = vmatpush2.msra.mxu0 %v773
  %1988 = vmatprep.subr.mxu0 %v770
  %1989 = vmatpush2.msra.mxu0 %v769
  %1990 = vmatprep.subr.mxu0 %v766
  %1991 = vmatpush2.msra.mxu0 %v765
  %1992 = vmatprep.subr.mxu0 %v762
  %1993 = vmatpush2.msra.mxu0 %v761
  %1994 = vmatprep.subr.mxu0 %v758
  %1995 = vmatpush2.msra.mxu0 %v757
  %1996 = vmatprep.subr.mxu0 %v754
  %1997 = vmatpush2.msra.mxu0 %v753
  %1998 = vmatprep.subr.mxu0 %v750
  %1999 = vmatpush2.msra.mxu0 %v749
  %2000 = vmatprep.subr.mxu0 %v746
  %2001 = vmatpush2.msra.mxu0 %v745
  %2002 = vmatprep.subr.mxu0 %v742
  %2003 = vmatpush2.msra.mxu0 %v741
  %2004 = vmatprep.mubr.f32.mxu0 %v31
  %2005 = vmatmul.mubr.f32.gmra.mxu0 %v30
  %v2006 = vpop.f32.mrf.mxu0
  %v2007 = vadd.f32 %v1936, %v2006
  %v2008 = vpop.f32.mrf.mxu0
  %v2009 = vadd.f32 %v1938, %v2008
  %2010 = vdwg.mxu0
  %2011 = vmatprep.subr.mxu0 %v866
  %2012 = vmatpush1.msra.mxu0 %v865
  %2013 = vmatprep.subr.mxu0 %v862
  %2014 = vmatpush1.msra.mxu0 %v861
  %2015 = vmatprep.subr.mxu0 %v858
  %2016 = vmatpush1.msra.mxu0 %v857
  %2017 = vmatprep.subr.mxu0 %v854
  %2018 = vmatpush1.msra.mxu0 %v853
  %2019 = vmatprep.subr.mxu0 %v850
  %2020 = vmatpush1.msra.mxu0 %v849
  %2021 = vmatprep.subr.mxu0 %v846
  %2022 = vmatpush1.msra.mxu0 %v845
  %2023 = vmatprep.subr.mxu0 %v842
  %2024 = vmatpush1.msra.mxu0 %v841
  %2025 = vmatprep.subr.mxu0 %v838
  %2026 = vmatpush1.msra.mxu0 %v837
  %2027 = vmatprep.subr.mxu0 %v834
  %2028 = vmatpush1.msra.mxu0 %v833
  %2029 = vmatprep.subr.mxu0 %v830
  %2030 = vmatpush1.msra.mxu0 %v829
  %2031 = vmatprep.subr.mxu0 %v826
  %2032 = vmatpush1.msra.mxu0 %v825
  %2033 = vmatprep.subr.mxu0 %v822
  %2034 = vmatpush1.msra.mxu0 %v821
  %2035 = vmatprep.subr.mxu0 %v818
  %2036 = vmatpush1.msra.mxu0 %v817
  %2037 = vmatprep.subr.mxu0 %v814
  %2038 = vmatpush1.msra.mxu0 %v813
  %2039 = vmatprep.subr.mxu0 %v810
  %2040 = vmatpush1.msra.mxu0 %v809
  %2041 = vmatprep.subr.mxu0 %v806
  %2042 = vmatpush1.msra.mxu0 %v805
  %2043 = vmatprep.subr.mxu0 %v930
  %2044 = vmatpush2.msra.mxu0 %v929
  %2045 = vmatprep.subr.mxu0 %v926
  %2046 = vmatpush2.msra.mxu0 %v925
  %2047 = vmatprep.subr.mxu0 %v922
  %2048 = vmatpush2.msra.mxu0 %v921
  %2049 = vmatprep.subr.mxu0 %v918
  %2050 = vmatpush2.msra.mxu0 %v917
  %2051 = vmatprep.subr.mxu0 %v914
  %2052 = vmatpush2.msra.mxu0 %v913
  %2053 = vmatprep.subr.mxu0 %v910
  %2054 = vmatpush2.msra.mxu0 %v909
  %2055 = vmatprep.subr.mxu0 %v906
  %2056 = vmatpush2.msra.mxu0 %v905
  %2057 = vmatprep.subr.mxu0 %v902
  %2058 = vmatpush2.msra.mxu0 %v901
  %2059 = vmatprep.subr.mxu0 %v898
  %2060 = vmatpush2.msra.mxu0 %v897
  %2061 = vmatprep.subr.mxu0 %v894
  %2062 = vmatpush2.msra.mxu0 %v893
  %2063 = vmatprep.subr.mxu0 %v890
  %2064 = vmatpush2.msra.mxu0 %v889
  %2065 = vmatprep.subr.mxu0 %v886
  %2066 = vmatpush2.msra.mxu0 %v885
  %2067 = vmatprep.subr.mxu0 %v882
  %2068 = vmatpush2.msra.mxu0 %v881
  %2069 = vmatprep.subr.mxu0 %v878
  %2070 = vmatpush2.msra.mxu0 %v877
  %2071 = vmatprep.subr.mxu0 %v874
  %2072 = vmatpush2.msra.mxu0 %v873
  %2073 = vmatprep.subr.mxu0 %v870
  %2074 = vmatpush2.msra.mxu0 %v869
  %2075 = vmatprep.mubr.f32.mxu0 %v33
  %2076 = vmatmul.mubr.f32.gmra.mxu0 %v32
  %v2077 = vpop.f32.mrf.mxu0
  %v2078 = vadd.f32 %v2007, %v2077
  %v2079 = vpop.f32.mrf.mxu0
  %v2080 = vadd.f32 %v2009, %v2079
  %2081 = vdwg.mxu0
  %2082 = vmatprep.subr.mxu0 %v994
  %2083 = vmatpush1.msra.mxu0 %v993
  %2084 = vmatprep.subr.mxu0 %v990
  %2085 = vmatpush1.msra.mxu0 %v989
  %2086 = vmatprep.subr.mxu0 %v986
  %2087 = vmatpush1.msra.mxu0 %v985
  %2088 = vmatprep.subr.mxu0 %v982
  %2089 = vmatpush1.msra.mxu0 %v981
  %2090 = vmatprep.subr.mxu0 %v978
  %2091 = vmatpush1.msra.mxu0 %v977
  %2092 = vmatprep.subr.mxu0 %v974
  %2093 = vmatpush1.msra.mxu0 %v973
  %2094 = vmatprep.subr.mxu0 %v970
  %2095 = vmatpush1.msra.mxu0 %v969
  %2096 = vmatprep.subr.mxu0 %v966
  %2097 = vmatpush1.msra.mxu0 %v965
  %2098 = vmatprep.subr.mxu0 %v962
  %2099 = vmatpush1.msra.mxu0 %v961
  %2100 = vmatprep.subr.mxu0 %v958
  %2101 = vmatpush1.msra.mxu0 %v957
  %2102 = vmatprep.subr.mxu0 %v954
  %2103 = vmatpush1.msra.mxu0 %v953
  %2104 = vmatprep.subr.mxu0 %v950
  %2105 = vmatpush1.msra.mxu0 %v949
  %2106 = vmatprep.subr.mxu0 %v946
  %2107 = vmatpush1.msra.mxu0 %v945
  %2108 = vmatprep.subr.mxu0 %v942
  %2109 = vmatpush1.msra.mxu0 %v941
  %2110 = vmatprep.subr.mxu0 %v938
  %2111 = vmatpush1.msra.mxu0 %v937
  %2112 = vmatprep.subr.mxu0 %v934
  %2113 = vmatpush1.msra.mxu0 %v933
  %2114 = vmatprep.subr.mxu0 0.0
  %2115 = vmatpush2.msra.mxu0 0.0
  %2116 = vmatprep.subr.mxu0 0.0
  %2117 = vmatpush2.msra.mxu0 0.0
  %2118 = vmatprep.subr.mxu0 0.0
  %2119 = vmatpush2.msra.mxu0 0.0
  %2120 = vmatprep.subr.mxu0 0.0
  %2121 = vmatpush2.msra.mxu0 0.0
  %2122 = vmatprep.subr.mxu0 0.0
  %2123 = vmatpush2.msra.mxu0 0.0
  %2124 = vmatprep.subr.mxu0 0.0
  %2125 = vmatpush2.msra.mxu0 0.0
  %2126 = vmatprep.subr.mxu0 0.0
  %2127 = vmatpush2.msra.mxu0 0.0
  %2128 = vmatprep.subr.mxu0 0.0
  %2129 = vmatpush2.msra.mxu0 0.0
  %2130 = vmatprep.subr.mxu0 0.0
  %2131 = vmatpush2.msra.mxu0 0.0
  %2132 = vmatprep.subr.mxu0 0.0
  %2133 = vmatpush2.msra.mxu0 0.0
  %2134 = vmatprep.subr.mxu0 0.0
  %2135 = vmatpush2.msra.mxu0 0.0
  %2136 = vmatprep.subr.mxu0 0.0
  %2137 = vmatpush2.msra.mxu0 0.0
  %2138 = vmatprep.subr.mxu0 0.0
  %2139 = vmatpush2.msra.mxu0 0.0
  %2140 = vmatprep.subr.mxu0 0.0
  %2141 = vmatpush2.msra.mxu0 0.0
  %2142 = vmatprep.subr.mxu0 0.0
  %2143 = vmatpush2.msra.mxu0 0.0
  %2144 = vmatprep.subr.mxu0 0.0
  %2145 = vmatpush2.msra.mxu0 0.0
  %2146 = vmatprep.mubr.f32.mxu0 0.0
  %2147 = vmatmul.mubr.f32.gmra.mxu0 %v34
  %v2148 = vpop.f32.mrf.mxu0
  %v2149 = vadd.f32 %v2078, %v2148
  %v2150 = vpop.f32.mrf.mxu0
  %v2151 = vadd.f32 %v2080, %v2150
  %2152 = vdwg.mxu0
  %v2153 = vmax.f32 %v1581, 0.0
  %v2154 = vmax.f32 %v1583, 0.0
  %v2155 = vmax.f32 %v2149, 0.0
  %v2156 = vmax.f32 %v2151, 0.0
  %v2157 = vld [vmem:[%s3] sm:$0xff]
  %v2158 = vld [vmem:[%s3 + $0x8] sm:$0xff]
  %v2159 = vld [vmem:[%s3 + $0x10] sm:$0xff]
  %v2160 = vld [vmem:[%s3 + $0x18] sm:$0xff]
  %v2161 = vld [vmem:[%s3 + $0x20] sm:$0xff]
  %v2162 = vld [vmem:[%s3 + $0x28] sm:$0xff]
  %v2163 = vld [vmem:[%s3 + $0x30] sm:$0xff]
  %v2164 = vld [vmem:[%s3 + $0x38] sm:$0xff]
  %v2165 = vld [vmem:[%s3 + $0x40] sm:$0xff]
  %v2166 = vld [vmem:[%s3 + $0x48] sm:$0xff]
  %v2167 = vld [vmem:[%s3 + $0x50] sm:$0xff]
  %v2168 = vld [vmem:[%s3 + $0x58] sm:$0xff]
  %v2169 = vld [vmem:[%s3 + $0x60] sm:$0xff]
  %v2170 = vld [vmem:[%s3 + $0x68] sm:$0xff]
  %v2171 = vld [vmem:[%s3 + $0x70] sm:$0xff]
  %v2172 = vld [vmem:[%s3 + $0x78] sm:$0xff]
  %v2173 = vld [vmem:[%s3 + $0x80] sm:$0xff]
  %v2174 = vld [vmem:[%s3 + $0x88] sm:$0xff]
  %v2175 = vld [vmem:[%s3 + $0x90] sm:$0xff]
  %v2176 = vld [vmem:[%s3 + $0x98] sm:$0xff]
  %v2177 = vld [vmem:[%s3 + $0xa0] sm:$0xff]
  %v2178 = vld [vmem:[%s3 + $0xa8] sm:$0xff]
  %v2179 = vld [vmem:[%s3 + $0xb0] sm:$0xff]
  %v2180 = vld [vmem:[%s3 + $0xb8] sm:$0xff]
  %v2181 = vld [vmem:[%s3 + $0xc0] sm:$0xff]
  %v2182 = vld [vmem:[%s3 + $0xc8] sm:$0xff]
  %v2183 = vld [vmem:[%s3 + $0xd0] sm:$0xff]
  %v2184 = vld [vmem:[%s3 + $0xd8] sm:$0xff]
  %v2185 = vld [vmem:[%s3 + $0xe0] sm:$0xff]
  %v2186 = vld [vmem:[%s3 + $0xe8] sm:$0xff]
  %v2187 = vld [vmem:[%s3 + $0xf0] sm:$0xff]
  %v2188 = vld [vmem:[%s3 + $0xf8] sm:$0xff]
  %v2189 = vld [vmem:[%s3 + $0x100] sm:$0xff]
  %v2190 = vld [vmem:[%s3 + $0x108] sm:$0xff]
  %v2191 = vld [vmem:[%s3 + $0x110] sm:$0xff]
  %v2192 = vld [vmem:[%s3 + $0x118] sm:$0xff]
  %v2193 = vld [vmem:[%s3 + $0x120] sm:$0xff]
  %v2194 = vld [vmem:[%s3 + $0x128] sm:$0xff]
  %v2195 = vld [vmem:[%s3 + $0x130] sm:$0xff]
  %v2196 = vld [vmem:[%s3 + $0x138] sm:$0xff]
  %v2197 = vld [vmem:[%s3 + $0x140] sm:$0xff]
  %v2198 = vld [vmem:[%s3 + $0x148] sm:$0xff]
  %v2199 = vld [vmem:[%s3 + $0x150] sm:$0xff]
  %v2200 = vld [vmem:[%s3 + $0x158] sm:$0xff]
  %v2201 = vld [vmem:[%s3 + $0x160] sm:$0xff]
  %v2202 = vld [vmem:[%s3 + $0x168] sm:$0xff]
  %v2203 = vld [vmem:[%s3 + $0x170] sm:$0xff]
  %v2204 = vld [vmem:[%s3 + $0x178] sm:$0xff]
  %v2205 = vld [vmem:[%s3 + $0x180] sm:$0xff]
  %v2206 = vld [vmem:[%s3 + $0x188] sm:$0xff]
  %v2207 = vld [vmem:[%s3 + $0x190] sm:$0xff]
  %v2208 = vld [vmem:[%s3 + $0x198] sm:$0xff]
  %v2209 = vld [vmem:[%s3 + $0x1a0] sm:$0xff]
  %v2210 = vld [vmem:[%s3 + $0x1a8] sm:$0xff]
  %v2211 = vld [vmem:[%s3 + $0x1b0] sm:$0xff]
  %v2212 = vld [vmem:[%s3 + $0x1b8] sm:$0xff]
  %v2213 = vld [vmem:[%s3 + $0x1c0] sm:$0xff]
  %v2214 = vld [vmem:[%s3 + $0x1c8] sm:$0xff]
  %v2215 = vld [vmem:[%s3 + $0x1d0] sm:$0xff]
  %v2216 = vld [vmem:[%s3 + $0x1d8] sm:$0xff]
  %v2217 = vld [vmem:[%s3 + $0x1e0] sm:$0xff]
  %v2218 = vld [vmem:[%s3 + $0x1e8] sm:$0xff]
  %v2219 = vld [vmem:[%s3 + $0x1f0] sm:$0xff]
  %v2220 = vld [vmem:[%s3 + $0x1f8] sm:$0xff]
  %v2221 = vld [vmem:[%s4] sm:$0x1]
  %v2223 = vlaneseq
  %v2224 = vshrl.u32 %v2223, 7
  %v2225 = vsub.s32 0, %v2224
  %v2226 = vrot.slane %v2221, %v2225
  %2228 = vmatprep.subr.mxu0 0.0
  %2229 = vmatpush1.msra.mxu0 %v2172
  %2230 = vmatprep.subr.mxu0 0.0
  %2231 = vmatpush1.msra.mxu0 %v2171
  %2232 = vmatprep.subr.mxu0 0.0
  %2233 = vmatpush1.msra.mxu0 %v2170
  %2234 = vmatprep.subr.mxu0 0.0
  %2235 = vmatpush1.msra.mxu0 %v2169
  %2236 = vmatprep.subr.mxu0 0.0
  %2237 = vmatpush1.msra.mxu0 %v2168
  %2238 = vmatprep.subr.mxu0 0.0
  %2239 = vmatpush1.msra.mxu0 %v2167
  %2240 = vmatprep.subr.mxu0 0.0
  %2241 = vmatpush1.msra.mxu0 %v2166
  %2242 = vmatprep.subr.mxu0 0.0
  %2243 = vmatpush1.msra.mxu0 %v2165
  %2244 = vmatprep.subr.mxu0 0.0
  %2245 = vmatpush1.msra.mxu0 %v2164
  %2246 = vmatprep.subr.mxu0 0.0
  %2247 = vmatpush1.msra.mxu0 %v2163
  %2248 = vmatprep.subr.mxu0 0.0
  %2249 = vmatpush1.msra.mxu0 %v2162
  %2250 = vmatprep.subr.mxu0 0.0
  %2251 = vmatpush1.msra.mxu0 %v2161
  %2252 = vmatprep.subr.mxu0 0.0
  %2253 = vmatpush1.msra.mxu0 %v2160
  %2254 = vmatprep.subr.mxu0 0.0
  %2255 = vmatpush1.msra.mxu0 %v2159
  %2256 = vmatprep.subr.mxu0 0.0
  %2257 = vmatpush1.msra.mxu0 %v2158
  %2258 = vmatprep.subr.mxu0 0.0
  %2259 = vmatpush1.msra.mxu0 %v2157
  %2260 = vmatprep.subr.mxu0 0.0
  %2261 = vmatpush2.msra.mxu0 %v2188
  %2262 = vmatprep.subr.mxu0 0.0
  %2263 = vmatpush2.msra.mxu0 %v2187
  %2264 = vmatprep.subr.mxu0 0.0
  %2265 = vmatpush2.msra.mxu0 %v2186
  %2266 = vmatprep.subr.mxu0 0.0
  %2267 = vmatpush2.msra.mxu0 %v2185
  %2268 = vmatprep.subr.mxu0 0.0
  %2269 = vmatpush2.msra.mxu0 %v2184
  %2270 = vmatprep.subr.mxu0 0.0
  %2271 = vmatpush2.msra.mxu0 %v2183
  %2272 = vmatprep.subr.mxu0 0.0
  %2273 = vmatpush2.msra.mxu0 %v2182
  %2274 = vmatprep.subr.mxu0 0.0
  %2275 = vmatpush2.msra.mxu0 %v2181
  %2276 = vmatprep.subr.mxu0 0.0
  %2277 = vmatpush2.msra.mxu0 %v2180
  %2278 = vmatprep.subr.mxu0 0.0
  %2279 = vmatpush2.msra.mxu0 %v2179
  %2280 = vmatprep.subr.mxu0 0.0
  %2281 = vmatpush2.msra.mxu0 %v2178
  %2282 = vmatprep.subr.mxu0 0.0
  %2283 = vmatpush2.msra.mxu0 %v2177
  %2284 = vmatprep.subr.mxu0 0.0
  %2285 = vmatpush2.msra.mxu0 %v2176
  %2286 = vmatprep.subr.mxu0 0.0
  %2287 = vmatpush2.msra.mxu0 %v2175
  %2288 = vmatprep.subr.mxu0 0.0
  %2289 = vmatpush2.msra.mxu0 %v2174
  %2290 = vmatprep.subr.mxu0 0.0
  %2291 = vmatpush2.msra.mxu0 %v2173
  %2292 = vmatprep.mubr.f32.mxu0 %v2154
  %2293 = vmatmul.mubr.f32.gmra.mxu0 %v2153
  %v2294 = vpop.f32.mrf.mxu0
  %v2295 = vadd.f32 %v2226, %v2294
  %v2296 = vpop.f32.mrf.mxu0
  %2297 = vdwg.mxu0
  %2298 = vmatprep.subr.mxu0 0.0
  %2299 = vmatpush1.msra.mxu0 %v2204
  %2300 = vmatprep.subr.mxu0 0.0
  %2301 = vmatpush1.msra.mxu0 %v2203
  %2302 = vmatprep.subr.mxu0 0.0
  %2303 = vmatpush1.msra.mxu0 %v2202
  %2304 = vmatprep.subr.mxu0 0.0
  %2305 = vmatpush1.msra.mxu0 %v2201
  %2306 = vmatprep.subr.mxu0 0.0
  %2307 = vmatpush1.msra.mxu0 %v2200
  %2308 = vmatprep.subr.mxu0 0.0
  %2309 = vmatpush1.msra.mxu0 %v2199
  %2310 = vmatprep.subr.mxu0 0.0
  %2311 = vmatpush1.msra.mxu0 %v2198
  %2312 = vmatprep.subr.mxu0 0.0
  %2313 = vmatpush1.msra.mxu0 %v2197
  %2314 = vmatprep.subr.mxu0 0.0
  %2315 = vmatpush1.msra.mxu0 %v2196
  %2316 = vmatprep.subr.mxu0 0.0
  %2317 = vmatpush1.msra.mxu0 %v2195
  %2318 = vmatprep.subr.mxu0 0.0
  %2319 = vmatpush1.msra.mxu0 %v2194
  %2320 = vmatprep.subr.mxu0 0.0
  %2321 = vmatpush1.msra.mxu0 %v2193
  %2322 = vmatprep.subr.mxu0 0.0
  %2323 = vmatpush1.msra.mxu0 %v2192
  %2324 = vmatprep.subr.mxu0 0.0
  %2325 = vmatpush1.msra.mxu0 %v2191
  %2326 = vmatprep.subr.mxu0 0.0
  %2327 = vmatpush1.msra.mxu0 %v2190
  %2328 = vmatprep.subr.mxu0 0.0
  %2329 = vmatpush1.msra.mxu0 %v2189
  %2330 = vmatprep.subr.mxu0 0.0
  %2331 = vmatpush2.msra.mxu0 %v2220
  %2332 = vmatprep.subr.mxu0 0.0
  %2333 = vmatpush2.msra.mxu0 %v2219
  %2334 = vmatprep.subr.mxu0 0.0
  %2335 = vmatpush2.msra.mxu0 %v2218
  %2336 = vmatprep.subr.mxu0 0.0
  %2337 = vmatpush2.msra.mxu0 %v2217
  %2338 = vmatprep.subr.mxu0 0.0
  %2339 = vmatpush2.msra.mxu0 %v2216
  %2340 = vmatprep.subr.mxu0 0.0
  %2341 = vmatpush2.msra.mxu0 %v2215
  %2342 = vmatprep.subr.mxu0 0.0
  %2343 = vmatpush2.msra.mxu0 %v2214
  %2344 = vmatprep.subr.mxu0 0.0
  %2345 = vmatpush2.msra.mxu0 %v2213
  %2346 = vmatprep.subr.mxu0 0.0
  %2347 = vmatpush2.msra.mxu0 %v2212
  %2348 = vmatprep.subr.mxu0 0.0
  %2349 = vmatpush2.msra.mxu0 %v2211
  %2350 = vmatprep.subr.mxu0 0.0
  %2351 = vmatpush2.msra.mxu0 %v2210
  %2352 = vmatprep.subr.mxu0 0.0
  %2353 = vmatpush2.msra.mxu0 %v2209
  %2354 = vmatprep.subr.mxu0 0.0
  %2355 = vmatpush2.msra.mxu0 %v2208
  %2356 = vmatprep.subr.mxu0 0.0
  %2357 = vmatpush2.msra.mxu0 %v2207
  %2358 = vmatprep.subr.mxu0 0.0
  %2359 = vmatpush2.msra.mxu0 %v2206
  %2360 = vmatprep.subr.mxu0 0.0
  %2361 = vmatpush2.msra.mxu0 %v2205
  %2362 = vmatprep.mubr.f32.mxu0 %v2156
  %2363 = vmatmul.mubr.f32.gmra.mxu0 %v2155
  %v2364 = vpop.f32.mrf.mxu0
  %v2365 = vadd.f32 %v2295, %v2364
  %v2366 = vpop.f32.mrf.mxu0
  %2367 = vdwg.mxu0
  %2368 = vst [vmem:[%s5] sm:$0xff] %v2365
  // Predicated region
  $region22: #{a2c_forward.9} parent=0 // pred_check
    _
  $region23: #{a2c_forward.9} parent=0 // pred_check_branch
    %2370 = sbr.rel (0) target = $region25
  $region24: #{a2c_forward.9} parent=0 // pred_region
    _
  $region25: #{a2c_forward.9} parent=0 // pred_fallthru
    _
  // Predicated region
  $region26: #{a2c_forward.9} parent=0 // pred_check
    _
  $region27: #{a2c_forward.9} parent=0 // pred_check_branch
    %2372 = sbr.rel (0) target = $region29
  $region28: #{a2c_forward.9} parent=0 // pred_region
    _
  $region29: #{a2c_forward.9} parent=0 // pred_fallthru
    _

</llo_original>
